<compile_context>
chip_gen: v7x
topology: tpu7x:2x2x1
jax: 0.10.0
libtpu: 0.0.40
codegen_flags: <defaults>
</compile_context>

<pallas_src>
import math
import functools

import jax
import jax.numpy as jnp
from jax.experimental import pallas as pl
from jax.experimental.pallas import tpu as pltpu


def _mha_kernel(q_ref, k_ref, v_ref, wq_ref, wk_ref, wv_ref, wo_ref, bo_ref,
                o_ref, ctx_scr, *, n_heads, head_dim):
    """One batch block (b_blk batch elements) per grid step.

    q_ref: (b_blk, Sq, E) bf16        k_ref / v_ref: (b_blk, Sk, E) bf16
    wq/wk/wv_ref: (E, E) bf16 block-diagonal kron(I_H, W.T); the 1/sqrt(d)
                  score scale is pre-folded into wq.
    wo_ref: (E, E) bf16 pre-transposed      bo_ref: (1, E) f32
    o_ref: (b_blk, Sq, E)               ctx_scr: (b_blk*Sq, E) bf16 scratch
    """
    f32, bf16 = jnp.float32, jnp.bfloat16
    b_blk, sq, E = q_ref.shape
    sk = k_ref.shape[1]
    d = head_dim

    # Fused lane-dense projections on the whole (b_blk*S, E) slab: one
    # (rows, E) @ (E, E) matmul each, bf16 operands, f32 MXU accumulation.
    q2 = q_ref[...].reshape(b_blk * sq, E)
    k2 = k_ref[...].reshape(b_blk * sk, E)
    v2 = v_ref[...].reshape(b_blk * sk, E)
    qp = jnp.dot(q2, wq_ref[...], preferred_element_type=f32).astype(bf16)
    kp = jnp.dot(k2, wk_ref[...], preferred_element_type=f32).astype(bf16)
    vp = jnp.dot(v2, wv_ref[...], preferred_element_type=f32).astype(bf16)

    # Attention core: static (batch, head) loops over small static extents;
    # contraction over the last axes so no transpose is materialized. Each
    # head stores its context directly into the VMEM scratch at lane offset
    # h*d, bounding the per-head temporaries' live ranges.
    qk_dims = (((1,), (1,)), ((), ()))          # a @ b.T via dimension numbers
    for b in range(b_blk):
        qr = slice(b * sq, (b + 1) * sq)
        kr = slice(b * sk, (b + 1) * sk)
        for h in range(n_heads):
            cs = slice(h * d, (h + 1) * d)
            qh = qp[qr, cs]                     # (Sq, d)
            kh = kp[kr, cs]                     # (Sk, d)
            vh = vp[kr, cs]                     # (Sk, d)

            s = jax.lax.dot_general(qh, kh, qk_dims,
                                    preferred_element_type=f32)   # (Sq, Sk)
            # TODO(synk): mask != None path (masked_fill with -1e20) omitted.
            m = jnp.max(s, axis=-1, keepdims=True)
            e = jnp.exp(s - m)                  # f32 exp on the EUP
            # (on v6e/v7x a bf16 exp roughly doubles EUP throughput if the
            #  EUP ever becomes the saturated slot; kept f32 for accuracy)
            r = pl.reciprocal(jnp.sum(e, axis=-1, keepdims=True), approx=True)
            p = (e * r).astype(bf16)
            ctx_scr[qr, cs] = jnp.dot(
                p, vh, preferred_element_type=f32).astype(bf16)

    # Single fused lane-dense output projection + bias from the scratch.
    out = jnp.dot(ctx_scr[...], wo_ref[...], preferred_element_type=f32)
    out = out + bo_ref[...]
    o_ref[...] = out.reshape(b_blk, sq, E).astype(o_ref.dtype)


def _build_mha_call(B, Sq, Sk, E, n_heads, head_dim, b_blk, out_dtype,
                    single_buffer_weights):
    kernel = functools.partial(_mha_kernel, n_heads=n_heads, head_dim=head_dim)

    wkw = {}
    if single_buffer_weights:
        # Weights/bias are grid-invariant: one VMEM buffer is enough
        # (default double-buffering would waste ~2x their VMEM footprint).
        wkw = dict(pipeline_mode=pl.Buffered(buffer_count=1))
    w_spec = pl.BlockSpec((E, E), lambda bi: (0, 0), **wkw)
    b_spec = pl.BlockSpec((1, E), lambda bi: (0, 0), **wkw)

    grid_spec = pltpu.PrefetchScalarGridSpec(
        num_scalar_prefetch=0,
        grid=(B // b_blk,),
        in_specs=[
            pl.BlockSpec((b_blk, Sq, E), lambda bi: (bi, 0, 0)),
            pl.BlockSpec((b_blk, Sk, E), lambda bi: (bi, 0, 0)),
            pl.BlockSpec((b_blk, Sk, E), lambda bi: (bi, 0, 0)),
            w_spec, w_spec, w_spec, w_spec, b_spec,
        ],
        out_specs=pl.BlockSpec((b_blk, Sq, E), lambda bi: (bi, 0, 0)),
        scratch_shapes=[pltpu.VMEM((b_blk * Sq, E), jnp.bfloat16)],
    )

    flops = 2 * B * (Sq * E * E + 2 * Sk * E * E            # q/k/v projections
                     + n_heads * 2 * Sq * Sk * head_dim     # QK^T + PV
                     + Sq * E * E)                          # output projection
    transcendentals = B * n_heads * Sq * Sk
    bytes_accessed = (2 * B * (Sq + 2 * Sk) * E              # bf16 activations
                      + 2 * 4 * E * E + 4 * E                # weights + bias
                      + jnp.dtype(out_dtype).itemsize * B * Sq * E)

    return pl.pallas_call(
        kernel,
        out_shape=jax.ShapeDtypeStruct((B, Sq, E), out_dtype),
        grid_spec=grid_spec,
        compiler_params=pltpu.CompilerParams(
            dimension_semantics=("parallel",)),
        cost_estimate=pl.CostEstimate(flops=flops,
                                      transcendentals=transcendentals,
                                      bytes_accessed=bytes_accessed),
    )


def prepare_params(params, *, n_heads):
    """One-time layout plumbing (call at module init, NOT per forward):
    block-diagonal pre-transposed projection weights (kron(I_H, W.T)) with the
    1/sqrt(d) score scale folded into wq, pre-transposed output weight, and
    bf16 casts (half the HBM->VMEM bytes, native MXU dtype)."""
    wq, wk, wv, wo, bo = params
    d = wq.shape[0]
    E = n_heads * d
    assert wo.shape == (E, E) and bo.shape == (E,)
    scale = 1.0 / math.sqrt(d)
    eye = jnp.eye(n_heads, dtype=wq.dtype)
    wq_bd_t = jnp.kron(eye, (wq * scale).T).astype(jnp.bfloat16)   # (E, E)
    wk_bd_t = jnp.kron(eye, wk.T).astype(jnp.bfloat16)             # (E, E)
    wv_bd_t = jnp.kron(eye, wv.T).astype(jnp.bfloat16)             # (E, E)
    wo_t = wo.T.astype(jnp.bfloat16)                               # (E, E)
    bo2 = bo.reshape(1, E).astype(jnp.float32)
    # TODO(synk): on v5e (128-wide MXU, ~197 TF/s bf16) benchmark the
    #             alternative (S*H, d) @ (d, d) shared-weight projections:
    #             the kron form does H x the minimal projection FLOPs.
    return (wq_bd_t, wk_bd_t, wv_bd_t, wo_t, bo2)


def multi_head_attention(key_t, query_t, value_t, prepped_params, *, n_heads,
                         b_blk=None, out_dtype=jnp.float32):
    """key_t/value_t: (B, Sk, E), query_t: (B, Sq, E)  ->  (B, Sq, E)."""
    B, Sk, E = key_t.shape
    Sq = query_t.shape[1]
    head_dim = E // n_heads

    if b_blk is None:
        # Enough rows per grid step to fill the 16 sublanes of a bf16 vreg
        # and amortize the ~0.35 us per-step overhead; cap per-step bytes and
        # keep b_blk a divisor of B.
        b_blk = max(1, min(B, -(-16 // Sq)))
        max_rows = max(1, (1 << 20) // (2 * E))      # ~1 MiB of bf16 rows
        b_blk = max(1, min(b_blk, max(1, max_rows // max(Sq, Sk))))
        while B % b_blk:
            b_blk -= 1
    assert B % b_blk == 0

    q_bf = query_t.astype(jnp.bfloat16)
    k_bf = key_t.astype(jnp.bfloat16)
    v_bf = value_t.astype(jnp.bfloat16)
    args = (q_bf, k_bf, v_bf) + tuple(prepped_params)

    try:
        call = _build_mha_call(B, Sq, Sk, E, n_heads, head_dim, b_blk,
                               out_dtype, single_buffer_weights=True)
        return call(*args)
    except Exception:
        # pipeline_mode=pl.Buffered(1) not supported on this jax version:
        # fall back to default double-buffered weight specs.
        call = _build_mha_call(B, Sq, Sk, E, n_heads, head_dim, b_blk,
                               out_dtype, single_buffer_weights=False)
        return call(*args)


def _reference(key_t, query_t, value_t, params, n_heads):
    """Pure-JAX f32 transcription of the PyTorch forward (mask=None)."""
    B, Sk, E = key_t.shape
    Sq = query_t.shape[1]
    d = E // n_heads
    wq, wk, wv, wo, bo = params
    k = key_t.reshape(B, Sk, n_heads, d)
    q = query_t.reshape(B, Sq, n_heads, d)
    v = value_t.reshape(B, Sk, n_heads, d)
    kp = k @ wk.T
    qp = q @ wq.T
    vp = v @ wv.T
    qp = qp.transpose(0, 2, 1, 3)
    kp = kp.transpose(0, 2, 1, 3)
    vp = vp.transpose(0, 2, 1, 3)
    prod = (qp @ kp.transpose(0, 1, 3, 2)) / math.sqrt(d)
    sc = jax.nn.softmax(prod, axis=-1)
    ctx = sc @ vp
    concat = ctx.transpose(0, 2, 1, 3).reshape(B, Sq, E)
    return concat @ wo.T + bo


if __name__ == "__main__":
    # Small shapes consistent with the module: embed_dim divisible by n_heads,
    # E >= 128 so every operand/output block is lane-dense (unmasked stores).
    B, Sk, Sq = 2, 16, 8
    EMBED_DIM, N_HEADS = 128, 8
    D = EMBED_DIM // N_HEADS

    root = jax.random.PRNGKey(0)
    k_in, k_q, k_v, k_wq, k_wk, k_wv, k_wo, k_bo = jax.random.split(root, 8)

    key_t = jax.random.normal(k_in, (B, Sk, EMBED_DIM), jnp.float32)
    query_t = jax.random.normal(k_q, (B, Sq, EMBED_DIM), jnp.float32)
    value_t = jax.random.normal(k_v, (B, Sk, EMBED_DIM), jnp.float32)

    # nn.Linear-style init: U(-1/sqrt(fan_in), 1/sqrt(fan_in)), deterministic.
    def lin_init(k, shape, fan_in):
        bound = 1.0 / math.sqrt(fan_in)
        return jax.random.uniform(k, shape, jnp.float32, -bound, bound)

    wq = lin_init(k_wq, (D, D), D)                          # query_matrix.weight
    wk = lin_init(k_wk, (D, D), D)                          # key_matrix.weight
    wv = lin_init(k_wv, (D, D), D)                          # value_matrix.weight
    wo = lin_init(k_wo, (EMBED_DIM, EMBED_DIM), EMBED_DIM)  # out.weight
    bo = lin_init(k_bo, (EMBED_DIM,), EMBED_DIM)            # out.bias
    params = (wq, wk, wv, wo, bo)

    prepped = prepare_params(params, n_heads=N_HEADS)       # once, at "init"

    out = multi_head_attention(key_t, query_t, value_t, prepped,
                               n_heads=N_HEADS)
    out = jax.block_until_ready(out)

    ref = _reference(key_t, query_t, value_t, params, N_HEADS)
    assert out.shape == (B, Sq, EMBED_DIM)
    # bf16 MXU path + approx softmax reciprocal -> relaxed tolerance vs f32 ref.
    max_err = float(jnp.max(jnp.abs(out - ref)))
    assert jnp.allclose(out, ref, atol=2e-2, rtol=2e-2), (
        f"mismatch vs reference (max abs err {max_err})")

    print("KERNEL_OK")
</pallas_src>

<mosaic_0001>
module attributes {stable_mosaic.version = 11 : i64} {
  func.func @_mha_kernel(%arg0: i32, %arg1: memref<2x8x128xbf16, #tpu.memory_space<vmem>>, %arg2: memref<2x16x128xbf16, #tpu.memory_space<vmem>>, %arg3: memref<2x16x128xbf16, #tpu.memory_space<vmem>>, %arg4: memref<128x128xbf16, #tpu.memory_space<vmem>>, %arg5: memref<128x128xbf16, #tpu.memory_space<vmem>>, %arg6: memref<128x128xbf16, #tpu.memory_space<vmem>>, %arg7: memref<128x128xbf16, #tpu.memory_space<vmem>>, %arg8: memref<1x128xf32, #tpu.memory_space<vmem>>, %arg9: memref<2x8x128xf32, #tpu.memory_space<vmem>>, %arg10: memref<16x128xbf16, #tpu.memory_space<vmem>>) attributes {dimension_semantics = [#tpu.dimension_semantics<parallel>], iteration_bounds = array<i64: 1>, scalar_prefetch = 0 : i64, scratch_operands = 1 : i64, tpu.core_type = #tpu.core_type<tc>, window_params = [{transform_indices = @transform_0, window_bounds = array<i64: 2, 8, 128>}, {transform_indices = @transform_1, window_bounds = array<i64: 2, 16, 128>}, {transform_indices = @transform_2, window_bounds = array<i64: 2, 16, 128>}, {pipeline_mode = #tpu.pipeline_mode<synchronous>, transform_indices = @transform_3, window_bounds = array<i64: 128, 128>}, {pipeline_mode = #tpu.pipeline_mode<synchronous>, transform_indices = @transform_4, window_bounds = array<i64: 128, 128>}, {pipeline_mode = #tpu.pipeline_mode<synchronous>, transform_indices = @transform_5, window_bounds = array<i64: 128, 128>}, {pipeline_mode = #tpu.pipeline_mode<synchronous>, transform_indices = @transform_6, window_bounds = array<i64: 128, 128>}, {pipeline_mode = #tpu.pipeline_mode<synchronous>, transform_indices = @transform_7, window_bounds = array<i64: 1, 128>}, {transform_indices = @transform_8, window_bounds = array<i64: 2, 8, 128>}]} {
    %c0 = arith.constant 0 : index
    %c0_0 = arith.constant 0 : index
    %c0_1 = arith.constant 0 : index
    %0 = vector.load %arg1[%c0, %c0_0, %c0_1] : memref<2x8x128xbf16, #tpu.memory_space<vmem>>, vector<2x8x128xbf16>
    %1 = vector.shape_cast %0 : vector<2x8x128xbf16> to vector<16x128xbf16>
    %c0_2 = arith.constant 0 : index
    %c0_3 = arith.constant 0 : index
    %c0_4 = arith.constant 0 : index
    %2 = vector.load %arg2[%c0_2, %c0_3, %c0_4] : memref<2x16x128xbf16, #tpu.memory_space<vmem>>, vector<2x16x128xbf16>
    %3 = vector.shape_cast %2 : vector<2x16x128xbf16> to vector<32x128xbf16>
    %c0_5 = arith.constant 0 : index
    %c0_6 = arith.constant 0 : index
    %c0_7 = arith.constant 0 : index
    %4 = vector.load %arg3[%c0_5, %c0_6, %c0_7] : memref<2x16x128xbf16, #tpu.memory_space<vmem>>, vector<2x16x128xbf16>
    %5 = vector.shape_cast %4 : vector<2x16x128xbf16> to vector<32x128xbf16>
    %c0_8 = arith.constant 0 : index
    %c0_9 = arith.constant 0 : index
    %6 = vector.load %arg4[%c0_8, %c0_9] : memref<128x128xbf16, #tpu.memory_space<vmem>>, vector<128x128xbf16>
    %cst = arith.constant dense<0.000000e+00> : vector<16x128xf32>
    %7 = tpu.matmul %1, %6, %cst {dimension_numbers = #tpu.dot_dimension_numbers<[1], [0], [0], [1], [0, 0, 1, 1], [], []>} : vector<16x128xbf16>, vector<128x128xbf16>, vector<16x128xf32> -> vector<16x128xf32>
    %8 = arith.truncf %7 : vector<16x128xf32> to vector<16x128xbf16>
    %c0_10 = arith.constant 0 : index
    %c0_11 = arith.constant 0 : index
    %9 = vector.load %arg5[%c0_10, %c0_11] : memref<128x128xbf16, #tpu.memory_space<vmem>>, vector<128x128xbf16>
    %cst_12 = arith.constant dense<0.000000e+00> : vector<32x128xf32>
    %10 = tpu.matmul %3, %9, %cst_12 {dimension_numbers = #tpu.dot_dimension_numbers<[1], [0], [0], [1], [0, 0, 1, 1], [], []>} : vector<32x128xbf16>, vector<128x128xbf16>, vector<32x128xf32> -> vector<32x128xf32>
    %11 = arith.truncf %10 : vector<32x128xf32> to vector<32x128xbf16>
    %c0_13 = arith.constant 0 : index
    %c0_14 = arith.constant 0 : index
    %12 = vector.load %arg6[%c0_13, %c0_14] : memref<128x128xbf16, #tpu.memory_space<vmem>>, vector<128x128xbf16>
    %cst_15 = arith.constant dense<0.000000e+00> : vector<32x128xf32>
    %13 = tpu.matmul %5, %12, %cst_15 {dimension_numbers = #tpu.dot_dimension_numbers<[1], [0], [0], [1], [0, 0, 1, 1], [], []>} : vector<32x128xbf16>, vector<128x128xbf16>, vector<32x128xf32> -> vector<32x128xf32>
    %14 = arith.truncf %13 : vector<32x128xf32> to vector<32x128xbf16>
    %15 = vector.extract_strided_slice %8 {offsets = [0, 0], sizes = [8, 16], strides = [1, 1]} : vector<16x128xbf16> to vector<8x16xbf16>
    %16 = vector.extract_strided_slice %11 {offsets = [0, 0], sizes = [16, 16], strides = [1, 1]} : vector<32x128xbf16> to vector<16x16xbf16>
    %17 = vector.extract_strided_slice %14 {offsets = [0, 0], sizes = [16, 16], strides = [1, 1]} : vector<32x128xbf16> to vector<16x16xbf16>
    %cst_16 = arith.constant dense<0.000000e+00> : vector<8x16xf32>
    %18 = tpu.matmul %15, %16, %cst_16 {dimension_numbers = #tpu.dot_dimension_numbers<[1], [1], [0], [0], [0, 0, 1, 0], [], []>} : vector<8x16xbf16>, vector<16x16xbf16>, vector<8x16xf32> -> vector<8x16xf32>
    %cst_17 = arith.constant dense<0xFF800000> : vector<8xf32>
    %19 = vector.multi_reduction <maximumf>, %18, %cst_17 [1] : vector<8x16xf32> to vector<8xf32>
    %20 = vector.shape_cast %19 : vector<8xf32> to vector<8x1xf32>
    %21 = vector.broadcast %20 : vector<8x1xf32> to vector<8x16xf32>
    %22 = arith.subf %18, %21 : vector<8x16xf32>
    %23 = math.exp %22 : vector<8x16xf32>
    %cst_18 = arith.constant dense<0.000000e+00> : vector<8xf32>
    %24 = vector.multi_reduction <add>, %23, %cst_18 [1] : vector<8x16xf32> to vector<8xf32>
    %25 = vector.shape_cast %24 : vector<8xf32> to vector<8x1xf32>
    %26 = tpu.reciprocal %25 {approx = true} : vector<8x1xf32> -> vector<8x1xf32>
    %27 = vector.broadcast %26 : vector<8x1xf32> to vector<8x16xf32>
    %28 = arith.mulf %23, %27 : vector<8x16xf32>
    %29 = arith.truncf %28 : vector<8x16xf32> to vector<8x16xbf16>
    %cst_19 = arith.constant dense<0.000000e+00> : vector<8x16xf32>
    %30 = tpu.matmul %29, %17, %cst_19 {dimension_numbers = #tpu.dot_dimension_numbers<[1], [0], [0], [1], [0, 0, 1, 1], [], []>} : vector<8x16xbf16>, vector<16x16xbf16>, vector<8x16xf32> -> vector<8x16xf32>
    %31 = arith.truncf %30 : vector<8x16xf32> to vector<8x16xbf16>
    %c0_20 = arith.constant 0 : index
    %c0_21 = arith.constant 0 : index
    %32 = vector.load %arg10[%c0_20, %c0_21] : memref<16x128xbf16, #tpu.memory_space<vmem>>, vector<8x16xbf16>
    tpu.vector_store %arg10[%c0_20, %c0_21], %31 {strides = array<i32>} : memref<16x128xbf16, #tpu.memory_space<vmem>>, vector<8x16xbf16>,
    %33 = vector.extract_strided_slice %8 {offsets = [0, 16], sizes = [8, 16], strides = [1, 1]} : vector<16x128xbf16> to vector<8x16xbf16>
    %34 = vector.extract_strided_slice %11 {offsets = [0, 16], sizes = [16, 16], strides = [1, 1]} : vector<32x128xbf16> to vector<16x16xbf16>
    %35 = vector.extract_strided_slice %14 {offsets = [0, 16], sizes = [16, 16], strides = [1, 1]} : vector<32x128xbf16> to vector<16x16xbf16>
    %cst_22 = arith.constant dense<0.000000e+00> : vector<8x16xf32>
    %36 = tpu.matmul %33, %34, %cst_22 {dimension_numbers = #tpu.dot_dimension_numbers<[1], [1], [0], [0], [0, 0, 1, 0], [], []>} : vector<8x16xbf16>, vector<16x16xbf16>, vector<8x16xf32> -> vector<8x16xf32>
    %cst_23 = arith.constant dense<0xFF800000> : vector<8xf32>
    %37 = vector.multi_reduction <maximumf>, %36, %cst_23 [1] : vector<8x16xf32> to vector<8xf32>
    %38 = vector.shape_cast %37 : vector<8xf32> to vector<8x1xf32>
    %39 = vector.broadcast %38 : vector<8x1xf32> to vector<8x16xf32>
    %40 = arith.subf %36, %39 : vector<8x16xf32>
    %41 = math.exp %40 : vector<8x16xf32>
    %cst_24 = arith.constant dense<0.000000e+00> : vector<8xf32>
    %42 = vector.multi_reduction <add>, %41, %cst_24 [1] : vector<8x16xf32> to vector<8xf32>
    %43 = vector.shape_cast %42 : vector<8xf32> to vector<8x1xf32>
    %44 = tpu.reciprocal %43 {approx = true} : vector<8x1xf32> -> vector<8x1xf32>
    %45 = vector.broadcast %44 : vector<8x1xf32> to vector<8x16xf32>
    %46 = arith.mulf %41, %45 : vector<8x16xf32>
    %47 = arith.truncf %46 : vector<8x16xf32> to vector<8x16xbf16>
    %cst_25 = arith.constant dense<0.000000e+00> : vector<8x16xf32>
    %48 = tpu.matmul %47, %35, %cst_25 {dimension_numbers = #tpu.dot_dimension_numbers<[1], [0], [0], [1], [0, 0, 1, 1], [], []>} : vector<8x16xbf16>, vector<16x16xbf16>, vector<8x16xf32> -> vector<8x16xf32>
    %49 = arith.truncf %48 : vector<8x16xf32> to vector<8x16xbf16>
    %c0_26 = arith.constant 0 : index
    %c16 = arith.constant 16 : index
    %50 = vector.load %arg10[%c0_26, %c16] : memref<16x128xbf16, #tpu.memory_space<vmem>>, vector<8x16xbf16>
    tpu.vector_store %arg10[%c0_26, %c16], %49 {strides = array<i32>} : memref<16x128xbf16, #tpu.memory_space<vmem>>, vector<8x16xbf16>,
    %51 = vector.extract_strided_slice %8 {offsets = [0, 32], sizes = [8, 16], strides = [1, 1]} : vector<16x128xbf16> to vector<8x16xbf16>
    %52 = vector.extract_strided_slice %11 {offsets = [0, 32], sizes = [16, 16], strides = [1, 1]} : vector<32x128xbf16> to vector<16x16xbf16>
    %53 = vector.extract_strided_slice %14 {offsets = [0, 32], sizes = [16, 16], strides = [1, 1]} : vector<32x128xbf16> to vector<16x16xbf16>
    %cst_27 = arith.constant dense<0.000000e+00> : vector<8x16xf32>
    %54 = tpu.matmul %51, %52, %cst_27 {dimension_numbers = #tpu.dot_dimension_numbers<[1], [1], [0], [0], [0, 0, 1, 0], [], []>} : vector<8x16xbf16>, vector<16x16xbf16>, vector<8x16xf32> -> vector<8x16xf32>
    %cst_28 = arith.constant dense<0xFF800000> : vector<8xf32>
    %55 = vector.multi_reduction <maximumf>, %54, %cst_28 [1] : vector<8x16xf32> to vector<8xf32>
    %56 = vector.shape_cast %55 : vector<8xf32> to vector<8x1xf32>
    %57 = vector.broadcast %56 : vector<8x1xf32> to vector<8x16xf32>
    %58 = arith.subf %54, %57 : vector<8x16xf32>
    %59 = math.exp %58 : vector<8x16xf32>
    %cst_29 = arith.constant dense<0.000000e+00> : vector<8xf32>
    %60 = vector.multi_reduction <add>, %59, %cst_29 [1] : vector<8x16xf32> to vector<8xf32>
    %61 = vector.shape_cast %60 : vector<8xf32> to vector<8x1xf32>
    %62 = tpu.reciprocal %61 {approx = true} : vector<8x1xf32> -> vector<8x1xf32>
    %63 = vector.broadcast %62 : vector<8x1xf32> to vector<8x16xf32>
    %64 = arith.mulf %59, %63 : vector<8x16xf32>
    %65 = arith.truncf %64 : vector<8x16xf32> to vector<8x16xbf16>
    %cst_30 = arith.constant dense<0.000000e+00> : vector<8x16xf32>
    %66 = tpu.matmul %65, %53, %cst_30 {dimension_numbers = #tpu.dot_dimension_numbers<[1], [0], [0], [1], [0, 0, 1, 1], [], []>} : vector<8x16xbf16>, vector<16x16xbf16>, vector<8x16xf32> -> vector<8x16xf32>
    %67 = arith.truncf %66 : vector<8x16xf32> to vector<8x16xbf16>
    %c0_31 = arith.constant 0 : index
    %c32 = arith.constant 32 : index
    %68 = vector.load %arg10[%c0_31, %c32] : memref<16x128xbf16, #tpu.memory_space<vmem>>, vector<8x16xbf16>
    tpu.vector_store %arg10[%c0_31, %c32], %67 {strides = array<i32>} : memref<16x128xbf16, #tpu.memory_space<vmem>>, vector<8x16xbf16>,
    %69 = vector.extract_strided_slice %8 {offsets = [0, 48], sizes = [8, 16], strides = [1, 1]} : vector<16x128xbf16> to vector<8x16xbf16>
    %70 = vector.extract_strided_slice %11 {offsets = [0, 48], sizes = [16, 16], strides = [1, 1]} : vector<32x128xbf16> to vector<16x16xbf16>
    %71 = vector.extract_strided_slice %14 {offsets = [0, 48], sizes = [16, 16], strides = [1, 1]} : vector<32x128xbf16> to vector<16x16xbf16>
    %cst_32 = arith.constant dense<0.000000e+00> : vector<8x16xf32>
    %72 = tpu.matmul %69, %70, %cst_32 {dimension_numbers = #tpu.dot_dimension_numbers<[1], [1], [0], [0], [0, 0, 1, 0], [], []>} : vector<8x16xbf16>, vector<16x16xbf16>, vector<8x16xf32> -> vector<8x16xf32>
    %cst_33 = arith.constant dense<0xFF800000> : vector<8xf32>
    %73 = vector.multi_reduction <maximumf>, %72, %cst_33 [1] : vector<8x16xf32> to vector<8xf32>
    %74 = vector.shape_cast %73 : vector<8xf32> to vector<8x1xf32>
    %75 = vector.broadcast %74 : vector<8x1xf32> to vector<8x16xf32>
    %76 = arith.subf %72, %75 : vector<8x16xf32>
    %77 = math.exp %76 : vector<8x16xf32>
    %cst_34 = arith.constant dense<0.000000e+00> : vector<8xf32>
    %78 = vector.multi_reduction <add>, %77, %cst_34 [1] : vector<8x16xf32> to vector<8xf32>
    %79 = vector.shape_cast %78 : vector<8xf32> to vector<8x1xf32>
    %80 = tpu.reciprocal %79 {approx = true} : vector<8x1xf32> -> vector<8x1xf32>
    %81 = vector.broadcast %80 : vector<8x1xf32> to vector<8x16xf32>
    %82 = arith.mulf %77, %81 : vector<8x16xf32>
    %83 = arith.truncf %82 : vector<8x16xf32> to vector<8x16xbf16>
    %cst_35 = arith.constant dense<0.000000e+00> : vector<8x16xf32>
    %84 = tpu.matmul %83, %71, %cst_35 {dimension_numbers = #tpu.dot_dimension_numbers<[1], [0], [0], [1], [0, 0, 1, 1], [], []>} : vector<8x16xbf16>, vector<16x16xbf16>, vector<8x16xf32> -> vector<8x16xf32>
    %85 = arith.truncf %84 : vector<8x16xf32> to vector<8x16xbf16>
    %c0_36 = arith.constant 0 : index
    %c48 = arith.constant 48 : index
    %86 = vector.load %arg10[%c0_36, %c48] : memref<16x128xbf16, #tpu.memory_space<vmem>>, vector<8x16xbf16>
    tpu.vector_store %arg10[%c0_36, %c48], %85 {strides = array<i32>} : memref<16x128xbf16, #tpu.memory_space<vmem>>, vector<8x16xbf16>,
    %87 = vector.extract_strided_slice %8 {offsets = [0, 64], sizes = [8, 16], strides = [1, 1]} : vector<16x128xbf16> to vector<8x16xbf16>
    %88 = vector.extract_strided_slice %11 {offsets = [0, 64], sizes = [16, 16], strides = [1, 1]} : vector<32x128xbf16> to vector<16x16xbf16>
    %89 = vector.extract_strided_slice %14 {offsets = [0, 64], sizes = [16, 16], strides = [1, 1]} : vector<32x128xbf16> to vector<16x16xbf16>
    %cst_37 = arith.constant dense<0.000000e+00> : vector<8x16xf32>
    %90 = tpu.matmul %87, %88, %cst_37 {dimension_numbers = #tpu.dot_dimension_numbers<[1], [1], [0], [0], [0, 0, 1, 0], [], []>} : vector<8x16xbf16>, vector<16x16xbf16>, vector<8x16xf32> -> vector<8x16xf32>
    %cst_38 = arith.constant dense<0xFF800000> : vector<8xf32>
    %91 = vector.multi_reduction <maximumf>, %90, %cst_38 [1] : vector<8x16xf32> to vector<8xf32>
    %92 = vector.shape_cast %91 : vector<8xf32> to vector<8x1xf32>
    %93 = vector.broadcast %92 : vector<8x1xf32> to vector<8x16xf32>
    %94 = arith.subf %90, %93 : vector<8x16xf32>
    %95 = math.exp %94 : vector<8x16xf32>
    %cst_39 = arith.constant dense<0.000000e+00> : vector<8xf32>
    %96 = vector.multi_reduction <add>, %95, %cst_39 [1] : vector<8x16xf32> to vector<8xf32>
    %97 = vector.shape_cast %96 : vector<8xf32> to vector<8x1xf32>
    %98 = tpu.reciprocal %97 {approx = true} : vector<8x1xf32> -> vector<8x1xf32>
    %99 = vector.broadcast %98 : vector<8x1xf32> to vector<8x16xf32>
    %100 = arith.mulf %95, %99 : vector<8x16xf32>
    %101 = arith.truncf %100 : vector<8x16xf32> to vector<8x16xbf16>
    %cst_40 = arith.constant dense<0.000000e+00> : vector<8x16xf32>
    %102 = tpu.matmul %101, %89, %cst_40 {dimension_numbers = #tpu.dot_dimension_numbers<[1], [0], [0], [1], [0, 0, 1, 1], [], []>} : vector<8x16xbf16>, vector<16x16xbf16>, vector<8x16xf32> -> vector<8x16xf32>
    %103 = arith.truncf %102 : vector<8x16xf32> to vector<8x16xbf16>
    %c0_41 = arith.constant 0 : index
    %c64 = arith.constant 64 : index
    %104 = vector.load %arg10[%c0_41, %c64] : memref<16x128xbf16, #tpu.memory_space<vmem>>, vector<8x16xbf16>
    tpu.vector_store %arg10[%c0_41, %c64], %103 {strides = array<i32>} : memref<16x128xbf16, #tpu.memory_space<vmem>>, vector<8x16xbf16>,
    %105 = vector.extract_strided_slice %8 {offsets = [0, 80], sizes = [8, 16], strides = [1, 1]} : vector<16x128xbf16> to vector<8x16xbf16>
    %106 = vector.extract_strided_slice %11 {offsets = [0, 80], sizes = [16, 16], strides = [1, 1]} : vector<32x128xbf16> to vector<16x16xbf16>
    %107 = vector.extract_strided_slice %14 {offsets = [0, 80], sizes = [16, 16], strides = [1, 1]} : vector<32x128xbf16> to vector<16x16xbf16>
    %cst_42 = arith.constant dense<0.000000e+00> : vector<8x16xf32>
    %108 = tpu.matmul %105, %106, %cst_42 {dimension_numbers = #tpu.dot_dimension_numbers<[1], [1], [0], [0], [0, 0, 1, 0], [], []>} : vector<8x16xbf16>, vector<16x16xbf16>, vector<8x16xf32> -> vector<8x16xf32>
    %cst_43 = arith.constant dense<0xFF800000> : vector<8xf32>
    %109 = vector.multi_reduction <maximumf>, %108, %cst_43 [1] : vector<8x16xf32> to vector<8xf32>
    %110 = vector.shape_cast %109 : vector<8xf32> to vector<8x1xf32>
    %111 = vector.broadcast %110 : vector<8x1xf32> to vector<8x16xf32>
    %112 = arith.subf %108, %111 : vector<8x16xf32>
    %113 = math.exp %112 : vector<8x16xf32>
    %cst_44 = arith.constant dense<0.000000e+00> : vector<8xf32>
    %114 = vector.multi_reduction <add>, %113, %cst_44 [1] : vector<8x16xf32> to vector<8xf32>
    %115 = vector.shape_cast %114 : vector<8xf32> to vector<8x1xf32>
    %116 = tpu.reciprocal %115 {approx = true} : vector<8x1xf32> -> vector<8x1xf32>
    %117 = vector.broadcast %116 : vector<8x1xf32> to vector<8x16xf32>
    %118 = arith.mulf %113, %117 : vector<8x16xf32>
    %119 = arith.truncf %118 : vector<8x16xf32> to vector<8x16xbf16>
    %cst_45 = arith.constant dense<0.000000e+00> : vector<8x16xf32>
    %120 = tpu.matmul %119, %107, %cst_45 {dimension_numbers = #tpu.dot_dimension_numbers<[1], [0], [0], [1], [0, 0, 1, 1], [], []>} : vector<8x16xbf16>, vector<16x16xbf16>, vector<8x16xf32> -> vector<8x16xf32>
    %121 = arith.truncf %120 : vector<8x16xf32> to vector<8x16xbf16>
    %c0_46 = arith.constant 0 : index
    %c80 = arith.constant 80 : index
    %122 = vector.load %arg10[%c0_46, %c80] : memref<16x128xbf16, #tpu.memory_space<vmem>>, vector<8x16xbf16>
    tpu.vector_store %arg10[%c0_46, %c80], %121 {strides = array<i32>} : memref<16x128xbf16, #tpu.memory_space<vmem>>, vector<8x16xbf16>,
    %123 = vector.extract_strided_slice %8 {offsets = [0, 96], sizes = [8, 16], strides = [1, 1]} : vector<16x128xbf16> to vector<8x16xbf16>
    %124 = vector.extract_strided_slice %11 {offsets = [0, 96], sizes = [16, 16], strides = [1, 1]} : vector<32x128xbf16> to vector<16x16xbf16>
    %125 = vector.extract_strided_slice %14 {offsets = [0, 96], sizes = [16, 16], strides = [1, 1]} : vector<32x128xbf16> to vector<16x16xbf16>
    %cst_47 = arith.constant dense<0.000000e+00> : vector<8x16xf32>
    %126 = tpu.matmul %123, %124, %cst_47 {dimension_numbers = #tpu.dot_dimension_numbers<[1], [1], [0], [0], [0, 0, 1, 0], [], []>} : vector<8x16xbf16>, vector<16x16xbf16>, vector<8x16xf32> -> vector<8x16xf32>
    %cst_48 = arith.constant dense<0xFF800000> : vector<8xf32>
    %127 = vector.multi_reduction <maximumf>, %126, %cst_48 [1] : vector<8x16xf32> to vector<8xf32>
    %128 = vector.shape_cast %127 : vector<8xf32> to vector<8x1xf32>
    %129 = vector.broadcast %128 : vector<8x1xf32> to vector<8x16xf32>
    %130 = arith.subf %126, %129 : vector<8x16xf32>
    %131 = math.exp %130 : vector<8x16xf32>
    %cst_49 = arith.constant dense<0.000000e+00> : vector<8xf32>
    %132 = vector.multi_reduction <add>, %131, %cst_49 [1] : vector<8x16xf32> to vector<8xf32>
    %133 = vector.shape_cast %132 : vector<8xf32> to vector<8x1xf32>
    %134 = tpu.reciprocal %133 {approx = true} : vector<8x1xf32> -> vector<8x1xf32>
    %135 = vector.broadcast %134 : vector<8x1xf32> to vector<8x16xf32>
    %136 = arith.mulf %131, %135 : vector<8x16xf32>
    %137 = arith.truncf %136 : vector<8x16xf32> to vector<8x16xbf16>
    %cst_50 = arith.constant dense<0.000000e+00> : vector<8x16xf32>
    %138 = tpu.matmul %137, %125, %cst_50 {dimension_numbers = #tpu.dot_dimension_numbers<[1], [0], [0], [1], [0, 0, 1, 1], [], []>} : vector<8x16xbf16>, vector<16x16xbf16>, vector<8x16xf32> -> vector<8x16xf32>
    %139 = arith.truncf %138 : vector<8x16xf32> to vector<8x16xbf16>
    %c0_51 = arith.constant 0 : index
    %c96 = arith.constant 96 : index
    %140 = vector.load %arg10[%c0_51, %c96] : memref<16x128xbf16, #tpu.memory_space<vmem>>, vector<8x16xbf16>
    tpu.vector_store %arg10[%c0_51, %c96], %139 {strides = array<i32>} : memref<16x128xbf16, #tpu.memory_space<vmem>>, vector<8x16xbf16>,
    %141 = vector.extract_strided_slice %8 {offsets = [0, 112], sizes = [8, 16], strides = [1, 1]} : vector<16x128xbf16> to vector<8x16xbf16>
    %142 = vector.extract_strided_slice %11 {offsets = [0, 112], sizes = [16, 16], strides = [1, 1]} : vector<32x128xbf16> to vector<16x16xbf16>
    %143 = vector.extract_strided_slice %14 {offsets = [0, 112], sizes = [16, 16], strides = [1, 1]} : vector<32x128xbf16> to vector<16x16xbf16>
    %cst_52 = arith.constant dense<0.000000e+00> : vector<8x16xf32>
    %144 = tpu.matmul %141, %142, %cst_52 {dimension_numbers = #tpu.dot_dimension_numbers<[1], [1], [0], [0], [0, 0, 1, 0], [], []>} : vector<8x16xbf16>, vector<16x16xbf16>, vector<8x16xf32> -> vector<8x16xf32>
    %cst_53 = arith.constant dense<0xFF800000> : vector<8xf32>
    %145 = vector.multi_reduction <maximumf>, %144, %cst_53 [1] : vector<8x16xf32> to vector<8xf32>
    %146 = vector.shape_cast %145 : vector<8xf32> to vector<8x1xf32>
    %147 = vector.broadcast %146 : vector<8x1xf32> to vector<8x16xf32>
    %148 = arith.subf %144, %147 : vector<8x16xf32>
    %149 = math.exp %148 : vector<8x16xf32>
    %cst_54 = arith.constant dense<0.000000e+00> : vector<8xf32>
    %150 = vector.multi_reduction <add>, %149, %cst_54 [1] : vector<8x16xf32> to vector<8xf32>
    %151 = vector.shape_cast %150 : vector<8xf32> to vector<8x1xf32>
    %152 = tpu.reciprocal %151 {approx = true} : vector<8x1xf32> -> vector<8x1xf32>
    %153 = vector.broadcast %152 : vector<8x1xf32> to vector<8x16xf32>
    %154 = arith.mulf %149, %153 : vector<8x16xf32>
    %155 = arith.truncf %154 : vector<8x16xf32> to vector<8x16xbf16>
    %cst_55 = arith.constant dense<0.000000e+00> : vector<8x16xf32>
    %156 = tpu.matmul %155, %143, %cst_55 {dimension_numbers = #tpu.dot_dimension_numbers<[1], [0], [0], [1], [0, 0, 1, 1], [], []>} : vector<8x16xbf16>, vector<16x16xbf16>, vector<8x16xf32> -> vector<8x16xf32>
    %157 = arith.truncf %156 : vector<8x16xf32> to vector<8x16xbf16>
    %c0_56 = arith.constant 0 : index
    %c112 = arith.constant 112 : index
    %158 = vector.load %arg10[%c0_56, %c112] : memref<16x128xbf16, #tpu.memory_space<vmem>>, vector<8x16xbf16>
    tpu.vector_store %arg10[%c0_56, %c112], %157 {strides = array<i32>} : memref<16x128xbf16, #tpu.memory_space<vmem>>, vector<8x16xbf16>,
    %159 = vector.extract_strided_slice %8 {offsets = [8, 0], sizes = [8, 16], strides = [1, 1]} : vector<16x128xbf16> to vector<8x16xbf16>
    %160 = vector.extract_strided_slice %11 {offsets = [16, 0], sizes = [16, 16], strides = [1, 1]} : vector<32x128xbf16> to vector<16x16xbf16>
    %161 = vector.extract_strided_slice %14 {offsets = [16, 0], sizes = [16, 16], strides = [1, 1]} : vector<32x128xbf16> to vector<16x16xbf16>
    %cst_57 = arith.constant dense<0.000000e+00> : vector<8x16xf32>
    %162 = tpu.matmul %159, %160, %cst_57 {dimension_numbers = #tpu.dot_dimension_numbers<[1], [1], [0], [0], [0, 0, 1, 0], [], []>} : vector<8x16xbf16>, vector<16x16xbf16>, vector<8x16xf32> -> vector<8x16xf32>
    %cst_58 = arith.constant dense<0xFF800000> : vector<8xf32>
    %163 = vector.multi_reduction <maximumf>, %162, %cst_58 [1] : vector<8x16xf32> to vector<8xf32>
    %164 = vector.shape_cast %163 : vector<8xf32> to vector<8x1xf32>
    %165 = vector.broadcast %164 : vector<8x1xf32> to vector<8x16xf32>
    %166 = arith.subf %162, %165 : vector<8x16xf32>
    %167 = math.exp %166 : vector<8x16xf32>
    %cst_59 = arith.constant dense<0.000000e+00> : vector<8xf32>
    %168 = vector.multi_reduction <add>, %167, %cst_59 [1] : vector<8x16xf32> to vector<8xf32>
    %169 = vector.shape_cast %168 : vector<8xf32> to vector<8x1xf32>
    %170 = tpu.reciprocal %169 {approx = true} : vector<8x1xf32> -> vector<8x1xf32>
    %171 = vector.broadcast %170 : vector<8x1xf32> to vector<8x16xf32>
    %172 = arith.mulf %167, %171 : vector<8x16xf32>
    %173 = arith.truncf %172 : vector<8x16xf32> to vector<8x16xbf16>
    %cst_60 = arith.constant dense<0.000000e+00> : vector<8x16xf32>
    %174 = tpu.matmul %173, %161, %cst_60 {dimension_numbers = #tpu.dot_dimension_numbers<[1], [0], [0], [1], [0, 0, 1, 1], [], []>} : vector<8x16xbf16>, vector<16x16xbf16>, vector<8x16xf32> -> vector<8x16xf32>
    %175 = arith.truncf %174 : vector<8x16xf32> to vector<8x16xbf16>
    %c8 = arith.constant 8 : index
    %c0_61 = arith.constant 0 : index
    %176 = vector.load %arg10[%c8, %c0_61] : memref<16x128xbf16, #tpu.memory_space<vmem>>, vector<8x16xbf16>
    tpu.vector_store %arg10[%c8, %c0_61], %175 {strides = array<i32>} : memref<16x128xbf16, #tpu.memory_space<vmem>>, vector<8x16xbf16>,
    %177 = vector.extract_strided_slice %8 {offsets = [8, 16], sizes = [8, 16], strides = [1, 1]} : vector<16x128xbf16> to vector<8x16xbf16>
    %178 = vector.extract_strided_slice %11 {offsets = [16, 16], sizes = [16, 16], strides = [1, 1]} : vector<32x128xbf16> to vector<16x16xbf16>
    %179 = vector.extract_strided_slice %14 {offsets = [16, 16], sizes = [16, 16], strides = [1, 1]} : vector<32x128xbf16> to vector<16x16xbf16>
    %cst_62 = arith.constant dense<0.000000e+00> : vector<8x16xf32>
    %180 = tpu.matmul %177, %178, %cst_62 {dimension_numbers = #tpu.dot_dimension_numbers<[1], [1], [0], [0], [0, 0, 1, 0], [], []>} : vector<8x16xbf16>, vector<16x16xbf16>, vector<8x16xf32> -> vector<8x16xf32>
    %cst_63 = arith.constant dense<0xFF800000> : vector<8xf32>
    %181 = vector.multi_reduction <maximumf>, %180, %cst_63 [1] : vector<8x16xf32> to vector<8xf32>
    %182 = vector.shape_cast %181 : vector<8xf32> to vector<8x1xf32>
    %183 = vector.broadcast %182 : vector<8x1xf32> to vector<8x16xf32>
    %184 = arith.subf %180, %183 : vector<8x16xf32>
    %185 = math.exp %184 : vector<8x16xf32>
    %cst_64 = arith.constant dense<0.000000e+00> : vector<8xf32>
    %186 = vector.multi_reduction <add>, %185, %cst_64 [1] : vector<8x16xf32> to vector<8xf32>
    %187 = vector.shape_cast %186 : vector<8xf32> to vector<8x1xf32>
    %188 = tpu.reciprocal %187 {approx = true} : vector<8x1xf32> -> vector<8x1xf32>
    %189 = vector.broadcast %188 : vector<8x1xf32> to vector<8x16xf32>
    %190 = arith.mulf %185, %189 : vector<8x16xf32>
    %191 = arith.truncf %190 : vector<8x16xf32> to vector<8x16xbf16>
    %cst_65 = arith.constant dense<0.000000e+00> : vector<8x16xf32>
    %192 = tpu.matmul %191, %179, %cst_65 {dimension_numbers = #tpu.dot_dimension_numbers<[1], [0], [0], [1], [0, 0, 1, 1], [], []>} : vector<8x16xbf16>, vector<16x16xbf16>, vector<8x16xf32> -> vector<8x16xf32>
    %193 = arith.truncf %192 : vector<8x16xf32> to vector<8x16xbf16>
    %c8_66 = arith.constant 8 : index
    %c16_67 = arith.constant 16 : index
    %194 = vector.load %arg10[%c8_66, %c16_67] : memref<16x128xbf16, #tpu.memory_space<vmem>>, vector<8x16xbf16>
    tpu.vector_store %arg10[%c8_66, %c16_67], %193 {strides = array<i32>} : memref<16x128xbf16, #tpu.memory_space<vmem>>, vector<8x16xbf16>,
    %195 = vector.extract_strided_slice %8 {offsets = [8, 32], sizes = [8, 16], strides = [1, 1]} : vector<16x128xbf16> to vector<8x16xbf16>
    %196 = vector.extract_strided_slice %11 {offsets = [16, 32], sizes = [16, 16], strides = [1, 1]} : vector<32x128xbf16> to vector<16x16xbf16>
    %197 = vector.extract_strided_slice %14 {offsets = [16, 32], sizes = [16, 16], strides = [1, 1]} : vector<32x128xbf16> to vector<16x16xbf16>
    %cst_68 = arith.constant dense<0.000000e+00> : vector<8x16xf32>
    %198 = tpu.matmul %195, %196, %cst_68 {dimension_numbers = #tpu.dot_dimension_numbers<[1], [1], [0], [0], [0, 0, 1, 0], [], []>} : vector<8x16xbf16>, vector<16x16xbf16>, vector<8x16xf32> -> vector<8x16xf32>
    %cst_69 = arith.constant dense<0xFF800000> : vector<8xf32>
    %199 = vector.multi_reduction <maximumf>, %198, %cst_69 [1] : vector<8x16xf32> to vector<8xf32>
    %200 = vector.shape_cast %199 : vector<8xf32> to vector<8x1xf32>
    %201 = vector.broadcast %200 : vector<8x1xf32> to vector<8x16xf32>
    %202 = arith.subf %198, %201 : vector<8x16xf32>
    %203 = math.exp %202 : vector<8x16xf32>
    %cst_70 = arith.constant dense<0.000000e+00> : vector<8xf32>
    %204 = vector.multi_reduction <add>, %203, %cst_70 [1] : vector<8x16xf32> to vector<8xf32>
    %205 = vector.shape_cast %204 : vector<8xf32> to vector<8x1xf32>
    %206 = tpu.reciprocal %205 {approx = true} : vector<8x1xf32> -> vector<8x1xf32>
    %207 = vector.broadcast %206 : vector<8x1xf32> to vector<8x16xf32>
    %208 = arith.mulf %203, %207 : vector<8x16xf32>
    %209 = arith.truncf %208 : vector<8x16xf32> to vector<8x16xbf16>
    %cst_71 = arith.constant dense<0.000000e+00> : vector<8x16xf32>
    %210 = tpu.matmul %209, %197, %cst_71 {dimension_numbers = #tpu.dot_dimension_numbers<[1], [0], [0], [1], [0, 0, 1, 1], [], []>} : vector<8x16xbf16>, vector<16x16xbf16>, vector<8x16xf32> -> vector<8x16xf32>
    %211 = arith.truncf %210 : vector<8x16xf32> to vector<8x16xbf16>
    %c8_72 = arith.constant 8 : index
    %c32_73 = arith.constant 32 : index
    %212 = vector.load %arg10[%c8_72, %c32_73] : memref<16x128xbf16, #tpu.memory_space<vmem>>, vector<8x16xbf16>
    tpu.vector_store %arg10[%c8_72, %c32_73], %211 {strides = array<i32>} : memref<16x128xbf16, #tpu.memory_space<vmem>>, vector<8x16xbf16>,
    %213 = vector.extract_strided_slice %8 {offsets = [8, 48], sizes = [8, 16], strides = [1, 1]} : vector<16x128xbf16> to vector<8x16xbf16>
    %214 = vector.extract_strided_slice %11 {offsets = [16, 48], sizes = [16, 16], strides = [1, 1]} : vector<32x128xbf16> to vector<16x16xbf16>
    %215 = vector.extract_strided_slice %14 {offsets = [16, 48], sizes = [16, 16], strides = [1, 1]} : vector<32x128xbf16> to vector<16x16xbf16>
    %cst_74 = arith.constant dense<0.000000e+00> : vector<8x16xf32>
    %216 = tpu.matmul %213, %214, %cst_74 {dimension_numbers = #tpu.dot_dimension_numbers<[1], [1], [0], [0], [0, 0, 1, 0], [], []>} : vector<8x16xbf16>, vector<16x16xbf16>, vector<8x16xf32> -> vector<8x16xf32>
    %cst_75 = arith.constant dense<0xFF800000> : vector<8xf32>
    %217 = vector.multi_reduction <maximumf>, %216, %cst_75 [1] : vector<8x16xf32> to vector<8xf32>
    %218 = vector.shape_cast %217 : vector<8xf32> to vector<8x1xf32>
    %219 = vector.broadcast %218 : vector<8x1xf32> to vector<8x16xf32>
    %220 = arith.subf %216, %219 : vector<8x16xf32>
    %221 = math.exp %220 : vector<8x16xf32>
    %cst_76 = arith.constant dense<0.000000e+00> : vector<8xf32>
    %222 = vector.multi_reduction <add>, %221, %cst_76 [1] : vector<8x16xf32> to vector<8xf32>
    %223 = vector.shape_cast %222 : vector<8xf32> to vector<8x1xf32>
    %224 = tpu.reciprocal %223 {approx = true} : vector<8x1xf32> -> vector<8x1xf32>
    %225 = vector.broadcast %224 : vector<8x1xf32> to vector<8x16xf32>
    %226 = arith.mulf %221, %225 : vector<8x16xf32>
    %227 = arith.truncf %226 : vector<8x16xf32> to vector<8x16xbf16>
    %cst_77 = arith.constant dense<0.000000e+00> : vector<8x16xf32>
    %228 = tpu.matmul %227, %215, %cst_77 {dimension_numbers = #tpu.dot_dimension_numbers<[1], [0], [0], [1], [0, 0, 1, 1], [], []>} : vector<8x16xbf16>, vector<16x16xbf16>, vector<8x16xf32> -> vector<8x16xf32>
    %229 = arith.truncf %228 : vector<8x16xf32> to vector<8x16xbf16>
    %c8_78 = arith.constant 8 : index
    %c48_79 = arith.constant 48 : index
    %230 = vector.load %arg10[%c8_78, %c48_79] : memref<16x128xbf16, #tpu.memory_space<vmem>>, vector<8x16xbf16>
    tpu.vector_store %arg10[%c8_78, %c48_79], %229 {strides = array<i32>} : memref<16x128xbf16, #tpu.memory_space<vmem>>, vector<8x16xbf16>,
    %231 = vector.extract_strided_slice %8 {offsets = [8, 64], sizes = [8, 16], strides = [1, 1]} : vector<16x128xbf16> to vector<8x16xbf16>
    %232 = vector.extract_strided_slice %11 {offsets = [16, 64], sizes = [16, 16], strides = [1, 1]} : vector<32x128xbf16> to vector<16x16xbf16>
    %233 = vector.extract_strided_slice %14 {offsets = [16, 64], sizes = [16, 16], strides = [1, 1]} : vector<32x128xbf16> to vector<16x16xbf16>
    %cst_80 = arith.constant dense<0.000000e+00> : vector<8x16xf32>
    %234 = tpu.matmul %231, %232, %cst_80 {dimension_numbers = #tpu.dot_dimension_numbers<[1], [1], [0], [0], [0, 0, 1, 0], [], []>} : vector<8x16xbf16>, vector<16x16xbf16>, vector<8x16xf32> -> vector<8x16xf32>
    %cst_81 = arith.constant dense<0xFF800000> : vector<8xf32>
    %235 = vector.multi_reduction <maximumf>, %234, %cst_81 [1] : vector<8x16xf32> to vector<8xf32>
    %236 = vector.shape_cast %235 : vector<8xf32> to vector<8x1xf32>
    %237 = vector.broadcast %236 : vector<8x1xf32> to vector<8x16xf32>
    %238 = arith.subf %234, %237 : vector<8x16xf32>
    %239 = math.exp %238 : vector<8x16xf32>
    %cst_82 = arith.constant dense<0.000000e+00> : vector<8xf32>
    %240 = vector.multi_reduction <add>, %239, %cst_82 [1] : vector<8x16xf32> to vector<8xf32>
    %241 = vector.shape_cast %240 : vector<8xf32> to vector<8x1xf32>
    %242 = tpu.reciprocal %241 {approx = true} : vector<8x1xf32> -> vector<8x1xf32>
    %243 = vector.broadcast %242 : vector<8x1xf32> to vector<8x16xf32>
    %244 = arith.mulf %239, %243 : vector<8x16xf32>
    %245 = arith.truncf %244 : vector<8x16xf32> to vector<8x16xbf16>
    %cst_83 = arith.constant dense<0.000000e+00> : vector<8x16xf32>
    %246 = tpu.matmul %245, %233, %cst_83 {dimension_numbers = #tpu.dot_dimension_numbers<[1], [0], [0], [1], [0, 0, 1, 1], [], []>} : vector<8x16xbf16>, vector<16x16xbf16>, vector<8x16xf32> -> vector<8x16xf32>
    %247 = arith.truncf %246 : vector<8x16xf32> to vector<8x16xbf16>
    %c8_84 = arith.constant 8 : index
    %c64_85 = arith.constant 64 : index
    %248 = vector.load %arg10[%c8_84, %c64_85] : memref<16x128xbf16, #tpu.memory_space<vmem>>, vector<8x16xbf16>
    tpu.vector_store %arg10[%c8_84, %c64_85], %247 {strides = array<i32>} : memref<16x128xbf16, #tpu.memory_space<vmem>>, vector<8x16xbf16>,
    %249 = vector.extract_strided_slice %8 {offsets = [8, 80], sizes = [8, 16], strides = [1, 1]} : vector<16x128xbf16> to vector<8x16xbf16>
    %250 = vector.extract_strided_slice %11 {offsets = [16, 80], sizes = [16, 16], strides = [1, 1]} : vector<32x128xbf16> to vector<16x16xbf16>
    %251 = vector.extract_strided_slice %14 {offsets = [16, 80], sizes = [16, 16], strides = [1, 1]} : vector<32x128xbf16> to vector<16x16xbf16>
    %cst_86 = arith.constant dense<0.000000e+00> : vector<8x16xf32>
    %252 = tpu.matmul %249, %250, %cst_86 {dimension_numbers = #tpu.dot_dimension_numbers<[1], [1], [0], [0], [0, 0, 1, 0], [], []>} : vector<8x16xbf16>, vector<16x16xbf16>, vector<8x16xf32> -> vector<8x16xf32>
    %cst_87 = arith.constant dense<0xFF800000> : vector<8xf32>
    %253 = vector.multi_reduction <maximumf>, %252, %cst_87 [1] : vector<8x16xf32> to vector<8xf32>
    %254 = vector.shape_cast %253 : vector<8xf32> to vector<8x1xf32>
    %255 = vector.broadcast %254 : vector<8x1xf32> to vector<8x16xf32>
    %256 = arith.subf %252, %255 : vector<8x16xf32>
    %257 = math.exp %256 : vector<8x16xf32>
    %cst_88 = arith.constant dense<0.000000e+00> : vector<8xf32>
    %258 = vector.multi_reduction <add>, %257, %cst_88 [1] : vector<8x16xf32> to vector<8xf32>
    %259 = vector.shape_cast %258 : vector<8xf32> to vector<8x1xf32>
    %260 = tpu.reciprocal %259 {approx = true} : vector<8x1xf32> -> vector<8x1xf32>
    %261 = vector.broadcast %260 : vector<8x1xf32> to vector<8x16xf32>
    %262 = arith.mulf %257, %261 : vector<8x16xf32>
    %263 = arith.truncf %262 : vector<8x16xf32> to vector<8x16xbf16>
    %cst_89 = arith.constant dense<0.000000e+00> : vector<8x16xf32>
    %264 = tpu.matmul %263, %251, %cst_89 {dimension_numbers = #tpu.dot_dimension_numbers<[1], [0], [0], [1], [0, 0, 1, 1], [], []>} : vector<8x16xbf16>, vector<16x16xbf16>, vector<8x16xf32> -> vector<8x16xf32>
    %265 = arith.truncf %264 : vector<8x16xf32> to vector<8x16xbf16>
    %c8_90 = arith.constant 8 : index
    %c80_91 = arith.constant 80 : index
    %266 = vector.load %arg10[%c8_90, %c80_91] : memref<16x128xbf16, #tpu.memory_space<vmem>>, vector<8x16xbf16>
    tpu.vector_store %arg10[%c8_90, %c80_91], %265 {strides = array<i32>} : memref<16x128xbf16, #tpu.memory_space<vmem>>, vector<8x16xbf16>,
    %267 = vector.extract_strided_slice %8 {offsets = [8, 96], sizes = [8, 16], strides = [1, 1]} : vector<16x128xbf16> to vector<8x16xbf16>
    %268 = vector.extract_strided_slice %11 {offsets = [16, 96], sizes = [16, 16], strides = [1, 1]} : vector<32x128xbf16> to vector<16x16xbf16>
    %269 = vector.extract_strided_slice %14 {offsets = [16, 96], sizes = [16, 16], strides = [1, 1]} : vector<32x128xbf16> to vector<16x16xbf16>
    %cst_92 = arith.constant dense<0.000000e+00> : vector<8x16xf32>
    %270 = tpu.matmul %267, %268, %cst_92 {dimension_numbers = #tpu.dot_dimension_numbers<[1], [1], [0], [0], [0, 0, 1, 0], [], []>} : vector<8x16xbf16>, vector<16x16xbf16>, vector<8x16xf32> -> vector<8x16xf32>
    %cst_93 = arith.constant dense<0xFF800000> : vector<8xf32>
    %271 = vector.multi_reduction <maximumf>, %270, %cst_93 [1] : vector<8x16xf32> to vector<8xf32>
    %272 = vector.shape_cast %271 : vector<8xf32> to vector<8x1xf32>
    %273 = vector.broadcast %272 : vector<8x1xf32> to vector<8x16xf32>
    %274 = arith.subf %270, %273 : vector<8x16xf32>
    %275 = math.exp %274 : vector<8x16xf32>
    %cst_94 = arith.constant dense<0.000000e+00> : vector<8xf32>
    %276 = vector.multi_reduction <add>, %275, %cst_94 [1] : vector<8x16xf32> to vector<8xf32>
    %277 = vector.shape_cast %276 : vector<8xf32> to vector<8x1xf32>
    %278 = tpu.reciprocal %277 {approx = true} : vector<8x1xf32> -> vector<8x1xf32>
    %279 = vector.broadcast %278 : vector<8x1xf32> to vector<8x16xf32>
    %280 = arith.mulf %275, %279 : vector<8x16xf32>
    %281 = arith.truncf %280 : vector<8x16xf32> to vector<8x16xbf16>
    %cst_95 = arith.constant dense<0.000000e+00> : vector<8x16xf32>
    %282 = tpu.matmul %281, %269, %cst_95 {dimension_numbers = #tpu.dot_dimension_numbers<[1], [0], [0], [1], [0, 0, 1, 1], [], []>} : vector<8x16xbf16>, vector<16x16xbf16>, vector<8x16xf32> -> vector<8x16xf32>
    %283 = arith.truncf %282 : vector<8x16xf32> to vector<8x16xbf16>
    %c8_96 = arith.constant 8 : index
    %c96_97 = arith.constant 96 : index
    %284 = vector.load %arg10[%c8_96, %c96_97] : memref<16x128xbf16, #tpu.memory_space<vmem>>, vector<8x16xbf16>
    tpu.vector_store %arg10[%c8_96, %c96_97], %283 {strides = array<i32>} : memref<16x128xbf16, #tpu.memory_space<vmem>>, vector<8x16xbf16>,
    %285 = vector.extract_strided_slice %8 {offsets = [8, 112], sizes = [8, 16], strides = [1, 1]} : vector<16x128xbf16> to vector<8x16xbf16>
    %286 = vector.extract_strided_slice %11 {offsets = [16, 112], sizes = [16, 16], strides = [1, 1]} : vector<32x128xbf16> to vector<16x16xbf16>
    %287 = vector.extract_strided_slice %14 {offsets = [16, 112], sizes = [16, 16], strides = [1, 1]} : vector<32x128xbf16> to vector<16x16xbf16>
    %cst_98 = arith.constant dense<0.000000e+00> : vector<8x16xf32>
    %288 = tpu.matmul %285, %286, %cst_98 {dimension_numbers = #tpu.dot_dimension_numbers<[1], [1], [0], [0], [0, 0, 1, 0], [], []>} : vector<8x16xbf16>, vector<16x16xbf16>, vector<8x16xf32> -> vector<8x16xf32>
    %cst_99 = arith.constant dense<0xFF800000> : vector<8xf32>
    %289 = vector.multi_reduction <maximumf>, %288, %cst_99 [1] : vector<8x16xf32> to vector<8xf32>
    %290 = vector.shape_cast %289 : vector<8xf32> to vector<8x1xf32>
    %291 = vector.broadcast %290 : vector<8x1xf32> to vector<8x16xf32>
    %292 = arith.subf %288, %291 : vector<8x16xf32>
    %293 = math.exp %292 : vector<8x16xf32>
    %cst_100 = arith.constant dense<0.000000e+00> : vector<8xf32>
    %294 = vector.multi_reduction <add>, %293, %cst_100 [1] : vector<8x16xf32> to vector<8xf32>
    %295 = vector.shape_cast %294 : vector<8xf32> to vector<8x1xf32>
    %296 = tpu.reciprocal %295 {approx = true} : vector<8x1xf32> -> vector<8x1xf32>
    %297 = vector.broadcast %296 : vector<8x1xf32> to vector<8x16xf32>
    %298 = arith.mulf %293, %297 : vector<8x16xf32>
    %299 = arith.truncf %298 : vector<8x16xf32> to vector<8x16xbf16>
    %cst_101 = arith.constant dense<0.000000e+00> : vector<8x16xf32>
    %300 = tpu.matmul %299, %287, %cst_101 {dimension_numbers = #tpu.dot_dimension_numbers<[1], [0], [0], [1], [0, 0, 1, 1], [], []>} : vector<8x16xbf16>, vector<16x16xbf16>, vector<8x16xf32> -> vector<8x16xf32>
    %301 = arith.truncf %300 : vector<8x16xf32> to vector<8x16xbf16>
    %c8_102 = arith.constant 8 : index
    %c112_103 = arith.constant 112 : index
    %302 = vector.load %arg10[%c8_102, %c112_103] : memref<16x128xbf16, #tpu.memory_space<vmem>>, vector<8x16xbf16>
    tpu.vector_store %arg10[%c8_102, %c112_103], %301 {strides = array<i32>} : memref<16x128xbf16, #tpu.memory_space<vmem>>, vector<8x16xbf16>,
    %c0_104 = arith.constant 0 : index
    %c0_105 = arith.constant 0 : index
    %303 = vector.load %arg10[%c0_104, %c0_105] : memref<16x128xbf16, #tpu.memory_space<vmem>>, vector<16x128xbf16>
    %c0_106 = arith.constant 0 : index
    %c0_107 = arith.constant 0 : index
    %304 = vector.load %arg7[%c0_106, %c0_107] : memref<128x128xbf16, #tpu.memory_space<vmem>>, vector<128x128xbf16>
    %cst_108 = arith.constant dense<0.000000e+00> : vector<16x128xf32>
    %305 = tpu.matmul %303, %304, %cst_108 {dimension_numbers = #tpu.dot_dimension_numbers<[1], [0], [0], [1], [0, 0, 1, 1], [], []>} : vector<16x128xbf16>, vector<128x128xbf16>, vector<16x128xf32> -> vector<16x128xf32>
    %c0_109 = arith.constant 0 : index
    %c0_110 = arith.constant 0 : index
    %306 = vector.load %arg8[%c0_109, %c0_110] : memref<1x128xf32, #tpu.memory_space<vmem>>, vector<1x128xf32>
    %307 = vector.broadcast %306 : vector<1x128xf32> to vector<16x128xf32>
    %308 = arith.addf %305, %307 : vector<16x128xf32>
    %309 = vector.shape_cast %308 : vector<16x128xf32> to vector<2x8x128xf32>
    %c0_111 = arith.constant 0 : index
    %c0_112 = arith.constant 0 : index
    %c0_113 = arith.constant 0 : index
    %310 = vector.load %arg9[%c0_111, %c0_112, %c0_113] : memref<2x8x128xf32, #tpu.memory_space<vmem>>, vector<2x8x128xf32>
    tpu.vector_store %arg9[%c0_111, %c0_112, %c0_113], %309 {strides = array<i32>} : memref<2x8x128xf32, #tpu.memory_space<vmem>>, vector<2x8x128xf32>,
    return
  }
  func.func @transform_0(%arg0: i32) -> (i32, i32, i32) {
    %c0_i32 = arith.constant 0 : i32
    %c0_i32_0 = arith.constant 0 : i32
    %c0_i32_1 = arith.constant 0 : i32
    return %arg0, %c0_i32, %c0_i32_0 : i32, i32, i32
  }
  func.func @transform_1(%arg0: i32) -> (i32, i32, i32) {
    %c0_i32 = arith.constant 0 : i32
    %c0_i32_0 = arith.constant 0 : i32
    %c0_i32_1 = arith.constant 0 : i32
    return %arg0, %c0_i32, %c0_i32_0 : i32, i32, i32
  }
  func.func @transform_2(%arg0: i32) -> (i32, i32, i32) {
    %c0_i32 = arith.constant 0 : i32
    %c0_i32_0 = arith.constant 0 : i32
    %c0_i32_1 = arith.constant 0 : i32
    return %arg0, %c0_i32, %c0_i32_0 : i32, i32, i32
  }
  func.func @transform_3(%arg0: i32) -> (i32, i32) {
    %c0_i32 = arith.constant 0 : i32
    %c0_i32_0 = arith.constant 0 : i32
    %c0_i32_1 = arith.constant 0 : i32
    return %c0_i32, %c0_i32_0 : i32, i32
  }
  func.func @transform_4(%arg0: i32) -> (i32, i32) {
    %c0_i32 = arith.constant 0 : i32
    %c0_i32_0 = arith.constant 0 : i32
    %c0_i32_1 = arith.constant 0 : i32
    return %c0_i32, %c0_i32_0 : i32, i32
  }
  func.func @transform_5(%arg0: i32) -> (i32, i32) {
    %c0_i32 = arith.constant 0 : i32
    %c0_i32_0 = arith.constant 0 : i32
    %c0_i32_1 = arith.constant 0 : i32
    return %c0_i32, %c0_i32_0 : i32, i32
  }
  func.func @transform_6(%arg0: i32) -> (i32, i32) {
    %c0_i32 = arith.constant 0 : i32
    %c0_i32_0 = arith.constant 0 : i32
    %c0_i32_1 = arith.constant 0 : i32
    return %c0_i32, %c0_i32_0 : i32, i32
  }
  func.func @transform_7(%arg0: i32) -> (i32, i32) {
    %c0_i32 = arith.constant 0 : i32
    %c0_i32_0 = arith.constant 0 : i32
    %c0_i32_1 = arith.constant 0 : i32
    return %c0_i32, %c0_i32_0 : i32, i32
  }
  func.func @transform_8(%arg0: i32) -> (i32, i32, i32) {
    %c0_i32 = arith.constant 0 : i32
    %c0_i32_0 = arith.constant 0 : i32
    %c0_i32_1 = arith.constant 0 : i32
    return %arg0, %c0_i32, %c0_i32_0 : i32, i32, i32
  }
}

module attributes {stable_mosaic.version = 11 : i64} {
  func.func @_mha_kernel(%arg0: i32, %arg1: memref<2x8x128xbf16, #tpu.memory_space<vmem>>, %arg2: memref<2x16x128xbf16, #tpu.memory_space<vmem>>, %arg3: memref<2x16x128xbf16, #tpu.memory_space<vmem>>, %arg4: memref<128x128xbf16, #tpu.memory_space<vmem>>, %arg5: memref<128x128xbf16, #tpu.memory_space<vmem>>, %arg6: memref<128x128xbf16, #tpu.memory_space<vmem>>, %arg7: memref<128x128xbf16, #tpu.memory_space<vmem>>, %arg8: memref<1x128xf32, #tpu.memory_space<vmem>>, %arg9: memref<2x8x128xf32, #tpu.memory_space<vmem>>, %arg10: memref<16x128xbf16, #tpu.memory_space<vmem>>) attributes {dimension_semantics = [#tpu.dimension_semantics<parallel>], iteration_bounds = array<i64: 1>, scalar_prefetch = 0 : i64, scratch_operands = 1 : i64, tpu.core_type = #tpu.core_type<tc>, window_params = [{transform_indices = @transform_0, window_bounds = array<i64: 2, 8, 128>}, {transform_indices = @transform_1, window_bounds = array<i64: 2, 16, 128>}, {transform_indices = @transform_2, window_bounds = array<i64: 2, 16, 128>}, {pipeline_mode = #tpu.pipeline_mode<synchronous>, transform_indices = @transform_3, window_bounds = array<i64: 128, 128>}, {pipeline_mode = #tpu.pipeline_mode<synchronous>, transform_indices = @transform_4, window_bounds = array<i64: 128, 128>}, {pipeline_mode = #tpu.pipeline_mode<synchronous>, transform_indices = @transform_5, window_bounds = array<i64: 128, 128>}, {pipeline_mode = #tpu.pipeline_mode<synchronous>, transform_indices = @transform_6, window_bounds = array<i64: 128, 128>}, {pipeline_mode = #tpu.pipeline_mode<synchronous>, transform_indices = @transform_7, window_bounds = array<i64: 1, 128>}, {transform_indices = @transform_8, window_bounds = array<i64: 2, 8, 128>}]} {
    %c0 = arith.constant 0 : index
    %c0_0 = arith.constant 0 : index
    %c0_1 = arith.constant 0 : index
    %0 = vector.load %arg1[%c0, %c0_0, %c0_1] : memref<2x8x128xbf16, #tpu.memory_space<vmem>>, vector<2x8x128xbf16>
    %1 = vector.shape_cast %0 : vector<2x8x128xbf16> to vector<16x128xbf16>
    %c0_2 = arith.constant 0 : index
    %c0_3 = arith.constant 0 : index
    %c0_4 = arith.constant 0 : index
    %2 = vector.load %arg2[%c0_2, %c0_3, %c0_4] : memref<2x16x128xbf16, #tpu.memory_space<vmem>>, vector<2x16x128xbf16>
    %3 = vector.shape_cast %2 : vector<2x16x128xbf16> to vector<32x128xbf16>
    %c0_5 = arith.constant 0 : index
    %c0_6 = arith.constant 0 : index
    %c0_7 = arith.constant 0 : index
    %4 = vector.load %arg3[%c0_5, %c0_6, %c0_7] : memref<2x16x128xbf16, #tpu.memory_space<vmem>>, vector<2x16x128xbf16>
    %5 = vector.shape_cast %4 : vector<2x16x128xbf16> to vector<32x128xbf16>
    %c0_8 = arith.constant 0 : index
    %c0_9 = arith.constant 0 : index
    %6 = vector.load %arg4[%c0_8, %c0_9] : memref<128x128xbf16, #tpu.memory_space<vmem>>, vector<128x128xbf16>
    %cst = arith.constant dense<0.000000e+00> : vector<16x128xf32>
    %7 = tpu.matmul %1, %6, %cst {dimension_numbers = #tpu.dot_dimension_numbers<[1], [0], [0], [1], [0, 0, 1, 1], [], []>} : vector<16x128xbf16>, vector<128x128xbf16>, vector<16x128xf32> -> vector<16x128xf32>
    %8 = arith.truncf %7 : vector<16x128xf32> to vector<16x128xbf16>
    %c0_10 = arith.constant 0 : index
    %c0_11 = arith.constant 0 : index
    %9 = vector.load %arg5[%c0_10, %c0_11] : memref<128x128xbf16, #tpu.memory_space<vmem>>, vector<128x128xbf16>
    %cst_12 = arith.constant dense<0.000000e+00> : vector<32x128xf32>
    %10 = tpu.matmul %3, %9, %cst_12 {dimension_numbers = #tpu.dot_dimension_numbers<[1], [0], [0], [1], [0, 0, 1, 1], [], []>} : vector<32x128xbf16>, vector<128x128xbf16>, vector<32x128xf32> -> vector<32x128xf32>
    %11 = arith.truncf %10 : vector<32x128xf32> to vector<32x128xbf16>
    %c0_13 = arith.constant 0 : index
    %c0_14 = arith.constant 0 : index
    %12 = vector.load %arg6[%c0_13, %c0_14] : memref<128x128xbf16, #tpu.memory_space<vmem>>, vector<128x128xbf16>
    %cst_15 = arith.constant dense<0.000000e+00> : vector<32x128xf32>
    %13 = tpu.matmul %5, %12, %cst_15 {dimension_numbers = #tpu.dot_dimension_numbers<[1], [0], [0], [1], [0, 0, 1, 1], [], []>} : vector<32x128xbf16>, vector<128x128xbf16>, vector<32x128xf32> -> vector<32x128xf32>
    %14 = arith.truncf %13 : vector<32x128xf32> to vector<32x128xbf16>
    %15 = vector.extract_strided_slice %8 {offsets = [0, 0], sizes = [8, 16], strides = [1, 1]} : vector<16x128xbf16> to vector<8x16xbf16>
    %16 = vector.extract_strided_slice %11 {offsets = [0, 0], sizes = [16, 16], strides = [1, 1]} : vector<32x128xbf16> to vector<16x16xbf16>
    %17 = vector.extract_strided_slice %14 {offsets = [0, 0], sizes = [16, 16], strides = [1, 1]} : vector<32x128xbf16> to vector<16x16xbf16>
    %cst_16 = arith.constant dense<0.000000e+00> : vector<8x16xf32>
    %18 = tpu.matmul %15, %16, %cst_16 {dimension_numbers = #tpu.dot_dimension_numbers<[1], [1], [0], [0], [0, 0, 1, 0], [], []>} : vector<8x16xbf16>, vector<16x16xbf16>, vector<8x16xf32> -> vector<8x16xf32>
    %cst_17 = arith.constant dense<0xFF800000> : vector<8xf32>
    %19 = vector.multi_reduction <maximumf>, %18, %cst_17 [1] : vector<8x16xf32> to vector<8xf32>
    %20 = vector.shape_cast %19 : vector<8xf32> to vector<8x1xf32>
    %21 = vector.broadcast %20 : vector<8x1xf32> to vector<8x16xf32>
    %22 = arith.subf %18, %21 : vector<8x16xf32>
    %23 = math.exp %22 : vector<8x16xf32>
    %cst_18 = arith.constant dense<0.000000e+00> : vector<8xf32>
    %24 = vector.multi_reduction <add>, %23, %cst_18 [1] : vector<8x16xf32> to vector<8xf32>
    %25 = vector.shape_cast %24 : vector<8xf32> to vector<8x1xf32>
    %26 = tpu.reciprocal %25 {approx = true} : vector<8x1xf32> -> vector<8x1xf32>
    %27 = vector.broadcast %26 : vector<8x1xf32> to vector<8x16xf32>
    %28 = arith.mulf %23, %27 : vector<8x16xf32>
    %29 = arith.truncf %28 : vector<8x16xf32> to vector<8x16xbf16>
    %cst_19 = arith.constant dense<0.000000e+00> : vector<8x16xf32>
    %30 = tpu.matmul %29, %17, %cst_19 {dimension_numbers = #tpu.dot_dimension_numbers<[1], [0], [0], [1], [0, 0, 1, 1], [], []>} : vector<8x16xbf16>, vector<16x16xbf16>, vector<8x16xf32> -> vector<8x16xf32>
    %31 = arith.truncf %30 : vector<8x16xf32> to vector<8x16xbf16>
    %c0_20 = arith.constant 0 : index
    %c0_21 = arith.constant 0 : index
    %32 = vector.load %arg10[%c0_20, %c0_21] : memref<16x128xbf16, #tpu.memory_space<vmem>>, vector<8x16xbf16>
    tpu.vector_store %arg10[%c0_20, %c0_21], %31 {strides = array<i32>} : memref<16x128xbf16, #tpu.memory_space<vmem>>, vector<8x16xbf16>,
    %33 = vector.extract_strided_slice %8 {offsets = [0, 16], sizes = [8, 16], strides = [1, 1]} : vector<16x128xbf16> to vector<8x16xbf16>
    %34 = vector.extract_strided_slice %11 {offsets = [0, 16], sizes = [16, 16], strides = [1, 1]} : vector<32x128xbf16> to vector<16x16xbf16>
    %35 = vector.extract_strided_slice %14 {offsets = [0, 16], sizes = [16, 16], strides = [1, 1]} : vector<32x128xbf16> to vector<16x16xbf16>
    %cst_22 = arith.constant dense<0.000000e+00> : vector<8x16xf32>
    %36 = tpu.matmul %33, %34, %cst_22 {dimension_numbers = #tpu.dot_dimension_numbers<[1], [1], [0], [0], [0, 0, 1, 0], [], []>} : vector<8x16xbf16>, vector<16x16xbf16>, vector<8x16xf32> -> vector<8x16xf32>
    %cst_23 = arith.constant dense<0xFF800000> : vector<8xf32>
    %37 = vector.multi_reduction <maximumf>, %36, %cst_23 [1] : vector<8x16xf32> to vector<8xf32>
    %38 = vector.shape_cast %37 : vector<8xf32> to vector<8x1xf32>
    %39 = vector.broadcast %38 : vector<8x1xf32> to vector<8x16xf32>
    %40 = arith.subf %36, %39 : vector<8x16xf32>
    %41 = math.exp %40 : vector<8x16xf32>
    %cst_24 = arith.constant dense<0.000000e+00> : vector<8xf32>
    %42 = vector.multi_reduction <add>, %41, %cst_24 [1] : vector<8x16xf32> to vector<8xf32>
    %43 = vector.shape_cast %42 : vector<8xf32> to vector<8x1xf32>
    %44 = tpu.reciprocal %43 {approx = true} : vector<8x1xf32> -> vector<8x1xf32>
    %45 = vector.broadcast %44 : vector<8x1xf32> to vector<8x16xf32>
    %46 = arith.mulf %41, %45 : vector<8x16xf32>
    %47 = arith.truncf %46 : vector<8x16xf32> to vector<8x16xbf16>
    %cst_25 = arith.constant dense<0.000000e+00> : vector<8x16xf32>
    %48 = tpu.matmul %47, %35, %cst_25 {dimension_numbers = #tpu.dot_dimension_numbers<[1], [0], [0], [1], [0, 0, 1, 1], [], []>} : vector<8x16xbf16>, vector<16x16xbf16>, vector<8x16xf32> -> vector<8x16xf32>
    %49 = arith.truncf %48 : vector<8x16xf32> to vector<8x16xbf16>
    %c0_26 = arith.constant 0 : index
    %c16 = arith.constant 16 : index
    %50 = vector.load %arg10[%c0_26, %c16] : memref<16x128xbf16, #tpu.memory_space<vmem>>, vector<8x16xbf16>
    tpu.vector_store %arg10[%c0_26, %c16], %49 {strides = array<i32>} : memref<16x128xbf16, #tpu.memory_space<vmem>>, vector<8x16xbf16>,
    %51 = vector.extract_strided_slice %8 {offsets = [0, 32], sizes = [8, 16], strides = [1, 1]} : vector<16x128xbf16> to vector<8x16xbf16>
    %52 = vector.extract_strided_slice %11 {offsets = [0, 32], sizes = [16, 16], strides = [1, 1]} : vector<32x128xbf16> to vector<16x16xbf16>
    %53 = vector.extract_strided_slice %14 {offsets = [0, 32], sizes = [16, 16], strides = [1, 1]} : vector<32x128xbf16> to vector<16x16xbf16>
    %cst_27 = arith.constant dense<0.000000e+00> : vector<8x16xf32>
    %54 = tpu.matmul %51, %52, %cst_27 {dimension_numbers = #tpu.dot_dimension_numbers<[1], [1], [0], [0], [0, 0, 1, 0], [], []>} : vector<8x16xbf16>, vector<16x16xbf16>, vector<8x16xf32> -> vector<8x16xf32>
    %cst_28 = arith.constant dense<0xFF800000> : vector<8xf32>
    %55 = vector.multi_reduction <maximumf>, %54, %cst_28 [1] : vector<8x16xf32> to vector<8xf32>
    %56 = vector.shape_cast %55 : vector<8xf32> to vector<8x1xf32>
    %57 = vector.broadcast %56 : vector<8x1xf32> to vector<8x16xf32>
    %58 = arith.subf %54, %57 : vector<8x16xf32>
    %59 = math.exp %58 : vector<8x16xf32>
    %cst_29 = arith.constant dense<0.000000e+00> : vector<8xf32>
    %60 = vector.multi_reduction <add>, %59, %cst_29 [1] : vector<8x16xf32> to vector<8xf32>
    %61 = vector.shape_cast %60 : vector<8xf32> to vector<8x1xf32>
    %62 = tpu.reciprocal %61 {approx = true} : vector<8x1xf32> -> vector<8x1xf32>
    %63 = vector.broadcast %62 : vector<8x1xf32> to vector<8x16xf32>
    %64 = arith.mulf %59, %63 : vector<8x16xf32>
    %65 = arith.truncf %64 : vector<8x16xf32> to vector<8x16xbf16>
    %cst_30 = arith.constant dense<0.000000e+00> : vector<8x16xf32>
    %66 = tpu.matmul %65, %53, %cst_30 {dimension_numbers = #tpu.dot_dimension_numbers<[1], [0], [0], [1], [0, 0, 1, 1], [], []>} : vector<8x16xbf16>, vector<16x16xbf16>, vector<8x16xf32> -> vector<8x16xf32>
    %67 = arith.truncf %66 : vector<8x16xf32> to vector<8x16xbf16>
    %c0_31 = arith.constant 0 : index
    %c32 = arith.constant 32 : index
    %68 = vector.load %arg10[%c0_31, %c32] : memref<16x128xbf16, #tpu.memory_space<vmem>>, vector<8x16xbf16>
    tpu.vector_store %arg10[%c0_31, %c32], %67 {strides = array<i32>} : memref<16x128xbf16, #tpu.memory_space<vmem>>, vector<8x16xbf16>,
    %69 = vector.extract_strided_slice %8 {offsets = [0, 48], sizes = [8, 16], strides = [1, 1]} : vector<16x128xbf16> to vector<8x16xbf16>
    %70 = vector.extract_strided_slice %11 {offsets = [0, 48], sizes = [16, 16], strides = [1, 1]} : vector<32x128xbf16> to vector<16x16xbf16>
    %71 = vector.extract_strided_slice %14 {offsets = [0, 48], sizes = [16, 16], strides = [1, 1]} : vector<32x128xbf16> to vector<16x16xbf16>
    %cst_32 = arith.constant dense<0.000000e+00> : vector<8x16xf32>
    %72 = tpu.matmul %69, %70, %cst_32 {dimension_numbers = #tpu.dot_dimension_numbers<[1], [1], [0], [0], [0, 0, 1, 0], [], []>} : vector<8x16xbf16>, vector<16x16xbf16>, vector<8x16xf32> -> vector<8x16xf32>
    %cst_33 = arith.constant dense<0xFF800000> : vector<8xf32>
    %73 = vector.multi_reduction <maximumf>, %72, %cst_33 [1] : vector<8x16xf32> to vector<8xf32>
    %74 = vector.shape_cast %73 : vector<8xf32> to vector<8x1xf32>
    %75 = vector.broadcast %74 : vector<8x1xf32> to vector<8x16xf32>
    %76 = arith.subf %72, %75 : vector<8x16xf32>
    %77 = math.exp %76 : vector<8x16xf32>
    %cst_34 = arith.constant dense<0.000000e+00> : vector<8xf32>
    %78 = vector.multi_reduction <add>, %77, %cst_34 [1] : vector<8x16xf32> to vector<8xf32>
    %79 = vector.shape_cast %78 : vector<8xf32> to vector<8x1xf32>
    %80 = tpu.reciprocal %79 {approx = true} : vector<8x1xf32> -> vector<8x1xf32>
    %81 = vector.broadcast %80 : vector<8x1xf32> to vector<8x16xf32>
    %82 = arith.mulf %77, %81 : vector<8x16xf32>
    %83 = arith.truncf %82 : vector<8x16xf32> to vector<8x16xbf16>
    %cst_35 = arith.constant dense<0.000000e+00> : vector<8x16xf32>
    %84 = tpu.matmul %83, %71, %cst_35 {dimension_numbers = #tpu.dot_dimension_numbers<[1], [0], [0], [1], [0, 0, 1, 1], [], []>} : vector<8x16xbf16>, vector<16x16xbf16>, vector<8x16xf32> -> vector<8x16xf32>
    %85 = arith.truncf %84 : vector<8x16xf32> to vector<8x16xbf16>
    %c0_36 = arith.constant 0 : index
    %c48 = arith.constant 48 : index
    %86 = vector.load %arg10[%c0_36, %c48] : memref<16x128xbf16, #tpu.memory_space<vmem>>, vector<8x16xbf16>
    tpu.vector_store %arg10[%c0_36, %c48], %85 {strides = array<i32>} : memref<16x128xbf16, #tpu.memory_space<vmem>>, vector<8x16xbf16>,
    %87 = vector.extract_strided_slice %8 {offsets = [0, 64], sizes = [8, 16], strides = [1, 1]} : vector<16x128xbf16> to vector<8x16xbf16>
    %88 = vector.extract_strided_slice %11 {offsets = [0, 64], sizes = [16, 16], strides = [1, 1]} : vector<32x128xbf16> to vector<16x16xbf16>
    %89 = vector.extract_strided_slice %14 {offsets = [0, 64], sizes = [16, 16], strides = [1, 1]} : vector<32x128xbf16> to vector<16x16xbf16>
    %cst_37 = arith.constant dense<0.000000e+00> : vector<8x16xf32>
    %90 = tpu.matmul %87, %88, %cst_37 {dimension_numbers = #tpu.dot_dimension_numbers<[1], [1], [0], [0], [0, 0, 1, 0], [], []>} : vector<8x16xbf16>, vector<16x16xbf16>, vector<8x16xf32> -> vector<8x16xf32>
    %cst_38 = arith.constant dense<0xFF800000> : vector<8xf32>
    %91 = vector.multi_reduction <maximumf>, %90, %cst_38 [1] : vector<8x16xf32> to vector<8xf32>
    %92 = vector.shape_cast %91 : vector<8xf32> to vector<8x1xf32>
    %93 = vector.broadcast %92 : vector<8x1xf32> to vector<8x16xf32>
    %94 = arith.subf %90, %93 : vector<8x16xf32>
    %95 = math.exp %94 : vector<8x16xf32>
    %cst_39 = arith.constant dense<0.000000e+00> : vector<8xf32>
    %96 = vector.multi_reduction <add>, %95, %cst_39 [1] : vector<8x16xf32> to vector<8xf32>
    %97 = vector.shape_cast %96 : vector<8xf32> to vector<8x1xf32>
    %98 = tpu.reciprocal %97 {approx = true} : vector<8x1xf32> -> vector<8x1xf32>
    %99 = vector.broadcast %98 : vector<8x1xf32> to vector<8x16xf32>
    %100 = arith.mulf %95, %99 : vector<8x16xf32>
    %101 = arith.truncf %100 : vector<8x16xf32> to vector<8x16xbf16>
    %cst_40 = arith.constant dense<0.000000e+00> : vector<8x16xf32>
    %102 = tpu.matmul %101, %89, %cst_40 {dimension_numbers = #tpu.dot_dimension_numbers<[1], [0], [0], [1], [0, 0, 1, 1], [], []>} : vector<8x16xbf16>, vector<16x16xbf16>, vector<8x16xf32> -> vector<8x16xf32>
    %103 = arith.truncf %102 : vector<8x16xf32> to vector<8x16xbf16>
    %c0_41 = arith.constant 0 : index
    %c64 = arith.constant 64 : index
    %104 = vector.load %arg10[%c0_41, %c64] : memref<16x128xbf16, #tpu.memory_space<vmem>>, vector<8x16xbf16>
    tpu.vector_store %arg10[%c0_41, %c64], %103 {strides = array<i32>} : memref<16x128xbf16, #tpu.memory_space<vmem>>, vector<8x16xbf16>,
    %105 = vector.extract_strided_slice %8 {offsets = [0, 80], sizes = [8, 16], strides = [1, 1]} : vector<16x128xbf16> to vector<8x16xbf16>
    %106 = vector.extract_strided_slice %11 {offsets = [0, 80], sizes = [16, 16], strides = [1, 1]} : vector<32x128xbf16> to vector<16x16xbf16>
    %107 = vector.extract_strided_slice %14 {offsets = [0, 80], sizes = [16, 16], strides = [1, 1]} : vector<32x128xbf16> to vector<16x16xbf16>
    %cst_42 = arith.constant dense<0.000000e+00> : vector<8x16xf32>
    %108 = tpu.matmul %105, %106, %cst_42 {dimension_numbers = #tpu.dot_dimension_numbers<[1], [1], [0], [0], [0, 0, 1, 0], [], []>} : vector<8x16xbf16>, vector<16x16xbf16>, vector<8x16xf32> -> vector<8x16xf32>
    %cst_43 = arith.constant dense<0xFF800000> : vector<8xf32>
    %109 = vector.multi_reduction <maximumf>, %108, %cst_43 [1] : vector<8x16xf32> to vector<8xf32>
    %110 = vector.shape_cast %109 : vector<8xf32> to vector<8x1xf32>
    %111 = vector.broadcast %110 : vector<8x1xf32> to vector<8x16xf32>
    %112 = arith.subf %108, %111 : vector<8x16xf32>
    %113 = math.exp %112 : vector<8x16xf32>
    %cst_44 = arith.constant dense<0.000000e+00> : vector<8xf32>
    %114 = vector.multi_reduction <add>, %113, %cst_44 [1] : vector<8x16xf32> to vector<8xf32>
    %115 = vector.shape_cast %114 : vector<8xf32> to vector<8x1xf32>
    %116 = tpu.reciprocal %115 {approx = true} : vector<8x1xf32> -> vector<8x1xf32>
    %117 = vector.broadcast %116 : vector<8x1xf32> to vector<8x16xf32>
    %118 = arith.mulf %113, %117 : vector<8x16xf32>
    %119 = arith.truncf %118 : vector<8x16xf32> to vector<8x16xbf16>
    %cst_45 = arith.constant dense<0.000000e+00> : vector<8x16xf32>
    %120 = tpu.matmul %119, %107, %cst_45 {dimension_numbers = #tpu.dot_dimension_numbers<[1], [0], [0], [1], [0, 0, 1, 1], [], []>} : vector<8x16xbf16>, vector<16x16xbf16>, vector<8x16xf32> -> vector<8x16xf32>
    %121 = arith.truncf %120 : vector<8x16xf32> to vector<8x16xbf16>
    %c0_46 = arith.constant 0 : index
    %c80 = arith.constant 80 : index
    %122 = vector.load %arg10[%c0_46, %c80] : memref<16x128xbf16, #tpu.memory_space<vmem>>, vector<8x16xbf16>
    tpu.vector_store %arg10[%c0_46, %c80], %121 {strides = array<i32>} : memref<16x128xbf16, #tpu.memory_space<vmem>>, vector<8x16xbf16>,
    %123 = vector.extract_strided_slice %8 {offsets = [0, 96], sizes = [8, 16], strides = [1, 1]} : vector<16x128xbf16> to vector<8x16xbf16>
    %124 = vector.extract_strided_slice %11 {offsets = [0, 96], sizes = [16, 16], strides = [1, 1]} : vector<32x128xbf16> to vector<16x16xbf16>
    %125 = vector.extract_strided_slice %14 {offsets = [0, 96], sizes = [16, 16], strides = [1, 1]} : vector<32x128xbf16> to vector<16x16xbf16>
    %cst_47 = arith.constant dense<0.000000e+00> : vector<8x16xf32>
    %126 = tpu.matmul %123, %124, %cst_47 {dimension_numbers = #tpu.dot_dimension_numbers<[1], [1], [0], [0], [0, 0, 1, 0], [], []>} : vector<8x16xbf16>, vector<16x16xbf16>, vector<8x16xf32> -> vector<8x16xf32>
    %cst_48 = arith.constant dense<0xFF800000> : vector<8xf32>
    %127 = vector.multi_reduction <maximumf>, %126, %cst_48 [1] : vector<8x16xf32> to vector<8xf32>
    %128 = vector.shape_cast %127 : vector<8xf32> to vector<8x1xf32>
    %129 = vector.broadcast %128 : vector<8x1xf32> to vector<8x16xf32>
    %130 = arith.subf %126, %129 : vector<8x16xf32>
    %131 = math.exp %130 : vector<8x16xf32>
    %cst_49 = arith.constant dense<0.000000e+00> : vector<8xf32>
    %132 = vector.multi_reduction <add>, %131, %cst_49 [1] : vector<8x16xf32> to vector<8xf32>
    %133 = vector.shape_cast %132 : vector<8xf32> to vector<8x1xf32>
    %134 = tpu.reciprocal %133 {approx = true} : vector<8x1xf32> -> vector<8x1xf32>
    %135 = vector.broadcast %134 : vector<8x1xf32> to vector<8x16xf32>
    %136 = arith.mulf %131, %135 : vector<8x16xf32>
    %137 = arith.truncf %136 : vector<8x16xf32> to vector<8x16xbf16>
    %cst_50 = arith.constant dense<0.000000e+00> : vector<8x16xf32>
    %138 = tpu.matmul %137, %125, %cst_50 {dimension_numbers = #tpu.dot_dimension_numbers<[1], [0], [0], [1], [0, 0, 1, 1], [], []>} : vector<8x16xbf16>, vector<16x16xbf16>, vector<8x16xf32> -> vector<8x16xf32>
    %139 = arith.truncf %138 : vector<8x16xf32> to vector<8x16xbf16>
    %c0_51 = arith.constant 0 : index
    %c96 = arith.constant 96 : index
    %140 = vector.load %arg10[%c0_51, %c96] : memref<16x128xbf16, #tpu.memory_space<vmem>>, vector<8x16xbf16>
    tpu.vector_store %arg10[%c0_51, %c96], %139 {strides = array<i32>} : memref<16x128xbf16, #tpu.memory_space<vmem>>, vector<8x16xbf16>,
    %141 = vector.extract_strided_slice %8 {offsets = [0, 112], sizes = [8, 16], strides = [1, 1]} : vector<16x128xbf16> to vector<8x16xbf16>
    %142 = vector.extract_strided_slice %11 {offsets = [0, 112], sizes = [16, 16], strides = [1, 1]} : vector<32x128xbf16> to vector<16x16xbf16>
    %143 = vector.extract_strided_slice %14 {offsets = [0, 112], sizes = [16, 16], strides = [1, 1]} : vector<32x128xbf16> to vector<16x16xbf16>
    %cst_52 = arith.constant dense<0.000000e+00> : vector<8x16xf32>
    %144 = tpu.matmul %141, %142, %cst_52 {dimension_numbers = #tpu.dot_dimension_numbers<[1], [1], [0], [0], [0, 0, 1, 0], [], []>} : vector<8x16xbf16>, vector<16x16xbf16>, vector<8x16xf32> -> vector<8x16xf32>
    %cst_53 = arith.constant dense<0xFF800000> : vector<8xf32>
    %145 = vector.multi_reduction <maximumf>, %144, %cst_53 [1] : vector<8x16xf32> to vector<8xf32>
    %146 = vector.shape_cast %145 : vector<8xf32> to vector<8x1xf32>
    %147 = vector.broadcast %146 : vector<8x1xf32> to vector<8x16xf32>
    %148 = arith.subf %144, %147 : vector<8x16xf32>
    %149 = math.exp %148 : vector<8x16xf32>
    %cst_54 = arith.constant dense<0.000000e+00> : vector<8xf32>
    %150 = vector.multi_reduction <add>, %149, %cst_54 [1] : vector<8x16xf32> to vector<8xf32>
    %151 = vector.shape_cast %150 : vector<8xf32> to vector<8x1xf32>
    %152 = tpu.reciprocal %151 {approx = true} : vector<8x1xf32> -> vector<8x1xf32>
    %153 = vector.broadcast %152 : vector<8x1xf32> to vector<8x16xf32>
    %154 = arith.mulf %149, %153 : vector<8x16xf32>
    %155 = arith.truncf %154 : vector<8x16xf32> to vector<8x16xbf16>
    %cst_55 = arith.constant dense<0.000000e+00> : vector<8x16xf32>
    %156 = tpu.matmul %155, %143, %cst_55 {dimension_numbers = #tpu.dot_dimension_numbers<[1], [0], [0], [1], [0, 0, 1, 1], [], []>} : vector<8x16xbf16>, vector<16x16xbf16>, vector<8x16xf32> -> vector<8x16xf32>
    %157 = arith.truncf %156 : vector<8x16xf32> to vector<8x16xbf16>
    %c0_56 = arith.constant 0 : index
    %c112 = arith.constant 112 : index
    %158 = vector.load %arg10[%c0_56, %c112] : memref<16x128xbf16, #tpu.memory_space<vmem>>, vector<8x16xbf16>
    tpu.vector_store %arg10[%c0_56, %c112], %157 {strides = array<i32>} : memref<16x128xbf16, #tpu.memory_space<vmem>>, vector<8x16xbf16>,
    %159 = vector.extract_strided_slice %8 {offsets = [8, 0], sizes = [8, 16], strides = [1, 1]} : vector<16x128xbf16> to vector<8x16xbf16>
    %160 = vector.extract_strided_slice %11 {offsets = [16, 0], sizes = [16, 16], strides = [1, 1]} : vector<32x128xbf16> to vector<16x16xbf16>
    %161 = vector.extract_strided_slice %14 {offsets = [16, 0], sizes = [16, 16], strides = [1, 1]} : vector<32x128xbf16> to vector<16x16xbf16>
    %cst_57 = arith.constant dense<0.000000e+00> : vector<8x16xf32>
    %162 = tpu.matmul %159, %160, %cst_57 {dimension_numbers = #tpu.dot_dimension_numbers<[1], [1], [0], [0], [0, 0, 1, 0], [], []>} : vector<8x16xbf16>, vector<16x16xbf16>, vector<8x16xf32> -> vector<8x16xf32>
    %cst_58 = arith.constant dense<0xFF800000> : vector<8xf32>
    %163 = vector.multi_reduction <maximumf>, %162, %cst_58 [1] : vector<8x16xf32> to vector<8xf32>
    %164 = vector.shape_cast %163 : vector<8xf32> to vector<8x1xf32>
    %165 = vector.broadcast %164 : vector<8x1xf32> to vector<8x16xf32>
    %166 = arith.subf %162, %165 : vector<8x16xf32>
    %167 = math.exp %166 : vector<8x16xf32>
    %cst_59 = arith.constant dense<0.000000e+00> : vector<8xf32>
    %168 = vector.multi_reduction <add>, %167, %cst_59 [1] : vector<8x16xf32> to vector<8xf32>
    %169 = vector.shape_cast %168 : vector<8xf32> to vector<8x1xf32>
    %170 = tpu.reciprocal %169 {approx = true} : vector<8x1xf32> -> vector<8x1xf32>
    %171 = vector.broadcast %170 : vector<8x1xf32> to vector<8x16xf32>
    %172 = arith.mulf %167, %171 : vector<8x16xf32>
    %173 = arith.truncf %172 : vector<8x16xf32> to vector<8x16xbf16>
    %cst_60 = arith.constant dense<0.000000e+00> : vector<8x16xf32>
    %174 = tpu.matmul %173, %161, %cst_60 {dimension_numbers = #tpu.dot_dimension_numbers<[1], [0], [0], [1], [0, 0, 1, 1], [], []>} : vector<8x16xbf16>, vector<16x16xbf16>, vector<8x16xf32> -> vector<8x16xf32>
    %175 = arith.truncf %174 : vector<8x16xf32> to vector<8x16xbf16>
    %c8 = arith.constant 8 : index
    %c0_61 = arith.constant 0 : index
    %176 = vector.load %arg10[%c8, %c0_61] : memref<16x128xbf16, #tpu.memory_space<vmem>>, vector<8x16xbf16>
    tpu.vector_store %arg10[%c8, %c0_61], %175 {strides = array<i32>} : memref<16x128xbf16, #tpu.memory_space<vmem>>, vector<8x16xbf16>,
    %177 = vector.extract_strided_slice %8 {offsets = [8, 16], sizes = [8, 16], strides = [1, 1]} : vector<16x128xbf16> to vector<8x16xbf16>
    %178 = vector.extract_strided_slice %11 {offsets = [16, 16], sizes = [16, 16], strides = [1, 1]} : vector<32x128xbf16> to vector<16x16xbf16>
    %179 = vector.extract_strided_slice %14 {offsets = [16, 16], sizes = [16, 16], strides = [1, 1]} : vector<32x128xbf16> to vector<16x16xbf16>
    %cst_62 = arith.constant dense<0.000000e+00> : vector<8x16xf32>
    %180 = tpu.matmul %177, %178, %cst_62 {dimension_numbers = #tpu.dot_dimension_numbers<[1], [1], [0], [0], [0, 0, 1, 0], [], []>} : vector<8x16xbf16>, vector<16x16xbf16>, vector<8x16xf32> -> vector<8x16xf32>
    %cst_63 = arith.constant dense<0xFF800000> : vector<8xf32>
    %181 = vector.multi_reduction <maximumf>, %180, %cst_63 [1] : vector<8x16xf32> to vector<8xf32>
    %182 = vector.shape_cast %181 : vector<8xf32> to vector<8x1xf32>
    %183 = vector.broadcast %182 : vector<8x1xf32> to vector<8x16xf32>
    %184 = arith.subf %180, %183 : vector<8x16xf32>
    %185 = math.exp %184 : vector<8x16xf32>
    %cst_64 = arith.constant dense<0.000000e+00> : vector<8xf32>
    %186 = vector.multi_reduction <add>, %185, %cst_64 [1] : vector<8x16xf32> to vector<8xf32>
    %187 = vector.shape_cast %186 : vector<8xf32> to vector<8x1xf32>
    %188 = tpu.reciprocal %187 {approx = true} : vector<8x1xf32> -> vector<8x1xf32>
    %189 = vector.broadcast %188 : vector<8x1xf32> to vector<8x16xf32>
    %190 = arith.mulf %185, %189 : vector<8x16xf32>
    %191 = arith.truncf %190 : vector<8x16xf32> to vector<8x16xbf16>
    %cst_65 = arith.constant dense<0.000000e+00> : vector<8x16xf32>
    %192 = tpu.matmul %191, %179, %cst_65 {dimension_numbers = #tpu.dot_dimension_numbers<[1], [0], [0], [1], [0, 0, 1, 1], [], []>} : vector<8x16xbf16>, vector<16x16xbf16>, vector<8x16xf32> -> vector<8x16xf32>
    %193 = arith.truncf %192 : vector<8x16xf32> to vector<8x16xbf16>
    %c8_66 = arith.constant 8 : index
    %c16_67 = arith.constant 16 : index
    %194 = vector.load %arg10[%c8_66, %c16_67] : memref<16x128xbf16, #tpu.memory_space<vmem>>, vector<8x16xbf16>
    tpu.vector_store %arg10[%c8_66, %c16_67], %193 {strides = array<i32>} : memref<16x128xbf16, #tpu.memory_space<vmem>>, vector<8x16xbf16>,
    %195 = vector.extract_strided_slice %8 {offsets = [8, 32], sizes = [8, 16], strides = [1, 1]} : vector<16x128xbf16> to vector<8x16xbf16>
    %196 = vector.extract_strided_slice %11 {offsets = [16, 32], sizes = [16, 16], strides = [1, 1]} : vector<32x128xbf16> to vector<16x16xbf16>
    %197 = vector.extract_strided_slice %14 {offsets = [16, 32], sizes = [16, 16], strides = [1, 1]} : vector<32x128xbf16> to vector<16x16xbf16>
    %cst_68 = arith.constant dense<0.000000e+00> : vector<8x16xf32>
    %198 = tpu.matmul %195, %196, %cst_68 {dimension_numbers = #tpu.dot_dimension_numbers<[1], [1], [0], [0], [0, 0, 1, 0], [], []>} : vector<8x16xbf16>, vector<16x16xbf16>, vector<8x16xf32> -> vector<8x16xf32>
    %cst_69 = arith.constant dense<0xFF800000> : vector<8xf32>
    %199 = vector.multi_reduction <maximumf>, %198, %cst_69 [1] : vector<8x16xf32> to vector<8xf32>
    %200 = vector.shape_cast %199 : vector<8xf32> to vector<8x1xf32>
    %201 = vector.broadcast %200 : vector<8x1xf32> to vector<8x16xf32>
    %202 = arith.subf %198, %201 : vector<8x16xf32>
    %203 = math.exp %202 : vector<8x16xf32>
    %cst_70 = arith.constant dense<0.000000e+00> : vector<8xf32>
    %204 = vector.multi_reduction <add>, %203, %cst_70 [1] : vector<8x16xf32> to vector<8xf32>
    %205 = vector.shape_cast %204 : vector<8xf32> to vector<8x1xf32>
    %206 = tpu.reciprocal %205 {approx = true} : vector<8x1xf32> -> vector<8x1xf32>
    %207 = vector.broadcast %206 : vector<8x1xf32> to vector<8x16xf32>
    %208 = arith.mulf %203, %207 : vector<8x16xf32>
    %209 = arith.truncf %208 : vector<8x16xf32> to vector<8x16xbf16>
    %cst_71 = arith.constant dense<0.000000e+00> : vector<8x16xf32>
    %210 = tpu.matmul %209, %197, %cst_71 {dimension_numbers = #tpu.dot_dimension_numbers<[1], [0], [0], [1], [0, 0, 1, 1], [], []>} : vector<8x16xbf16>, vector<16x16xbf16>, vector<8x16xf32> -> vector<8x16xf32>
    %211 = arith.truncf %210 : vector<8x16xf32> to vector<8x16xbf16>
    %c8_72 = arith.constant 8 : index
    %c32_73 = arith.constant 32 : index
    %212 = vector.load %arg10[%c8_72, %c32_73] : memref<16x128xbf16, #tpu.memory_space<vmem>>, vector<8x16xbf16>
    tpu.vector_store %arg10[%c8_72, %c32_73], %211 {strides = array<i32>} : memref<16x128xbf16, #tpu.memory_space<vmem>>, vector<8x16xbf16>,
    %213 = vector.extract_strided_slice %8 {offsets = [8, 48], sizes = [8, 16], strides = [1, 1]} : vector<16x128xbf16> to vector<8x16xbf16>
    %214 = vector.extract_strided_slice %11 {offsets = [16, 48], sizes = [16, 16], strides = [1, 1]} : vector<32x128xbf16> to vector<16x16xbf16>
    %215 = vector.extract_strided_slice %14 {offsets = [16, 48], sizes = [16, 16], strides = [1, 1]} : vector<32x128xbf16> to vector<16x16xbf16>
    %cst_74 = arith.constant dense<0.000000e+00> : vector<8x16xf32>
    %216 = tpu.matmul %213, %214, %cst_74 {dimension_numbers = #tpu.dot_dimension_numbers<[1], [1], [0], [0], [0, 0, 1, 0], [], []>} : vector<8x16xbf16>, vector<16x16xbf16>, vector<8x16xf32> -> vector<8x16xf32>
    %cst_75 = arith.constant dense<0xFF800000> : vector<8xf32>
    %217 = vector.multi_reduction <maximumf>, %216, %cst_75 [1] : vector<8x16xf32> to vector<8xf32>
    %218 = vector.shape_cast %217 : vector<8xf32> to vector<8x1xf32>
    %219 = vector.broadcast %218 : vector<8x1xf32> to vector<8x16xf32>
    %220 = arith.subf %216, %219 : vector<8x16xf32>
    %221 = math.exp %220 : vector<8x16xf32>
    %cst_76 = arith.constant dense<0.000000e+00> : vector<8xf32>
    %222 = vector.multi_reduction <add>, %221, %cst_76 [1] : vector<8x16xf32> to vector<8xf32>
    %223 = vector.shape_cast %222 : vector<8xf32> to vector<8x1xf32>
    %224 = tpu.reciprocal %223 {approx = true} : vector<8x1xf32> -> vector<8x1xf32>
    %225 = vector.broadcast %224 : vector<8x1xf32> to vector<8x16xf32>
    %226 = arith.mulf %221, %225 : vector<8x16xf32>
    %227 = arith.truncf %226 : vector<8x16xf32> to vector<8x16xbf16>
    %cst_77 = arith.constant dense<0.000000e+00> : vector<8x16xf32>
    %228 = tpu.matmul %227, %215, %cst_77 {dimension_numbers = #tpu.dot_dimension_numbers<[1], [0], [0], [1], [0, 0, 1, 1], [], []>} : vector<8x16xbf16>, vector<16x16xbf16>, vector<8x16xf32> -> vector<8x16xf32>
    %229 = arith.truncf %228 : vector<8x16xf32> to vector<8x16xbf16>
    %c8_78 = arith.constant 8 : index
    %c48_79 = arith.constant 48 : index
    %230 = vector.load %arg10[%c8_78, %c48_79] : memref<16x128xbf16, #tpu.memory_space<vmem>>, vector<8x16xbf16>
    tpu.vector_store %arg10[%c8_78, %c48_79], %229 {strides = array<i32>} : memref<16x128xbf16, #tpu.memory_space<vmem>>, vector<8x16xbf16>,
    %231 = vector.extract_strided_slice %8 {offsets = [8, 64], sizes = [8, 16], strides = [1, 1]} : vector<16x128xbf16> to vector<8x16xbf16>
    %232 = vector.extract_strided_slice %11 {offsets = [16, 64], sizes = [16, 16], strides = [1, 1]} : vector<32x128xbf16> to vector<16x16xbf16>
    %233 = vector.extract_strided_slice %14 {offsets = [16, 64], sizes = [16, 16], strides = [1, 1]} : vector<32x128xbf16> to vector<16x16xbf16>
    %cst_80 = arith.constant dense<0.000000e+00> : vector<8x16xf32>
    %234 = tpu.matmul %231, %232, %cst_80 {dimension_numbers = #tpu.dot_dimension_numbers<[1], [1], [0], [0], [0, 0, 1, 0], [], []>} : vector<8x16xbf16>, vector<16x16xbf16>, vector<8x16xf32> -> vector<8x16xf32>
    %cst_81 = arith.constant dense<0xFF800000> : vector<8xf32>
    %235 = vector.multi_reduction <maximumf>, %234, %cst_81 [1] : vector<8x16xf32> to vector<8xf32>
    %236 = vector.shape_cast %235 : vector<8xf32> to vector<8x1xf32>
    %237 = vector.broadcast %236 : vector<8x1xf32> to vector<8x16xf32>
    %238 = arith.subf %234, %237 : vector<8x16xf32>
    %239 = math.exp %238 : vector<8x16xf32>
    %cst_82 = arith.constant dense<0.000000e+00> : vector<8xf32>
    %240 = vector.multi_reduction <add>, %239, %cst_82 [1] : vector<8x16xf32> to vector<8xf32>
    %241 = vector.shape_cast %240 : vector<8xf32> to vector<8x1xf32>
    %242 = tpu.reciprocal %241 {approx = true} : vector<8x1xf32> -> vector<8x1xf32>
    %243 = vector.broadcast %242 : vector<8x1xf32> to vector<8x16xf32>
    %244 = arith.mulf %239, %243 : vector<8x16xf32>
    %245 = arith.truncf %244 : vector<8x16xf32> to vector<8x16xbf16>
    %cst_83 = arith.constant dense<0.000000e+00> : vector<8x16xf32>
    %246 = tpu.matmul %245, %233, %cst_83 {dimension_numbers = #tpu.dot_dimension_numbers<[1], [0], [0], [1], [0, 0, 1, 1], [], []>} : vector<8x16xbf16>, vector<16x16xbf16>, vector<8x16xf32> -> vector<8x16xf32>
    %247 = arith.truncf %246 : vector<8x16xf32> to vector<8x16xbf16>
    %c8_84 = arith.constant 8 : index
    %c64_85 = arith.constant 64 : index
    %248 = vector.load %arg10[%c8_84, %c64_85] : memref<16x128xbf16, #tpu.memory_space<vmem>>, vector<8x16xbf16>
    tpu.vector_store %arg10[%c8_84, %c64_85], %247 {strides = array<i32>} : memref<16x128xbf16, #tpu.memory_space<vmem>>, vector<8x16xbf16>,
    %249 = vector.extract_strided_slice %8 {offsets = [8, 80], sizes = [8, 16], strides = [1, 1]} : vector<16x128xbf16> to vector<8x16xbf16>
    %250 = vector.extract_strided_slice %11 {offsets = [16, 80], sizes = [16, 16], strides = [1, 1]} : vector<32x128xbf16> to vector<16x16xbf16>
    %251 = vector.extract_strided_slice %14 {offsets = [16, 80], sizes = [16, 16], strides = [1, 1]} : vector<32x128xbf16> to vector<16x16xbf16>
    %cst_86 = arith.constant dense<0.000000e+00> : vector<8x16xf32>
    %252 = tpu.matmul %249, %250, %cst_86 {dimension_numbers = #tpu.dot_dimension_numbers<[1], [1], [0], [0], [0, 0, 1, 0], [], []>} : vector<8x16xbf16>, vector<16x16xbf16>, vector<8x16xf32> -> vector<8x16xf32>
    %cst_87 = arith.constant dense<0xFF800000> : vector<8xf32>
    %253 = vector.multi_reduction <maximumf>, %252, %cst_87 [1] : vector<8x16xf32> to vector<8xf32>
    %254 = vector.shape_cast %253 : vector<8xf32> to vector<8x1xf32>
    %255 = vector.broadcast %254 : vector<8x1xf32> to vector<8x16xf32>
    %256 = arith.subf %252, %255 : vector<8x16xf32>
    %257 = math.exp %256 : vector<8x16xf32>
    %cst_88 = arith.constant dense<0.000000e+00> : vector<8xf32>
    %258 = vector.multi_reduction <add>, %257, %cst_88 [1] : vector<8x16xf32> to vector<8xf32>
    %259 = vector.shape_cast %258 : vector<8xf32> to vector<8x1xf32>
    %260 = tpu.reciprocal %259 {approx = true} : vector<8x1xf32> -> vector<8x1xf32>
    %261 = vector.broadcast %260 : vector<8x1xf32> to vector<8x16xf32>
    %262 = arith.mulf %257, %261 : vector<8x16xf32>
    %263 = arith.truncf %262 : vector<8x16xf32> to vector<8x16xbf16>
    %cst_89 = arith.constant dense<0.000000e+00> : vector<8x16xf32>
    %264 = tpu.matmul %263, %251, %cst_89 {dimension_numbers = #tpu.dot_dimension_numbers<[1], [0], [0], [1], [0, 0, 1, 1], [], []>} : vector<8x16xbf16>, vector<16x16xbf16>, vector<8x16xf32> -> vector<8x16xf32>
    %265 = arith.truncf %264 : vector<8x16xf32> to vector<8x16xbf16>
    %c8_90 = arith.constant 8 : index
    %c80_91 = arith.constant 80 : index
    %266 = vector.load %arg10[%c8_90, %c80_91] : memref<16x128xbf16, #tpu.memory_space<vmem>>, vector<8x16xbf16>
    tpu.vector_store %arg10[%c8_90, %c80_91], %265 {strides = array<i32>} : memref<16x128xbf16, #tpu.memory_space<vmem>>, vector<8x16xbf16>,
    %267 = vector.extract_strided_slice %8 {offsets = [8, 96], sizes = [8, 16], strides = [1, 1]} : vector<16x128xbf16> to vector<8x16xbf16>
    %268 = vector.extract_strided_slice %11 {offsets = [16, 96], sizes = [16, 16], strides = [1, 1]} : vector<32x128xbf16> to vector<16x16xbf16>
    %269 = vector.extract_strided_slice %14 {offsets = [16, 96], sizes = [16, 16], strides = [1, 1]} : vector<32x128xbf16> to vector<16x16xbf16>
    %cst_92 = arith.constant dense<0.000000e+00> : vector<8x16xf32>
    %270 = tpu.matmul %267, %268, %cst_92 {dimension_numbers = #tpu.dot_dimension_numbers<[1], [1], [0], [0], [0, 0, 1, 0], [], []>} : vector<8x16xbf16>, vector<16x16xbf16>, vector<8x16xf32> -> vector<8x16xf32>
    %cst_93 = arith.constant dense<0xFF800000> : vector<8xf32>
    %271 = vector.multi_reduction <maximumf>, %270, %cst_93 [1] : vector<8x16xf32> to vector<8xf32>
    %272 = vector.shape_cast %271 : vector<8xf32> to vector<8x1xf32>
    %273 = vector.broadcast %272 : vector<8x1xf32> to vector<8x16xf32>
    %274 = arith.subf %270, %273 : vector<8x16xf32>
    %275 = math.exp %274 : vector<8x16xf32>
    %cst_94 = arith.constant dense<0.000000e+00> : vector<8xf32>
    %276 = vector.multi_reduction <add>, %275, %cst_94 [1] : vector<8x16xf32> to vector<8xf32>
    %277 = vector.shape_cast %276 : vector<8xf32> to vector<8x1xf32>
    %278 = tpu.reciprocal %277 {approx = true} : vector<8x1xf32> -> vector<8x1xf32>
    %279 = vector.broadcast %278 : vector<8x1xf32> to vector<8x16xf32>
    %280 = arith.mulf %275, %279 : vector<8x16xf32>
    %281 = arith.truncf %280 : vector<8x16xf32> to vector<8x16xbf16>
    %cst_95 = arith.constant dense<0.000000e+00> : vector<8x16xf32>
    %282 = tpu.matmul %281, %269, %cst_95 {dimension_numbers = #tpu.dot_dimension_numbers<[1], [0], [0], [1], [0, 0, 1, 1], [], []>} : vector<8x16xbf16>, vector<16x16xbf16>, vector<8x16xf32> -> vector<8x16xf32>
    %283 = arith.truncf %282 : vector<8x16xf32> to vector<8x16xbf16>
    %c8_96 = arith.constant 8 : index
    %c96_97 = arith.constant 96 : index
    %284 = vector.load %arg10[%c8_96, %c96_97] : memref<16x128xbf16, #tpu.memory_space<vmem>>, vector<8x16xbf16>
    tpu.vector_store %arg10[%c8_96, %c96_97], %283 {strides = array<i32>} : memref<16x128xbf16, #tpu.memory_space<vmem>>, vector<8x16xbf16>,
    %285 = vector.extract_strided_slice %8 {offsets = [8, 112], sizes = [8, 16], strides = [1, 1]} : vector<16x128xbf16> to vector<8x16xbf16>
    %286 = vector.extract_strided_slice %11 {offsets = [16, 112], sizes = [16, 16], strides = [1, 1]} : vector<32x128xbf16> to vector<16x16xbf16>
    %287 = vector.extract_strided_slice %14 {offsets = [16, 112], sizes = [16, 16], strides = [1, 1]} : vector<32x128xbf16> to vector<16x16xbf16>
    %cst_98 = arith.constant dense<0.000000e+00> : vector<8x16xf32>
    %288 = tpu.matmul %285, %286, %cst_98 {dimension_numbers = #tpu.dot_dimension_numbers<[1], [1], [0], [0], [0, 0, 1, 0], [], []>} : vector<8x16xbf16>, vector<16x16xbf16>, vector<8x16xf32> -> vector<8x16xf32>
    %cst_99 = arith.constant dense<0xFF800000> : vector<8xf32>
    %289 = vector.multi_reduction <maximumf>, %288, %cst_99 [1] : vector<8x16xf32> to vector<8xf32>
    %290 = vector.shape_cast %289 : vector<8xf32> to vector<8x1xf32>
    %291 = vector.broadcast %290 : vector<8x1xf32> to vector<8x16xf32>
    %292 = arith.subf %288, %291 : vector<8x16xf32>
    %293 = math.exp %292 : vector<8x16xf32>
    %cst_100 = arith.constant dense<0.000000e+00> : vector<8xf32>
    %294 = vector.multi_reduction <add>, %293, %cst_100 [1] : vector<8x16xf32> to vector<8xf32>
    %295 = vector.shape_cast %294 : vector<8xf32> to vector<8x1xf32>
    %296 = tpu.reciprocal %295 {approx = true} : vector<8x1xf32> -> vector<8x1xf32>
    %297 = vector.broadcast %296 : vector<8x1xf32> to vector<8x16xf32>
    %298 = arith.mulf %293, %297 : vector<8x16xf32>
    %299 = arith.truncf %298 : vector<8x16xf32> to vector<8x16xbf16>
    %cst_101 = arith.constant dense<0.000000e+00> : vector<8x16xf32>
    %300 = tpu.matmul %299, %287, %cst_101 {dimension_numbers = #tpu.dot_dimension_numbers<[1], [0], [0], [1], [0, 0, 1, 1], [], []>} : vector<8x16xbf16>, vector<16x16xbf16>, vector<8x16xf32> -> vector<8x16xf32>
    %301 = arith.truncf %300 : vector<8x16xf32> to vector<8x16xbf16>
    %c8_102 = arith.constant 8 : index
    %c112_103 = arith.constant 112 : index
    %302 = vector.load %arg10[%c8_102, %c112_103] : memref<16x128xbf16, #tpu.memory_space<vmem>>, vector<8x16xbf16>
    tpu.vector_store %arg10[%c8_102, %c112_103], %301 {strides = array<i32>} : memref<16x128xbf16, #tpu.memory_space<vmem>>, vector<8x16xbf16>,
    %c0_104 = arith.constant 0 : index
    %c0_105 = arith.constant 0 : index
    %303 = vector.load %arg10[%c0_104, %c0_105] : memref<16x128xbf16, #tpu.memory_space<vmem>>, vector<16x128xbf16>
    %c0_106 = arith.constant 0 : index
    %c0_107 = arith.constant 0 : index
    %304 = vector.load %arg7[%c0_106, %c0_107] : memref<128x128xbf16, #tpu.memory_space<vmem>>, vector<128x128xbf16>
    %cst_108 = arith.constant dense<0.000000e+00> : vector<16x128xf32>
    %305 = tpu.matmul %303, %304, %cst_108 {dimension_numbers = #tpu.dot_dimension_numbers<[1], [0], [0], [1], [0, 0, 1, 1], [], []>} : vector<16x128xbf16>, vector<128x128xbf16>, vector<16x128xf32> -> vector<16x128xf32>
    %c0_109 = arith.constant 0 : index
    %c0_110 = arith.constant 0 : index
    %306 = vector.load %arg8[%c0_109, %c0_110] : memref<1x128xf32, #tpu.memory_space<vmem>>, vector<1x128xf32>
    %307 = vector.broadcast %306 : vector<1x128xf32> to vector<16x128xf32>
    %308 = arith.addf %305, %307 : vector<16x128xf32>
    %309 = vector.shape_cast %308 : vector<16x128xf32> to vector<2x8x128xf32>
    %c0_111 = arith.constant 0 : index
    %c0_112 = arith.constant 0 : index
    %c0_113 = arith.constant 0 : index
    %310 = vector.load %arg9[%c0_111, %c0_112, %c0_113] : memref<2x8x128xf32, #tpu.memory_space<vmem>>, vector<2x8x128xf32>
    tpu.vector_store %arg9[%c0_111, %c0_112, %c0_113], %309 {strides = array<i32>} : memref<2x8x128xf32, #tpu.memory_space<vmem>>, vector<2x8x128xf32>,
    return
  }
  func.func @transform_0(%arg0: i32) -> (i32, i32, i32) {
    %c0_i32 = arith.constant 0 : i32
    %c0_i32_0 = arith.constant 0 : i32
    %c0_i32_1 = arith.constant 0 : i32
    return %arg0, %c0_i32, %c0_i32_0 : i32, i32, i32
  }
  func.func @transform_1(%arg0: i32) -> (i32, i32, i32) {
    %c0_i32 = arith.constant 0 : i32
    %c0_i32_0 = arith.constant 0 : i32
    %c0_i32_1 = arith.constant 0 : i32
    return %arg0, %c0_i32, %c0_i32_0 : i32, i32, i32
  }
  func.func @transform_2(%arg0: i32) -> (i32, i32, i32) {
    %c0_i32 = arith.constant 0 : i32
    %c0_i32_0 = arith.constant 0 : i32
    %c0_i32_1 = arith.constant 0 : i32
    return %arg0, %c0_i32, %c0_i32_0 : i32, i32, i32
  }
  func.func @transform_3(%arg0: i32) -> (i32, i32) {
    %c0_i32 = arith.constant 0 : i32
    %c0_i32_0 = arith.constant 0 : i32
    %c0_i32_1 = arith.constant 0 : i32
    return %c0_i32, %c0_i32_0 : i32, i32
  }
  func.func @transform_4(%arg0: i32) -> (i32, i32) {
    %c0_i32 = arith.constant 0 : i32
    %c0_i32_0 = arith.constant 0 : i32
    %c0_i32_1 = arith.constant 0 : i32
    return %c0_i32, %c0_i32_0 : i32, i32
  }
  func.func @transform_5(%arg0: i32) -> (i32, i32) {
    %c0_i32 = arith.constant 0 : i32
    %c0_i32_0 = arith.constant 0 : i32
    %c0_i32_1 = arith.constant 0 : i32
    return %c0_i32, %c0_i32_0 : i32, i32
  }
  func.func @transform_6(%arg0: i32) -> (i32, i32) {
    %c0_i32 = arith.constant 0 : i32
    %c0_i32_0 = arith.constant 0 : i32
    %c0_i32_1 = arith.constant 0 : i32
    return %c0_i32, %c0_i32_0 : i32, i32
  }
  func.func @transform_7(%arg0: i32) -> (i32, i32) {
    %c0_i32 = arith.constant 0 : i32
    %c0_i32_0 = arith.constant 0 : i32
    %c0_i32_1 = arith.constant 0 : i32
    return %c0_i32, %c0_i32_0 : i32, i32
  }
  func.func @transform_8(%arg0: i32) -> (i32, i32, i32) {
    %c0_i32 = arith.constant 0 : i32
    %c0_i32_0 = arith.constant 0 : i32
    %c0_i32_1 = arith.constant 0 : i32
    return %arg0, %c0_i32, %c0_i32_0 : i32, i32, i32
  }
}

</mosaic_0001>

<llo_original>
// kernel: tpu_custom_call.1
$region0: #{tpu_custom_call.1}
  #allocation0 [shape = 'u32[]', space=smem, size = 0x4, offset = 0x4, fixed_abs, tag = 'smem constant byte address 0x4 - core index']
  #allocation1 [shape = 'u32[144,128]{1,0:T(1,128)}', space=vmem, size = 0x12000, scoped, tag = 'internal scratch']
  #allocation2 [shape = 'bf16[16,128]{1,0:T(16,128)(2,1)}', space=vmem, size = 0x1000, scoped, tag = 'scratch operand']
  %s0 = inlined_call_operand.hbm [shape: bf16[2,8,128], index: 0, kind: input, shape index: {}]
  %s1 = inlined_call_operand.hbm [shape: bf16[2,16,128], index: 1, kind: input, shape index: {}]
  %s2 = inlined_call_operand.hbm [shape: bf16[2,16,128], index: 2, kind: input, shape index: {}]
  %s3 = inlined_call_operand.hbm [shape: bf16[128,128], index: 3, kind: input, shape index: {}]
  %s4 = inlined_call_operand.hbm [shape: bf16[128,128], index: 4, kind: input, shape index: {}]
  %s5 = inlined_call_operand.hbm [shape: bf16[128,128], index: 5, kind: input, shape index: {}]
  %s6 = inlined_call_operand.hbm [shape: bf16[128,128], index: 6, kind: input, shape index: {}]
  %s7 = inlined_call_operand.vmem [shape: f32[1,128], index: 7, kind: input, shape index: {}]
  %s8 = inlined_call_operand.hbm [shape: f32[2,8,128], index: 8, kind: output, shape index: {}]
  %s9 = sld [smem:[#allocation0]]
  $region70: #{tpu_custom_call.1} parent=0
    _
  %s11 = ssub.s32 1, %s9
  %s12 = scalar_select 0, %s11, %s9
  $region1: #{tpu_custom_call.1} parent=0
    #allocation3 [shape = 'u8[4096]{0}', space=vmem, size = 0x1000, scoped, tag = 'input window, operand 0, single buffered']
    #allocation4 [shape = 's32[1]{0}', space=sflag, size = 0x4, scoped, tag = 'scoped memory for tpu_custom_call.1']
    #allocation5 [shape = 's32[1]{0}', space=sflag, size = 0x4, scoped, tag = 'scoped memory for tpu_custom_call.1']
    #allocation6 [shape = 'u8[8192]{0}', space=vmem, size = 0x2000, scoped, tag = 'input window, operand 1, single buffered']
    #allocation7 [shape = 's32[1]{0}', space=sflag, size = 0x4, scoped, tag = 'scoped memory for tpu_custom_call.1']
    #allocation8 [shape = 'u8[8192]{0}', space=vmem, size = 0x2000, scoped, tag = 'input window, operand 2, single buffered']
    #allocation9 [shape = 'u8[32768]{0}', space=vmem, size = 0x8000, scoped, tag = 'input window, operand 3, single buffered']
    #allocation10 [shape = 's32[1]{0}', space=sflag, size = 0x4, scoped, tag = 'scoped memory for tpu_custom_call.1']
    #allocation11 [shape = 'u8[32768]{0}', space=vmem, size = 0x8000, scoped, tag = 'input window, operand 4, single buffered']
    #allocation12 [shape = 'u8[32768]{0}', space=vmem, size = 0x8000, scoped, tag = 'input window, operand 5, single buffered']
    #allocation13 [shape = 's32[1]{0}', space=sflag, size = 0x4, scoped, tag = 'scoped memory for tpu_custom_call.1']
    #allocation14 [shape = 'u8[32768]{0}', space=vmem, size = 0x8000, scoped, tag = 'input window, operand 6, single buffered']
    #allocation15 [shape = 'u8[8192]{0}', space=vmem, size = 0x2000, scoped, tag = 'output window, operand 0, single buffered']
    %13 = vsyncpa [#allocation4], 0
    %14 = vsyncpa [#allocation7], 0
    %15 = vsyncpa [#allocation10], 0
    %16 = vsyncpa [#allocation13], 0
    %17 = vsyncpa [#allocation5], 0
    // Predicated region
    $region2: #{tpu_custom_call.1} parent=1 // pred_check
      _
    $region3: #{tpu_custom_call.1} parent=1 // pred_check_branch
      %19 = sbr.rel (0) target = $region5
    $region4: #{tpu_custom_call.1} parent=1 // pred_region
      %s21 = ssub.s32 128, 128
      %22 = vsyncadd [#allocation4], %s21
      %s23 = sshll.u32 [#allocation3], 4
      %s24 = int_to_ptr.vmem [resolvable:$true] %s23
      %29 = dma.hbm_to_vmem [thread:$0]  %s0, 128, %s24, [#allocation4], 64, 64, 4
    $region5: #{tpu_custom_call.1} parent=1 // pred_fallthru
      _
    // Predicated region
    $region6: #{tpu_custom_call.1} parent=1 // pred_check
      _
    $region7: #{tpu_custom_call.1} parent=1 // pred_check_branch
      %31 = sbr.rel (0) target = $region9
    $region8: #{tpu_custom_call.1} parent=1 // pred_region
      %s33 = ssub.s32 256, 256
      %34 = vsyncadd [#allocation7], %s33
      %s35 = sshll.u32 [#allocation6], 4
      %s36 = int_to_ptr.vmem [resolvable:$true] %s35
      %41 = dma.hbm_to_vmem [thread:$0]  %s1, 256, %s36, [#allocation7], 64, 64, 4
    $region9: #{tpu_custom_call.1} parent=1 // pred_fallthru
      _
    // Predicated region
    $region10: #{tpu_custom_call.1} parent=1 // pred_check
      _
    $region11: #{tpu_custom_call.1} parent=1 // pred_check_branch
      %43 = sbr.rel (0) target = $region13
    $region12: #{tpu_custom_call.1} parent=1 // pred_region
      %s45 = ssub.s32 256, 256
      %46 = vsyncadd [#allocation7], %s45
      %s47 = sshll.u32 [#allocation8], 4
      %s48 = int_to_ptr.vmem [resolvable:$true] %s47
      %53 = dma.hbm_to_vmem [thread:$0]  %s2, 256, %s48, [#allocation7], 64, 64, 4
    $region13: #{tpu_custom_call.1} parent=1 // pred_fallthru
      _
    // Predicated region
    $region14: #{tpu_custom_call.1} parent=1 // pred_check
      _
    $region15: #{tpu_custom_call.1} parent=1 // pred_check_branch
      %55 = sbr.rel (0) target = $region17
    $region16: #{tpu_custom_call.1} parent=1 // pred_region
      %s57 = ssub.s32 1024, 1024
      %58 = vsyncadd [#allocation10], %s57
      %s59 = sshll.u32 [#allocation9], 4
      %s60 = int_to_ptr.vmem [resolvable:$true] %s59
      %65 = dma.hbm_to_vmem [thread:$0]  %s3, 1024, %s60, [#allocation10], 64, 64, 4
    $region17: #{tpu_custom_call.1} parent=1 // pred_fallthru
      _
    // Predicated region
    $region18: #{tpu_custom_call.1} parent=1 // pred_check
      _
    $region19: #{tpu_custom_call.1} parent=1 // pred_check_branch
      %67 = sbr.rel (0) target = $region21
    $region20: #{tpu_custom_call.1} parent=1 // pred_region
      %s69 = ssub.s32 1024, 1024
      %70 = vsyncadd [#allocation10], %s69
      %s71 = sshll.u32 [#allocation11], 4
      %s72 = int_to_ptr.vmem [resolvable:$true] %s71
      %77 = dma.hbm_to_vmem [thread:$0]  %s4, 1024, %s72, [#allocation10], 64, 64, 4
    $region21: #{tpu_custom_call.1} parent=1 // pred_fallthru
      _
    // Predicated region
    $region22: #{tpu_custom_call.1} parent=1 // pred_check
      _
    $region23: #{tpu_custom_call.1} parent=1 // pred_check_branch
      %79 = sbr.rel (0) target = $region25
    $region24: #{tpu_custom_call.1} parent=1 // pred_region
      %s81 = ssub.s32 1024, 1024
      %82 = vsyncadd [#allocation13], %s81
      %s83 = sshll.u32 [#allocation12], 4
      %s84 = int_to_ptr.vmem [resolvable:$true] %s83
      %89 = dma.hbm_to_vmem [thread:$0]  %s5, 1024, %s84, [#allocation13], 64, 64, 4
    $region25: #{tpu_custom_call.1} parent=1 // pred_fallthru
      _
    // Predicated region
    $region26: #{tpu_custom_call.1} parent=1 // pred_check
      _
    $region27: #{tpu_custom_call.1} parent=1 // pred_check_branch
      %91 = sbr.rel (0) target = $region29
    $region28: #{tpu_custom_call.1} parent=1 // pred_region
      %s93 = ssub.s32 1024, 1024
      %94 = vsyncadd [#allocation13], %s93
      %s95 = sshll.u32 [#allocation14], 4
      %s96 = int_to_ptr.vmem [resolvable:$true] %s95
      %101 = dma.hbm_to_vmem [thread:$0]  %s6, 1024, %s96, [#allocation13], 64, 64, 4
    $region29: #{tpu_custom_call.1} parent=1 // pred_fallthru
      _
    // Predicated region
    $region30: #{tpu_custom_call.1} parent=1 // pred_check
      _
    $region31: #{tpu_custom_call.1} parent=1 // pred_check_branch
      %103 = sbr.rel (0) target = $region33
    $region32: #{tpu_custom_call.1} parent=1 // pred_region
      _
    $region33: #{tpu_custom_call.1} parent=1 // pred_fallthru
      _
    // Predicated region
    $region34: #{tpu_custom_call.1} parent=1 // pred_check
      _
    $region35: #{tpu_custom_call.1} parent=1 // pred_check_branch
      %105 = sbr.rel (0) target = $region37
    $region36: #{tpu_custom_call.1} parent=1 // pred_region
      %106 = dma.done [#allocation4], 128
    $region37: #{tpu_custom_call.1} parent=1 // pred_fallthru
      _
    // Predicated region
    $region38: #{tpu_custom_call.1} parent=1 // pred_check
      _
    $region39: #{tpu_custom_call.1} parent=1 // pred_check_branch
      %108 = sbr.rel (0) target = $region41
    $region40: #{tpu_custom_call.1} parent=1 // pred_region
      %109 = dma.done [#allocation7], 256
    $region41: #{tpu_custom_call.1} parent=1 // pred_fallthru
      _
    // Predicated region
    $region42: #{tpu_custom_call.1} parent=1 // pred_check
      _
    $region43: #{tpu_custom_call.1} parent=1 // pred_check_branch
      %111 = sbr.rel (0) target = $region45
    $region44: #{tpu_custom_call.1} parent=1 // pred_region
      %112 = dma.done [#allocation7], 256
    $region45: #{tpu_custom_call.1} parent=1 // pred_fallthru
      _
    // Predicated region
    $region46: #{tpu_custom_call.1} parent=1 // pred_check
      _
    $region47: #{tpu_custom_call.1} parent=1 // pred_check_branch
      %114 = sbr.rel (0) target = $region49
    $region48: #{tpu_custom_call.1} parent=1 // pred_region
      %115 = dma.done [#allocation10], 1024
    $region49: #{tpu_custom_call.1} parent=1 // pred_fallthru
      _
    // Predicated region
    $region50: #{tpu_custom_call.1} parent=1 // pred_check
      _
    $region51: #{tpu_custom_call.1} parent=1 // pred_check_branch
      %117 = sbr.rel (0) target = $region53
    $region52: #{tpu_custom_call.1} parent=1 // pred_region
      %118 = dma.done [#allocation10], 1024
    $region53: #{tpu_custom_call.1} parent=1 // pred_fallthru
      _
    // Predicated region
    $region54: #{tpu_custom_call.1} parent=1 // pred_check
      _
    $region55: #{tpu_custom_call.1} parent=1 // pred_check_branch
      %120 = sbr.rel (0) target = $region57
    $region56: #{tpu_custom_call.1} parent=1 // pred_region
      %121 = dma.done [#allocation13], 1024
    $region57: #{tpu_custom_call.1} parent=1 // pred_fallthru
      _
    // Predicated region
    $region58: #{tpu_custom_call.1} parent=1 // pred_check
      _
    $region59: #{tpu_custom_call.1} parent=1 // pred_check_branch
      %123 = sbr.rel (0) target = $region61
    $region60: #{tpu_custom_call.1} parent=1 // pred_region
      %124 = dma.done [#allocation13], 1024
    $region61: #{tpu_custom_call.1} parent=1 // pred_fallthru
      _
    %v126 = vld [vmem:[#allocation3] sm:$0xf]
    %v127 = vld [vmem:[#allocation3 + $0x4] sm:$0xf]
    %v128 = vld [vmem:[#allocation6] sm:$0xf]
    %v129 = vld [vmem:[#allocation6 + $0x4] sm:$0xf]
    %v130 = vld [vmem:[#allocation6 + $0x8] sm:$0xf]
    %v131 = vld [vmem:[#allocation6 + $0xc] sm:$0xf]
    %v132 = vld [vmem:[#allocation8] sm:$0xf]
    %v133 = vld [vmem:[#allocation8 + $0x4] sm:$0xf]
    %v134 = vld [vmem:[#allocation8 + $0x8] sm:$0xf]
    %v135 = vld [vmem:[#allocation8 + $0xc] sm:$0xf]
    %v136 = vld [vmem:[#allocation9] sm:$0xf]
    %v137 = vld [vmem:[#allocation9 + $0x4] sm:$0xf]
    %v138 = vld [vmem:[#allocation9 + $0x8] sm:$0xf]
    %v139 = vld [vmem:[#allocation9 + $0xc] sm:$0xf]
    %v140 = vld [vmem:[#allocation9 + $0x10] sm:$0xf]
    %v141 = vld [vmem:[#allocation9 + $0x14] sm:$0xf]
    %v142 = vld [vmem:[#allocation9 + $0x18] sm:$0xf]
    %v143 = vld [vmem:[#allocation9 + $0x1c] sm:$0xf]
    %v144 = vld [vmem:[#allocation9 + $0x20] sm:$0xf]
    %v145 = vld [vmem:[#allocation9 + $0x24] sm:$0xf]
    %v146 = vld [vmem:[#allocation9 + $0x28] sm:$0xf]
    %v147 = vld [vmem:[#allocation9 + $0x2c] sm:$0xf]
    %v148 = vld [vmem:[#allocation9 + $0x30] sm:$0xf]
    %v149 = vld [vmem:[#allocation9 + $0x34] sm:$0xf]
    %v150 = vld [vmem:[#allocation9 + $0x38] sm:$0xf]
    %v151 = vld [vmem:[#allocation9 + $0x3c] sm:$0xf]
    %v154 = vunpack.c.l.b16 %v126
    %v155 = vunpack.c.l.b16 %v127
    %v156 = vpack.c.b16 %v155, %v154
    %v174 = vunpack.c.l.b16 %v136
    %v175 = vunpack.c.l.b16 %v137
    %v176 = vunpack.c.l.b16 %v138
    %v177 = vunpack.c.l.b16 %v139
    %v178 = vunpack.c.l.b16 %v140
    %v179 = vunpack.c.l.b16 %v141
    %v180 = vunpack.c.l.b16 %v142
    %v181 = vunpack.c.l.b16 %v143
    %v182 = vunpack.c.l.b16 %v144
    %v183 = vunpack.c.l.b16 %v145
    %v184 = vunpack.c.l.b16 %v146
    %v185 = vunpack.c.l.b16 %v147
    %v186 = vunpack.c.l.b16 %v148
    %v187 = vunpack.c.l.b16 %v149
    %v188 = vunpack.c.l.b16 %v150
    %v189 = vunpack.c.l.b16 %v151
    %v190 = vpack.c.b16 %v175, %v174
    %v191 = vpack.c.b16 %v177, %v176
    %v192 = vpack.c.b16 %v179, %v178
    %v193 = vpack.c.b16 %v181, %v180
    %v194 = vpack.c.b16 %v183, %v182
    %v195 = vpack.c.b16 %v185, %v184
    %v196 = vpack.c.b16 %v187, %v186
    %v197 = vpack.c.b16 %v189, %v188
    %206 = vmatprep.subr.bf16.mxu0 0
    %207 = vmatpush1.bf16.msra.mxu0 %v190
    %208 = vmatprep.subr.bf16.mxu0 0
    %209 = vmatpush1.bf16.msra.mxu0 %v191
    %210 = vmatprep.subr.bf16.mxu0 0
    %211 = vmatpush1.bf16.msra.mxu0 %v192
    %212 = vmatprep.subr.bf16.mxu0 0
    %213 = vmatpush1.bf16.msra.mxu0 %v193
    %214 = vmatprep.subr.bf16.mxu0 0
    %215 = vmatpush1.bf16.msra.mxu0 %v194
    %216 = vmatprep.subr.bf16.mxu0 0
    %217 = vmatpush1.bf16.msra.mxu0 %v195
    %218 = vmatprep.subr.bf16.mxu0 0
    %219 = vmatpush1.bf16.msra.mxu0 %v196
    %220 = vmatprep.subr.bf16.mxu0 0
    %221 = vmatpush1.bf16.msra.mxu0 %v197
    %222 = vmatprep.subr.bf16.mxu0 0
    %223 = vmatpush1.bf16.msra.mxu0 0
    %224 = vmatprep.subr.bf16.mxu0 0
    %225 = vmatpush1.bf16.msra.mxu0 0
    %226 = vmatprep.subr.bf16.mxu0 0
    %227 = vmatpush1.bf16.msra.mxu0 0
    %228 = vmatprep.subr.bf16.mxu0 0
    %229 = vmatpush1.bf16.msra.mxu0 0
    %230 = vmatprep.subr.bf16.mxu0 0
    %231 = vmatpush1.bf16.msra.mxu0 0
    %232 = vmatprep.subr.bf16.mxu0 0
    %233 = vmatpush1.bf16.msra.mxu0 0
    %234 = vmatprep.subr.bf16.mxu0 0
    %235 = vmatpush1.bf16.msra.mxu0 0
    %236 = vmatprep.subr.bf16.mxu0 0
    %237 = vmatpush1.bf16.msra.mxu0 0
    %238 = vmatprep.mubr.bf16.mxu0 0
    %239 = vmatmul.mubr.bf16.gmra.mrb[0].mxu0 %v156
    %v240 = vpop.f32.mrb[0].mxu0
    %v241 = vadd.f32 0.0, %v240
    %v242 = vpop.f32.mrb[0].mxu0
    %v243 = vpop.f32.mrb[0].mxu0
    %v244 = vadd.f32 0.0, %v243
    %v245 = vpop.f32.mrb[0].mxu0
    %246 = vdwg.mxu0
    %v247 = vpack.c.bf16 %v244, %v241
    %v248 = vld [vmem:[#allocation11] sm:$0xf]
    %v249 = vld [vmem:[#allocation11 + $0x4] sm:$0xf]
    %v250 = vld [vmem:[#allocation11 + $0x8] sm:$0xf]
    %v251 = vld [vmem:[#allocation11 + $0xc] sm:$0xf]
    %v252 = vld [vmem:[#allocation11 + $0x10] sm:$0xf]
    %v253 = vld [vmem:[#allocation11 + $0x14] sm:$0xf]
    %v254 = vld [vmem:[#allocation11 + $0x18] sm:$0xf]
    %v255 = vld [vmem:[#allocation11 + $0x1c] sm:$0xf]
    %v256 = vld [vmem:[#allocation11 + $0x20] sm:$0xf]
    %v257 = vld [vmem:[#allocation11 + $0x24] sm:$0xf]
    %v258 = vld [vmem:[#allocation11 + $0x28] sm:$0xf]
    %v259 = vld [vmem:[#allocation11 + $0x2c] sm:$0xf]
    %v260 = vld [vmem:[#allocation11 + $0x30] sm:$0xf]
    %v261 = vld [vmem:[#allocation11 + $0x34] sm:$0xf]
    %v262 = vld [vmem:[#allocation11 + $0x38] sm:$0xf]
    %v263 = vld [vmem:[#allocation11 + $0x3c] sm:$0xf]
    %v268 = vunpack.c.l.b16 %v128
    %v269 = vunpack.c.l.b16 %v129
    %v270 = vunpack.c.l.b16 %v130
    %v271 = vunpack.c.l.b16 %v131
    %v272 = vpack.c.b16 %v269, %v268
    %v273 = vpack.c.b16 %v271, %v270
    %v292 = vunpack.c.l.b16 %v248
    %v293 = vunpack.c.l.b16 %v249
    %v294 = vunpack.c.l.b16 %v250
    %v295 = vunpack.c.l.b16 %v251
    %v296 = vunpack.c.l.b16 %v252
    %v297 = vunpack.c.l.b16 %v253
    %v298 = vunpack.c.l.b16 %v254
    %v299 = vunpack.c.l.b16 %v255
    %v300 = vunpack.c.l.b16 %v256
    %v301 = vunpack.c.l.b16 %v257
    %v302 = vunpack.c.l.b16 %v258
    %v303 = vunpack.c.l.b16 %v259
    %v304 = vunpack.c.l.b16 %v260
    %v305 = vunpack.c.l.b16 %v261
    %v306 = vunpack.c.l.b16 %v262
    %v307 = vunpack.c.l.b16 %v263
    %v308 = vpack.c.b16 %v293, %v292
    %v309 = vpack.c.b16 %v295, %v294
    %v310 = vpack.c.b16 %v297, %v296
    %v311 = vpack.c.b16 %v299, %v298
    %v312 = vpack.c.b16 %v301, %v300
    %v313 = vpack.c.b16 %v303, %v302
    %v314 = vpack.c.b16 %v305, %v304
    %v315 = vpack.c.b16 %v307, %v306
    %324 = vmatprep.subr.bf16.mxu0 0
    %325 = vmatpush1.bf16.msra.mxu0 %v308
    %326 = vmatprep.subr.bf16.mxu0 0
    %327 = vmatpush1.bf16.msra.mxu0 %v309
    %328 = vmatprep.subr.bf16.mxu0 0
    %329 = vmatpush1.bf16.msra.mxu0 %v310
    %330 = vmatprep.subr.bf16.mxu0 0
    %331 = vmatpush1.bf16.msra.mxu0 %v311
    %332 = vmatprep.subr.bf16.mxu0 0
    %333 = vmatpush1.bf16.msra.mxu0 %v312
    %334 = vmatprep.subr.bf16.mxu0 0
    %335 = vmatpush1.bf16.msra.mxu0 %v313
    %336 = vmatprep.subr.bf16.mxu0 0
    %337 = vmatpush1.bf16.msra.mxu0 %v314
    %338 = vmatprep.subr.bf16.mxu0 0
    %339 = vmatpush1.bf16.msra.mxu0 %v315
    %340 = vmatprep.subr.bf16.mxu0 0
    %341 = vmatpush1.bf16.msra.mxu0 0
    %342 = vmatprep.subr.bf16.mxu0 0
    %343 = vmatpush1.bf16.msra.mxu0 0
    %344 = vmatprep.subr.bf16.mxu0 0
    %345 = vmatpush1.bf16.msra.mxu0 0
    %346 = vmatprep.subr.bf16.mxu0 0
    %347 = vmatpush1.bf16.msra.mxu0 0
    %348 = vmatprep.subr.bf16.mxu0 0
    %349 = vmatpush1.bf16.msra.mxu0 0
    %350 = vmatprep.subr.bf16.mxu0 0
    %351 = vmatpush1.bf16.msra.mxu0 0
    %352 = vmatprep.subr.bf16.mxu0 0
    %353 = vmatpush1.bf16.msra.mxu0 0
    %354 = vmatprep.subr.bf16.mxu0 0
    %355 = vmatpush1.bf16.msra.mxu0 0
    %356 = vmatprep.mubr.bf16.mxu0 0
    %357 = vmatmul.mubr.bf16.gmra.mrb[0].mxu0 %v272
    %v358 = vpop.f32.mrb[0].mxu0
    %v359 = vadd.f32 0.0, %v358
    %v360 = vpop.f32.mrb[0].mxu0
    %v361 = vpop.f32.mrb[0].mxu0
    %v362 = vadd.f32 0.0, %v361
    %v363 = vpop.f32.mrb[0].mxu0
    %364 = vmatprep.mubr.bf16.mxu0 0
    %365 = vmatmul.mubr.bf16.gmra.mrb[0].mxu0 %v273
    %v366 = vpop.f32.mrb[0].mxu0
    %v367 = vadd.f32 0.0, %v366
    %v368 = vpop.f32.mrb[0].mxu0
    %v369 = vpop.f32.mrb[0].mxu0
    %v370 = vadd.f32 0.0, %v369
    %v371 = vpop.f32.mrb[0].mxu0
    %372 = vdwg.mxu0
    %v373 = vpack.c.bf16 %v362, %v359
    %v374 = vpack.c.bf16 %v370, %v367
    %v375 = vld [vmem:[#allocation12] sm:$0xf]
    %v376 = vld [vmem:[#allocation12 + $0x4] sm:$0xf]
    %v377 = vld [vmem:[#allocation12 + $0x8] sm:$0xf]
    %v378 = vld [vmem:[#allocation12 + $0xc] sm:$0xf]
    %v379 = vld [vmem:[#allocation12 + $0x10] sm:$0xf]
    %v380 = vld [vmem:[#allocation12 + $0x14] sm:$0xf]
    %v381 = vld [vmem:[#allocation12 + $0x18] sm:$0xf]
    %v382 = vld [vmem:[#allocation12 + $0x1c] sm:$0xf]
    %v383 = vld [vmem:[#allocation12 + $0x20] sm:$0xf]
    %v384 = vld [vmem:[#allocation12 + $0x24] sm:$0xf]
    %v385 = vld [vmem:[#allocation12 + $0x28] sm:$0xf]
    %v386 = vld [vmem:[#allocation12 + $0x2c] sm:$0xf]
    %v387 = vld [vmem:[#allocation12 + $0x30] sm:$0xf]
    %v388 = vld [vmem:[#allocation12 + $0x34] sm:$0xf]
    %v389 = vld [vmem:[#allocation12 + $0x38] sm:$0xf]
    %v390 = vld [vmem:[#allocation12 + $0x3c] sm:$0xf]
    %v395 = vunpack.c.l.b16 %v132
    %v396 = vunpack.c.l.b16 %v133
    %v397 = vunpack.c.l.b16 %v134
    %v398 = vunpack.c.l.b16 %v135
    %v399 = vpack.c.b16 %v396, %v395
    %v400 = vpack.c.b16 %v398, %v397
    %v419 = vunpack.c.l.b16 %v375
    %v420 = vunpack.c.l.b16 %v376
    %v421 = vunpack.c.l.b16 %v377
    %v422 = vunpack.c.l.b16 %v378
    %v423 = vunpack.c.l.b16 %v379
    %v424 = vunpack.c.l.b16 %v380
    %v425 = vunpack.c.l.b16 %v381
    %v426 = vunpack.c.l.b16 %v382
    %v427 = vunpack.c.l.b16 %v383
    %v428 = vunpack.c.l.b16 %v384
    %v429 = vunpack.c.l.b16 %v385
    %v430 = vunpack.c.l.b16 %v386
    %v431 = vunpack.c.l.b16 %v387
    %v432 = vunpack.c.l.b16 %v388
    %v433 = vunpack.c.l.b16 %v389
    %v434 = vunpack.c.l.b16 %v390
    %v435 = vpack.c.b16 %v420, %v419
    %v436 = vpack.c.b16 %v422, %v421
    %v437 = vpack.c.b16 %v424, %v423
    %v438 = vpack.c.b16 %v426, %v425
    %v439 = vpack.c.b16 %v428, %v427
    %v440 = vpack.c.b16 %v430, %v429
    %v441 = vpack.c.b16 %v432, %v431
    %v442 = vpack.c.b16 %v434, %v433
    %451 = vmatprep.subr.bf16.mxu0 0
    %452 = vmatpush1.bf16.msra.mxu0 %v435
    %453 = vmatprep.subr.bf16.mxu0 0
    %454 = vmatpush1.bf16.msra.mxu0 %v436
    %455 = vmatprep.subr.bf16.mxu0 0
    %456 = vmatpush1.bf16.msra.mxu0 %v437
    %457 = vmatprep.subr.bf16.mxu0 0
    %458 = vmatpush1.bf16.msra.mxu0 %v438
    %459 = vmatprep.subr.bf16.mxu0 0
    %460 = vmatpush1.bf16.msra.mxu0 %v439
    %461 = vmatprep.subr.bf16.mxu0 0
    %462 = vmatpush1.bf16.msra.mxu0 %v440
    %463 = vmatprep.subr.bf16.mxu0 0
    %464 = vmatpush1.bf16.msra.mxu0 %v441
    %465 = vmatprep.subr.bf16.mxu0 0
    %466 = vmatpush1.bf16.msra.mxu0 %v442
    %467 = vmatprep.subr.bf16.mxu0 0
    %468 = vmatpush1.bf16.msra.mxu0 0
    %469 = vmatprep.subr.bf16.mxu0 0
    %470 = vmatpush1.bf16.msra.mxu0 0
    %471 = vmatprep.subr.bf16.mxu0 0
    %472 = vmatpush1.bf16.msra.mxu0 0
    %473 = vmatprep.subr.bf16.mxu0 0
    %474 = vmatpush1.bf16.msra.mxu0 0
    %475 = vmatprep.subr.bf16.mxu0 0
    %476 = vmatpush1.bf16.msra.mxu0 0
    %477 = vmatprep.subr.bf16.mxu0 0
    %478 = vmatpush1.bf16.msra.mxu0 0
    %479 = vmatprep.subr.bf16.mxu0 0
    %480 = vmatpush1.bf16.msra.mxu0 0
    %481 = vmatprep.subr.bf16.mxu0 0
    %482 = vmatpush1.bf16.msra.mxu0 0
    %483 = vmatprep.mubr.bf16.mxu0 0
    %484 = vmatmul.mubr.bf16.gmra.mrb[0].mxu0 %v399
    %v485 = vpop.f32.mrb[0].mxu0
    %v486 = vadd.f32 0.0, %v485
    %v487 = vpop.f32.mrb[0].mxu0
    %v488 = vpop.f32.mrb[0].mxu0
    %v489 = vadd.f32 0.0, %v488
    %v490 = vpop.f32.mrb[0].mxu0
    %491 = vmatprep.mubr.bf16.mxu0 0
    %492 = vmatmul.mubr.bf16.gmra.mrb[0].mxu0 %v400
    %v493 = vpop.f32.mrb[0].mxu0
    %v494 = vadd.f32 0.0, %v493
    %v495 = vpop.f32.mrb[0].mxu0
    %v496 = vpop.f32.mrb[0].mxu0
    %v497 = vadd.f32 0.0, %v496
    %v498 = vpop.f32.mrb[0].mxu0
    %499 = vdwg.mxu0
    %v500 = vpack.c.bf16 %v489, %v486
    %v501 = vpack.c.bf16 %v497, %v494
    %vm502 = vcmask 130048
    %v504 = vsel %vm502, %v247, 0
    %v507 = vsel %vm502, %v373, 0
    %509 = vmatprep.subr.bf16.mxu0 0
    %510 = vmatpush1.bf16.xpose.msra.mxu0 %v507
    %511 = vmatprep.subr.bf16.mxu0 0
    %512 = vmatpush1.bf16.xpose.msra.mxu0 0
    %513 = vmatprep.subr.bf16.mxu0 0
    %514 = vmatpush1.bf16.xpose.msra.mxu0 0
    %515 = vmatprep.subr.bf16.mxu0 0
    %516 = vmatpush1.bf16.xpose.msra.mxu0 0
    %517 = vmatprep.subr.bf16.mxu0 0
    %518 = vmatpush1.bf16.xpose.msra.mxu0 0
    %519 = vmatprep.subr.bf16.mxu0 0
    %520 = vmatpush1.bf16.xpose.msra.mxu0 0
    %521 = vmatprep.subr.bf16.mxu0 0
    %522 = vmatpush1.bf16.xpose.msra.mxu0 0
    %523 = vmatprep.subr.bf16.mxu0 0
    %524 = vmatpush1.bf16.xpose.msra.mxu0 0
    %525 = vmatprep.subr.bf16.mxu0 0
    %526 = vmatpush1.bf16.xpose.msra.mxu0 0
    %527 = vmatprep.subr.bf16.mxu0 0
    %528 = vmatpush1.bf16.xpose.msra.mxu0 0
    %529 = vmatprep.subr.bf16.mxu0 0
    %530 = vmatpush1.bf16.xpose.msra.mxu0 0
    %531 = vmatprep.subr.bf16.mxu0 0
    %532 = vmatpush1.bf16.xpose.msra.mxu0 0
    %533 = vmatprep.subr.bf16.mxu0 0
    %534 = vmatpush1.bf16.xpose.msra.mxu0 0
    %535 = vmatprep.subr.bf16.mxu0 0
    %536 = vmatpush1.bf16.xpose.msra.mxu0 0
    %537 = vmatprep.subr.bf16.mxu0 0
    %538 = vmatpush1.bf16.xpose.msra.mxu0 0
    %539 = vmatprep.subr.bf16.mxu0 0
    %540 = vmatpush1.bf16.xpose.msra.mxu0 0
    %541 = vmatprep.mubr.bf16.mxu0 0
    %542 = vmatmul.mubr.bf16.gmra.mrb[0].mxu0 %v504
    %v543 = vpop.f32.mrb[0].mxu0
    %v544 = vadd.f32 0.0, %v543
    %v545 = vpop.f32.mrb[0].mxu0
    %v546 = vpop.f32.mrb[0].mxu0
    %v547 = vpop.f32.mrb[0].mxu0
    %548 = vdwg.mxu0
    %v549 = vsel %vm502, %v544, -inf
    %550 = vmax.xlane.f32.xlu0 %v549
    %v551 = vpop.xlane.xlu0 %550
    %v552 = vsub.f32 %v544, %v551
    %v553 = vmul.f32 %v552, 1.442695
    %v554 = vpow.pop %v553
    %v555 = vsel %vm502, %v554, 0.0
    %556 = vadd.xlane.f32.xlu0 %v555
    %v557 = vpop.xlane.xlu0 %556
    %v558 = vrcp.pop %v557
    %v559 = vmul.f32 %v554, %v558
    %v560 = vpack.c.bf16 %v559, %v559
    %v562 = vsel %vm502, %v560, 0
    %564 = vmatprep.subr.bf16.mxu0 0
    %565 = vmatpush1.bf16.msra.mxu0 %v500
    %566 = vmatprep.subr.bf16.mxu0 0
    %567 = vmatpush1.bf16.msra.mxu0 0
    %568 = vmatprep.subr.bf16.mxu0 0
    %569 = vmatpush1.bf16.msra.mxu0 0
    %570 = vmatprep.subr.bf16.mxu0 0
    %571 = vmatpush1.bf16.msra.mxu0 0
    %572 = vmatprep.subr.bf16.mxu0 0
    %573 = vmatpush1.bf16.msra.mxu0 0
    %574 = vmatprep.subr.bf16.mxu0 0
    %575 = vmatpush1.bf16.msra.mxu0 0
    %576 = vmatprep.subr.bf16.mxu0 0
    %577 = vmatpush1.bf16.msra.mxu0 0
    %578 = vmatprep.subr.bf16.mxu0 0
    %579 = vmatpush1.bf16.msra.mxu0 0
    %580 = vmatprep.subr.bf16.mxu0 0
    %581 = vmatpush1.bf16.msra.mxu0 0
    %582 = vmatprep.subr.bf16.mxu0 0
    %583 = vmatpush1.bf16.msra.mxu0 0
    %584 = vmatprep.subr.bf16.mxu0 0
    %585 = vmatpush1.bf16.msra.mxu0 0
    %586 = vmatprep.subr.bf16.mxu0 0
    %587 = vmatpush1.bf16.msra.mxu0 0
    %588 = vmatprep.subr.bf16.mxu0 0
    %589 = vmatpush1.bf16.msra.mxu0 0
    %590 = vmatprep.subr.bf16.mxu0 0
    %591 = vmatpush1.bf16.msra.mxu0 0
    %592 = vmatprep.subr.bf16.mxu0 0
    %593 = vmatpush1.bf16.msra.mxu0 0
    %594 = vmatprep.subr.bf16.mxu0 0
    %595 = vmatpush1.bf16.msra.mxu0 0
    %596 = vmatprep.mubr.bf16.mxu0 0
    %597 = vmatmul.mubr.bf16.gmra.mrb[0].mxu0 %v562
    %v598 = vpop.f32.mrb[0].mxu0
    %v599 = vadd.f32 0.0, %v598
    %v600 = vpop.f32.mrb[0].mxu0
    %v601 = vpop.f32.mrb[0].mxu0
    %v602 = vpop.f32.mrb[0].mxu0
    %603 = vdwg.mxu0
    %v604 = vpack.c.bf16 %v599, %v599
    %vm605 = vcmask 125952
    %606 = vst.msk [vmem:[#allocation2] sm:$0xf] %vm605, %v604
    %608 = vrot.lane.b32.xlu0 %v247, 112
    %v609 = vpop.permute.xlu0 %608
    %611 = vrot.lane.b32.xlu0 %v373, 112
    %v612 = vpop.permute.xlu0 %611
    %v614 = vsel %vm502, %v609, 0
    %v617 = vsel %vm502, %v612, 0
    %619 = vmatprep.subr.bf16.mxu0 0
    %620 = vmatpush1.bf16.xpose.msra.mxu0 %v617
    %621 = vmatprep.subr.bf16.mxu0 0
    %622 = vmatpush1.bf16.xpose.msra.mxu0 0
    %623 = vmatprep.subr.bf16.mxu0 0
    %624 = vmatpush1.bf16.xpose.msra.mxu0 0
    %625 = vmatprep.subr.bf16.mxu0 0
    %626 = vmatpush1.bf16.xpose.msra.mxu0 0
    %627 = vmatprep.subr.bf16.mxu0 0
    %628 = vmatpush1.bf16.xpose.msra.mxu0 0
    %629 = vmatprep.subr.bf16.mxu0 0
    %630 = vmatpush1.bf16.xpose.msra.mxu0 0
    %631 = vmatprep.subr.bf16.mxu0 0
    %632 = vmatpush1.bf16.xpose.msra.mxu0 0
    %633 = vmatprep.subr.bf16.mxu0 0
    %634 = vmatpush1.bf16.xpose.msra.mxu0 0
    %635 = vmatprep.subr.bf16.mxu0 0
    %636 = vmatpush1.bf16.xpose.msra.mxu0 0
    %637 = vmatprep.subr.bf16.mxu0 0
    %638 = vmatpush1.bf16.xpose.msra.mxu0 0
    %639 = vmatprep.subr.bf16.mxu0 0
    %640 = vmatpush1.bf16.xpose.msra.mxu0 0
    %641 = vmatprep.subr.bf16.mxu0 0
    %642 = vmatpush1.bf16.xpose.msra.mxu0 0
    %643 = vmatprep.subr.bf16.mxu0 0
    %644 = vmatpush1.bf16.xpose.msra.mxu0 0
    %645 = vmatprep.subr.bf16.mxu0 0
    %646 = vmatpush1.bf16.xpose.msra.mxu0 0
    %647 = vmatprep.subr.bf16.mxu0 0
    %648 = vmatpush1.bf16.xpose.msra.mxu0 0
    %649 = vmatprep.subr.bf16.mxu0 0
    %650 = vmatpush1.bf16.xpose.msra.mxu0 0
    %651 = vmatprep.mubr.bf16.mxu0 0
    %652 = vmatmul.mubr.bf16.gmra.mrb[0].mxu0 %v614
    %v653 = vpop.f32.mrb[0].mxu0
    %v654 = vadd.f32 0.0, %v653
    %v655 = vpop.f32.mrb[0].mxu0
    %v656 = vpop.f32.mrb[0].mxu0
    %v657 = vpop.f32.mrb[0].mxu0
    %658 = vdwg.mxu0
    %v659 = vsel %vm502, %v654, -inf
    %660 = vmax.xlane.f32.xlu0 %v659
    %v661 = vpop.xlane.xlu0 %660
    %v662 = vsub.f32 %v654, %v661
    %v663 = vmul.f32 %v662, 1.442695
    %v664 = vpow.pop %v663
    %v665 = vsel %vm502, %v664, 0.0
    %666 = vadd.xlane.f32.xlu0 %v665
    %v667 = vpop.xlane.xlu0 %666
    %v668 = vrcp.pop %v667
    %v669 = vmul.f32 %v664, %v668
    %v670 = vpack.c.bf16 %v669, %v669
    %672 = vrot.lane.b32.xlu0 %v500, 112
    %v673 = vpop.permute.xlu0 %672
    %v676 = vsel %vm502, %v670, 0
    %678 = vmatprep.subr.bf16.mxu0 0
    %679 = vmatpush1.bf16.msra.mxu0 %v673
    %680 = vmatprep.subr.bf16.mxu0 0
    %681 = vmatpush1.bf16.msra.mxu0 0
    %682 = vmatprep.subr.bf16.mxu0 0
    %683 = vmatpush1.bf16.msra.mxu0 0
    %684 = vmatprep.subr.bf16.mxu0 0
    %685 = vmatpush1.bf16.msra.mxu0 0
    %686 = vmatprep.subr.bf16.mxu0 0
    %687 = vmatpush1.bf16.msra.mxu0 0
    %688 = vmatprep.subr.bf16.mxu0 0
    %689 = vmatpush1.bf16.msra.mxu0 0
    %690 = vmatprep.subr.bf16.mxu0 0
    %691 = vmatpush1.bf16.msra.mxu0 0
    %692 = vmatprep.subr.bf16.mxu0 0
    %693 = vmatpush1.bf16.msra.mxu0 0
    %694 = vmatprep.subr.bf16.mxu0 0
    %695 = vmatpush1.bf16.msra.mxu0 0
    %696 = vmatprep.subr.bf16.mxu0 0
    %697 = vmatpush1.bf16.msra.mxu0 0
    %698 = vmatprep.subr.bf16.mxu0 0
    %699 = vmatpush1.bf16.msra.mxu0 0
    %700 = vmatprep.subr.bf16.mxu0 0
    %701 = vmatpush1.bf16.msra.mxu0 0
    %702 = vmatprep.subr.bf16.mxu0 0
    %703 = vmatpush1.bf16.msra.mxu0 0
    %704 = vmatprep.subr.bf16.mxu0 0
    %705 = vmatpush1.bf16.msra.mxu0 0
    %706 = vmatprep.subr.bf16.mxu0 0
    %707 = vmatpush1.bf16.msra.mxu0 0
    %708 = vmatprep.subr.bf16.mxu0 0
    %709 = vmatpush1.bf16.msra.mxu0 0
    %710 = vmatprep.mubr.bf16.mxu0 0
    %711 = vmatmul.mubr.bf16.gmra.mrb[0].mxu0 %v676
    %v712 = vpop.f32.mrb[0].mxu0
    %v713 = vadd.f32 0.0, %v712
    %v714 = vpop.f32.mrb[0].mxu0
    %v715 = vpop.f32.mrb[0].mxu0
    %v716 = vpop.f32.mrb[0].mxu0
    %717 = vdwg.mxu0
    %v718 = vpack.c.bf16 %v713, %v713
    %720 = vrot.lane.b32.xlu0 %v718, 16
    %v721 = vpop.permute.xlu0 %720
    %vm723 = vcmask 257152
    %724 = vst.msk [vmem:[#allocation2] sm:$0xf] %vm723, %v721
    %725 = vrot.lane.b32.xlu0 %v247, 96
    %v726 = vpop.permute.xlu0 %725
    %727 = vrot.lane.b32.xlu0 %v373, 96
    %v728 = vpop.permute.xlu0 %727
    %v730 = vsel %vm502, %v726, 0
    %v733 = vsel %vm502, %v728, 0
    %735 = vmatprep.subr.bf16.mxu0 0
    %736 = vmatpush1.bf16.xpose.msra.mxu0 %v733
    %737 = vmatprep.subr.bf16.mxu0 0
    %738 = vmatpush1.bf16.xpose.msra.mxu0 0
    %739 = vmatprep.subr.bf16.mxu0 0
    %740 = vmatpush1.bf16.xpose.msra.mxu0 0
    %741 = vmatprep.subr.bf16.mxu0 0
    %742 = vmatpush1.bf16.xpose.msra.mxu0 0
    %743 = vmatprep.subr.bf16.mxu0 0
    %744 = vmatpush1.bf16.xpose.msra.mxu0 0
    %745 = vmatprep.subr.bf16.mxu0 0
    %746 = vmatpush1.bf16.xpose.msra.mxu0 0
    %747 = vmatprep.subr.bf16.mxu0 0
    %748 = vmatpush1.bf16.xpose.msra.mxu0 0
    %749 = vmatprep.subr.bf16.mxu0 0
    %750 = vmatpush1.bf16.xpose.msra.mxu0 0
    %751 = vmatprep.subr.bf16.mxu0 0
    %752 = vmatpush1.bf16.xpose.msra.mxu0 0
    %753 = vmatprep.subr.bf16.mxu0 0
    %754 = vmatpush1.bf16.xpose.msra.mxu0 0
    %755 = vmatprep.subr.bf16.mxu0 0
    %756 = vmatpush1.bf16.xpose.msra.mxu0 0
    %757 = vmatprep.subr.bf16.mxu0 0
    %758 = vmatpush1.bf16.xpose.msra.mxu0 0
    %759 = vmatprep.subr.bf16.mxu0 0
    %760 = vmatpush1.bf16.xpose.msra.mxu0 0
    %761 = vmatprep.subr.bf16.mxu0 0
    %762 = vmatpush1.bf16.xpose.msra.mxu0 0
    %763 = vmatprep.subr.bf16.mxu0 0
    %764 = vmatpush1.bf16.xpose.msra.mxu0 0
    %765 = vmatprep.subr.bf16.mxu0 0
    %766 = vmatpush1.bf16.xpose.msra.mxu0 0
    %767 = vmatprep.mubr.bf16.mxu0 0
    %768 = vmatmul.mubr.bf16.gmra.mrb[0].mxu0 %v730
    %v769 = vpop.f32.mrb[0].mxu0
    %v770 = vadd.f32 0.0, %v769
    %v771 = vpop.f32.mrb[0].mxu0
    %v772 = vpop.f32.mrb[0].mxu0
    %v773 = vpop.f32.mrb[0].mxu0
    %774 = vdwg.mxu0
    %v775 = vsel %vm502, %v770, -inf
    %776 = vmax.xlane.f32.xlu0 %v775
    %v777 = vpop.xlane.xlu0 %776
    %v778 = vsub.f32 %v770, %v777
    %v779 = vmul.f32 %v778, 1.442695
    %v780 = vpow.pop %v779
    %v781 = vsel %vm502, %v780, 0.0
    %782 = vadd.xlane.f32.xlu0 %v781
    %v783 = vpop.xlane.xlu0 %782
    %v784 = vrcp.pop %v783
    %v785 = vmul.f32 %v780, %v784
    %v786 = vpack.c.bf16 %v785, %v785
    %787 = vrot.lane.b32.xlu0 %v500, 96
    %v788 = vpop.permute.xlu0 %787
    %v791 = vsel %vm502, %v786, 0
    %793 = vmatprep.subr.bf16.mxu0 0
    %794 = vmatpush1.bf16.msra.mxu0 %v788
    %795 = vmatprep.subr.bf16.mxu0 0
    %796 = vmatpush1.bf16.msra.mxu0 0
    %797 = vmatprep.subr.bf16.mxu0 0
    %798 = vmatpush1.bf16.msra.mxu0 0
    %799 = vmatprep.subr.bf16.mxu0 0
    %800 = vmatpush1.bf16.msra.mxu0 0
    %801 = vmatprep.subr.bf16.mxu0 0
    %802 = vmatpush1.bf16.msra.mxu0 0
    %803 = vmatprep.subr.bf16.mxu0 0
    %804 = vmatpush1.bf16.msra.mxu0 0
    %805 = vmatprep.subr.bf16.mxu0 0
    %806 = vmatpush1.bf16.msra.mxu0 0
    %807 = vmatprep.subr.bf16.mxu0 0
    %808 = vmatpush1.bf16.msra.mxu0 0
    %809 = vmatprep.subr.bf16.mxu0 0
    %810 = vmatpush1.bf16.msra.mxu0 0
    %811 = vmatprep.subr.bf16.mxu0 0
    %812 = vmatpush1.bf16.msra.mxu0 0
    %813 = vmatprep.subr.bf16.mxu0 0
    %814 = vmatpush1.bf16.msra.mxu0 0
    %815 = vmatprep.subr.bf16.mxu0 0
    %816 = vmatpush1.bf16.msra.mxu0 0
    %817 = vmatprep.subr.bf16.mxu0 0
    %818 = vmatpush1.bf16.msra.mxu0 0
    %819 = vmatprep.subr.bf16.mxu0 0
    %820 = vmatpush1.bf16.msra.mxu0 0
    %821 = vmatprep.subr.bf16.mxu0 0
    %822 = vmatpush1.bf16.msra.mxu0 0
    %823 = vmatprep.subr.bf16.mxu0 0
    %824 = vmatpush1.bf16.msra.mxu0 0
    %825 = vmatprep.mubr.bf16.mxu0 0
    %826 = vmatmul.mubr.bf16.gmra.mrb[0].mxu0 %v791
    %v827 = vpop.f32.mrb[0].mxu0
    %v828 = vadd.f32 0.0, %v827
    %v829 = vpop.f32.mrb[0].mxu0
    %v830 = vpop.f32.mrb[0].mxu0
    %v831 = vpop.f32.mrb[0].mxu0
    %832 = vdwg.mxu0
    %v833 = vpack.c.bf16 %v828, %v828
    %835 = vrot.lane.b32.xlu0 %v833, 32
    %v836 = vpop.permute.xlu0 %835
    %vm838 = vcmask 388352
    %839 = vst.msk [vmem:[#allocation2] sm:$0xf] %vm838, %v836
    %840 = vrot.lane.b32.xlu0 %v247, 80
    %v841 = vpop.permute.xlu0 %840
    %842 = vrot.lane.b32.xlu0 %v373, 80
    %v843 = vpop.permute.xlu0 %842
    %v845 = vsel %vm502, %v841, 0
    %v848 = vsel %vm502, %v843, 0
    %850 = vmatprep.subr.bf16.mxu0 0
    %851 = vmatpush1.bf16.xpose.msra.mxu0 %v848
    %852 = vmatprep.subr.bf16.mxu0 0
    %853 = vmatpush1.bf16.xpose.msra.mxu0 0
    %854 = vmatprep.subr.bf16.mxu0 0
    %855 = vmatpush1.bf16.xpose.msra.mxu0 0
    %856 = vmatprep.subr.bf16.mxu0 0
    %857 = vmatpush1.bf16.xpose.msra.mxu0 0
    %858 = vmatprep.subr.bf16.mxu0 0
    %859 = vmatpush1.bf16.xpose.msra.mxu0 0
    %860 = vmatprep.subr.bf16.mxu0 0
    %861 = vmatpush1.bf16.xpose.msra.mxu0 0
    %862 = vmatprep.subr.bf16.mxu0 0
    %863 = vmatpush1.bf16.xpose.msra.mxu0 0
    %864 = vmatprep.subr.bf16.mxu0 0
    %865 = vmatpush1.bf16.xpose.msra.mxu0 0
    %866 = vmatprep.subr.bf16.mxu0 0
    %867 = vmatpush1.bf16.xpose.msra.mxu0 0
    %868 = vmatprep.subr.bf16.mxu0 0
    %869 = vmatpush1.bf16.xpose.msra.mxu0 0
    %870 = vmatprep.subr.bf16.mxu0 0
    %871 = vmatpush1.bf16.xpose.msra.mxu0 0
    %872 = vmatprep.subr.bf16.mxu0 0
    %873 = vmatpush1.bf16.xpose.msra.mxu0 0
    %874 = vmatprep.subr.bf16.mxu0 0
    %875 = vmatpush1.bf16.xpose.msra.mxu0 0
    %876 = vmatprep.subr.bf16.mxu0 0
    %877 = vmatpush1.bf16.xpose.msra.mxu0 0
    %878 = vmatprep.subr.bf16.mxu0 0
    %879 = vmatpush1.bf16.xpose.msra.mxu0 0
    %880 = vmatprep.subr.bf16.mxu0 0
    %881 = vmatpush1.bf16.xpose.msra.mxu0 0
    %882 = vmatprep.mubr.bf16.mxu0 0
    %883 = vmatmul.mubr.bf16.gmra.mrb[0].mxu0 %v845
    %v884 = vpop.f32.mrb[0].mxu0
    %v885 = vadd.f32 0.0, %v884
    %v886 = vpop.f32.mrb[0].mxu0
    %v887 = vpop.f32.mrb[0].mxu0
    %v888 = vpop.f32.mrb[0].mxu0
    %889 = vdwg.mxu0
    %v890 = vsel %vm502, %v885, -inf
    %891 = vmax.xlane.f32.xlu0 %v890
    %v892 = vpop.xlane.xlu0 %891
    %v893 = vsub.f32 %v885, %v892
    %v894 = vmul.f32 %v893, 1.442695
    %v895 = vpow.pop %v894
    %v896 = vsel %vm502, %v895, 0.0
    %897 = vadd.xlane.f32.xlu0 %v896
    %v898 = vpop.xlane.xlu0 %897
    %v899 = vrcp.pop %v898
    %v900 = vmul.f32 %v895, %v899
    %v901 = vpack.c.bf16 %v900, %v900
    %902 = vrot.lane.b32.xlu0 %v500, 80
    %v903 = vpop.permute.xlu0 %902
    %v906 = vsel %vm502, %v901, 0
    %908 = vmatprep.subr.bf16.mxu0 0
    %909 = vmatpush1.bf16.msra.mxu0 %v903
    %910 = vmatprep.subr.bf16.mxu0 0
    %911 = vmatpush1.bf16.msra.mxu0 0
    %912 = vmatprep.subr.bf16.mxu0 0
    %913 = vmatpush1.bf16.msra.mxu0 0
    %914 = vmatprep.subr.bf16.mxu0 0
    %915 = vmatpush1.bf16.msra.mxu0 0
    %916 = vmatprep.subr.bf16.mxu0 0
    %917 = vmatpush1.bf16.msra.mxu0 0
    %918 = vmatprep.subr.bf16.mxu0 0
    %919 = vmatpush1.bf16.msra.mxu0 0
    %920 = vmatprep.subr.bf16.mxu0 0
    %921 = vmatpush1.bf16.msra.mxu0 0
    %922 = vmatprep.subr.bf16.mxu0 0
    %923 = vmatpush1.bf16.msra.mxu0 0
    %924 = vmatprep.subr.bf16.mxu0 0
    %925 = vmatpush1.bf16.msra.mxu0 0
    %926 = vmatprep.subr.bf16.mxu0 0
    %927 = vmatpush1.bf16.msra.mxu0 0
    %928 = vmatprep.subr.bf16.mxu0 0
    %929 = vmatpush1.bf16.msra.mxu0 0
    %930 = vmatprep.subr.bf16.mxu0 0
    %931 = vmatpush1.bf16.msra.mxu0 0
    %932 = vmatprep.subr.bf16.mxu0 0
    %933 = vmatpush1.bf16.msra.mxu0 0
    %934 = vmatprep.subr.bf16.mxu0 0
    %935 = vmatpush1.bf16.msra.mxu0 0
    %936 = vmatprep.subr.bf16.mxu0 0
    %937 = vmatpush1.bf16.msra.mxu0 0
    %938 = vmatprep.subr.bf16.mxu0 0
    %939 = vmatpush1.bf16.msra.mxu0 0
    %940 = vmatprep.mubr.bf16.mxu0 0
    %941 = vmatmul.mubr.bf16.gmra.mrb[0].mxu0 %v906
    %v942 = vpop.f32.mrb[0].mxu0
    %v943 = vadd.f32 0.0, %v942
    %v944 = vpop.f32.mrb[0].mxu0
    %v945 = vpop.f32.mrb[0].mxu0
    %v946 = vpop.f32.mrb[0].mxu0
    %947 = vdwg.mxu0
    %v948 = vpack.c.bf16 %v943, %v943
    %950 = vrot.lane.b32.xlu0 %v948, 48
    %v951 = vpop.permute.xlu0 %950
    %vm953 = vcmask 519552
    %954 = vst.msk [vmem:[#allocation2] sm:$0xf] %vm953, %v951
    %955 = vrot.lane.b32.xlu0 %v247, 64
    %v956 = vpop.permute.xlu0 %955
    %957 = vrot.lane.b32.xlu0 %v373, 64
    %v958 = vpop.permute.xlu0 %957
    %v960 = vsel %vm502, %v956, 0
    %v963 = vsel %vm502, %v958, 0
    %965 = vmatprep.subr.bf16.mxu0 0
    %966 = vmatpush1.bf16.xpose.msra.mxu0 %v963
    %967 = vmatprep.subr.bf16.mxu0 0
    %968 = vmatpush1.bf16.xpose.msra.mxu0 0
    %969 = vmatprep.subr.bf16.mxu0 0
    %970 = vmatpush1.bf16.xpose.msra.mxu0 0
    %971 = vmatprep.subr.bf16.mxu0 0
    %972 = vmatpush1.bf16.xpose.msra.mxu0 0
    %973 = vmatprep.subr.bf16.mxu0 0
    %974 = vmatpush1.bf16.xpose.msra.mxu0 0
    %975 = vmatprep.subr.bf16.mxu0 0
    %976 = vmatpush1.bf16.xpose.msra.mxu0 0
    %977 = vmatprep.subr.bf16.mxu0 0
    %978 = vmatpush1.bf16.xpose.msra.mxu0 0
    %979 = vmatprep.subr.bf16.mxu0 0
    %980 = vmatpush1.bf16.xpose.msra.mxu0 0
    %981 = vmatprep.subr.bf16.mxu0 0
    %982 = vmatpush1.bf16.xpose.msra.mxu0 0
    %983 = vmatprep.subr.bf16.mxu0 0
    %984 = vmatpush1.bf16.xpose.msra.mxu0 0
    %985 = vmatprep.subr.bf16.mxu0 0
    %986 = vmatpush1.bf16.xpose.msra.mxu0 0
    %987 = vmatprep.subr.bf16.mxu0 0
    %988 = vmatpush1.bf16.xpose.msra.mxu0 0
    %989 = vmatprep.subr.bf16.mxu0 0
    %990 = vmatpush1.bf16.xpose.msra.mxu0 0
    %991 = vmatprep.subr.bf16.mxu0 0
    %992 = vmatpush1.bf16.xpose.msra.mxu0 0
    %993 = vmatprep.subr.bf16.mxu0 0
    %994 = vmatpush1.bf16.xpose.msra.mxu0 0
    %995 = vmatprep.subr.bf16.mxu0 0
    %996 = vmatpush1.bf16.xpose.msra.mxu0 0
    %997 = vmatprep.mubr.bf16.mxu0 0
    %998 = vmatmul.mubr.bf16.gmra.mrb[0].mxu0 %v960
    %v999 = vpop.f32.mrb[0].mxu0
    %v1000 = vadd.f32 0.0, %v999
    %v1001 = vpop.f32.mrb[0].mxu0
    %v1002 = vpop.f32.mrb[0].mxu0
    %v1003 = vpop.f32.mrb[0].mxu0
    %1004 = vdwg.mxu0
    %v1005 = vsel %vm502, %v1000, -inf
    %1006 = vmax.xlane.f32.xlu0 %v1005
    %v1007 = vpop.xlane.xlu0 %1006
    %v1008 = vsub.f32 %v1000, %v1007
    %v1009 = vmul.f32 %v1008, 1.442695
    %v1010 = vpow.pop %v1009
    %v1011 = vsel %vm502, %v1010, 0.0
    %1012 = vadd.xlane.f32.xlu0 %v1011
    %v1013 = vpop.xlane.xlu0 %1012
    %v1014 = vrcp.pop %v1013
    %v1015 = vmul.f32 %v1010, %v1014
    %v1016 = vpack.c.bf16 %v1015, %v1015
    %1017 = vrot.lane.b32.xlu0 %v500, 64
    %v1018 = vpop.permute.xlu0 %1017
    %v1021 = vsel %vm502, %v1016, 0
    %1023 = vmatprep.subr.bf16.mxu0 0
    %1024 = vmatpush1.bf16.msra.mxu0 %v1018
    %1025 = vmatprep.subr.bf16.mxu0 0
    %1026 = vmatpush1.bf16.msra.mxu0 0
    %1027 = vmatprep.subr.bf16.mxu0 0
    %1028 = vmatpush1.bf16.msra.mxu0 0
    %1029 = vmatprep.subr.bf16.mxu0 0
    %1030 = vmatpush1.bf16.msra.mxu0 0
    %1031 = vmatprep.subr.bf16.mxu0 0
    %1032 = vmatpush1.bf16.msra.mxu0 0
    %1033 = vmatprep.subr.bf16.mxu0 0
    %1034 = vmatpush1.bf16.msra.mxu0 0
    %1035 = vmatprep.subr.bf16.mxu0 0
    %1036 = vmatpush1.bf16.msra.mxu0 0
    %1037 = vmatprep.subr.bf16.mxu0 0
    %1038 = vmatpush1.bf16.msra.mxu0 0
    %1039 = vmatprep.subr.bf16.mxu0 0
    %1040 = vmatpush1.bf16.msra.mxu0 0
    %1041 = vmatprep.subr.bf16.mxu0 0
    %1042 = vmatpush1.bf16.msra.mxu0 0
    %1043 = vmatprep.subr.bf16.mxu0 0
    %1044 = vmatpush1.bf16.msra.mxu0 0
    %1045 = vmatprep.subr.bf16.mxu0 0
    %1046 = vmatpush1.bf16.msra.mxu0 0
    %1047 = vmatprep.subr.bf16.mxu0 0
    %1048 = vmatpush1.bf16.msra.mxu0 0
    %1049 = vmatprep.subr.bf16.mxu0 0
    %1050 = vmatpush1.bf16.msra.mxu0 0
    %1051 = vmatprep.subr.bf16.mxu0 0
    %1052 = vmatpush1.bf16.msra.mxu0 0
    %1053 = vmatprep.subr.bf16.mxu0 0
    %1054 = vmatpush1.bf16.msra.mxu0 0
    %1055 = vmatprep.mubr.bf16.mxu0 0
    %1056 = vmatmul.mubr.bf16.gmra.mrb[0].mxu0 %v1021
    %v1057 = vpop.f32.mrb[0].mxu0
    %v1058 = vadd.f32 0.0, %v1057
    %v1059 = vpop.f32.mrb[0].mxu0
    %v1060 = vpop.f32.mrb[0].mxu0
    %v1061 = vpop.f32.mrb[0].mxu0
    %1062 = vdwg.mxu0
    %v1063 = vpack.c.bf16 %v1058, %v1058
    %1065 = vrot.lane.b32.xlu0 %v1063, 64
    %v1066 = vpop.permute.xlu0 %1065
    %vm1068 = vcmask 650752
    %1069 = vst.msk [vmem:[#allocation2] sm:$0xf] %vm1068, %v1066
    %1070 = vrot.lane.b32.xlu0 %v247, 48
    %v1071 = vpop.permute.xlu0 %1070
    %1072 = vrot.lane.b32.xlu0 %v373, 48
    %v1073 = vpop.permute.xlu0 %1072
    %v1075 = vsel %vm502, %v1071, 0
    %v1078 = vsel %vm502, %v1073, 0
    %1080 = vmatprep.subr.bf16.mxu0 0
    %1081 = vmatpush1.bf16.xpose.msra.mxu0 %v1078
    %1082 = vmatprep.subr.bf16.mxu0 0
    %1083 = vmatpush1.bf16.xpose.msra.mxu0 0
    %1084 = vmatprep.subr.bf16.mxu0 0
    %1085 = vmatpush1.bf16.xpose.msra.mxu0 0
    %1086 = vmatprep.subr.bf16.mxu0 0
    %1087 = vmatpush1.bf16.xpose.msra.mxu0 0
    %1088 = vmatprep.subr.bf16.mxu0 0
    %1089 = vmatpush1.bf16.xpose.msra.mxu0 0
    %1090 = vmatprep.subr.bf16.mxu0 0
    %1091 = vmatpush1.bf16.xpose.msra.mxu0 0
    %1092 = vmatprep.subr.bf16.mxu0 0
    %1093 = vmatpush1.bf16.xpose.msra.mxu0 0
    %1094 = vmatprep.subr.bf16.mxu0 0
    %1095 = vmatpush1.bf16.xpose.msra.mxu0 0
    %1096 = vmatprep.subr.bf16.mxu0 0
    %1097 = vmatpush1.bf16.xpose.msra.mxu0 0
    %1098 = vmatprep.subr.bf16.mxu0 0
    %1099 = vmatpush1.bf16.xpose.msra.mxu0 0
    %1100 = vmatprep.subr.bf16.mxu0 0
    %1101 = vmatpush1.bf16.xpose.msra.mxu0 0
    %1102 = vmatprep.subr.bf16.mxu0 0
    %1103 = vmatpush1.bf16.xpose.msra.mxu0 0
    %1104 = vmatprep.subr.bf16.mxu0 0
    %1105 = vmatpush1.bf16.xpose.msra.mxu0 0
    %1106 = vmatprep.subr.bf16.mxu0 0
    %1107 = vmatpush1.bf16.xpose.msra.mxu0 0
    %1108 = vmatprep.subr.bf16.mxu0 0
    %1109 = vmatpush1.bf16.xpose.msra.mxu0 0
    %1110 = vmatprep.subr.bf16.mxu0 0
    %1111 = vmatpush1.bf16.xpose.msra.mxu0 0
    %1112 = vmatprep.mubr.bf16.mxu0 0
    %1113 = vmatmul.mubr.bf16.gmra.mrb[0].mxu0 %v1075
    %v1114 = vpop.f32.mrb[0].mxu0
    %v1115 = vadd.f32 0.0, %v1114
    %v1116 = vpop.f32.mrb[0].mxu0
    %v1117 = vpop.f32.mrb[0].mxu0
    %v1118 = vpop.f32.mrb[0].mxu0
    %1119 = vdwg.mxu0
    %v1120 = vsel %vm502, %v1115, -inf
    %1121 = vmax.xlane.f32.xlu0 %v1120
    %v1122 = vpop.xlane.xlu0 %1121
    %v1123 = vsub.f32 %v1115, %v1122
    %v1124 = vmul.f32 %v1123, 1.442695
    %v1125 = vpow.pop %v1124
    %v1126 = vsel %vm502, %v1125, 0.0
    %1127 = vadd.xlane.f32.xlu0 %v1126
    %v1128 = vpop.xlane.xlu0 %1127
    %v1129 = vrcp.pop %v1128
    %v1130 = vmul.f32 %v1125, %v1129
    %v1131 = vpack.c.bf16 %v1130, %v1130
    %1132 = vrot.lane.b32.xlu0 %v500, 48
    %v1133 = vpop.permute.xlu0 %1132
    %v1136 = vsel %vm502, %v1131, 0
    %1138 = vmatprep.subr.bf16.mxu0 0
    %1139 = vmatpush1.bf16.msra.mxu0 %v1133
    %1140 = vmatprep.subr.bf16.mxu0 0
    %1141 = vmatpush1.bf16.msra.mxu0 0
    %1142 = vmatprep.subr.bf16.mxu0 0
    %1143 = vmatpush1.bf16.msra.mxu0 0
    %1144 = vmatprep.subr.bf16.mxu0 0
    %1145 = vmatpush1.bf16.msra.mxu0 0
    %1146 = vmatprep.subr.bf16.mxu0 0
    %1147 = vmatpush1.bf16.msra.mxu0 0
    %1148 = vmatprep.subr.bf16.mxu0 0
    %1149 = vmatpush1.bf16.msra.mxu0 0
    %1150 = vmatprep.subr.bf16.mxu0 0
    %1151 = vmatpush1.bf16.msra.mxu0 0
    %1152 = vmatprep.subr.bf16.mxu0 0
    %1153 = vmatpush1.bf16.msra.mxu0 0
    %1154 = vmatprep.subr.bf16.mxu0 0
    %1155 = vmatpush1.bf16.msra.mxu0 0
    %1156 = vmatprep.subr.bf16.mxu0 0
    %1157 = vmatpush1.bf16.msra.mxu0 0
    %1158 = vmatprep.subr.bf16.mxu0 0
    %1159 = vmatpush1.bf16.msra.mxu0 0
    %1160 = vmatprep.subr.bf16.mxu0 0
    %1161 = vmatpush1.bf16.msra.mxu0 0
    %1162 = vmatprep.subr.bf16.mxu0 0
    %1163 = vmatpush1.bf16.msra.mxu0 0
    %1164 = vmatprep.subr.bf16.mxu0 0
    %1165 = vmatpush1.bf16.msra.mxu0 0
    %1166 = vmatprep.subr.bf16.mxu0 0
    %1167 = vmatpush1.bf16.msra.mxu0 0
    %1168 = vmatprep.subr.bf16.mxu0 0
    %1169 = vmatpush1.bf16.msra.mxu0 0
    %1170 = vmatprep.mubr.bf16.mxu0 0
    %1171 = vmatmul.mubr.bf16.gmra.mrb[0].mxu0 %v1136
    %v1172 = vpop.f32.mrb[0].mxu0
    %v1173 = vadd.f32 0.0, %v1172
    %v1174 = vpop.f32.mrb[0].mxu0
    %v1175 = vpop.f32.mrb[0].mxu0
    %v1176 = vpop.f32.mrb[0].mxu0
    %1177 = vdwg.mxu0
    %v1178 = vpack.c.bf16 %v1173, %v1173
    %1180 = vrot.lane.b32.xlu0 %v1178, 80
    %v1181 = vpop.permute.xlu0 %1180
    %vm1183 = vcmask 781952
    %1184 = vst.msk [vmem:[#allocation2] sm:$0xf] %vm1183, %v1181
    %1185 = vrot.lane.b32.xlu0 %v247, 32
    %v1186 = vpop.permute.xlu0 %1185
    %1187 = vrot.lane.b32.xlu0 %v373, 32
    %v1188 = vpop.permute.xlu0 %1187
    %v1190 = vsel %vm502, %v1186, 0
    %v1193 = vsel %vm502, %v1188, 0
    %1195 = vmatprep.subr.bf16.mxu0 0
    %1196 = vmatpush1.bf16.xpose.msra.mxu0 %v1193
    %1197 = vmatprep.subr.bf16.mxu0 0
    %1198 = vmatpush1.bf16.xpose.msra.mxu0 0
    %1199 = vmatprep.subr.bf16.mxu0 0
    %1200 = vmatpush1.bf16.xpose.msra.mxu0 0
    %1201 = vmatprep.subr.bf16.mxu0 0
    %1202 = vmatpush1.bf16.xpose.msra.mxu0 0
    %1203 = vmatprep.subr.bf16.mxu0 0
    %1204 = vmatpush1.bf16.xpose.msra.mxu0 0
    %1205 = vmatprep.subr.bf16.mxu0 0
    %1206 = vmatpush1.bf16.xpose.msra.mxu0 0
    %1207 = vmatprep.subr.bf16.mxu0 0
    %1208 = vmatpush1.bf16.xpose.msra.mxu0 0
    %1209 = vmatprep.subr.bf16.mxu0 0
    %1210 = vmatpush1.bf16.xpose.msra.mxu0 0
    %1211 = vmatprep.subr.bf16.mxu0 0
    %1212 = vmatpush1.bf16.xpose.msra.mxu0 0
    %1213 = vmatprep.subr.bf16.mxu0 0
    %1214 = vmatpush1.bf16.xpose.msra.mxu0 0
    %1215 = vmatprep.subr.bf16.mxu0 0
    %1216 = vmatpush1.bf16.xpose.msra.mxu0 0
    %1217 = vmatprep.subr.bf16.mxu0 0
    %1218 = vmatpush1.bf16.xpose.msra.mxu0 0
    %1219 = vmatprep.subr.bf16.mxu0 0
    %1220 = vmatpush1.bf16.xpose.msra.mxu0 0
    %1221 = vmatprep.subr.bf16.mxu0 0
    %1222 = vmatpush1.bf16.xpose.msra.mxu0 0
    %1223 = vmatprep.subr.bf16.mxu0 0
    %1224 = vmatpush1.bf16.xpose.msra.mxu0 0
    %1225 = vmatprep.subr.bf16.mxu0 0
    %1226 = vmatpush1.bf16.xpose.msra.mxu0 0
    %1227 = vmatprep.mubr.bf16.mxu0 0
    %1228 = vmatmul.mubr.bf16.gmra.mrb[0].mxu0 %v1190
    %v1229 = vpop.f32.mrb[0].mxu0
    %v1230 = vadd.f32 0.0, %v1229
    %v1231 = vpop.f32.mrb[0].mxu0
    %v1232 = vpop.f32.mrb[0].mxu0
    %v1233 = vpop.f32.mrb[0].mxu0
    %1234 = vdwg.mxu0
    %v1235 = vsel %vm502, %v1230, -inf
    %1236 = vmax.xlane.f32.xlu0 %v1235
    %v1237 = vpop.xlane.xlu0 %1236
    %v1238 = vsub.f32 %v1230, %v1237
    %v1239 = vmul.f32 %v1238, 1.442695
    %v1240 = vpow.pop %v1239
    %v1241 = vsel %vm502, %v1240, 0.0
    %1242 = vadd.xlane.f32.xlu0 %v1241
    %v1243 = vpop.xlane.xlu0 %1242
    %v1244 = vrcp.pop %v1243
    %v1245 = vmul.f32 %v1240, %v1244
    %v1246 = vpack.c.bf16 %v1245, %v1245
    %1247 = vrot.lane.b32.xlu0 %v500, 32
    %v1248 = vpop.permute.xlu0 %1247
    %v1251 = vsel %vm502, %v1246, 0
    %1253 = vmatprep.subr.bf16.mxu0 0
    %1254 = vmatpush1.bf16.msra.mxu0 %v1248
    %1255 = vmatprep.subr.bf16.mxu0 0
    %1256 = vmatpush1.bf16.msra.mxu0 0
    %1257 = vmatprep.subr.bf16.mxu0 0
    %1258 = vmatpush1.bf16.msra.mxu0 0
    %1259 = vmatprep.subr.bf16.mxu0 0
    %1260 = vmatpush1.bf16.msra.mxu0 0
    %1261 = vmatprep.subr.bf16.mxu0 0
    %1262 = vmatpush1.bf16.msra.mxu0 0
    %1263 = vmatprep.subr.bf16.mxu0 0
    %1264 = vmatpush1.bf16.msra.mxu0 0
    %1265 = vmatprep.subr.bf16.mxu0 0
    %1266 = vmatpush1.bf16.msra.mxu0 0
    %1267 = vmatprep.subr.bf16.mxu0 0
    %1268 = vmatpush1.bf16.msra.mxu0 0
    %1269 = vmatprep.subr.bf16.mxu0 0
    %1270 = vmatpush1.bf16.msra.mxu0 0
    %1271 = vmatprep.subr.bf16.mxu0 0
    %1272 = vmatpush1.bf16.msra.mxu0 0
    %1273 = vmatprep.subr.bf16.mxu0 0
    %1274 = vmatpush1.bf16.msra.mxu0 0
    %1275 = vmatprep.subr.bf16.mxu0 0
    %1276 = vmatpush1.bf16.msra.mxu0 0
    %1277 = vmatprep.subr.bf16.mxu0 0
    %1278 = vmatpush1.bf16.msra.mxu0 0
    %1279 = vmatprep.subr.bf16.mxu0 0
    %1280 = vmatpush1.bf16.msra.mxu0 0
    %1281 = vmatprep.subr.bf16.mxu0 0
    %1282 = vmatpush1.bf16.msra.mxu0 0
    %1283 = vmatprep.subr.bf16.mxu0 0
    %1284 = vmatpush1.bf16.msra.mxu0 0
    %1285 = vmatprep.mubr.bf16.mxu0 0
    %1286 = vmatmul.mubr.bf16.gmra.mrb[0].mxu0 %v1251
    %v1287 = vpop.f32.mrb[0].mxu0
    %v1288 = vadd.f32 0.0, %v1287
    %v1289 = vpop.f32.mrb[0].mxu0
    %v1290 = vpop.f32.mrb[0].mxu0
    %v1291 = vpop.f32.mrb[0].mxu0
    %1292 = vdwg.mxu0
    %v1293 = vpack.c.bf16 %v1288, %v1288
    %1295 = vrot.lane.b32.xlu0 %v1293, 96
    %v1296 = vpop.permute.xlu0 %1295
    %vm1298 = vcmask 913152
    %1299 = vst.msk [vmem:[#allocation2] sm:$0xf] %vm1298, %v1296
    %1300 = vrot.lane.b32.xlu0 %v247, 16
    %v1301 = vpop.permute.xlu0 %1300
    %1302 = vrot.lane.b32.xlu0 %v373, 16
    %v1303 = vpop.permute.xlu0 %1302
    %v1305 = vsel %vm502, %v1301, 0
    %v1308 = vsel %vm502, %v1303, 0
    %1310 = vmatprep.subr.bf16.mxu0 0
    %1311 = vmatpush1.bf16.xpose.msra.mxu0 %v1308
    %1312 = vmatprep.subr.bf16.mxu0 0
    %1313 = vmatpush1.bf16.xpose.msra.mxu0 0
    %1314 = vmatprep.subr.bf16.mxu0 0
    %1315 = vmatpush1.bf16.xpose.msra.mxu0 0
    %1316 = vmatprep.subr.bf16.mxu0 0
    %1317 = vmatpush1.bf16.xpose.msra.mxu0 0
    %1318 = vmatprep.subr.bf16.mxu0 0
    %1319 = vmatpush1.bf16.xpose.msra.mxu0 0
    %1320 = vmatprep.subr.bf16.mxu0 0
    %1321 = vmatpush1.bf16.xpose.msra.mxu0 0
    %1322 = vmatprep.subr.bf16.mxu0 0
    %1323 = vmatpush1.bf16.xpose.msra.mxu0 0
    %1324 = vmatprep.subr.bf16.mxu0 0
    %1325 = vmatpush1.bf16.xpose.msra.mxu0 0
    %1326 = vmatprep.subr.bf16.mxu0 0
    %1327 = vmatpush1.bf16.xpose.msra.mxu0 0
    %1328 = vmatprep.subr.bf16.mxu0 0
    %1329 = vmatpush1.bf16.xpose.msra.mxu0 0
    %1330 = vmatprep.subr.bf16.mxu0 0
    %1331 = vmatpush1.bf16.xpose.msra.mxu0 0
    %1332 = vmatprep.subr.bf16.mxu0 0
    %1333 = vmatpush1.bf16.xpose.msra.mxu0 0
    %1334 = vmatprep.subr.bf16.mxu0 0
    %1335 = vmatpush1.bf16.xpose.msra.mxu0 0
    %1336 = vmatprep.subr.bf16.mxu0 0
    %1337 = vmatpush1.bf16.xpose.msra.mxu0 0
    %1338 = vmatprep.subr.bf16.mxu0 0
    %1339 = vmatpush1.bf16.xpose.msra.mxu0 0
    %1340 = vmatprep.subr.bf16.mxu0 0
    %1341 = vmatpush1.bf16.xpose.msra.mxu0 0
    %1342 = vmatprep.mubr.bf16.mxu0 0
    %1343 = vmatmul.mubr.bf16.gmra.mrb[0].mxu0 %v1305
    %v1344 = vpop.f32.mrb[0].mxu0
    %v1345 = vadd.f32 0.0, %v1344
    %v1346 = vpop.f32.mrb[0].mxu0
    %v1347 = vpop.f32.mrb[0].mxu0
    %v1348 = vpop.f32.mrb[0].mxu0
    %1349 = vdwg.mxu0
    %v1350 = vsel %vm502, %v1345, -inf
    %1351 = vmax.xlane.f32.xlu0 %v1350
    %v1352 = vpop.xlane.xlu0 %1351
    %v1353 = vsub.f32 %v1345, %v1352
    %v1354 = vmul.f32 %v1353, 1.442695
    %v1355 = vpow.pop %v1354
    %v1356 = vsel %vm502, %v1355, 0.0
    %1357 = vadd.xlane.f32.xlu0 %v1356
    %v1358 = vpop.xlane.xlu0 %1357
    %v1359 = vrcp.pop %v1358
    %v1360 = vmul.f32 %v1355, %v1359
    %v1361 = vpack.c.bf16 %v1360, %v1360
    %1362 = vrot.lane.b32.xlu0 %v500, 16
    %v1363 = vpop.permute.xlu0 %1362
    %v1366 = vsel %vm502, %v1361, 0
    %1368 = vmatprep.subr.bf16.mxu0 0
    %1369 = vmatpush1.bf16.msra.mxu0 %v1363
    %1370 = vmatprep.subr.bf16.mxu0 0
    %1371 = vmatpush1.bf16.msra.mxu0 0
    %1372 = vmatprep.subr.bf16.mxu0 0
    %1373 = vmatpush1.bf16.msra.mxu0 0
    %1374 = vmatprep.subr.bf16.mxu0 0
    %1375 = vmatpush1.bf16.msra.mxu0 0
    %1376 = vmatprep.subr.bf16.mxu0 0
    %1377 = vmatpush1.bf16.msra.mxu0 0
    %1378 = vmatprep.subr.bf16.mxu0 0
    %1379 = vmatpush1.bf16.msra.mxu0 0
    %1380 = vmatprep.subr.bf16.mxu0 0
    %1381 = vmatpush1.bf16.msra.mxu0 0
    %1382 = vmatprep.subr.bf16.mxu0 0
    %1383 = vmatpush1.bf16.msra.mxu0 0
    %1384 = vmatprep.subr.bf16.mxu0 0
    %1385 = vmatpush1.bf16.msra.mxu0 0
    %1386 = vmatprep.subr.bf16.mxu0 0
    %1387 = vmatpush1.bf16.msra.mxu0 0
    %1388 = vmatprep.subr.bf16.mxu0 0
    %1389 = vmatpush1.bf16.msra.mxu0 0
    %1390 = vmatprep.subr.bf16.mxu0 0
    %1391 = vmatpush1.bf16.msra.mxu0 0
    %1392 = vmatprep.subr.bf16.mxu0 0
    %1393 = vmatpush1.bf16.msra.mxu0 0
    %1394 = vmatprep.subr.bf16.mxu0 0
    %1395 = vmatpush1.bf16.msra.mxu0 0
    %1396 = vmatprep.subr.bf16.mxu0 0
    %1397 = vmatpush1.bf16.msra.mxu0 0
    %1398 = vmatprep.subr.bf16.mxu0 0
    %1399 = vmatpush1.bf16.msra.mxu0 0
    %1400 = vmatprep.mubr.bf16.mxu0 0
    %1401 = vmatmul.mubr.bf16.gmra.mrb[0].mxu0 %v1366
    %v1402 = vpop.f32.mrb[0].mxu0
    %v1403 = vadd.f32 0.0, %v1402
    %v1404 = vpop.f32.mrb[0].mxu0
    %v1405 = vpop.f32.mrb[0].mxu0
    %v1406 = vpop.f32.mrb[0].mxu0
    %1407 = vdwg.mxu0
    %v1408 = vpack.c.bf16 %v1403, %v1403
    %1410 = vrot.lane.b32.xlu0 %v1408, 112
    %v1411 = vpop.permute.xlu0 %1410
    %vm1413 = vcmask 1044352
    %1414 = vst.msk [vmem:[#allocation2] sm:$0xf] %vm1413, %v1411
    %v1415 = vrot.slane %v247, 4
    %v1417 = vsel %vm502, %v1415, 0
    %v1420 = vsel %vm502, %v374, 0
    %1422 = vmatprep.subr.bf16.mxu0 0
    %1423 = vmatpush1.bf16.xpose.msra.mxu0 %v1420
    %1424 = vmatprep.subr.bf16.mxu0 0
    %1425 = vmatpush1.bf16.xpose.msra.mxu0 0
    %1426 = vmatprep.subr.bf16.mxu0 0
    %1427 = vmatpush1.bf16.xpose.msra.mxu0 0
    %1428 = vmatprep.subr.bf16.mxu0 0
    %1429 = vmatpush1.bf16.xpose.msra.mxu0 0
    %1430 = vmatprep.subr.bf16.mxu0 0
    %1431 = vmatpush1.bf16.xpose.msra.mxu0 0
    %1432 = vmatprep.subr.bf16.mxu0 0
    %1433 = vmatpush1.bf16.xpose.msra.mxu0 0
    %1434 = vmatprep.subr.bf16.mxu0 0
    %1435 = vmatpush1.bf16.xpose.msra.mxu0 0
    %1436 = vmatprep.subr.bf16.mxu0 0
    %1437 = vmatpush1.bf16.xpose.msra.mxu0 0
    %1438 = vmatprep.subr.bf16.mxu0 0
    %1439 = vmatpush1.bf16.xpose.msra.mxu0 0
    %1440 = vmatprep.subr.bf16.mxu0 0
    %1441 = vmatpush1.bf16.xpose.msra.mxu0 0
    %1442 = vmatprep.subr.bf16.mxu0 0
    %1443 = vmatpush1.bf16.xpose.msra.mxu0 0
    %1444 = vmatprep.subr.bf16.mxu0 0
    %1445 = vmatpush1.bf16.xpose.msra.mxu0 0
    %1446 = vmatprep.subr.bf16.mxu0 0
    %1447 = vmatpush1.bf16.xpose.msra.mxu0 0
    %1448 = vmatprep.subr.bf16.mxu0 0
    %1449 = vmatpush1.bf16.xpose.msra.mxu0 0
    %1450 = vmatprep.subr.bf16.mxu0 0
    %1451 = vmatpush1.bf16.xpose.msra.mxu0 0
    %1452 = vmatprep.subr.bf16.mxu0 0
    %1453 = vmatpush1.bf16.xpose.msra.mxu0 0
    %1454 = vmatprep.mubr.bf16.mxu0 0
    %1455 = vmatmul.mubr.bf16.gmra.mrb[0].mxu0 %v1417
    %v1456 = vpop.f32.mrb[0].mxu0
    %v1457 = vadd.f32 0.0, %v1456
    %v1458 = vpop.f32.mrb[0].mxu0
    %v1459 = vpop.f32.mrb[0].mxu0
    %v1460 = vpop.f32.mrb[0].mxu0
    %1461 = vdwg.mxu0
    %v1462 = vsel %vm502, %v1457, -inf
    %1463 = vmax.xlane.f32.xlu0 %v1462
    %v1464 = vpop.xlane.xlu0 %1463
    %v1465 = vsub.f32 %v1457, %v1464
    %v1466 = vmul.f32 %v1465, 1.442695
    %v1467 = vpow.pop %v1466
    %v1468 = vsel %vm502, %v1467, 0.0
    %1469 = vadd.xlane.f32.xlu0 %v1468
    %v1470 = vpop.xlane.xlu0 %1469
    %v1471 = vrcp.pop %v1470
    %v1472 = vmul.f32 %v1467, %v1471
    %v1473 = vpack.c.bf16 %v1472, %v1472
    %v1475 = vsel %vm502, %v1473, 0
    %1477 = vmatprep.subr.bf16.mxu0 0
    %1478 = vmatpush1.bf16.msra.mxu0 %v501
    %1479 = vmatprep.subr.bf16.mxu0 0
    %1480 = vmatpush1.bf16.msra.mxu0 0
    %1481 = vmatprep.subr.bf16.mxu0 0
    %1482 = vmatpush1.bf16.msra.mxu0 0
    %1483 = vmatprep.subr.bf16.mxu0 0
    %1484 = vmatpush1.bf16.msra.mxu0 0
    %1485 = vmatprep.subr.bf16.mxu0 0
    %1486 = vmatpush1.bf16.msra.mxu0 0
    %1487 = vmatprep.subr.bf16.mxu0 0
    %1488 = vmatpush1.bf16.msra.mxu0 0
    %1489 = vmatprep.subr.bf16.mxu0 0
    %1490 = vmatpush1.bf16.msra.mxu0 0
    %1491 = vmatprep.subr.bf16.mxu0 0
    %1492 = vmatpush1.bf16.msra.mxu0 0
    %1493 = vmatprep.subr.bf16.mxu0 0
    %1494 = vmatpush1.bf16.msra.mxu0 0
    %1495 = vmatprep.subr.bf16.mxu0 0
    %1496 = vmatpush1.bf16.msra.mxu0 0
    %1497 = vmatprep.subr.bf16.mxu0 0
    %1498 = vmatpush1.bf16.msra.mxu0 0
    %1499 = vmatprep.subr.bf16.mxu0 0
    %1500 = vmatpush1.bf16.msra.mxu0 0
    %1501 = vmatprep.subr.bf16.mxu0 0
    %1502 = vmatpush1.bf16.msra.mxu0 0
    %1503 = vmatprep.subr.bf16.mxu0 0
    %1504 = vmatpush1.bf16.msra.mxu0 0
    %1505 = vmatprep.subr.bf16.mxu0 0
    %1506 = vmatpush1.bf16.msra.mxu0 0
    %1507 = vmatprep.subr.bf16.mxu0 0
    %1508 = vmatpush1.bf16.msra.mxu0 0
    %1509 = vmatprep.mubr.bf16.mxu0 0
    %1510 = vmatmul.mubr.bf16.gmra.mrb[0].mxu0 %v1475
    %v1511 = vpop.f32.mrb[0].mxu0
    %v1512 = vadd.f32 0.0, %v1511
    %v1513 = vpop.f32.mrb[0].mxu0
    %v1514 = vpop.f32.mrb[0].mxu0
    %v1515 = vpop.f32.mrb[0].mxu0
    %1516 = vdwg.mxu0
    %v1517 = vpack.c.bf16 %v1512, %v1512
    %v1519 = vrot.slane %v1517, 4
    %vm1521 = vcmask 130052
    %1522 = vst.msk [vmem:[#allocation2] sm:$0xf0] %vm1521, %v1519
    %1523 = vrot.lane.b32.xlu0 %v1415, 112
    %v1524 = vpop.permute.xlu0 %1523
    %1526 = vrot.lane.b32.xlu0 %v374, 112
    %v1527 = vpop.permute.xlu0 %1526
    %v1529 = vsel %vm502, %v1524, 0
    %v1532 = vsel %vm502, %v1527, 0
    %1534 = vmatprep.subr.bf16.mxu0 0
    %1535 = vmatpush1.bf16.xpose.msra.mxu0 %v1532
    %1536 = vmatprep.subr.bf16.mxu0 0
    %1537 = vmatpush1.bf16.xpose.msra.mxu0 0
    %1538 = vmatprep.subr.bf16.mxu0 0
    %1539 = vmatpush1.bf16.xpose.msra.mxu0 0
    %1540 = vmatprep.subr.bf16.mxu0 0
    %1541 = vmatpush1.bf16.xpose.msra.mxu0 0
    %1542 = vmatprep.subr.bf16.mxu0 0
    %1543 = vmatpush1.bf16.xpose.msra.mxu0 0
    %1544 = vmatprep.subr.bf16.mxu0 0
    %1545 = vmatpush1.bf16.xpose.msra.mxu0 0
    %1546 = vmatprep.subr.bf16.mxu0 0
    %1547 = vmatpush1.bf16.xpose.msra.mxu0 0
    %1548 = vmatprep.subr.bf16.mxu0 0
    %1549 = vmatpush1.bf16.xpose.msra.mxu0 0
    %1550 = vmatprep.subr.bf16.mxu0 0
    %1551 = vmatpush1.bf16.xpose.msra.mxu0 0
    %1552 = vmatprep.subr.bf16.mxu0 0
    %1553 = vmatpush1.bf16.xpose.msra.mxu0 0
    %1554 = vmatprep.subr.bf16.mxu0 0
    %1555 = vmatpush1.bf16.xpose.msra.mxu0 0
    %1556 = vmatprep.subr.bf16.mxu0 0
    %1557 = vmatpush1.bf16.xpose.msra.mxu0 0
    %1558 = vmatprep.subr.bf16.mxu0 0
    %1559 = vmatpush1.bf16.xpose.msra.mxu0 0
    %1560 = vmatprep.subr.bf16.mxu0 0
    %1561 = vmatpush1.bf16.xpose.msra.mxu0 0
    %1562 = vmatprep.subr.bf16.mxu0 0
    %1563 = vmatpush1.bf16.xpose.msra.mxu0 0
    %1564 = vmatprep.subr.bf16.mxu0 0
    %1565 = vmatpush1.bf16.xpose.msra.mxu0 0
    %1566 = vmatprep.mubr.bf16.mxu0 0
    %1567 = vmatmul.mubr.bf16.gmra.mrb[0].mxu0 %v1529
    %v1568 = vpop.f32.mrb[0].mxu0
    %v1569 = vadd.f32 0.0, %v1568
    %v1570 = vpop.f32.mrb[0].mxu0
    %v1571 = vpop.f32.mrb[0].mxu0
    %v1572 = vpop.f32.mrb[0].mxu0
    %1573 = vdwg.mxu0
    %v1574 = vsel %vm502, %v1569, -inf
    %1575 = vmax.xlane.f32.xlu0 %v1574
    %v1576 = vpop.xlane.xlu0 %1575
    %v1577 = vsub.f32 %v1569, %v1576
    %v1578 = vmul.f32 %v1577, 1.442695
    %v1579 = vpow.pop %v1578
    %v1580 = vsel %vm502, %v1579, 0.0
    %1581 = vadd.xlane.f32.xlu0 %v1580
    %v1582 = vpop.xlane.xlu0 %1581
    %v1583 = vrcp.pop %v1582
    %v1584 = vmul.f32 %v1579, %v1583
    %v1585 = vpack.c.bf16 %v1584, %v1584
    %1587 = vrot.lane.b32.xlu0 %v501, 112
    %v1588 = vpop.permute.xlu0 %1587
    %v1591 = vsel %vm502, %v1585, 0
    %1593 = vmatprep.subr.bf16.mxu0 0
    %1594 = vmatpush1.bf16.msra.mxu0 %v1588
    %1595 = vmatprep.subr.bf16.mxu0 0
    %1596 = vmatpush1.bf16.msra.mxu0 0
    %1597 = vmatprep.subr.bf16.mxu0 0
    %1598 = vmatpush1.bf16.msra.mxu0 0
    %1599 = vmatprep.subr.bf16.mxu0 0
    %1600 = vmatpush1.bf16.msra.mxu0 0
    %1601 = vmatprep.subr.bf16.mxu0 0
    %1602 = vmatpush1.bf16.msra.mxu0 0
    %1603 = vmatprep.subr.bf16.mxu0 0
    %1604 = vmatpush1.bf16.msra.mxu0 0
    %1605 = vmatprep.subr.bf16.mxu0 0
    %1606 = vmatpush1.bf16.msra.mxu0 0
    %1607 = vmatprep.subr.bf16.mxu0 0
    %1608 = vmatpush1.bf16.msra.mxu0 0
    %1609 = vmatprep.subr.bf16.mxu0 0
    %1610 = vmatpush1.bf16.msra.mxu0 0
    %1611 = vmatprep.subr.bf16.mxu0 0
    %1612 = vmatpush1.bf16.msra.mxu0 0
    %1613 = vmatprep.subr.bf16.mxu0 0
    %1614 = vmatpush1.bf16.msra.mxu0 0
    %1615 = vmatprep.subr.bf16.mxu0 0
    %1616 = vmatpush1.bf16.msra.mxu0 0
    %1617 = vmatprep.subr.bf16.mxu0 0
    %1618 = vmatpush1.bf16.msra.mxu0 0
    %1619 = vmatprep.subr.bf16.mxu0 0
    %1620 = vmatpush1.bf16.msra.mxu0 0
    %1621 = vmatprep.subr.bf16.mxu0 0
    %1622 = vmatpush1.bf16.msra.mxu0 0
    %1623 = vmatprep.subr.bf16.mxu0 0
    %1624 = vmatpush1.bf16.msra.mxu0 0
    %1625 = vmatprep.mubr.bf16.mxu0 0
    %1626 = vmatmul.mubr.bf16.gmra.mrb[0].mxu0 %v1591
    %v1627 = vpop.f32.mrb[0].mxu0
    %v1628 = vadd.f32 0.0, %v1627
    %v1629 = vpop.f32.mrb[0].mxu0
    %v1630 = vpop.f32.mrb[0].mxu0
    %v1631 = vpop.f32.mrb[0].mxu0
    %1632 = vdwg.mxu0
    %v1633 = vpack.c.bf16 %v1628, %v1628
    %v1635 = vrot.slane %v1633, 4
    %1636 = vrot.lane.b32.xlu0 %v1635, 16
    %v1637 = vpop.permute.xlu0 %1636
    %vm1639 = vcmask 261252
    %1640 = vst.msk [vmem:[#allocation2] sm:$0xf0] %vm1639, %v1637
    %1641 = vrot.lane.b32.xlu0 %v1415, 96
    %v1642 = vpop.permute.xlu0 %1641
    %1643 = vrot.lane.b32.xlu0 %v374, 96
    %v1644 = vpop.permute.xlu0 %1643
    %v1646 = vsel %vm502, %v1642, 0
    %v1649 = vsel %vm502, %v1644, 0
    %1651 = vmatprep.subr.bf16.mxu0 0
    %1652 = vmatpush1.bf16.xpose.msra.mxu0 %v1649
    %1653 = vmatprep.subr.bf16.mxu0 0
    %1654 = vmatpush1.bf16.xpose.msra.mxu0 0
    %1655 = vmatprep.subr.bf16.mxu0 0
    %1656 = vmatpush1.bf16.xpose.msra.mxu0 0
    %1657 = vmatprep.subr.bf16.mxu0 0
    %1658 = vmatpush1.bf16.xpose.msra.mxu0 0
    %1659 = vmatprep.subr.bf16.mxu0 0
    %1660 = vmatpush1.bf16.xpose.msra.mxu0 0
    %1661 = vmatprep.subr.bf16.mxu0 0
    %1662 = vmatpush1.bf16.xpose.msra.mxu0 0
    %1663 = vmatprep.subr.bf16.mxu0 0
    %1664 = vmatpush1.bf16.xpose.msra.mxu0 0
    %1665 = vmatprep.subr.bf16.mxu0 0
    %1666 = vmatpush1.bf16.xpose.msra.mxu0 0
    %1667 = vmatprep.subr.bf16.mxu0 0
    %1668 = vmatpush1.bf16.xpose.msra.mxu0 0
    %1669 = vmatprep.subr.bf16.mxu0 0
    %1670 = vmatpush1.bf16.xpose.msra.mxu0 0
    %1671 = vmatprep.subr.bf16.mxu0 0
    %1672 = vmatpush1.bf16.xpose.msra.mxu0 0
    %1673 = vmatprep.subr.bf16.mxu0 0
    %1674 = vmatpush1.bf16.xpose.msra.mxu0 0
    %1675 = vmatprep.subr.bf16.mxu0 0
    %1676 = vmatpush1.bf16.xpose.msra.mxu0 0
    %1677 = vmatprep.subr.bf16.mxu0 0
    %1678 = vmatpush1.bf16.xpose.msra.mxu0 0
    %1679 = vmatprep.subr.bf16.mxu0 0
    %1680 = vmatpush1.bf16.xpose.msra.mxu0 0
    %1681 = vmatprep.subr.bf16.mxu0 0
    %1682 = vmatpush1.bf16.xpose.msra.mxu0 0
    %1683 = vmatprep.mubr.bf16.mxu0 0
    %1684 = vmatmul.mubr.bf16.gmra.mrb[0].mxu0 %v1646
    %v1685 = vpop.f32.mrb[0].mxu0
    %v1686 = vadd.f32 0.0, %v1685
    %v1687 = vpop.f32.mrb[0].mxu0
    %v1688 = vpop.f32.mrb[0].mxu0
    %v1689 = vpop.f32.mrb[0].mxu0
    %1690 = vdwg.mxu0
    %v1691 = vsel %vm502, %v1686, -inf
    %1692 = vmax.xlane.f32.xlu0 %v1691
    %v1693 = vpop.xlane.xlu0 %1692
    %v1694 = vsub.f32 %v1686, %v1693
    %v1695 = vmul.f32 %v1694, 1.442695
    %v1696 = vpow.pop %v1695
    %v1697 = vsel %vm502, %v1696, 0.0
    %1698 = vadd.xlane.f32.xlu0 %v1697
    %v1699 = vpop.xlane.xlu0 %1698
    %v1700 = vrcp.pop %v1699
    %v1701 = vmul.f32 %v1696, %v1700
    %v1702 = vpack.c.bf16 %v1701, %v1701
    %1703 = vrot.lane.b32.xlu0 %v501, 96
    %v1704 = vpop.permute.xlu0 %1703
    %v1707 = vsel %vm502, %v1702, 0
    %1709 = vmatprep.subr.bf16.mxu0 0
    %1710 = vmatpush1.bf16.msra.mxu0 %v1704
    %1711 = vmatprep.subr.bf16.mxu0 0
    %1712 = vmatpush1.bf16.msra.mxu0 0
    %1713 = vmatprep.subr.bf16.mxu0 0
    %1714 = vmatpush1.bf16.msra.mxu0 0
    %1715 = vmatprep.subr.bf16.mxu0 0
    %1716 = vmatpush1.bf16.msra.mxu0 0
    %1717 = vmatprep.subr.bf16.mxu0 0
    %1718 = vmatpush1.bf16.msra.mxu0 0
    %1719 = vmatprep.subr.bf16.mxu0 0
    %1720 = vmatpush1.bf16.msra.mxu0 0
    %1721 = vmatprep.subr.bf16.mxu0 0
    %1722 = vmatpush1.bf16.msra.mxu0 0
    %1723 = vmatprep.subr.bf16.mxu0 0
    %1724 = vmatpush1.bf16.msra.mxu0 0
    %1725 = vmatprep.subr.bf16.mxu0 0
    %1726 = vmatpush1.bf16.msra.mxu0 0
    %1727 = vmatprep.subr.bf16.mxu0 0
    %1728 = vmatpush1.bf16.msra.mxu0 0
    %1729 = vmatprep.subr.bf16.mxu0 0
    %1730 = vmatpush1.bf16.msra.mxu0 0
    %1731 = vmatprep.subr.bf16.mxu0 0
    %1732 = vmatpush1.bf16.msra.mxu0 0
    %1733 = vmatprep.subr.bf16.mxu0 0
    %1734 = vmatpush1.bf16.msra.mxu0 0
    %1735 = vmatprep.subr.bf16.mxu0 0
    %1736 = vmatpush1.bf16.msra.mxu0 0
    %1737 = vmatprep.subr.bf16.mxu0 0
    %1738 = vmatpush1.bf16.msra.mxu0 0
    %1739 = vmatprep.subr.bf16.mxu0 0
    %1740 = vmatpush1.bf16.msra.mxu0 0
    %1741 = vmatprep.mubr.bf16.mxu0 0
    %1742 = vmatmul.mubr.bf16.gmra.mrb[0].mxu0 %v1707
    %v1743 = vpop.f32.mrb[0].mxu0
    %v1744 = vadd.f32 0.0, %v1743
    %v1745 = vpop.f32.mrb[0].mxu0
    %v1746 = vpop.f32.mrb[0].mxu0
    %v1747 = vpop.f32.mrb[0].mxu0
    %1748 = vdwg.mxu0
    %v1749 = vpack.c.bf16 %v1744, %v1744
    %v1751 = vrot.slane %v1749, 4
    %1752 = vrot.lane.b32.xlu0 %v1751, 32
    %v1753 = vpop.permute.xlu0 %1752
    %vm1755 = vcmask 392452
    %1756 = vst.msk [vmem:[#allocation2] sm:$0xf0] %vm1755, %v1753
    %1757 = vrot.lane.b32.xlu0 %v1415, 80
    %v1758 = vpop.permute.xlu0 %1757
    %1759 = vrot.lane.b32.xlu0 %v374, 80
    %v1760 = vpop.permute.xlu0 %1759
    %v1762 = vsel %vm502, %v1758, 0
    %v1765 = vsel %vm502, %v1760, 0
    %1767 = vmatprep.subr.bf16.mxu0 0
    %1768 = vmatpush1.bf16.xpose.msra.mxu0 %v1765
    %1769 = vmatprep.subr.bf16.mxu0 0
    %1770 = vmatpush1.bf16.xpose.msra.mxu0 0
    %1771 = vmatprep.subr.bf16.mxu0 0
    %1772 = vmatpush1.bf16.xpose.msra.mxu0 0
    %1773 = vmatprep.subr.bf16.mxu0 0
    %1774 = vmatpush1.bf16.xpose.msra.mxu0 0
    %1775 = vmatprep.subr.bf16.mxu0 0
    %1776 = vmatpush1.bf16.xpose.msra.mxu0 0
    %1777 = vmatprep.subr.bf16.mxu0 0
    %1778 = vmatpush1.bf16.xpose.msra.mxu0 0
    %1779 = vmatprep.subr.bf16.mxu0 0
    %1780 = vmatpush1.bf16.xpose.msra.mxu0 0
    %1781 = vmatprep.subr.bf16.mxu0 0
    %1782 = vmatpush1.bf16.xpose.msra.mxu0 0
    %1783 = vmatprep.subr.bf16.mxu0 0
    %1784 = vmatpush1.bf16.xpose.msra.mxu0 0
    %1785 = vmatprep.subr.bf16.mxu0 0
    %1786 = vmatpush1.bf16.xpose.msra.mxu0 0
    %1787 = vmatprep.subr.bf16.mxu0 0
    %1788 = vmatpush1.bf16.xpose.msra.mxu0 0
    %1789 = vmatprep.subr.bf16.mxu0 0
    %1790 = vmatpush1.bf16.xpose.msra.mxu0 0
    %1791 = vmatprep.subr.bf16.mxu0 0
    %1792 = vmatpush1.bf16.xpose.msra.mxu0 0
    %1793 = vmatprep.subr.bf16.mxu0 0
    %1794 = vmatpush1.bf16.xpose.msra.mxu0 0
    %1795 = vmatprep.subr.bf16.mxu0 0
    %1796 = vmatpush1.bf16.xpose.msra.mxu0 0
    %1797 = vmatprep.subr.bf16.mxu0 0
    %1798 = vmatpush1.bf16.xpose.msra.mxu0 0
    %1799 = vmatprep.mubr.bf16.mxu0 0
    %1800 = vmatmul.mubr.bf16.gmra.mrb[0].mxu0 %v1762
    %v1801 = vpop.f32.mrb[0].mxu0
    %v1802 = vadd.f32 0.0, %v1801
    %v1803 = vpop.f32.mrb[0].mxu0
    %v1804 = vpop.f32.mrb[0].mxu0
    %v1805 = vpop.f32.mrb[0].mxu0
    %1806 = vdwg.mxu0
    %v1807 = vsel %vm502, %v1802, -inf
    %1808 = vmax.xlane.f32.xlu0 %v1807
    %v1809 = vpop.xlane.xlu0 %1808
    %v1810 = vsub.f32 %v1802, %v1809
    %v1811 = vmul.f32 %v1810, 1.442695
    %v1812 = vpow.pop %v1811
    %v1813 = vsel %vm502, %v1812, 0.0
    %1814 = vadd.xlane.f32.xlu0 %v1813
    %v1815 = vpop.xlane.xlu0 %1814
    %v1816 = vrcp.pop %v1815
    %v1817 = vmul.f32 %v1812, %v1816
    %v1818 = vpack.c.bf16 %v1817, %v1817
    %1819 = vrot.lane.b32.xlu0 %v501, 80
    %v1820 = vpop.permute.xlu0 %1819
    %v1823 = vsel %vm502, %v1818, 0
    %1825 = vmatprep.subr.bf16.mxu0 0
    %1826 = vmatpush1.bf16.msra.mxu0 %v1820
    %1827 = vmatprep.subr.bf16.mxu0 0
    %1828 = vmatpush1.bf16.msra.mxu0 0
    %1829 = vmatprep.subr.bf16.mxu0 0
    %1830 = vmatpush1.bf16.msra.mxu0 0
    %1831 = vmatprep.subr.bf16.mxu0 0
    %1832 = vmatpush1.bf16.msra.mxu0 0
    %1833 = vmatprep.subr.bf16.mxu0 0
    %1834 = vmatpush1.bf16.msra.mxu0 0
    %1835 = vmatprep.subr.bf16.mxu0 0
    %1836 = vmatpush1.bf16.msra.mxu0 0
    %1837 = vmatprep.subr.bf16.mxu0 0
    %1838 = vmatpush1.bf16.msra.mxu0 0
    %1839 = vmatprep.subr.bf16.mxu0 0
    %1840 = vmatpush1.bf16.msra.mxu0 0
    %1841 = vmatprep.subr.bf16.mxu0 0
    %1842 = vmatpush1.bf16.msra.mxu0 0
    %1843 = vmatprep.subr.bf16.mxu0 0
    %1844 = vmatpush1.bf16.msra.mxu0 0
    %1845 = vmatprep.subr.bf16.mxu0 0
    %1846 = vmatpush1.bf16.msra.mxu0 0
    %1847 = vmatprep.subr.bf16.mxu0 0
    %1848 = vmatpush1.bf16.msra.mxu0 0
    %1849 = vmatprep.subr.bf16.mxu0 0
    %1850 = vmatpush1.bf16.msra.mxu0 0
    %1851 = vmatprep.subr.bf16.mxu0 0
    %1852 = vmatpush1.bf16.msra.mxu0 0
    %1853 = vmatprep.subr.bf16.mxu0 0
    %1854 = vmatpush1.bf16.msra.mxu0 0
    %1855 = vmatprep.subr.bf16.mxu0 0
    %1856 = vmatpush1.bf16.msra.mxu0 0
    %1857 = vmatprep.mubr.bf16.mxu0 0
    %1858 = vmatmul.mubr.bf16.gmra.mrb[0].mxu0 %v1823
    %v1859 = vpop.f32.mrb[0].mxu0
    %v1860 = vadd.f32 0.0, %v1859
    %v1861 = vpop.f32.mrb[0].mxu0
    %v1862 = vpop.f32.mrb[0].mxu0
    %v1863 = vpop.f32.mrb[0].mxu0
    %1864 = vdwg.mxu0
    %v1865 = vpack.c.bf16 %v1860, %v1860
    %v1867 = vrot.slane %v1865, 4
    %1868 = vrot.lane.b32.xlu0 %v1867, 48
    %v1869 = vpop.permute.xlu0 %1868
    %vm1871 = vcmask 523652
    %1872 = vst.msk [vmem:[#allocation2] sm:$0xf0] %vm1871, %v1869
    %1873 = vrot.lane.b32.xlu0 %v1415, 64
    %v1874 = vpop.permute.xlu0 %1873
    %1875 = vrot.lane.b32.xlu0 %v374, 64
    %v1876 = vpop.permute.xlu0 %1875
    %v1878 = vsel %vm502, %v1874, 0
    %v1881 = vsel %vm502, %v1876, 0
    %1883 = vmatprep.subr.bf16.mxu0 0
    %1884 = vmatpush1.bf16.xpose.msra.mxu0 %v1881
    %1885 = vmatprep.subr.bf16.mxu0 0
    %1886 = vmatpush1.bf16.xpose.msra.mxu0 0
    %1887 = vmatprep.subr.bf16.mxu0 0
    %1888 = vmatpush1.bf16.xpose.msra.mxu0 0
    %1889 = vmatprep.subr.bf16.mxu0 0
    %1890 = vmatpush1.bf16.xpose.msra.mxu0 0
    %1891 = vmatprep.subr.bf16.mxu0 0
    %1892 = vmatpush1.bf16.xpose.msra.mxu0 0
    %1893 = vmatprep.subr.bf16.mxu0 0
    %1894 = vmatpush1.bf16.xpose.msra.mxu0 0
    %1895 = vmatprep.subr.bf16.mxu0 0
    %1896 = vmatpush1.bf16.xpose.msra.mxu0 0
    %1897 = vmatprep.subr.bf16.mxu0 0
    %1898 = vmatpush1.bf16.xpose.msra.mxu0 0
    %1899 = vmatprep.subr.bf16.mxu0 0
    %1900 = vmatpush1.bf16.xpose.msra.mxu0 0
    %1901 = vmatprep.subr.bf16.mxu0 0
    %1902 = vmatpush1.bf16.xpose.msra.mxu0 0
    %1903 = vmatprep.subr.bf16.mxu0 0
    %1904 = vmatpush1.bf16.xpose.msra.mxu0 0
    %1905 = vmatprep.subr.bf16.mxu0 0
    %1906 = vmatpush1.bf16.xpose.msra.mxu0 0
    %1907 = vmatprep.subr.bf16.mxu0 0
    %1908 = vmatpush1.bf16.xpose.msra.mxu0 0
    %1909 = vmatprep.subr.bf16.mxu0 0
    %1910 = vmatpush1.bf16.xpose.msra.mxu0 0
    %1911 = vmatprep.subr.bf16.mxu0 0
    %1912 = vmatpush1.bf16.xpose.msra.mxu0 0
    %1913 = vmatprep.subr.bf16.mxu0 0
    %1914 = vmatpush1.bf16.xpose.msra.mxu0 0
    %1915 = vmatprep.mubr.bf16.mxu0 0
    %1916 = vmatmul.mubr.bf16.gmra.mrb[0].mxu0 %v1878
    %v1917 = vpop.f32.mrb[0].mxu0
    %v1918 = vadd.f32 0.0, %v1917
    %v1919 = vpop.f32.mrb[0].mxu0
    %v1920 = vpop.f32.mrb[0].mxu0
    %v1921 = vpop.f32.mrb[0].mxu0
    %1922 = vdwg.mxu0
    %v1923 = vsel %vm502, %v1918, -inf
    %1924 = vmax.xlane.f32.xlu0 %v1923
    %v1925 = vpop.xlane.xlu0 %1924
    %v1926 = vsub.f32 %v1918, %v1925
    %v1927 = vmul.f32 %v1926, 1.442695
    %v1928 = vpow.pop %v1927
    %v1929 = vsel %vm502, %v1928, 0.0
    %1930 = vadd.xlane.f32.xlu0 %v1929
    %v1931 = vpop.xlane.xlu0 %1930
    %v1932 = vrcp.pop %v1931
    %v1933 = vmul.f32 %v1928, %v1932
    %v1934 = vpack.c.bf16 %v1933, %v1933
    %1935 = vrot.lane.b32.xlu0 %v501, 64
    %v1936 = vpop.permute.xlu0 %1935
    %v1939 = vsel %vm502, %v1934, 0
    %1941 = vmatprep.subr.bf16.mxu0 0
    %1942 = vmatpush1.bf16.msra.mxu0 %v1936
    %1943 = vmatprep.subr.bf16.mxu0 0
    %1944 = vmatpush1.bf16.msra.mxu0 0
    %1945 = vmatprep.subr.bf16.mxu0 0
    %1946 = vmatpush1.bf16.msra.mxu0 0
    %1947 = vmatprep.subr.bf16.mxu0 0
    %1948 = vmatpush1.bf16.msra.mxu0 0
    %1949 = vmatprep.subr.bf16.mxu0 0
    %1950 = vmatpush1.bf16.msra.mxu0 0
    %1951 = vmatprep.subr.bf16.mxu0 0
    %1952 = vmatpush1.bf16.msra.mxu0 0
    %1953 = vmatprep.subr.bf16.mxu0 0
    %1954 = vmatpush1.bf16.msra.mxu0 0
    %1955 = vmatprep.subr.bf16.mxu0 0
    %1956 = vmatpush1.bf16.msra.mxu0 0
    %1957 = vmatprep.subr.bf16.mxu0 0
    %1958 = vmatpush1.bf16.msra.mxu0 0
    %1959 = vmatprep.subr.bf16.mxu0 0
    %1960 = vmatpush1.bf16.msra.mxu0 0
    %1961 = vmatprep.subr.bf16.mxu0 0
    %1962 = vmatpush1.bf16.msra.mxu0 0
    %1963 = vmatprep.subr.bf16.mxu0 0
    %1964 = vmatpush1.bf16.msra.mxu0 0
    %1965 = vmatprep.subr.bf16.mxu0 0
    %1966 = vmatpush1.bf16.msra.mxu0 0
    %1967 = vmatprep.subr.bf16.mxu0 0
    %1968 = vmatpush1.bf16.msra.mxu0 0
    %1969 = vmatprep.subr.bf16.mxu0 0
    %1970 = vmatpush1.bf16.msra.mxu0 0
    %1971 = vmatprep.subr.bf16.mxu0 0
    %1972 = vmatpush1.bf16.msra.mxu0 0
    %1973 = vmatprep.mubr.bf16.mxu0 0
    %1974 = vmatmul.mubr.bf16.gmra.mrb[0].mxu0 %v1939
    %v1975 = vpop.f32.mrb[0].mxu0
    %v1976 = vadd.f32 0.0, %v1975
    %v1977 = vpop.f32.mrb[0].mxu0
    %v1978 = vpop.f32.mrb[0].mxu0
    %v1979 = vpop.f32.mrb[0].mxu0
    %1980 = vdwg.mxu0
    %v1981 = vpack.c.bf16 %v1976, %v1976
    %v1983 = vrot.slane %v1981, 4
    %1984 = vrot.lane.b32.xlu0 %v1983, 64
    %v1985 = vpop.permute.xlu0 %1984
    %vm1987 = vcmask 654852
    %1988 = vst.msk [vmem:[#allocation2] sm:$0xf0] %vm1987, %v1985
    %1989 = vrot.lane.b32.xlu0 %v1415, 48
    %v1990 = vpop.permute.xlu0 %1989
    %1991 = vrot.lane.b32.xlu0 %v374, 48
    %v1992 = vpop.permute.xlu0 %1991
    %v1994 = vsel %vm502, %v1990, 0
    %v1997 = vsel %vm502, %v1992, 0
    %1999 = vmatprep.subr.bf16.mxu0 0
    %2000 = vmatpush1.bf16.xpose.msra.mxu0 %v1997
    %2001 = vmatprep.subr.bf16.mxu0 0
    %2002 = vmatpush1.bf16.xpose.msra.mxu0 0
    %2003 = vmatprep.subr.bf16.mxu0 0
    %2004 = vmatpush1.bf16.xpose.msra.mxu0 0
    %2005 = vmatprep.subr.bf16.mxu0 0
    %2006 = vmatpush1.bf16.xpose.msra.mxu0 0
    %2007 = vmatprep.subr.bf16.mxu0 0
    %2008 = vmatpush1.bf16.xpose.msra.mxu0 0
    %2009 = vmatprep.subr.bf16.mxu0 0
    %2010 = vmatpush1.bf16.xpose.msra.mxu0 0
    %2011 = vmatprep.subr.bf16.mxu0 0
    %2012 = vmatpush1.bf16.xpose.msra.mxu0 0
    %2013 = vmatprep.subr.bf16.mxu0 0
    %2014 = vmatpush1.bf16.xpose.msra.mxu0 0
    %2015 = vmatprep.subr.bf16.mxu0 0
    %2016 = vmatpush1.bf16.xpose.msra.mxu0 0
    %2017 = vmatprep.subr.bf16.mxu0 0
    %2018 = vmatpush1.bf16.xpose.msra.mxu0 0
    %2019 = vmatprep.subr.bf16.mxu0 0
    %2020 = vmatpush1.bf16.xpose.msra.mxu0 0
    %2021 = vmatprep.subr.bf16.mxu0 0
    %2022 = vmatpush1.bf16.xpose.msra.mxu0 0
    %2023 = vmatprep.subr.bf16.mxu0 0
    %2024 = vmatpush1.bf16.xpose.msra.mxu0 0
    %2025 = vmatprep.subr.bf16.mxu0 0
    %2026 = vmatpush1.bf16.xpose.msra.mxu0 0
    %2027 = vmatprep.subr.bf16.mxu0 0
    %2028 = vmatpush1.bf16.xpose.msra.mxu0 0
    %2029 = vmatprep.subr.bf16.mxu0 0
    %2030 = vmatpush1.bf16.xpose.msra.mxu0 0
    %2031 = vmatprep.mubr.bf16.mxu0 0
    %2032 = vmatmul.mubr.bf16.gmra.mrb[0].mxu0 %v1994
    %v2033 = vpop.f32.mrb[0].mxu0
    %v2034 = vadd.f32 0.0, %v2033
    %v2035 = vpop.f32.mrb[0].mxu0
    %v2036 = vpop.f32.mrb[0].mxu0
    %v2037 = vpop.f32.mrb[0].mxu0
    %2038 = vdwg.mxu0
    %v2039 = vsel %vm502, %v2034, -inf
    %2040 = vmax.xlane.f32.xlu0 %v2039
    %v2041 = vpop.xlane.xlu0 %2040
    %v2042 = vsub.f32 %v2034, %v2041
    %v2043 = vmul.f32 %v2042, 1.442695
    %v2044 = vpow.pop %v2043
    %v2045 = vsel %vm502, %v2044, 0.0
    %2046 = vadd.xlane.f32.xlu0 %v2045
    %v2047 = vpop.xlane.xlu0 %2046
    %v2048 = vrcp.pop %v2047
    %v2049 = vmul.f32 %v2044, %v2048
    %v2050 = vpack.c.bf16 %v2049, %v2049
    %2051 = vrot.lane.b32.xlu0 %v501, 48
    %v2052 = vpop.permute.xlu0 %2051
    %v2055 = vsel %vm502, %v2050, 0
    %2057 = vmatprep.subr.bf16.mxu0 0
    %2058 = vmatpush1.bf16.msra.mxu0 %v2052
    %2059 = vmatprep.subr.bf16.mxu0 0
    %2060 = vmatpush1.bf16.msra.mxu0 0
    %2061 = vmatprep.subr.bf16.mxu0 0
    %2062 = vmatpush1.bf16.msra.mxu0 0
    %2063 = vmatprep.subr.bf16.mxu0 0
    %2064 = vmatpush1.bf16.msra.mxu0 0
    %2065 = vmatprep.subr.bf16.mxu0 0
    %2066 = vmatpush1.bf16.msra.mxu0 0
    %2067 = vmatprep.subr.bf16.mxu0 0
    %2068 = vmatpush1.bf16.msra.mxu0 0
    %2069 = vmatprep.subr.bf16.mxu0 0
    %2070 = vmatpush1.bf16.msra.mxu0 0
    %2071 = vmatprep.subr.bf16.mxu0 0
    %2072 = vmatpush1.bf16.msra.mxu0 0
    %2073 = vmatprep.subr.bf16.mxu0 0
    %2074 = vmatpush1.bf16.msra.mxu0 0
    %2075 = vmatprep.subr.bf16.mxu0 0
    %2076 = vmatpush1.bf16.msra.mxu0 0
    %2077 = vmatprep.subr.bf16.mxu0 0
    %2078 = vmatpush1.bf16.msra.mxu0 0
    %2079 = vmatprep.subr.bf16.mxu0 0
    %2080 = vmatpush1.bf16.msra.mxu0 0
    %2081 = vmatprep.subr.bf16.mxu0 0
    %2082 = vmatpush1.bf16.msra.mxu0 0
    %2083 = vmatprep.subr.bf16.mxu0 0
    %2084 = vmatpush1.bf16.msra.mxu0 0
    %2085 = vmatprep.subr.bf16.mxu0 0
    %2086 = vmatpush1.bf16.msra.mxu0 0
    %2087 = vmatprep.subr.bf16.mxu0 0
    %2088 = vmatpush1.bf16.msra.mxu0 0
    %2089 = vmatprep.mubr.bf16.mxu0 0
    %2090 = vmatmul.mubr.bf16.gmra.mrb[0].mxu0 %v2055
    %v2091 = vpop.f32.mrb[0].mxu0
    %v2092 = vadd.f32 0.0, %v2091
    %v2093 = vpop.f32.mrb[0].mxu0
    %v2094 = vpop.f32.mrb[0].mxu0
    %v2095 = vpop.f32.mrb[0].mxu0
    %2096 = vdwg.mxu0
    %v2097 = vpack.c.bf16 %v2092, %v2092
    %v2099 = vrot.slane %v2097, 4
    %2100 = vrot.lane.b32.xlu0 %v2099, 80
    %v2101 = vpop.permute.xlu0 %2100
    %vm2103 = vcmask 786052
    %2104 = vst.msk [vmem:[#allocation2] sm:$0xf0] %vm2103, %v2101
    %2105 = vrot.lane.b32.xlu0 %v1415, 32
    %v2106 = vpop.permute.xlu0 %2105
    %2107 = vrot.lane.b32.xlu0 %v374, 32
    %v2108 = vpop.permute.xlu0 %2107
    %v2110 = vsel %vm502, %v2106, 0
    %v2113 = vsel %vm502, %v2108, 0
    %2115 = vmatprep.subr.bf16.mxu0 0
    %2116 = vmatpush1.bf16.xpose.msra.mxu0 %v2113
    %2117 = vmatprep.subr.bf16.mxu0 0
    %2118 = vmatpush1.bf16.xpose.msra.mxu0 0
    %2119 = vmatprep.subr.bf16.mxu0 0
    %2120 = vmatpush1.bf16.xpose.msra.mxu0 0
    %2121 = vmatprep.subr.bf16.mxu0 0
    %2122 = vmatpush1.bf16.xpose.msra.mxu0 0
    %2123 = vmatprep.subr.bf16.mxu0 0
    %2124 = vmatpush1.bf16.xpose.msra.mxu0 0
    %2125 = vmatprep.subr.bf16.mxu0 0
    %2126 = vmatpush1.bf16.xpose.msra.mxu0 0
    %2127 = vmatprep.subr.bf16.mxu0 0
    %2128 = vmatpush1.bf16.xpose.msra.mxu0 0
    %2129 = vmatprep.subr.bf16.mxu0 0
    %2130 = vmatpush1.bf16.xpose.msra.mxu0 0
    %2131 = vmatprep.subr.bf16.mxu0 0
    %2132 = vmatpush1.bf16.xpose.msra.mxu0 0
    %2133 = vmatprep.subr.bf16.mxu0 0
    %2134 = vmatpush1.bf16.xpose.msra.mxu0 0
    %2135 = vmatprep.subr.bf16.mxu0 0
    %2136 = vmatpush1.bf16.xpose.msra.mxu0 0
    %2137 = vmatprep.subr.bf16.mxu0 0
    %2138 = vmatpush1.bf16.xpose.msra.mxu0 0
    %2139 = vmatprep.subr.bf16.mxu0 0
    %2140 = vmatpush1.bf16.xpose.msra.mxu0 0
    %2141 = vmatprep.subr.bf16.mxu0 0
    %2142 = vmatpush1.bf16.xpose.msra.mxu0 0
    %2143 = vmatprep.subr.bf16.mxu0 0
    %2144 = vmatpush1.bf16.xpose.msra.mxu0 0
    %2145 = vmatprep.subr.bf16.mxu0 0
    %2146 = vmatpush1.bf16.xpose.msra.mxu0 0
    %2147 = vmatprep.mubr.bf16.mxu0 0
    %2148 = vmatmul.mubr.bf16.gmra.mrb[0].mxu0 %v2110
    %v2149 = vpop.f32.mrb[0].mxu0
    %v2150 = vadd.f32 0.0, %v2149
    %v2151 = vpop.f32.mrb[0].mxu0
    %v2152 = vpop.f32.mrb[0].mxu0
    %v2153 = vpop.f32.mrb[0].mxu0
    %2154 = vdwg.mxu0
    %v2155 = vsel %vm502, %v2150, -inf
    %2156 = vmax.xlane.f32.xlu0 %v2155
    %v2157 = vpop.xlane.xlu0 %2156
    %v2158 = vsub.f32 %v2150, %v2157
    %v2159 = vmul.f32 %v2158, 1.442695
    %v2160 = vpow.pop %v2159
    %v2161 = vsel %vm502, %v2160, 0.0
    %2162 = vadd.xlane.f32.xlu0 %v2161
    %v2163 = vpop.xlane.xlu0 %2162
    %v2164 = vrcp.pop %v2163
    %v2165 = vmul.f32 %v2160, %v2164
    %v2166 = vpack.c.bf16 %v2165, %v2165
    %2167 = vrot.lane.b32.xlu0 %v501, 32
    %v2168 = vpop.permute.xlu0 %2167
    %v2171 = vsel %vm502, %v2166, 0
    %2173 = vmatprep.subr.bf16.mxu0 0
    %2174 = vmatpush1.bf16.msra.mxu0 %v2168
    %2175 = vmatprep.subr.bf16.mxu0 0
    %2176 = vmatpush1.bf16.msra.mxu0 0
    %2177 = vmatprep.subr.bf16.mxu0 0
    %2178 = vmatpush1.bf16.msra.mxu0 0
    %2179 = vmatprep.subr.bf16.mxu0 0
    %2180 = vmatpush1.bf16.msra.mxu0 0
    %2181 = vmatprep.subr.bf16.mxu0 0
    %2182 = vmatpush1.bf16.msra.mxu0 0
    %2183 = vmatprep.subr.bf16.mxu0 0
    %2184 = vmatpush1.bf16.msra.mxu0 0
    %2185 = vmatprep.subr.bf16.mxu0 0
    %2186 = vmatpush1.bf16.msra.mxu0 0
    %2187 = vmatprep.subr.bf16.mxu0 0
    %2188 = vmatpush1.bf16.msra.mxu0 0
    %2189 = vmatprep.subr.bf16.mxu0 0
    %2190 = vmatpush1.bf16.msra.mxu0 0
    %2191 = vmatprep.subr.bf16.mxu0 0
    %2192 = vmatpush1.bf16.msra.mxu0 0
    %2193 = vmatprep.subr.bf16.mxu0 0
    %2194 = vmatpush1.bf16.msra.mxu0 0
    %2195 = vmatprep.subr.bf16.mxu0 0
    %2196 = vmatpush1.bf16.msra.mxu0 0
    %2197 = vmatprep.subr.bf16.mxu0 0
    %2198 = vmatpush1.bf16.msra.mxu0 0
    %2199 = vmatprep.subr.bf16.mxu0 0
    %2200 = vmatpush1.bf16.msra.mxu0 0
    %2201 = vmatprep.subr.bf16.mxu0 0
    %2202 = vmatpush1.bf16.msra.mxu0 0
    %2203 = vmatprep.subr.bf16.mxu0 0
    %2204 = vmatpush1.bf16.msra.mxu0 0
    %2205 = vmatprep.mubr.bf16.mxu0 0
    %2206 = vmatmul.mubr.bf16.gmra.mrb[0].mxu0 %v2171
    %v2207 = vpop.f32.mrb[0].mxu0
    %v2208 = vadd.f32 0.0, %v2207
    %v2209 = vpop.f32.mrb[0].mxu0
    %v2210 = vpop.f32.mrb[0].mxu0
    %v2211 = vpop.f32.mrb[0].mxu0
    %2212 = vdwg.mxu0
    %v2213 = vpack.c.bf16 %v2208, %v2208
    %v2215 = vrot.slane %v2213, 4
    %2216 = vrot.lane.b32.xlu0 %v2215, 96
    %v2217 = vpop.permute.xlu0 %2216
    %vm2219 = vcmask 917252
    %2220 = vst.msk [vmem:[#allocation2] sm:$0xf0] %vm2219, %v2217
    %2221 = vrot.lane.b32.xlu0 %v1415, 16
    %v2222 = vpop.permute.xlu0 %2221
    %2223 = vrot.lane.b32.xlu0 %v374, 16
    %v2224 = vpop.permute.xlu0 %2223
    %v2226 = vsel %vm502, %v2222, 0
    %v2229 = vsel %vm502, %v2224, 0
    %2231 = vmatprep.subr.bf16.mxu0 0
    %2232 = vmatpush1.bf16.xpose.msra.mxu0 %v2229
    %2233 = vmatprep.subr.bf16.mxu0 0
    %2234 = vmatpush1.bf16.xpose.msra.mxu0 0
    %2235 = vmatprep.subr.bf16.mxu0 0
    %2236 = vmatpush1.bf16.xpose.msra.mxu0 0
    %2237 = vmatprep.subr.bf16.mxu0 0
    %2238 = vmatpush1.bf16.xpose.msra.mxu0 0
    %2239 = vmatprep.subr.bf16.mxu0 0
    %2240 = vmatpush1.bf16.xpose.msra.mxu0 0
    %2241 = vmatprep.subr.bf16.mxu0 0
    %2242 = vmatpush1.bf16.xpose.msra.mxu0 0
    %2243 = vmatprep.subr.bf16.mxu0 0
    %2244 = vmatpush1.bf16.xpose.msra.mxu0 0
    %2245 = vmatprep.subr.bf16.mxu0 0
    %2246 = vmatpush1.bf16.xpose.msra.mxu0 0
    %2247 = vmatprep.subr.bf16.mxu0 0
    %2248 = vmatpush1.bf16.xpose.msra.mxu0 0
    %2249 = vmatprep.subr.bf16.mxu0 0
    %2250 = vmatpush1.bf16.xpose.msra.mxu0 0
    %2251 = vmatprep.subr.bf16.mxu0 0
    %2252 = vmatpush1.bf16.xpose.msra.mxu0 0
    %2253 = vmatprep.subr.bf16.mxu0 0
    %2254 = vmatpush1.bf16.xpose.msra.mxu0 0
    %2255 = vmatprep.subr.bf16.mxu0 0
    %2256 = vmatpush1.bf16.xpose.msra.mxu0 0
    %2257 = vmatprep.subr.bf16.mxu0 0
    %2258 = vmatpush1.bf16.xpose.msra.mxu0 0
    %2259 = vmatprep.subr.bf16.mxu0 0
    %2260 = vmatpush1.bf16.xpose.msra.mxu0 0
    %2261 = vmatprep.subr.bf16.mxu0 0
    %2262 = vmatpush1.bf16.xpose.msra.mxu0 0
    %2263 = vmatprep.mubr.bf16.mxu0 0
    %2264 = vmatmul.mubr.bf16.gmra.mrb[0].mxu0 %v2226
    %v2265 = vpop.f32.mrb[0].mxu0
    %v2266 = vadd.f32 0.0, %v2265
    %v2267 = vpop.f32.mrb[0].mxu0
    %v2268 = vpop.f32.mrb[0].mxu0
    %v2269 = vpop.f32.mrb[0].mxu0
    %2270 = vdwg.mxu0
    %v2271 = vsel %vm502, %v2266, -inf
    %2272 = vmax.xlane.f32.xlu0 %v2271
    %v2273 = vpop.xlane.xlu0 %2272
    %v2274 = vsub.f32 %v2266, %v2273
    %v2275 = vmul.f32 %v2274, 1.442695
    %v2276 = vpow.pop %v2275
    %v2277 = vsel %vm502, %v2276, 0.0
    %2278 = vadd.xlane.f32.xlu0 %v2277
    %v2279 = vpop.xlane.xlu0 %2278
    %v2280 = vrcp.pop %v2279
    %v2281 = vmul.f32 %v2276, %v2280
    %v2282 = vpack.c.bf16 %v2281, %v2281
    %2283 = vrot.lane.b32.xlu0 %v501, 16
    %v2284 = vpop.permute.xlu0 %2283
    %v2287 = vsel %vm502, %v2282, 0
    %2289 = vmatprep.subr.bf16.mxu0 0
    %2290 = vmatpush1.bf16.msra.mxu0 %v2284
    %2291 = vmatprep.subr.bf16.mxu0 0
    %2292 = vmatpush1.bf16.msra.mxu0 0
    %2293 = vmatprep.subr.bf16.mxu0 0
    %2294 = vmatpush1.bf16.msra.mxu0 0
    %2295 = vmatprep.subr.bf16.mxu0 0
    %2296 = vmatpush1.bf16.msra.mxu0 0
    %2297 = vmatprep.subr.bf16.mxu0 0
    %2298 = vmatpush1.bf16.msra.mxu0 0
    %2299 = vmatprep.subr.bf16.mxu0 0
    %2300 = vmatpush1.bf16.msra.mxu0 0
    %2301 = vmatprep.subr.bf16.mxu0 0
    %2302 = vmatpush1.bf16.msra.mxu0 0
    %2303 = vmatprep.subr.bf16.mxu0 0
    %2304 = vmatpush1.bf16.msra.mxu0 0
    %2305 = vmatprep.subr.bf16.mxu0 0
    %2306 = vmatpush1.bf16.msra.mxu0 0
    %2307 = vmatprep.subr.bf16.mxu0 0
    %2308 = vmatpush1.bf16.msra.mxu0 0
    %2309 = vmatprep.subr.bf16.mxu0 0
    %2310 = vmatpush1.bf16.msra.mxu0 0
    %2311 = vmatprep.subr.bf16.mxu0 0
    %2312 = vmatpush1.bf16.msra.mxu0 0
    %2313 = vmatprep.subr.bf16.mxu0 0
    %2314 = vmatpush1.bf16.msra.mxu0 0
    %2315 = vmatprep.subr.bf16.mxu0 0
    %2316 = vmatpush1.bf16.msra.mxu0 0
    %2317 = vmatprep.subr.bf16.mxu0 0
    %2318 = vmatpush1.bf16.msra.mxu0 0
    %2319 = vmatprep.subr.bf16.mxu0 0
    %2320 = vmatpush1.bf16.msra.mxu0 0
    %2321 = vmatprep.mubr.bf16.mxu0 0
    %2322 = vmatmul.mubr.bf16.gmra.mrb[0].mxu0 %v2287
    %v2323 = vpop.f32.mrb[0].mxu0
    %v2324 = vadd.f32 0.0, %v2323
    %v2325 = vpop.f32.mrb[0].mxu0
    %v2326 = vpop.f32.mrb[0].mxu0
    %v2327 = vpop.f32.mrb[0].mxu0
    %2328 = vdwg.mxu0
    %v2329 = vpack.c.bf16 %v2324, %v2324
    %v2331 = vrot.slane %v2329, 4
    %2332 = vrot.lane.b32.xlu0 %v2331, 112
    %v2333 = vpop.permute.xlu0 %2332
    %vm2335 = vcmask 1048452
    %2336 = vst.msk [vmem:[#allocation2] sm:$0xf0] %vm2335, %v2333
    %v2337 = vld [vmem:[#allocation2] sm:$0xff]
    %v2338 = vld [vmem:[#allocation14] sm:$0xf]
    %v2339 = vld [vmem:[#allocation14 + $0x4] sm:$0xf]
    %v2340 = vld [vmem:[#allocation14 + $0x8] sm:$0xf]
    %v2341 = vld [vmem:[#allocation14 + $0xc] sm:$0xf]
    %v2342 = vld [vmem:[#allocation14 + $0x10] sm:$0xf]
    %v2343 = vld [vmem:[#allocation14 + $0x14] sm:$0xf]
    %v2344 = vld [vmem:[#allocation14 + $0x18] sm:$0xf]
    %v2345 = vld [vmem:[#allocation14 + $0x1c] sm:$0xf]
    %v2346 = vld [vmem:[#allocation14 + $0x20] sm:$0xf]
    %v2347 = vld [vmem:[#allocation14 + $0x24] sm:$0xf]
    %v2348 = vld [vmem:[#allocation14 + $0x28] sm:$0xf]
    %v2349 = vld [vmem:[#allocation14 + $0x2c] sm:$0xf]
    %v2350 = vld [vmem:[#allocation14 + $0x30] sm:$0xf]
    %v2351 = vld [vmem:[#allocation14 + $0x34] sm:$0xf]
    %v2352 = vld [vmem:[#allocation14 + $0x38] sm:$0xf]
    %v2353 = vld [vmem:[#allocation14 + $0x3c] sm:$0xf]
    %v2354 = vld [vmem:[%s7] sm:$0x1]
    %v2356 = vlaneseq
    %v2357 = vshrl.u32 %v2356, 7
    %v2358 = vsub.s32 0, %v2357
    %v2359 = vrot.slane %v2354, %v2358
    %v2377 = vunpack.c.l.b16 %v2338
    %v2378 = vunpack.c.l.b16 %v2339
    %v2379 = vunpack.c.l.b16 %v2340
    %v2380 = vunpack.c.l.b16 %v2341
    %v2381 = vunpack.c.l.b16 %v2342
    %v2382 = vunpack.c.l.b16 %v2343
    %v2383 = vunpack.c.l.b16 %v2344
    %v2384 = vunpack.c.l.b16 %v2345
    %v2385 = vunpack.c.l.b16 %v2346
    %v2386 = vunpack.c.l.b16 %v2347
    %v2387 = vunpack.c.l.b16 %v2348
    %v2388 = vunpack.c.l.b16 %v2349
    %v2389 = vunpack.c.l.b16 %v2350
    %v2390 = vunpack.c.l.b16 %v2351
    %v2391 = vunpack.c.l.b16 %v2352
    %v2392 = vunpack.c.l.b16 %v2353
    %v2393 = vpack.c.b16 %v2378, %v2377
    %v2394 = vpack.c.b16 %v2380, %v2379
    %v2395 = vpack.c.b16 %v2382, %v2381
    %v2396 = vpack.c.b16 %v2384, %v2383
    %v2397 = vpack.c.b16 %v2386, %v2385
    %v2398 = vpack.c.b16 %v2388, %v2387
    %v2399 = vpack.c.b16 %v2390, %v2389
    %v2400 = vpack.c.b16 %v2392, %v2391
    %2409 = vmatprep.subr.bf16.mxu0 0
    %2410 = vmatpush1.bf16.msra.mxu0 %v2393
    %2411 = vmatprep.subr.bf16.mxu0 0
    %2412 = vmatpush1.bf16.msra.mxu0 %v2394
    %2413 = vmatprep.subr.bf16.mxu0 0
    %2414 = vmatpush1.bf16.msra.mxu0 %v2395
    %2415 = vmatprep.subr.bf16.mxu0 0
    %2416 = vmatpush1.bf16.msra.mxu0 %v2396
    %2417 = vmatprep.subr.bf16.mxu0 0
    %2418 = vmatpush1.bf16.msra.mxu0 %v2397
    %2419 = vmatprep.subr.bf16.mxu0 0
    %2420 = vmatpush1.bf16.msra.mxu0 %v2398
    %2421 = vmatprep.subr.bf16.mxu0 0
    %2422 = vmatpush1.bf16.msra.mxu0 %v2399
    %2423 = vmatprep.subr.bf16.mxu0 0
    %2424 = vmatpush1.bf16.msra.mxu0 %v2400
    %2425 = vmatprep.subr.bf16.mxu0 0
    %2426 = vmatpush1.bf16.msra.mxu0 0
    %2427 = vmatprep.subr.bf16.mxu0 0
    %2428 = vmatpush1.bf16.msra.mxu0 0
    %2429 = vmatprep.subr.bf16.mxu0 0
    %2430 = vmatpush1.bf16.msra.mxu0 0
    %2431 = vmatprep.subr.bf16.mxu0 0
    %2432 = vmatpush1.bf16.msra.mxu0 0
    %2433 = vmatprep.subr.bf16.mxu0 0
    %2434 = vmatpush1.bf16.msra.mxu0 0
    %2435 = vmatprep.subr.bf16.mxu0 0
    %2436 = vmatpush1.bf16.msra.mxu0 0
    %2437 = vmatprep.subr.bf16.mxu0 0
    %2438 = vmatpush1.bf16.msra.mxu0 0
    %2439 = vmatprep.subr.bf16.mxu0 0
    %2440 = vmatpush1.bf16.msra.mxu0 0
    %2441 = vmatprep.mubr.bf16.mxu0 0
    %2442 = vmatmul.mubr.bf16.gmra.mrb[0].mxu0 %v2337
    %v2443 = vpop.f32.mrb[0].mxu0
    %v2444 = vadd.f32 %v2359, %v2443
    %v2445 = vpop.f32.mrb[0].mxu0
    %v2446 = vpop.f32.mrb[0].mxu0
    %v2447 = vadd.f32 %v2359, %v2446
    %v2448 = vpop.f32.mrb[0].mxu0
    %2449 = vdwg.mxu0
    %2450 = vst [vmem:[#allocation15] sm:$0xff] %v2444
    %2451 = vst [vmem:[#allocation15 + $0x8] sm:$0xff] %v2447
    // Predicated region
    $region62: #{tpu_custom_call.1} parent=1 // pred_check
      _
    $region63: #{tpu_custom_call.1} parent=1 // pred_check_branch
      %2453 = sbr.rel (0) target = $region65
    $region64: #{tpu_custom_call.1} parent=1 // pred_region
      %s2455 = ssub.s32 256, 256
      %2456 = vsyncadd [#allocation5], %s2455
      %s2457 = sshll.u32 [#allocation15], 4
      %s2458 = int_to_ptr.vmem [resolvable:$true] %s2457
      %2463 = dma.vmem_to_hbm [thread:$0]  %s2458, 256, %s8, [#allocation5], 128, 128, 8
    $region65: #{tpu_custom_call.1} parent=1 // pred_fallthru
      _
    // Predicated region
    $region66: #{tpu_custom_call.1} parent=1 // pred_check
      _
    $region67: #{tpu_custom_call.1} parent=1 // pred_check_branch
      %2465 = sbr.rel (0) target = $region69
    $region68: #{tpu_custom_call.1} parent=1 // pred_region
      %2466 = dma.done [#allocation5], 256
    $region69: #{tpu_custom_call.1} parent=1 // pred_fallthru
      _
    %2467 = vsyncpa [#allocation4], 1
    %2468 = vsyncpa [#allocation7], 1
    %2469 = vsyncpa [#allocation10], 1
    %2470 = vsyncpa [#allocation13], 1
    %2471 = vsyncpa [#allocation5], 1

// kernel: tpu_custom_call.1
$region0: #{tpu_custom_call.1}
  #allocation0 [shape = 'u32[]', space=smem, size = 0x4, offset = 0x4, fixed_abs, tag = 'smem constant byte address 0x4 - core index']
  #allocation1 [shape = 'u32[144,128]{1,0:T(1,128)}', space=vmem, size = 0x12000, scoped, tag = 'internal scratch']
  #allocation2 [shape = 'bf16[16,128]{1,0:T(16,128)(2,1)}', space=vmem, size = 0x1000, scoped, tag = 'scratch operand']
  %s0 = inlined_call_operand.hbm [shape: bf16[2,8,128], index: 0, kind: input, shape index: {}]
  %s1 = inlined_call_operand.hbm [shape: bf16[2,16,128], index: 1, kind: input, shape index: {}]
  %s2 = inlined_call_operand.hbm [shape: bf16[2,16,128], index: 2, kind: input, shape index: {}]
  %s3 = inlined_call_operand.hbm [shape: bf16[128,128], index: 3, kind: input, shape index: {}]
  %s4 = inlined_call_operand.hbm [shape: bf16[128,128], index: 4, kind: input, shape index: {}]
  %s5 = inlined_call_operand.hbm [shape: bf16[128,128], index: 5, kind: input, shape index: {}]
  %s6 = inlined_call_operand.hbm [shape: bf16[128,128], index: 6, kind: input, shape index: {}]
  %s7 = inlined_call_operand.vmem [shape: f32[1,128], index: 7, kind: input, shape index: {}]
  %s8 = inlined_call_operand.hbm [shape: f32[2,8,128], index: 8, kind: output, shape index: {}]
  %s9 = sld [smem:[#allocation0]]
  $region70: #{tpu_custom_call.1} parent=0
    _
  %s11 = ssub.s32 1, %s9
  %s12 = scalar_select 0, %s11, %s9
  $region1: #{tpu_custom_call.1} parent=0
    #allocation3 [shape = 'u8[4096]{0}', space=vmem, size = 0x1000, scoped, tag = 'input window, operand 0, single buffered']
    #allocation4 [shape = 's32[1]{0}', space=sflag, size = 0x4, scoped, tag = 'scoped memory for tpu_custom_call.1']
    #allocation5 [shape = 's32[1]{0}', space=sflag, size = 0x4, scoped, tag = 'scoped memory for tpu_custom_call.1']
    #allocation6 [shape = 'u8[8192]{0}', space=vmem, size = 0x2000, scoped, tag = 'input window, operand 1, single buffered']
    #allocation7 [shape = 's32[1]{0}', space=sflag, size = 0x4, scoped, tag = 'scoped memory for tpu_custom_call.1']
    #allocation8 [shape = 'u8[8192]{0}', space=vmem, size = 0x2000, scoped, tag = 'input window, operand 2, single buffered']
    #allocation9 [shape = 'u8[32768]{0}', space=vmem, size = 0x8000, scoped, tag = 'input window, operand 3, single buffered']
    #allocation10 [shape = 's32[1]{0}', space=sflag, size = 0x4, scoped, tag = 'scoped memory for tpu_custom_call.1']
    #allocation11 [shape = 'u8[32768]{0}', space=vmem, size = 0x8000, scoped, tag = 'input window, operand 4, single buffered']
    #allocation12 [shape = 'u8[32768]{0}', space=vmem, size = 0x8000, scoped, tag = 'input window, operand 5, single buffered']
    #allocation13 [shape = 's32[1]{0}', space=sflag, size = 0x4, scoped, tag = 'scoped memory for tpu_custom_call.1']
    #allocation14 [shape = 'u8[32768]{0}', space=vmem, size = 0x8000, scoped, tag = 'input window, operand 6, single buffered']
    #allocation15 [shape = 'u8[8192]{0}', space=vmem, size = 0x2000, scoped, tag = 'output window, operand 0, single buffered']
    %13 = vsyncpa [#allocation4], 0
    %14 = vsyncpa [#allocation7], 0
    %15 = vsyncpa [#allocation10], 0
    %16 = vsyncpa [#allocation13], 0
    %17 = vsyncpa [#allocation5], 0
    // Predicated region
    $region2: #{tpu_custom_call.1} parent=1 // pred_check
      _
    $region3: #{tpu_custom_call.1} parent=1 // pred_check_branch
      %19 = sbr.rel (0) target = $region5
    $region4: #{tpu_custom_call.1} parent=1 // pred_region
      %s21 = ssub.s32 128, 128
      %22 = vsyncadd [#allocation4], %s21
      %s23 = sshll.u32 [#allocation3], 4
      %s24 = int_to_ptr.vmem [resolvable:$true] %s23
      %29 = dma.hbm_to_vmem [thread:$0]  %s0, 128, %s24, [#allocation4], 64, 64, 4
    $region5: #{tpu_custom_call.1} parent=1 // pred_fallthru
      _
    // Predicated region
    $region6: #{tpu_custom_call.1} parent=1 // pred_check
      _
    $region7: #{tpu_custom_call.1} parent=1 // pred_check_branch
      %31 = sbr.rel (0) target = $region9
    $region8: #{tpu_custom_call.1} parent=1 // pred_region
      %s33 = ssub.s32 256, 256
      %34 = vsyncadd [#allocation7], %s33
      %s35 = sshll.u32 [#allocation6], 4
      %s36 = int_to_ptr.vmem [resolvable:$true] %s35
      %41 = dma.hbm_to_vmem [thread:$0]  %s1, 256, %s36, [#allocation7], 64, 64, 4
    $region9: #{tpu_custom_call.1} parent=1 // pred_fallthru
      _
    // Predicated region
    $region10: #{tpu_custom_call.1} parent=1 // pred_check
      _
    $region11: #{tpu_custom_call.1} parent=1 // pred_check_branch
      %43 = sbr.rel (0) target = $region13
    $region12: #{tpu_custom_call.1} parent=1 // pred_region
      %s45 = ssub.s32 256, 256
      %46 = vsyncadd [#allocation7], %s45
      %s47 = sshll.u32 [#allocation8], 4
      %s48 = int_to_ptr.vmem [resolvable:$true] %s47
      %53 = dma.hbm_to_vmem [thread:$0]  %s2, 256, %s48, [#allocation7], 64, 64, 4
    $region13: #{tpu_custom_call.1} parent=1 // pred_fallthru
      _
    // Predicated region
    $region14: #{tpu_custom_call.1} parent=1 // pred_check
      _
    $region15: #{tpu_custom_call.1} parent=1 // pred_check_branch
      %55 = sbr.rel (0) target = $region17
    $region16: #{tpu_custom_call.1} parent=1 // pred_region
      %s57 = ssub.s32 1024, 1024
      %58 = vsyncadd [#allocation10], %s57
      %s59 = sshll.u32 [#allocation9], 4
      %s60 = int_to_ptr.vmem [resolvable:$true] %s59
      %65 = dma.hbm_to_vmem [thread:$0]  %s3, 1024, %s60, [#allocation10], 64, 64, 4
    $region17: #{tpu_custom_call.1} parent=1 // pred_fallthru
      _
    // Predicated region
    $region18: #{tpu_custom_call.1} parent=1 // pred_check
      _
    $region19: #{tpu_custom_call.1} parent=1 // pred_check_branch
      %67 = sbr.rel (0) target = $region21
    $region20: #{tpu_custom_call.1} parent=1 // pred_region
      %s69 = ssub.s32 1024, 1024
      %70 = vsyncadd [#allocation10], %s69
      %s71 = sshll.u32 [#allocation11], 4
      %s72 = int_to_ptr.vmem [resolvable:$true] %s71
      %77 = dma.hbm_to_vmem [thread:$0]  %s4, 1024, %s72, [#allocation10], 64, 64, 4
    $region21: #{tpu_custom_call.1} parent=1 // pred_fallthru
      _
    // Predicated region
    $region22: #{tpu_custom_call.1} parent=1 // pred_check
      _
    $region23: #{tpu_custom_call.1} parent=1 // pred_check_branch
      %79 = sbr.rel (0) target = $region25
    $region24: #{tpu_custom_call.1} parent=1 // pred_region
      %s81 = ssub.s32 1024, 1024
      %82 = vsyncadd [#allocation13], %s81
      %s83 = sshll.u32 [#allocation12], 4
      %s84 = int_to_ptr.vmem [resolvable:$true] %s83
      %89 = dma.hbm_to_vmem [thread:$0]  %s5, 1024, %s84, [#allocation13], 64, 64, 4
    $region25: #{tpu_custom_call.1} parent=1 // pred_fallthru
      _
    // Predicated region
    $region26: #{tpu_custom_call.1} parent=1 // pred_check
      _
    $region27: #{tpu_custom_call.1} parent=1 // pred_check_branch
      %91 = sbr.rel (0) target = $region29
    $region28: #{tpu_custom_call.1} parent=1 // pred_region
      %s93 = ssub.s32 1024, 1024
      %94 = vsyncadd [#allocation13], %s93
      %s95 = sshll.u32 [#allocation14], 4
      %s96 = int_to_ptr.vmem [resolvable:$true] %s95
      %101 = dma.hbm_to_vmem [thread:$0]  %s6, 1024, %s96, [#allocation13], 64, 64, 4
    $region29: #{tpu_custom_call.1} parent=1 // pred_fallthru
      _
    // Predicated region
    $region30: #{tpu_custom_call.1} parent=1 // pred_check
      _
    $region31: #{tpu_custom_call.1} parent=1 // pred_check_branch
      %103 = sbr.rel (0) target = $region33
    $region32: #{tpu_custom_call.1} parent=1 // pred_region
      _
    $region33: #{tpu_custom_call.1} parent=1 // pred_fallthru
      _
    // Predicated region
    $region34: #{tpu_custom_call.1} parent=1 // pred_check
      _
    $region35: #{tpu_custom_call.1} parent=1 // pred_check_branch
      %105 = sbr.rel (0) target = $region37
    $region36: #{tpu_custom_call.1} parent=1 // pred_region
      %106 = dma.done [#allocation4], 128
    $region37: #{tpu_custom_call.1} parent=1 // pred_fallthru
      _
    // Predicated region
    $region38: #{tpu_custom_call.1} parent=1 // pred_check
      _
    $region39: #{tpu_custom_call.1} parent=1 // pred_check_branch
      %108 = sbr.rel (0) target = $region41
    $region40: #{tpu_custom_call.1} parent=1 // pred_region
      %109 = dma.done [#allocation7], 256
    $region41: #{tpu_custom_call.1} parent=1 // pred_fallthru
      _
    // Predicated region
    $region42: #{tpu_custom_call.1} parent=1 // pred_check
      _
    $region43: #{tpu_custom_call.1} parent=1 // pred_check_branch
      %111 = sbr.rel (0) target = $region45
    $region44: #{tpu_custom_call.1} parent=1 // pred_region
      %112 = dma.done [#allocation7], 256
    $region45: #{tpu_custom_call.1} parent=1 // pred_fallthru
      _
    // Predicated region
    $region46: #{tpu_custom_call.1} parent=1 // pred_check
      _
    $region47: #{tpu_custom_call.1} parent=1 // pred_check_branch
      %114 = sbr.rel (0) target = $region49
    $region48: #{tpu_custom_call.1} parent=1 // pred_region
      %115 = dma.done [#allocation10], 1024
    $region49: #{tpu_custom_call.1} parent=1 // pred_fallthru
      _
    // Predicated region
    $region50: #{tpu_custom_call.1} parent=1 // pred_check
      _
    $region51: #{tpu_custom_call.1} parent=1 // pred_check_branch
      %117 = sbr.rel (0) target = $region53
    $region52: #{tpu_custom_call.1} parent=1 // pred_region
      %118 = dma.done [#allocation10], 1024
    $region53: #{tpu_custom_call.1} parent=1 // pred_fallthru
      _
    // Predicated region
    $region54: #{tpu_custom_call.1} parent=1 // pred_check
      _
    $region55: #{tpu_custom_call.1} parent=1 // pred_check_branch
      %120 = sbr.rel (0) target = $region57
    $region56: #{tpu_custom_call.1} parent=1 // pred_region
      %121 = dma.done [#allocation13], 1024
    $region57: #{tpu_custom_call.1} parent=1 // pred_fallthru
      _
    // Predicated region
    $region58: #{tpu_custom_call.1} parent=1 // pred_check
      _
    $region59: #{tpu_custom_call.1} parent=1 // pred_check_branch
      %123 = sbr.rel (0) target = $region61
    $region60: #{tpu_custom_call.1} parent=1 // pred_region
      %124 = dma.done [#allocation13], 1024
    $region61: #{tpu_custom_call.1} parent=1 // pred_fallthru
      _
    %v126 = vld [vmem:[#allocation3] sm:$0xf]
    %v127 = vld [vmem:[#allocation3 + $0x4] sm:$0xf]
    %v128 = vld [vmem:[#allocation6] sm:$0xf]
    %v129 = vld [vmem:[#allocation6 + $0x4] sm:$0xf]
    %v130 = vld [vmem:[#allocation6 + $0x8] sm:$0xf]
    %v131 = vld [vmem:[#allocation6 + $0xc] sm:$0xf]
    %v132 = vld [vmem:[#allocation8] sm:$0xf]
    %v133 = vld [vmem:[#allocation8 + $0x4] sm:$0xf]
    %v134 = vld [vmem:[#allocation8 + $0x8] sm:$0xf]
    %v135 = vld [vmem:[#allocation8 + $0xc] sm:$0xf]
    %v136 = vld [vmem:[#allocation9] sm:$0xf]
    %v137 = vld [vmem:[#allocation9 + $0x4] sm:$0xf]
    %v138 = vld [vmem:[#allocation9 + $0x8] sm:$0xf]
    %v139 = vld [vmem:[#allocation9 + $0xc] sm:$0xf]
    %v140 = vld [vmem:[#allocation9 + $0x10] sm:$0xf]
    %v141 = vld [vmem:[#allocation9 + $0x14] sm:$0xf]
    %v142 = vld [vmem:[#allocation9 + $0x18] sm:$0xf]
    %v143 = vld [vmem:[#allocation9 + $0x1c] sm:$0xf]
    %v144 = vld [vmem:[#allocation9 + $0x20] sm:$0xf]
    %v145 = vld [vmem:[#allocation9 + $0x24] sm:$0xf]
    %v146 = vld [vmem:[#allocation9 + $0x28] sm:$0xf]
    %v147 = vld [vmem:[#allocation9 + $0x2c] sm:$0xf]
    %v148 = vld [vmem:[#allocation9 + $0x30] sm:$0xf]
    %v149 = vld [vmem:[#allocation9 + $0x34] sm:$0xf]
    %v150 = vld [vmem:[#allocation9 + $0x38] sm:$0xf]
    %v151 = vld [vmem:[#allocation9 + $0x3c] sm:$0xf]
    %v154 = vunpack.c.l.b16 %v126
    %v155 = vunpack.c.l.b16 %v127
    %v156 = vpack.c.b16 %v155, %v154
    %v174 = vunpack.c.l.b16 %v136
    %v175 = vunpack.c.l.b16 %v137
    %v176 = vunpack.c.l.b16 %v138
    %v177 = vunpack.c.l.b16 %v139
    %v178 = vunpack.c.l.b16 %v140
    %v179 = vunpack.c.l.b16 %v141
    %v180 = vunpack.c.l.b16 %v142
    %v181 = vunpack.c.l.b16 %v143
    %v182 = vunpack.c.l.b16 %v144
    %v183 = vunpack.c.l.b16 %v145
    %v184 = vunpack.c.l.b16 %v146
    %v185 = vunpack.c.l.b16 %v147
    %v186 = vunpack.c.l.b16 %v148
    %v187 = vunpack.c.l.b16 %v149
    %v188 = vunpack.c.l.b16 %v150
    %v189 = vunpack.c.l.b16 %v151
    %v190 = vpack.c.b16 %v175, %v174
    %v191 = vpack.c.b16 %v177, %v176
    %v192 = vpack.c.b16 %v179, %v178
    %v193 = vpack.c.b16 %v181, %v180
    %v194 = vpack.c.b16 %v183, %v182
    %v195 = vpack.c.b16 %v185, %v184
    %v196 = vpack.c.b16 %v187, %v186
    %v197 = vpack.c.b16 %v189, %v188
    %206 = vmatprep.subr.bf16.mxu0 0
    %207 = vmatpush1.bf16.msra.mxu0 %v190
    %208 = vmatprep.subr.bf16.mxu0 0
    %209 = vmatpush1.bf16.msra.mxu0 %v191
    %210 = vmatprep.subr.bf16.mxu0 0
    %211 = vmatpush1.bf16.msra.mxu0 %v192
    %212 = vmatprep.subr.bf16.mxu0 0
    %213 = vmatpush1.bf16.msra.mxu0 %v193
    %214 = vmatprep.subr.bf16.mxu0 0
    %215 = vmatpush1.bf16.msra.mxu0 %v194
    %216 = vmatprep.subr.bf16.mxu0 0
    %217 = vmatpush1.bf16.msra.mxu0 %v195
    %218 = vmatprep.subr.bf16.mxu0 0
    %219 = vmatpush1.bf16.msra.mxu0 %v196
    %220 = vmatprep.subr.bf16.mxu0 0
    %221 = vmatpush1.bf16.msra.mxu0 %v197
    %222 = vmatprep.subr.bf16.mxu0 0
    %223 = vmatpush1.bf16.msra.mxu0 0
    %224 = vmatprep.subr.bf16.mxu0 0
    %225 = vmatpush1.bf16.msra.mxu0 0
    %226 = vmatprep.subr.bf16.mxu0 0
    %227 = vmatpush1.bf16.msra.mxu0 0
    %228 = vmatprep.subr.bf16.mxu0 0
    %229 = vmatpush1.bf16.msra.mxu0 0
    %230 = vmatprep.subr.bf16.mxu0 0
    %231 = vmatpush1.bf16.msra.mxu0 0
    %232 = vmatprep.subr.bf16.mxu0 0
    %233 = vmatpush1.bf16.msra.mxu0 0
    %234 = vmatprep.subr.bf16.mxu0 0
    %235 = vmatpush1.bf16.msra.mxu0 0
    %236 = vmatprep.subr.bf16.mxu0 0
    %237 = vmatpush1.bf16.msra.mxu0 0
    %238 = vmatprep.mubr.bf16.mxu0 0
    %239 = vmatmul.mubr.bf16.gmra.mrb[0].mxu0 %v156
    %v240 = vpop.f32.mrb[0].mxu0
    %v241 = vadd.f32 0.0, %v240
    %v242 = vpop.f32.mrb[0].mxu0
    %v243 = vpop.f32.mrb[0].mxu0
    %v244 = vadd.f32 0.0, %v243
    %v245 = vpop.f32.mrb[0].mxu0
    %246 = vdwg.mxu0
    %v247 = vpack.c.bf16 %v244, %v241
    %v248 = vld [vmem:[#allocation11] sm:$0xf]
    %v249 = vld [vmem:[#allocation11 + $0x4] sm:$0xf]
    %v250 = vld [vmem:[#allocation11 + $0x8] sm:$0xf]
    %v251 = vld [vmem:[#allocation11 + $0xc] sm:$0xf]
    %v252 = vld [vmem:[#allocation11 + $0x10] sm:$0xf]
    %v253 = vld [vmem:[#allocation11 + $0x14] sm:$0xf]
    %v254 = vld [vmem:[#allocation11 + $0x18] sm:$0xf]
    %v255 = vld [vmem:[#allocation11 + $0x1c] sm:$0xf]
    %v256 = vld [vmem:[#allocation11 + $0x20] sm:$0xf]
    %v257 = vld [vmem:[#allocation11 + $0x24] sm:$0xf]
    %v258 = vld [vmem:[#allocation11 + $0x28] sm:$0xf]
    %v259 = vld [vmem:[#allocation11 + $0x2c] sm:$0xf]
    %v260 = vld [vmem:[#allocation11 + $0x30] sm:$0xf]
    %v261 = vld [vmem:[#allocation11 + $0x34] sm:$0xf]
    %v262 = vld [vmem:[#allocation11 + $0x38] sm:$0xf]
    %v263 = vld [vmem:[#allocation11 + $0x3c] sm:$0xf]
    %v268 = vunpack.c.l.b16 %v128
    %v269 = vunpack.c.l.b16 %v129
    %v270 = vunpack.c.l.b16 %v130
    %v271 = vunpack.c.l.b16 %v131
    %v272 = vpack.c.b16 %v269, %v268
    %v273 = vpack.c.b16 %v271, %v270
    %v292 = vunpack.c.l.b16 %v248
    %v293 = vunpack.c.l.b16 %v249
    %v294 = vunpack.c.l.b16 %v250
    %v295 = vunpack.c.l.b16 %v251
    %v296 = vunpack.c.l.b16 %v252
    %v297 = vunpack.c.l.b16 %v253
    %v298 = vunpack.c.l.b16 %v254
    %v299 = vunpack.c.l.b16 %v255
    %v300 = vunpack.c.l.b16 %v256
    %v301 = vunpack.c.l.b16 %v257
    %v302 = vunpack.c.l.b16 %v258
    %v303 = vunpack.c.l.b16 %v259
    %v304 = vunpack.c.l.b16 %v260
    %v305 = vunpack.c.l.b16 %v261
    %v306 = vunpack.c.l.b16 %v262
    %v307 = vunpack.c.l.b16 %v263
    %v308 = vpack.c.b16 %v293, %v292
    %v309 = vpack.c.b16 %v295, %v294
    %v310 = vpack.c.b16 %v297, %v296
    %v311 = vpack.c.b16 %v299, %v298
    %v312 = vpack.c.b16 %v301, %v300
    %v313 = vpack.c.b16 %v303, %v302
    %v314 = vpack.c.b16 %v305, %v304
    %v315 = vpack.c.b16 %v307, %v306
    %324 = vmatprep.subr.bf16.mxu0 0
    %325 = vmatpush1.bf16.msra.mxu0 %v308
    %326 = vmatprep.subr.bf16.mxu0 0
    %327 = vmatpush1.bf16.msra.mxu0 %v309
    %328 = vmatprep.subr.bf16.mxu0 0
    %329 = vmatpush1.bf16.msra.mxu0 %v310
    %330 = vmatprep.subr.bf16.mxu0 0
    %331 = vmatpush1.bf16.msra.mxu0 %v311
    %332 = vmatprep.subr.bf16.mxu0 0
    %333 = vmatpush1.bf16.msra.mxu0 %v312
    %334 = vmatprep.subr.bf16.mxu0 0
    %335 = vmatpush1.bf16.msra.mxu0 %v313
    %336 = vmatprep.subr.bf16.mxu0 0
    %337 = vmatpush1.bf16.msra.mxu0 %v314
    %338 = vmatprep.subr.bf16.mxu0 0
    %339 = vmatpush1.bf16.msra.mxu0 %v315
    %340 = vmatprep.subr.bf16.mxu0 0
    %341 = vmatpush1.bf16.msra.mxu0 0
    %342 = vmatprep.subr.bf16.mxu0 0
    %343 = vmatpush1.bf16.msra.mxu0 0
    %344 = vmatprep.subr.bf16.mxu0 0
    %345 = vmatpush1.bf16.msra.mxu0 0
    %346 = vmatprep.subr.bf16.mxu0 0
    %347 = vmatpush1.bf16.msra.mxu0 0
    %348 = vmatprep.subr.bf16.mxu0 0
    %349 = vmatpush1.bf16.msra.mxu0 0
    %350 = vmatprep.subr.bf16.mxu0 0
    %351 = vmatpush1.bf16.msra.mxu0 0
    %352 = vmatprep.subr.bf16.mxu0 0
    %353 = vmatpush1.bf16.msra.mxu0 0
    %354 = vmatprep.subr.bf16.mxu0 0
    %355 = vmatpush1.bf16.msra.mxu0 0
    %356 = vmatprep.mubr.bf16.mxu0 0
    %357 = vmatmul.mubr.bf16.gmra.mrb[0].mxu0 %v272
    %v358 = vpop.f32.mrb[0].mxu0
    %v359 = vadd.f32 0.0, %v358
    %v360 = vpop.f32.mrb[0].mxu0
    %v361 = vpop.f32.mrb[0].mxu0
    %v362 = vadd.f32 0.0, %v361
    %v363 = vpop.f32.mrb[0].mxu0
    %364 = vmatprep.mubr.bf16.mxu0 0
    %365 = vmatmul.mubr.bf16.gmra.mrb[0].mxu0 %v273
    %v366 = vpop.f32.mrb[0].mxu0
    %v367 = vadd.f32 0.0, %v366
    %v368 = vpop.f32.mrb[0].mxu0
    %v369 = vpop.f32.mrb[0].mxu0
    %v370 = vadd.f32 0.0, %v369
    %v371 = vpop.f32.mrb[0].mxu0
    %372 = vdwg.mxu0
    %v373 = vpack.c.bf16 %v362, %v359
    %v374 = vpack.c.bf16 %v370, %v367
    %v375 = vld [vmem:[#allocation12] sm:$0xf]
    %v376 = vld [vmem:[#allocation12 + $0x4] sm:$0xf]
    %v377 = vld [vmem:[#allocation12 + $0x8] sm:$0xf]
    %v378 = vld [vmem:[#allocation12 + $0xc] sm:$0xf]
    %v379 = vld [vmem:[#allocation12 + $0x10] sm:$0xf]
    %v380 = vld [vmem:[#allocation12 + $0x14] sm:$0xf]
    %v381 = vld [vmem:[#allocation12 + $0x18] sm:$0xf]
    %v382 = vld [vmem:[#allocation12 + $0x1c] sm:$0xf]
    %v383 = vld [vmem:[#allocation12 + $0x20] sm:$0xf]
    %v384 = vld [vmem:[#allocation12 + $0x24] sm:$0xf]
    %v385 = vld [vmem:[#allocation12 + $0x28] sm:$0xf]
    %v386 = vld [vmem:[#allocation12 + $0x2c] sm:$0xf]
    %v387 = vld [vmem:[#allocation12 + $0x30] sm:$0xf]
    %v388 = vld [vmem:[#allocation12 + $0x34] sm:$0xf]
    %v389 = vld [vmem:[#allocation12 + $0x38] sm:$0xf]
    %v390 = vld [vmem:[#allocation12 + $0x3c] sm:$0xf]
    %v395 = vunpack.c.l.b16 %v132
    %v396 = vunpack.c.l.b16 %v133
    %v397 = vunpack.c.l.b16 %v134
    %v398 = vunpack.c.l.b16 %v135
    %v399 = vpack.c.b16 %v396, %v395
    %v400 = vpack.c.b16 %v398, %v397
    %v419 = vunpack.c.l.b16 %v375
    %v420 = vunpack.c.l.b16 %v376
    %v421 = vunpack.c.l.b16 %v377
    %v422 = vunpack.c.l.b16 %v378
    %v423 = vunpack.c.l.b16 %v379
    %v424 = vunpack.c.l.b16 %v380
    %v425 = vunpack.c.l.b16 %v381
    %v426 = vunpack.c.l.b16 %v382
    %v427 = vunpack.c.l.b16 %v383
    %v428 = vunpack.c.l.b16 %v384
    %v429 = vunpack.c.l.b16 %v385
    %v430 = vunpack.c.l.b16 %v386
    %v431 = vunpack.c.l.b16 %v387
    %v432 = vunpack.c.l.b16 %v388
    %v433 = vunpack.c.l.b16 %v389
    %v434 = vunpack.c.l.b16 %v390
    %v435 = vpack.c.b16 %v420, %v419
    %v436 = vpack.c.b16 %v422, %v421
    %v437 = vpack.c.b16 %v424, %v423
    %v438 = vpack.c.b16 %v426, %v425
    %v439 = vpack.c.b16 %v428, %v427
    %v440 = vpack.c.b16 %v430, %v429
    %v441 = vpack.c.b16 %v432, %v431
    %v442 = vpack.c.b16 %v434, %v433
    %451 = vmatprep.subr.bf16.mxu0 0
    %452 = vmatpush1.bf16.msra.mxu0 %v435
    %453 = vmatprep.subr.bf16.mxu0 0
    %454 = vmatpush1.bf16.msra.mxu0 %v436
    %455 = vmatprep.subr.bf16.mxu0 0
    %456 = vmatpush1.bf16.msra.mxu0 %v437
    %457 = vmatprep.subr.bf16.mxu0 0
    %458 = vmatpush1.bf16.msra.mxu0 %v438
    %459 = vmatprep.subr.bf16.mxu0 0
    %460 = vmatpush1.bf16.msra.mxu0 %v439
    %461 = vmatprep.subr.bf16.mxu0 0
    %462 = vmatpush1.bf16.msra.mxu0 %v440
    %463 = vmatprep.subr.bf16.mxu0 0
    %464 = vmatpush1.bf16.msra.mxu0 %v441
    %465 = vmatprep.subr.bf16.mxu0 0
    %466 = vmatpush1.bf16.msra.mxu0 %v442
    %467 = vmatprep.subr.bf16.mxu0 0
    %468 = vmatpush1.bf16.msra.mxu0 0
    %469 = vmatprep.subr.bf16.mxu0 0
    %470 = vmatpush1.bf16.msra.mxu0 0
    %471 = vmatprep.subr.bf16.mxu0 0
    %472 = vmatpush1.bf16.msra.mxu0 0
    %473 = vmatprep.subr.bf16.mxu0 0
    %474 = vmatpush1.bf16.msra.mxu0 0
    %475 = vmatprep.subr.bf16.mxu0 0
    %476 = vmatpush1.bf16.msra.mxu0 0
    %477 = vmatprep.subr.bf16.mxu0 0
    %478 = vmatpush1.bf16.msra.mxu0 0
    %479 = vmatprep.subr.bf16.mxu0 0
    %480 = vmatpush1.bf16.msra.mxu0 0
    %481 = vmatprep.subr.bf16.mxu0 0
    %482 = vmatpush1.bf16.msra.mxu0 0
    %483 = vmatprep.mubr.bf16.mxu0 0
    %484 = vmatmul.mubr.bf16.gmra.mrb[0].mxu0 %v399
    %v485 = vpop.f32.mrb[0].mxu0
    %v486 = vadd.f32 0.0, %v485
    %v487 = vpop.f32.mrb[0].mxu0
    %v488 = vpop.f32.mrb[0].mxu0
    %v489 = vadd.f32 0.0, %v488
    %v490 = vpop.f32.mrb[0].mxu0
    %491 = vmatprep.mubr.bf16.mxu0 0
    %492 = vmatmul.mubr.bf16.gmra.mrb[0].mxu0 %v400
    %v493 = vpop.f32.mrb[0].mxu0
    %v494 = vadd.f32 0.0, %v493
    %v495 = vpop.f32.mrb[0].mxu0
    %v496 = vpop.f32.mrb[0].mxu0
    %v497 = vadd.f32 0.0, %v496
    %v498 = vpop.f32.mrb[0].mxu0
    %499 = vdwg.mxu0
    %v500 = vpack.c.bf16 %v489, %v486
    %v501 = vpack.c.bf16 %v497, %v494
    %vm502 = vcmask 130048
    %v504 = vsel %vm502, %v247, 0
    %v507 = vsel %vm502, %v373, 0
    %509 = vmatprep.subr.bf16.mxu0 0
    %510 = vmatpush1.bf16.xpose.msra.mxu0 %v507
    %511 = vmatprep.subr.bf16.mxu0 0
    %512 = vmatpush1.bf16.xpose.msra.mxu0 0
    %513 = vmatprep.subr.bf16.mxu0 0
    %514 = vmatpush1.bf16.xpose.msra.mxu0 0
    %515 = vmatprep.subr.bf16.mxu0 0
    %516 = vmatpush1.bf16.xpose.msra.mxu0 0
    %517 = vmatprep.subr.bf16.mxu0 0
    %518 = vmatpush1.bf16.xpose.msra.mxu0 0
    %519 = vmatprep.subr.bf16.mxu0 0
    %520 = vmatpush1.bf16.xpose.msra.mxu0 0
    %521 = vmatprep.subr.bf16.mxu0 0
    %522 = vmatpush1.bf16.xpose.msra.mxu0 0
    %523 = vmatprep.subr.bf16.mxu0 0
    %524 = vmatpush1.bf16.xpose.msra.mxu0 0
    %525 = vmatprep.subr.bf16.mxu0 0
    %526 = vmatpush1.bf16.xpose.msra.mxu0 0
    %527 = vmatprep.subr.bf16.mxu0 0
    %528 = vmatpush1.bf16.xpose.msra.mxu0 0
    %529 = vmatprep.subr.bf16.mxu0 0
    %530 = vmatpush1.bf16.xpose.msra.mxu0 0
    %531 = vmatprep.subr.bf16.mxu0 0
    %532 = vmatpush1.bf16.xpose.msra.mxu0 0
    %533 = vmatprep.subr.bf16.mxu0 0
    %534 = vmatpush1.bf16.xpose.msra.mxu0 0
    %535 = vmatprep.subr.bf16.mxu0 0
    %536 = vmatpush1.bf16.xpose.msra.mxu0 0
    %537 = vmatprep.subr.bf16.mxu0 0
    %538 = vmatpush1.bf16.xpose.msra.mxu0 0
    %539 = vmatprep.subr.bf16.mxu0 0
    %540 = vmatpush1.bf16.xpose.msra.mxu0 0
    %541 = vmatprep.mubr.bf16.mxu0 0
    %542 = vmatmul.mubr.bf16.gmra.mrb[0].mxu0 %v504
    %v543 = vpop.f32.mrb[0].mxu0
    %v544 = vadd.f32 0.0, %v543
    %v545 = vpop.f32.mrb[0].mxu0
    %v546 = vpop.f32.mrb[0].mxu0
    %v547 = vpop.f32.mrb[0].mxu0
    %548 = vdwg.mxu0
    %v549 = vsel %vm502, %v544, -inf
    %550 = vmax.xlane.f32.xlu0 %v549
    %v551 = vpop.xlane.xlu0 %550
    %v552 = vsub.f32 %v544, %v551
    %v553 = vmul.f32 %v552, 1.442695
    %v554 = vpow.pop %v553
    %v555 = vsel %vm502, %v554, 0.0
    %556 = vadd.xlane.f32.xlu0 %v555
    %v557 = vpop.xlane.xlu0 %556
    %v558 = vrcp.pop %v557
    %v559 = vmul.f32 %v554, %v558
    %v560 = vpack.c.bf16 %v559, %v559
    %v562 = vsel %vm502, %v560, 0
    %564 = vmatprep.subr.bf16.mxu0 0
    %565 = vmatpush1.bf16.msra.mxu0 %v500
    %566 = vmatprep.subr.bf16.mxu0 0
    %567 = vmatpush1.bf16.msra.mxu0 0
    %568 = vmatprep.subr.bf16.mxu0 0
    %569 = vmatpush1.bf16.msra.mxu0 0
    %570 = vmatprep.subr.bf16.mxu0 0
    %571 = vmatpush1.bf16.msra.mxu0 0
    %572 = vmatprep.subr.bf16.mxu0 0
    %573 = vmatpush1.bf16.msra.mxu0 0
    %574 = vmatprep.subr.bf16.mxu0 0
    %575 = vmatpush1.bf16.msra.mxu0 0
    %576 = vmatprep.subr.bf16.mxu0 0
    %577 = vmatpush1.bf16.msra.mxu0 0
    %578 = vmatprep.subr.bf16.mxu0 0
    %579 = vmatpush1.bf16.msra.mxu0 0
    %580 = vmatprep.subr.bf16.mxu0 0
    %581 = vmatpush1.bf16.msra.mxu0 0
    %582 = vmatprep.subr.bf16.mxu0 0
    %583 = vmatpush1.bf16.msra.mxu0 0
    %584 = vmatprep.subr.bf16.mxu0 0
    %585 = vmatpush1.bf16.msra.mxu0 0
    %586 = vmatprep.subr.bf16.mxu0 0
    %587 = vmatpush1.bf16.msra.mxu0 0
    %588 = vmatprep.subr.bf16.mxu0 0
    %589 = vmatpush1.bf16.msra.mxu0 0
    %590 = vmatprep.subr.bf16.mxu0 0
    %591 = vmatpush1.bf16.msra.mxu0 0
    %592 = vmatprep.subr.bf16.mxu0 0
    %593 = vmatpush1.bf16.msra.mxu0 0
    %594 = vmatprep.subr.bf16.mxu0 0
    %595 = vmatpush1.bf16.msra.mxu0 0
    %596 = vmatprep.mubr.bf16.mxu0 0
    %597 = vmatmul.mubr.bf16.gmra.mrb[0].mxu0 %v562
    %v598 = vpop.f32.mrb[0].mxu0
    %v599 = vadd.f32 0.0, %v598
    %v600 = vpop.f32.mrb[0].mxu0
    %v601 = vpop.f32.mrb[0].mxu0
    %v602 = vpop.f32.mrb[0].mxu0
    %603 = vdwg.mxu0
    %v604 = vpack.c.bf16 %v599, %v599
    %vm605 = vcmask 125952
    %606 = vst.msk [vmem:[#allocation2] sm:$0xf] %vm605, %v604
    %608 = vrot.lane.b32.xlu0 %v247, 112
    %v609 = vpop.permute.xlu0 %608
    %611 = vrot.lane.b32.xlu0 %v373, 112
    %v612 = vpop.permute.xlu0 %611
    %v614 = vsel %vm502, %v609, 0
    %v617 = vsel %vm502, %v612, 0
    %619 = vmatprep.subr.bf16.mxu0 0
    %620 = vmatpush1.bf16.xpose.msra.mxu0 %v617
    %621 = vmatprep.subr.bf16.mxu0 0
    %622 = vmatpush1.bf16.xpose.msra.mxu0 0
    %623 = vmatprep.subr.bf16.mxu0 0
    %624 = vmatpush1.bf16.xpose.msra.mxu0 0
    %625 = vmatprep.subr.bf16.mxu0 0
    %626 = vmatpush1.bf16.xpose.msra.mxu0 0
    %627 = vmatprep.subr.bf16.mxu0 0
    %628 = vmatpush1.bf16.xpose.msra.mxu0 0
    %629 = vmatprep.subr.bf16.mxu0 0
    %630 = vmatpush1.bf16.xpose.msra.mxu0 0
    %631 = vmatprep.subr.bf16.mxu0 0
    %632 = vmatpush1.bf16.xpose.msra.mxu0 0
    %633 = vmatprep.subr.bf16.mxu0 0
    %634 = vmatpush1.bf16.xpose.msra.mxu0 0
    %635 = vmatprep.subr.bf16.mxu0 0
    %636 = vmatpush1.bf16.xpose.msra.mxu0 0
    %637 = vmatprep.subr.bf16.mxu0 0
    %638 = vmatpush1.bf16.xpose.msra.mxu0 0
    %639 = vmatprep.subr.bf16.mxu0 0
    %640 = vmatpush1.bf16.xpose.msra.mxu0 0
    %641 = vmatprep.subr.bf16.mxu0 0
    %642 = vmatpush1.bf16.xpose.msra.mxu0 0
    %643 = vmatprep.subr.bf16.mxu0 0
    %644 = vmatpush1.bf16.xpose.msra.mxu0 0
    %645 = vmatprep.subr.bf16.mxu0 0
    %646 = vmatpush1.bf16.xpose.msra.mxu0 0
    %647 = vmatprep.subr.bf16.mxu0 0
    %648 = vmatpush1.bf16.xpose.msra.mxu0 0
    %649 = vmatprep.subr.bf16.mxu0 0
    %650 = vmatpush1.bf16.xpose.msra.mxu0 0
    %651 = vmatprep.mubr.bf16.mxu0 0
    %652 = vmatmul.mubr.bf16.gmra.mrb[0].mxu0 %v614
    %v653 = vpop.f32.mrb[0].mxu0
    %v654 = vadd.f32 0.0, %v653
    %v655 = vpop.f32.mrb[0].mxu0
    %v656 = vpop.f32.mrb[0].mxu0
    %v657 = vpop.f32.mrb[0].mxu0
    %658 = vdwg.mxu0
    %v659 = vsel %vm502, %v654, -inf
    %660 = vmax.xlane.f32.xlu0 %v659
    %v661 = vpop.xlane.xlu0 %660
    %v662 = vsub.f32 %v654, %v661
    %v663 = vmul.f32 %v662, 1.442695
    %v664 = vpow.pop %v663
    %v665 = vsel %vm502, %v664, 0.0
    %666 = vadd.xlane.f32.xlu0 %v665
    %v667 = vpop.xlane.xlu0 %666
    %v668 = vrcp.pop %v667
    %v669 = vmul.f32 %v664, %v668
    %v670 = vpack.c.bf16 %v669, %v669
    %672 = vrot.lane.b32.xlu0 %v500, 112
    %v673 = vpop.permute.xlu0 %672
    %v676 = vsel %vm502, %v670, 0
    %678 = vmatprep.subr.bf16.mxu0 0
    %679 = vmatpush1.bf16.msra.mxu0 %v673
    %680 = vmatprep.subr.bf16.mxu0 0
    %681 = vmatpush1.bf16.msra.mxu0 0
    %682 = vmatprep.subr.bf16.mxu0 0
    %683 = vmatpush1.bf16.msra.mxu0 0
    %684 = vmatprep.subr.bf16.mxu0 0
    %685 = vmatpush1.bf16.msra.mxu0 0
    %686 = vmatprep.subr.bf16.mxu0 0
    %687 = vmatpush1.bf16.msra.mxu0 0
    %688 = vmatprep.subr.bf16.mxu0 0
    %689 = vmatpush1.bf16.msra.mxu0 0
    %690 = vmatprep.subr.bf16.mxu0 0
    %691 = vmatpush1.bf16.msra.mxu0 0
    %692 = vmatprep.subr.bf16.mxu0 0
    %693 = vmatpush1.bf16.msra.mxu0 0
    %694 = vmatprep.subr.bf16.mxu0 0
    %695 = vmatpush1.bf16.msra.mxu0 0
    %696 = vmatprep.subr.bf16.mxu0 0
    %697 = vmatpush1.bf16.msra.mxu0 0
    %698 = vmatprep.subr.bf16.mxu0 0
    %699 = vmatpush1.bf16.msra.mxu0 0
    %700 = vmatprep.subr.bf16.mxu0 0
    %701 = vmatpush1.bf16.msra.mxu0 0
    %702 = vmatprep.subr.bf16.mxu0 0
    %703 = vmatpush1.bf16.msra.mxu0 0
    %704 = vmatprep.subr.bf16.mxu0 0
    %705 = vmatpush1.bf16.msra.mxu0 0
    %706 = vmatprep.subr.bf16.mxu0 0
    %707 = vmatpush1.bf16.msra.mxu0 0
    %708 = vmatprep.subr.bf16.mxu0 0
    %709 = vmatpush1.bf16.msra.mxu0 0
    %710 = vmatprep.mubr.bf16.mxu0 0
    %711 = vmatmul.mubr.bf16.gmra.mrb[0].mxu0 %v676
    %v712 = vpop.f32.mrb[0].mxu0
    %v713 = vadd.f32 0.0, %v712
    %v714 = vpop.f32.mrb[0].mxu0
    %v715 = vpop.f32.mrb[0].mxu0
    %v716 = vpop.f32.mrb[0].mxu0
    %717 = vdwg.mxu0
    %v718 = vpack.c.bf16 %v713, %v713
    %720 = vrot.lane.b32.xlu0 %v718, 16
    %v721 = vpop.permute.xlu0 %720
    %vm723 = vcmask 257152
    %724 = vst.msk [vmem:[#allocation2] sm:$0xf] %vm723, %v721
    %725 = vrot.lane.b32.xlu0 %v247, 96
    %v726 = vpop.permute.xlu0 %725
    %727 = vrot.lane.b32.xlu0 %v373, 96
    %v728 = vpop.permute.xlu0 %727
    %v730 = vsel %vm502, %v726, 0
    %v733 = vsel %vm502, %v728, 0
    %735 = vmatprep.subr.bf16.mxu0 0
    %736 = vmatpush1.bf16.xpose.msra.mxu0 %v733
    %737 = vmatprep.subr.bf16.mxu0 0
    %738 = vmatpush1.bf16.xpose.msra.mxu0 0
    %739 = vmatprep.subr.bf16.mxu0 0
    %740 = vmatpush1.bf16.xpose.msra.mxu0 0
    %741 = vmatprep.subr.bf16.mxu0 0
    %742 = vmatpush1.bf16.xpose.msra.mxu0 0
    %743 = vmatprep.subr.bf16.mxu0 0
    %744 = vmatpush1.bf16.xpose.msra.mxu0 0
    %745 = vmatprep.subr.bf16.mxu0 0
    %746 = vmatpush1.bf16.xpose.msra.mxu0 0
    %747 = vmatprep.subr.bf16.mxu0 0
    %748 = vmatpush1.bf16.xpose.msra.mxu0 0
    %749 = vmatprep.subr.bf16.mxu0 0
    %750 = vmatpush1.bf16.xpose.msra.mxu0 0
    %751 = vmatprep.subr.bf16.mxu0 0
    %752 = vmatpush1.bf16.xpose.msra.mxu0 0
    %753 = vmatprep.subr.bf16.mxu0 0
    %754 = vmatpush1.bf16.xpose.msra.mxu0 0
    %755 = vmatprep.subr.bf16.mxu0 0
    %756 = vmatpush1.bf16.xpose.msra.mxu0 0
    %757 = vmatprep.subr.bf16.mxu0 0
    %758 = vmatpush1.bf16.xpose.msra.mxu0 0
    %759 = vmatprep.subr.bf16.mxu0 0
    %760 = vmatpush1.bf16.xpose.msra.mxu0 0
    %761 = vmatprep.subr.bf16.mxu0 0
    %762 = vmatpush1.bf16.xpose.msra.mxu0 0
    %763 = vmatprep.subr.bf16.mxu0 0
    %764 = vmatpush1.bf16.xpose.msra.mxu0 0
    %765 = vmatprep.subr.bf16.mxu0 0
    %766 = vmatpush1.bf16.xpose.msra.mxu0 0
    %767 = vmatprep.mubr.bf16.mxu0 0
    %768 = vmatmul.mubr.bf16.gmra.mrb[0].mxu0 %v730
    %v769 = vpop.f32.mrb[0].mxu0
    %v770 = vadd.f32 0.0, %v769
    %v771 = vpop.f32.mrb[0].mxu0
    %v772 = vpop.f32.mrb[0].mxu0
    %v773 = vpop.f32.mrb[0].mxu0
    %774 = vdwg.mxu0
    %v775 = vsel %vm502, %v770, -inf
    %776 = vmax.xlane.f32.xlu0 %v775
    %v777 = vpop.xlane.xlu0 %776
    %v778 = vsub.f32 %v770, %v777
    %v779 = vmul.f32 %v778, 1.442695
    %v780 = vpow.pop %v779
    %v781 = vsel %vm502, %v780, 0.0
    %782 = vadd.xlane.f32.xlu0 %v781
    %v783 = vpop.xlane.xlu0 %782
    %v784 = vrcp.pop %v783
    %v785 = vmul.f32 %v780, %v784
    %v786 = vpack.c.bf16 %v785, %v785
    %787 = vrot.lane.b32.xlu0 %v500, 96
    %v788 = vpop.permute.xlu0 %787
    %v791 = vsel %vm502, %v786, 0
    %793 = vmatprep.subr.bf16.mxu0 0
    %794 = vmatpush1.bf16.msra.mxu0 %v788
    %795 = vmatprep.subr.bf16.mxu0 0
    %796 = vmatpush1.bf16.msra.mxu0 0
    %797 = vmatprep.subr.bf16.mxu0 0
    %798 = vmatpush1.bf16.msra.mxu0 0
    %799 = vmatprep.subr.bf16.mxu0 0
    %800 = vmatpush1.bf16.msra.mxu0 0
    %801 = vmatprep.subr.bf16.mxu0 0
    %802 = vmatpush1.bf16.msra.mxu0 0
    %803 = vmatprep.subr.bf16.mxu0 0
    %804 = vmatpush1.bf16.msra.mxu0 0
    %805 = vmatprep.subr.bf16.mxu0 0
    %806 = vmatpush1.bf16.msra.mxu0 0
    %807 = vmatprep.subr.bf16.mxu0 0
    %808 = vmatpush1.bf16.msra.mxu0 0
    %809 = vmatprep.subr.bf16.mxu0 0
    %810 = vmatpush1.bf16.msra.mxu0 0
    %811 = vmatprep.subr.bf16.mxu0 0
    %812 = vmatpush1.bf16.msra.mxu0 0
    %813 = vmatprep.subr.bf16.mxu0 0
    %814 = vmatpush1.bf16.msra.mxu0 0
    %815 = vmatprep.subr.bf16.mxu0 0
    %816 = vmatpush1.bf16.msra.mxu0 0
    %817 = vmatprep.subr.bf16.mxu0 0
    %818 = vmatpush1.bf16.msra.mxu0 0
    %819 = vmatprep.subr.bf16.mxu0 0
    %820 = vmatpush1.bf16.msra.mxu0 0
    %821 = vmatprep.subr.bf16.mxu0 0
    %822 = vmatpush1.bf16.msra.mxu0 0
    %823 = vmatprep.subr.bf16.mxu0 0
    %824 = vmatpush1.bf16.msra.mxu0 0
    %825 = vmatprep.mubr.bf16.mxu0 0
    %826 = vmatmul.mubr.bf16.gmra.mrb[0].mxu0 %v791
    %v827 = vpop.f32.mrb[0].mxu0
    %v828 = vadd.f32 0.0, %v827
    %v829 = vpop.f32.mrb[0].mxu0
    %v830 = vpop.f32.mrb[0].mxu0
    %v831 = vpop.f32.mrb[0].mxu0
    %832 = vdwg.mxu0
    %v833 = vpack.c.bf16 %v828, %v828
    %835 = vrot.lane.b32.xlu0 %v833, 32
    %v836 = vpop.permute.xlu0 %835
    %vm838 = vcmask 388352
    %839 = vst.msk [vmem:[#allocation2] sm:$0xf] %vm838, %v836
    %840 = vrot.lane.b32.xlu0 %v247, 80
    %v841 = vpop.permute.xlu0 %840
    %842 = vrot.lane.b32.xlu0 %v373, 80
    %v843 = vpop.permute.xlu0 %842
    %v845 = vsel %vm502, %v841, 0
    %v848 = vsel %vm502, %v843, 0
    %850 = vmatprep.subr.bf16.mxu0 0
    %851 = vmatpush1.bf16.xpose.msra.mxu0 %v848
    %852 = vmatprep.subr.bf16.mxu0 0
    %853 = vmatpush1.bf16.xpose.msra.mxu0 0
    %854 = vmatprep.subr.bf16.mxu0 0
    %855 = vmatpush1.bf16.xpose.msra.mxu0 0
    %856 = vmatprep.subr.bf16.mxu0 0
    %857 = vmatpush1.bf16.xpose.msra.mxu0 0
    %858 = vmatprep.subr.bf16.mxu0 0
    %859 = vmatpush1.bf16.xpose.msra.mxu0 0
    %860 = vmatprep.subr.bf16.mxu0 0
    %861 = vmatpush1.bf16.xpose.msra.mxu0 0
    %862 = vmatprep.subr.bf16.mxu0 0
    %863 = vmatpush1.bf16.xpose.msra.mxu0 0
    %864 = vmatprep.subr.bf16.mxu0 0
    %865 = vmatpush1.bf16.xpose.msra.mxu0 0
    %866 = vmatprep.subr.bf16.mxu0 0
    %867 = vmatpush1.bf16.xpose.msra.mxu0 0
    %868 = vmatprep.subr.bf16.mxu0 0
    %869 = vmatpush1.bf16.xpose.msra.mxu0 0
    %870 = vmatprep.subr.bf16.mxu0 0
    %871 = vmatpush1.bf16.xpose.msra.mxu0 0
    %872 = vmatprep.subr.bf16.mxu0 0
    %873 = vmatpush1.bf16.xpose.msra.mxu0 0
    %874 = vmatprep.subr.bf16.mxu0 0
    %875 = vmatpush1.bf16.xpose.msra.mxu0 0
    %876 = vmatprep.subr.bf16.mxu0 0
    %877 = vmatpush1.bf16.xpose.msra.mxu0 0
    %878 = vmatprep.subr.bf16.mxu0 0
    %879 = vmatpush1.bf16.xpose.msra.mxu0 0
    %880 = vmatprep.subr.bf16.mxu0 0
    %881 = vmatpush1.bf16.xpose.msra.mxu0 0
    %882 = vmatprep.mubr.bf16.mxu0 0
    %883 = vmatmul.mubr.bf16.gmra.mrb[0].mxu0 %v845
    %v884 = vpop.f32.mrb[0].mxu0
    %v885 = vadd.f32 0.0, %v884
    %v886 = vpop.f32.mrb[0].mxu0
    %v887 = vpop.f32.mrb[0].mxu0
    %v888 = vpop.f32.mrb[0].mxu0
    %889 = vdwg.mxu0
    %v890 = vsel %vm502, %v885, -inf
    %891 = vmax.xlane.f32.xlu0 %v890
    %v892 = vpop.xlane.xlu0 %891
    %v893 = vsub.f32 %v885, %v892
    %v894 = vmul.f32 %v893, 1.442695
    %v895 = vpow.pop %v894
    %v896 = vsel %vm502, %v895, 0.0
    %897 = vadd.xlane.f32.xlu0 %v896
    %v898 = vpop.xlane.xlu0 %897
    %v899 = vrcp.pop %v898
    %v900 = vmul.f32 %v895, %v899
    %v901 = vpack.c.bf16 %v900, %v900
    %902 = vrot.lane.b32.xlu0 %v500, 80
    %v903 = vpop.permute.xlu0 %902
    %v906 = vsel %vm502, %v901, 0
    %908 = vmatprep.subr.bf16.mxu0 0
    %909 = vmatpush1.bf16.msra.mxu0 %v903
    %910 = vmatprep.subr.bf16.mxu0 0
    %911 = vmatpush1.bf16.msra.mxu0 0
    %912 = vmatprep.subr.bf16.mxu0 0
    %913 = vmatpush1.bf16.msra.mxu0 0
    %914 = vmatprep.subr.bf16.mxu0 0
    %915 = vmatpush1.bf16.msra.mxu0 0
    %916 = vmatprep.subr.bf16.mxu0 0
    %917 = vmatpush1.bf16.msra.mxu0 0
    %918 = vmatprep.subr.bf16.mxu0 0
    %919 = vmatpush1.bf16.msra.mxu0 0
    %920 = vmatprep.subr.bf16.mxu0 0
    %921 = vmatpush1.bf16.msra.mxu0 0
    %922 = vmatprep.subr.bf16.mxu0 0
    %923 = vmatpush1.bf16.msra.mxu0 0
    %924 = vmatprep.subr.bf16.mxu0 0
    %925 = vmatpush1.bf16.msra.mxu0 0
    %926 = vmatprep.subr.bf16.mxu0 0
    %927 = vmatpush1.bf16.msra.mxu0 0
    %928 = vmatprep.subr.bf16.mxu0 0
    %929 = vmatpush1.bf16.msra.mxu0 0
    %930 = vmatprep.subr.bf16.mxu0 0
    %931 = vmatpush1.bf16.msra.mxu0 0
    %932 = vmatprep.subr.bf16.mxu0 0
    %933 = vmatpush1.bf16.msra.mxu0 0
    %934 = vmatprep.subr.bf16.mxu0 0
    %935 = vmatpush1.bf16.msra.mxu0 0
    %936 = vmatprep.subr.bf16.mxu0 0
    %937 = vmatpush1.bf16.msra.mxu0 0
    %938 = vmatprep.subr.bf16.mxu0 0
    %939 = vmatpush1.bf16.msra.mxu0 0
    %940 = vmatprep.mubr.bf16.mxu0 0
    %941 = vmatmul.mubr.bf16.gmra.mrb[0].mxu0 %v906
    %v942 = vpop.f32.mrb[0].mxu0
    %v943 = vadd.f32 0.0, %v942
    %v944 = vpop.f32.mrb[0].mxu0
    %v945 = vpop.f32.mrb[0].mxu0
    %v946 = vpop.f32.mrb[0].mxu0
    %947 = vdwg.mxu0
    %v948 = vpack.c.bf16 %v943, %v943
    %950 = vrot.lane.b32.xlu0 %v948, 48
    %v951 = vpop.permute.xlu0 %950
    %vm953 = vcmask 519552
    %954 = vst.msk [vmem:[#allocation2] sm:$0xf] %vm953, %v951
    %955 = vrot.lane.b32.xlu0 %v247, 64
    %v956 = vpop.permute.xlu0 %955
    %957 = vrot.lane.b32.xlu0 %v373, 64
    %v958 = vpop.permute.xlu0 %957
    %v960 = vsel %vm502, %v956, 0
    %v963 = vsel %vm502, %v958, 0
    %965 = vmatprep.subr.bf16.mxu0 0
    %966 = vmatpush1.bf16.xpose.msra.mxu0 %v963
    %967 = vmatprep.subr.bf16.mxu0 0
    %968 = vmatpush1.bf16.xpose.msra.mxu0 0
    %969 = vmatprep.subr.bf16.mxu0 0
    %970 = vmatpush1.bf16.xpose.msra.mxu0 0
    %971 = vmatprep.subr.bf16.mxu0 0
    %972 = vmatpush1.bf16.xpose.msra.mxu0 0
    %973 = vmatprep.subr.bf16.mxu0 0
    %974 = vmatpush1.bf16.xpose.msra.mxu0 0
    %975 = vmatprep.subr.bf16.mxu0 0
    %976 = vmatpush1.bf16.xpose.msra.mxu0 0
    %977 = vmatprep.subr.bf16.mxu0 0
    %978 = vmatpush1.bf16.xpose.msra.mxu0 0
    %979 = vmatprep.subr.bf16.mxu0 0
    %980 = vmatpush1.bf16.xpose.msra.mxu0 0
    %981 = vmatprep.subr.bf16.mxu0 0
    %982 = vmatpush1.bf16.xpose.msra.mxu0 0
    %983 = vmatprep.subr.bf16.mxu0 0
    %984 = vmatpush1.bf16.xpose.msra.mxu0 0
    %985 = vmatprep.subr.bf16.mxu0 0
    %986 = vmatpush1.bf16.xpose.msra.mxu0 0
    %987 = vmatprep.subr.bf16.mxu0 0
    %988 = vmatpush1.bf16.xpose.msra.mxu0 0
    %989 = vmatprep.subr.bf16.mxu0 0
    %990 = vmatpush1.bf16.xpose.msra.mxu0 0
    %991 = vmatprep.subr.bf16.mxu0 0
    %992 = vmatpush1.bf16.xpose.msra.mxu0 0
    %993 = vmatprep.subr.bf16.mxu0 0
    %994 = vmatpush1.bf16.xpose.msra.mxu0 0
    %995 = vmatprep.subr.bf16.mxu0 0
    %996 = vmatpush1.bf16.xpose.msra.mxu0 0
    %997 = vmatprep.mubr.bf16.mxu0 0
    %998 = vmatmul.mubr.bf16.gmra.mrb[0].mxu0 %v960
    %v999 = vpop.f32.mrb[0].mxu0
    %v1000 = vadd.f32 0.0, %v999
    %v1001 = vpop.f32.mrb[0].mxu0
    %v1002 = vpop.f32.mrb[0].mxu0
    %v1003 = vpop.f32.mrb[0].mxu0
    %1004 = vdwg.mxu0
    %v1005 = vsel %vm502, %v1000, -inf
    %1006 = vmax.xlane.f32.xlu0 %v1005
    %v1007 = vpop.xlane.xlu0 %1006
    %v1008 = vsub.f32 %v1000, %v1007
    %v1009 = vmul.f32 %v1008, 1.442695
    %v1010 = vpow.pop %v1009
    %v1011 = vsel %vm502, %v1010, 0.0
    %1012 = vadd.xlane.f32.xlu0 %v1011
    %v1013 = vpop.xlane.xlu0 %1012
    %v1014 = vrcp.pop %v1013
    %v1015 = vmul.f32 %v1010, %v1014
    %v1016 = vpack.c.bf16 %v1015, %v1015
    %1017 = vrot.lane.b32.xlu0 %v500, 64
    %v1018 = vpop.permute.xlu0 %1017
    %v1021 = vsel %vm502, %v1016, 0
    %1023 = vmatprep.subr.bf16.mxu0 0
    %1024 = vmatpush1.bf16.msra.mxu0 %v1018
    %1025 = vmatprep.subr.bf16.mxu0 0
    %1026 = vmatpush1.bf16.msra.mxu0 0
    %1027 = vmatprep.subr.bf16.mxu0 0
    %1028 = vmatpush1.bf16.msra.mxu0 0
    %1029 = vmatprep.subr.bf16.mxu0 0
    %1030 = vmatpush1.bf16.msra.mxu0 0
    %1031 = vmatprep.subr.bf16.mxu0 0
    %1032 = vmatpush1.bf16.msra.mxu0 0
    %1033 = vmatprep.subr.bf16.mxu0 0
    %1034 = vmatpush1.bf16.msra.mxu0 0
    %1035 = vmatprep.subr.bf16.mxu0 0
    %1036 = vmatpush1.bf16.msra.mxu0 0
    %1037 = vmatprep.subr.bf16.mxu0 0
    %1038 = vmatpush1.bf16.msra.mxu0 0
    %1039 = vmatprep.subr.bf16.mxu0 0
    %1040 = vmatpush1.bf16.msra.mxu0 0
    %1041 = vmatprep.subr.bf16.mxu0 0
    %1042 = vmatpush1.bf16.msra.mxu0 0
    %1043 = vmatprep.subr.bf16.mxu0 0
    %1044 = vmatpush1.bf16.msra.mxu0 0
    %1045 = vmatprep.subr.bf16.mxu0 0
    %1046 = vmatpush1.bf16.msra.mxu0 0
    %1047 = vmatprep.subr.bf16.mxu0 0
    %1048 = vmatpush1.bf16.msra.mxu0 0
    %1049 = vmatprep.subr.bf16.mxu0 0
    %1050 = vmatpush1.bf16.msra.mxu0 0
    %1051 = vmatprep.subr.bf16.mxu0 0
    %1052 = vmatpush1.bf16.msra.mxu0 0
    %1053 = vmatprep.subr.bf16.mxu0 0
    %1054 = vmatpush1.bf16.msra.mxu0 0
    %1055 = vmatprep.mubr.bf16.mxu0 0
    %1056 = vmatmul.mubr.bf16.gmra.mrb[0].mxu0 %v1021
    %v1057 = vpop.f32.mrb[0].mxu0
    %v1058 = vadd.f32 0.0, %v1057
    %v1059 = vpop.f32.mrb[0].mxu0
    %v1060 = vpop.f32.mrb[0].mxu0
    %v1061 = vpop.f32.mrb[0].mxu0
    %1062 = vdwg.mxu0
    %v1063 = vpack.c.bf16 %v1058, %v1058
    %1065 = vrot.lane.b32.xlu0 %v1063, 64
    %v1066 = vpop.permute.xlu0 %1065
    %vm1068 = vcmask 650752
    %1069 = vst.msk [vmem:[#allocation2] sm:$0xf] %vm1068, %v1066
    %1070 = vrot.lane.b32.xlu0 %v247, 48
    %v1071 = vpop.permute.xlu0 %1070
    %1072 = vrot.lane.b32.xlu0 %v373, 48
    %v1073 = vpop.permute.xlu0 %1072
    %v1075 = vsel %vm502, %v1071, 0
    %v1078 = vsel %vm502, %v1073, 0
    %1080 = vmatprep.subr.bf16.mxu0 0
    %1081 = vmatpush1.bf16.xpose.msra.mxu0 %v1078
    %1082 = vmatprep.subr.bf16.mxu0 0
    %1083 = vmatpush1.bf16.xpose.msra.mxu0 0
    %1084 = vmatprep.subr.bf16.mxu0 0
    %1085 = vmatpush1.bf16.xpose.msra.mxu0 0
    %1086 = vmatprep.subr.bf16.mxu0 0
    %1087 = vmatpush1.bf16.xpose.msra.mxu0 0
    %1088 = vmatprep.subr.bf16.mxu0 0
    %1089 = vmatpush1.bf16.xpose.msra.mxu0 0
    %1090 = vmatprep.subr.bf16.mxu0 0
    %1091 = vmatpush1.bf16.xpose.msra.mxu0 0
    %1092 = vmatprep.subr.bf16.mxu0 0
    %1093 = vmatpush1.bf16.xpose.msra.mxu0 0
    %1094 = vmatprep.subr.bf16.mxu0 0
    %1095 = vmatpush1.bf16.xpose.msra.mxu0 0
    %1096 = vmatprep.subr.bf16.mxu0 0
    %1097 = vmatpush1.bf16.xpose.msra.mxu0 0
    %1098 = vmatprep.subr.bf16.mxu0 0
    %1099 = vmatpush1.bf16.xpose.msra.mxu0 0
    %1100 = vmatprep.subr.bf16.mxu0 0
    %1101 = vmatpush1.bf16.xpose.msra.mxu0 0
    %1102 = vmatprep.subr.bf16.mxu0 0
    %1103 = vmatpush1.bf16.xpose.msra.mxu0 0
    %1104 = vmatprep.subr.bf16.mxu0 0
    %1105 = vmatpush1.bf16.xpose.msra.mxu0 0
    %1106 = vmatprep.subr.bf16.mxu0 0
    %1107 = vmatpush1.bf16.xpose.msra.mxu0 0
    %1108 = vmatprep.subr.bf16.mxu0 0
    %1109 = vmatpush1.bf16.xpose.msra.mxu0 0
    %1110 = vmatprep.subr.bf16.mxu0 0
    %1111 = vmatpush1.bf16.xpose.msra.mxu0 0
    %1112 = vmatprep.mubr.bf16.mxu0 0
    %1113 = vmatmul.mubr.bf16.gmra.mrb[0].mxu0 %v1075
    %v1114 = vpop.f32.mrb[0].mxu0
    %v1115 = vadd.f32 0.0, %v1114
    %v1116 = vpop.f32.mrb[0].mxu0
    %v1117 = vpop.f32.mrb[0].mxu0
    %v1118 = vpop.f32.mrb[0].mxu0
    %1119 = vdwg.mxu0
    %v1120 = vsel %vm502, %v1115, -inf
    %1121 = vmax.xlane.f32.xlu0 %v1120
    %v1122 = vpop.xlane.xlu0 %1121
    %v1123 = vsub.f32 %v1115, %v1122
    %v1124 = vmul.f32 %v1123, 1.442695
    %v1125 = vpow.pop %v1124
    %v1126 = vsel %vm502, %v1125, 0.0
    %1127 = vadd.xlane.f32.xlu0 %v1126
    %v1128 = vpop.xlane.xlu0 %1127
    %v1129 = vrcp.pop %v1128
    %v1130 = vmul.f32 %v1125, %v1129
    %v1131 = vpack.c.bf16 %v1130, %v1130
    %1132 = vrot.lane.b32.xlu0 %v500, 48
    %v1133 = vpop.permute.xlu0 %1132
    %v1136 = vsel %vm502, %v1131, 0
    %1138 = vmatprep.subr.bf16.mxu0 0
    %1139 = vmatpush1.bf16.msra.mxu0 %v1133
    %1140 = vmatprep.subr.bf16.mxu0 0
    %1141 = vmatpush1.bf16.msra.mxu0 0
    %1142 = vmatprep.subr.bf16.mxu0 0
    %1143 = vmatpush1.bf16.msra.mxu0 0
    %1144 = vmatprep.subr.bf16.mxu0 0
    %1145 = vmatpush1.bf16.msra.mxu0 0
    %1146 = vmatprep.subr.bf16.mxu0 0
    %1147 = vmatpush1.bf16.msra.mxu0 0
    %1148 = vmatprep.subr.bf16.mxu0 0
    %1149 = vmatpush1.bf16.msra.mxu0 0
    %1150 = vmatprep.subr.bf16.mxu0 0
    %1151 = vmatpush1.bf16.msra.mxu0 0
    %1152 = vmatprep.subr.bf16.mxu0 0
    %1153 = vmatpush1.bf16.msra.mxu0 0
    %1154 = vmatprep.subr.bf16.mxu0 0
    %1155 = vmatpush1.bf16.msra.mxu0 0
    %1156 = vmatprep.subr.bf16.mxu0 0
    %1157 = vmatpush1.bf16.msra.mxu0 0
    %1158 = vmatprep.subr.bf16.mxu0 0
    %1159 = vmatpush1.bf16.msra.mxu0 0
    %1160 = vmatprep.subr.bf16.mxu0 0
    %1161 = vmatpush1.bf16.msra.mxu0 0
    %1162 = vmatprep.subr.bf16.mxu0 0
    %1163 = vmatpush1.bf16.msra.mxu0 0
    %1164 = vmatprep.subr.bf16.mxu0 0
    %1165 = vmatpush1.bf16.msra.mxu0 0
    %1166 = vmatprep.subr.bf16.mxu0 0
    %1167 = vmatpush1.bf16.msra.mxu0 0
    %1168 = vmatprep.subr.bf16.mxu0 0
    %1169 = vmatpush1.bf16.msra.mxu0 0
    %1170 = vmatprep.mubr.bf16.mxu0 0
    %1171 = vmatmul.mubr.bf16.gmra.mrb[0].mxu0 %v1136
    %v1172 = vpop.f32.mrb[0].mxu0
    %v1173 = vadd.f32 0.0, %v1172
    %v1174 = vpop.f32.mrb[0].mxu0
    %v1175 = vpop.f32.mrb[0].mxu0
    %v1176 = vpop.f32.mrb[0].mxu0
    %1177 = vdwg.mxu0
    %v1178 = vpack.c.bf16 %v1173, %v1173
    %1180 = vrot.lane.b32.xlu0 %v1178, 80
    %v1181 = vpop.permute.xlu0 %1180
    %vm1183 = vcmask 781952
    %1184 = vst.msk [vmem:[#allocation2] sm:$0xf] %vm1183, %v1181
    %1185 = vrot.lane.b32.xlu0 %v247, 32
    %v1186 = vpop.permute.xlu0 %1185
    %1187 = vrot.lane.b32.xlu0 %v373, 32
    %v1188 = vpop.permute.xlu0 %1187
    %v1190 = vsel %vm502, %v1186, 0
    %v1193 = vsel %vm502, %v1188, 0
    %1195 = vmatprep.subr.bf16.mxu0 0
    %1196 = vmatpush1.bf16.xpose.msra.mxu0 %v1193
    %1197 = vmatprep.subr.bf16.mxu0 0
    %1198 = vmatpush1.bf16.xpose.msra.mxu0 0
    %1199 = vmatprep.subr.bf16.mxu0 0
    %1200 = vmatpush1.bf16.xpose.msra.mxu0 0
    %1201 = vmatprep.subr.bf16.mxu0 0
    %1202 = vmatpush1.bf16.xpose.msra.mxu0 0
    %1203 = vmatprep.subr.bf16.mxu0 0
    %1204 = vmatpush1.bf16.xpose.msra.mxu0 0
    %1205 = vmatprep.subr.bf16.mxu0 0
    %1206 = vmatpush1.bf16.xpose.msra.mxu0 0
    %1207 = vmatprep.subr.bf16.mxu0 0
    %1208 = vmatpush1.bf16.xpose.msra.mxu0 0
    %1209 = vmatprep.subr.bf16.mxu0 0
    %1210 = vmatpush1.bf16.xpose.msra.mxu0 0
    %1211 = vmatprep.subr.bf16.mxu0 0
    %1212 = vmatpush1.bf16.xpose.msra.mxu0 0
    %1213 = vmatprep.subr.bf16.mxu0 0
    %1214 = vmatpush1.bf16.xpose.msra.mxu0 0
    %1215 = vmatprep.subr.bf16.mxu0 0
    %1216 = vmatpush1.bf16.xpose.msra.mxu0 0
    %1217 = vmatprep.subr.bf16.mxu0 0
    %1218 = vmatpush1.bf16.xpose.msra.mxu0 0
    %1219 = vmatprep.subr.bf16.mxu0 0
    %1220 = vmatpush1.bf16.xpose.msra.mxu0 0
    %1221 = vmatprep.subr.bf16.mxu0 0
    %1222 = vmatpush1.bf16.xpose.msra.mxu0 0
    %1223 = vmatprep.subr.bf16.mxu0 0
    %1224 = vmatpush1.bf16.xpose.msra.mxu0 0
    %1225 = vmatprep.subr.bf16.mxu0 0
    %1226 = vmatpush1.bf16.xpose.msra.mxu0 0
    %1227 = vmatprep.mubr.bf16.mxu0 0
    %1228 = vmatmul.mubr.bf16.gmra.mrb[0].mxu0 %v1190
    %v1229 = vpop.f32.mrb[0].mxu0
    %v1230 = vadd.f32 0.0, %v1229
    %v1231 = vpop.f32.mrb[0].mxu0
    %v1232 = vpop.f32.mrb[0].mxu0
    %v1233 = vpop.f32.mrb[0].mxu0
    %1234 = vdwg.mxu0
    %v1235 = vsel %vm502, %v1230, -inf
    %1236 = vmax.xlane.f32.xlu0 %v1235
    %v1237 = vpop.xlane.xlu0 %1236
    %v1238 = vsub.f32 %v1230, %v1237
    %v1239 = vmul.f32 %v1238, 1.442695
    %v1240 = vpow.pop %v1239
    %v1241 = vsel %vm502, %v1240, 0.0
    %1242 = vadd.xlane.f32.xlu0 %v1241
    %v1243 = vpop.xlane.xlu0 %1242
    %v1244 = vrcp.pop %v1243
    %v1245 = vmul.f32 %v1240, %v1244
    %v1246 = vpack.c.bf16 %v1245, %v1245
    %1247 = vrot.lane.b32.xlu0 %v500, 32
    %v1248 = vpop.permute.xlu0 %1247
    %v1251 = vsel %vm502, %v1246, 0
    %1253 = vmatprep.subr.bf16.mxu0 0
    %1254 = vmatpush1.bf16.msra.mxu0 %v1248
    %1255 = vmatprep.subr.bf16.mxu0 0
    %1256 = vmatpush1.bf16.msra.mxu0 0
    %1257 = vmatprep.subr.bf16.mxu0 0
    %1258 = vmatpush1.bf16.msra.mxu0 0
    %1259 = vmatprep.subr.bf16.mxu0 0
    %1260 = vmatpush1.bf16.msra.mxu0 0
    %1261 = vmatprep.subr.bf16.mxu0 0
    %1262 = vmatpush1.bf16.msra.mxu0 0
    %1263 = vmatprep.subr.bf16.mxu0 0
    %1264 = vmatpush1.bf16.msra.mxu0 0
    %1265 = vmatprep.subr.bf16.mxu0 0
    %1266 = vmatpush1.bf16.msra.mxu0 0
    %1267 = vmatprep.subr.bf16.mxu0 0
    %1268 = vmatpush1.bf16.msra.mxu0 0
    %1269 = vmatprep.subr.bf16.mxu0 0
    %1270 = vmatpush1.bf16.msra.mxu0 0
    %1271 = vmatprep.subr.bf16.mxu0 0
    %1272 = vmatpush1.bf16.msra.mxu0 0
    %1273 = vmatprep.subr.bf16.mxu0 0
    %1274 = vmatpush1.bf16.msra.mxu0 0
    %1275 = vmatprep.subr.bf16.mxu0 0
    %1276 = vmatpush1.bf16.msra.mxu0 0
    %1277 = vmatprep.subr.bf16.mxu0 0
    %1278 = vmatpush1.bf16.msra.mxu0 0
    %1279 = vmatprep.subr.bf16.mxu0 0
    %1280 = vmatpush1.bf16.msra.mxu0 0
    %1281 = vmatprep.subr.bf16.mxu0 0
    %1282 = vmatpush1.bf16.msra.mxu0 0
    %1283 = vmatprep.subr.bf16.mxu0 0
    %1284 = vmatpush1.bf16.msra.mxu0 0
    %1285 = vmatprep.mubr.bf16.mxu0 0
    %1286 = vmatmul.mubr.bf16.gmra.mrb[0].mxu0 %v1251
    %v1287 = vpop.f32.mrb[0].mxu0
    %v1288 = vadd.f32 0.0, %v1287
    %v1289 = vpop.f32.mrb[0].mxu0
    %v1290 = vpop.f32.mrb[0].mxu0
    %v1291 = vpop.f32.mrb[0].mxu0
    %1292 = vdwg.mxu0
    %v1293 = vpack.c.bf16 %v1288, %v1288
    %1295 = vrot.lane.b32.xlu0 %v1293, 96
    %v1296 = vpop.permute.xlu0 %1295
    %vm1298 = vcmask 913152
    %1299 = vst.msk [vmem:[#allocation2] sm:$0xf] %vm1298, %v1296
    %1300 = vrot.lane.b32.xlu0 %v247, 16
    %v1301 = vpop.permute.xlu0 %1300
    %1302 = vrot.lane.b32.xlu0 %v373, 16
    %v1303 = vpop.permute.xlu0 %1302
    %v1305 = vsel %vm502, %v1301, 0
    %v1308 = vsel %vm502, %v1303, 0
    %1310 = vmatprep.subr.bf16.mxu0 0
    %1311 = vmatpush1.bf16.xpose.msra.mxu0 %v1308
    %1312 = vmatprep.subr.bf16.mxu0 0
    %1313 = vmatpush1.bf16.xpose.msra.mxu0 0
    %1314 = vmatprep.subr.bf16.mxu0 0
    %1315 = vmatpush1.bf16.xpose.msra.mxu0 0
    %1316 = vmatprep.subr.bf16.mxu0 0
    %1317 = vmatpush1.bf16.xpose.msra.mxu0 0
    %1318 = vmatprep.subr.bf16.mxu0 0
    %1319 = vmatpush1.bf16.xpose.msra.mxu0 0
    %1320 = vmatprep.subr.bf16.mxu0 0
    %1321 = vmatpush1.bf16.xpose.msra.mxu0 0
    %1322 = vmatprep.subr.bf16.mxu0 0
    %1323 = vmatpush1.bf16.xpose.msra.mxu0 0
    %1324 = vmatprep.subr.bf16.mxu0 0
    %1325 = vmatpush1.bf16.xpose.msra.mxu0 0
    %1326 = vmatprep.subr.bf16.mxu0 0
    %1327 = vmatpush1.bf16.xpose.msra.mxu0 0
    %1328 = vmatprep.subr.bf16.mxu0 0
    %1329 = vmatpush1.bf16.xpose.msra.mxu0 0
    %1330 = vmatprep.subr.bf16.mxu0 0
    %1331 = vmatpush1.bf16.xpose.msra.mxu0 0
    %1332 = vmatprep.subr.bf16.mxu0 0
    %1333 = vmatpush1.bf16.xpose.msra.mxu0 0
    %1334 = vmatprep.subr.bf16.mxu0 0
    %1335 = vmatpush1.bf16.xpose.msra.mxu0 0
    %1336 = vmatprep.subr.bf16.mxu0 0
    %1337 = vmatpush1.bf16.xpose.msra.mxu0 0
    %1338 = vmatprep.subr.bf16.mxu0 0
    %1339 = vmatpush1.bf16.xpose.msra.mxu0 0
    %1340 = vmatprep.subr.bf16.mxu0 0
    %1341 = vmatpush1.bf16.xpose.msra.mxu0 0
    %1342 = vmatprep.mubr.bf16.mxu0 0
    %1343 = vmatmul.mubr.bf16.gmra.mrb[0].mxu0 %v1305
    %v1344 = vpop.f32.mrb[0].mxu0
    %v1345 = vadd.f32 0.0, %v1344
    %v1346 = vpop.f32.mrb[0].mxu0
    %v1347 = vpop.f32.mrb[0].mxu0
    %v1348 = vpop.f32.mrb[0].mxu0
    %1349 = vdwg.mxu0
    %v1350 = vsel %vm502, %v1345, -inf
    %1351 = vmax.xlane.f32.xlu0 %v1350
    %v1352 = vpop.xlane.xlu0 %1351
    %v1353 = vsub.f32 %v1345, %v1352
    %v1354 = vmul.f32 %v1353, 1.442695
    %v1355 = vpow.pop %v1354
    %v1356 = vsel %vm502, %v1355, 0.0
    %1357 = vadd.xlane.f32.xlu0 %v1356
    %v1358 = vpop.xlane.xlu0 %1357
    %v1359 = vrcp.pop %v1358
    %v1360 = vmul.f32 %v1355, %v1359
    %v1361 = vpack.c.bf16 %v1360, %v1360
    %1362 = vrot.lane.b32.xlu0 %v500, 16
    %v1363 = vpop.permute.xlu0 %1362
    %v1366 = vsel %vm502, %v1361, 0
    %1368 = vmatprep.subr.bf16.mxu0 0
    %1369 = vmatpush1.bf16.msra.mxu0 %v1363
    %1370 = vmatprep.subr.bf16.mxu0 0
    %1371 = vmatpush1.bf16.msra.mxu0 0
    %1372 = vmatprep.subr.bf16.mxu0 0
    %1373 = vmatpush1.bf16.msra.mxu0 0
    %1374 = vmatprep.subr.bf16.mxu0 0
    %1375 = vmatpush1.bf16.msra.mxu0 0
    %1376 = vmatprep.subr.bf16.mxu0 0
    %1377 = vmatpush1.bf16.msra.mxu0 0
    %1378 = vmatprep.subr.bf16.mxu0 0
    %1379 = vmatpush1.bf16.msra.mxu0 0
    %1380 = vmatprep.subr.bf16.mxu0 0
    %1381 = vmatpush1.bf16.msra.mxu0 0
    %1382 = vmatprep.subr.bf16.mxu0 0
    %1383 = vmatpush1.bf16.msra.mxu0 0
    %1384 = vmatprep.subr.bf16.mxu0 0
    %1385 = vmatpush1.bf16.msra.mxu0 0
    %1386 = vmatprep.subr.bf16.mxu0 0
    %1387 = vmatpush1.bf16.msra.mxu0 0
    %1388 = vmatprep.subr.bf16.mxu0 0
    %1389 = vmatpush1.bf16.msra.mxu0 0
    %1390 = vmatprep.subr.bf16.mxu0 0
    %1391 = vmatpush1.bf16.msra.mxu0 0
    %1392 = vmatprep.subr.bf16.mxu0 0
    %1393 = vmatpush1.bf16.msra.mxu0 0
    %1394 = vmatprep.subr.bf16.mxu0 0
    %1395 = vmatpush1.bf16.msra.mxu0 0
    %1396 = vmatprep.subr.bf16.mxu0 0
    %1397 = vmatpush1.bf16.msra.mxu0 0
    %1398 = vmatprep.subr.bf16.mxu0 0
    %1399 = vmatpush1.bf16.msra.mxu0 0
    %1400 = vmatprep.mubr.bf16.mxu0 0
    %1401 = vmatmul.mubr.bf16.gmra.mrb[0].mxu0 %v1366
    %v1402 = vpop.f32.mrb[0].mxu0
    %v1403 = vadd.f32 0.0, %v1402
    %v1404 = vpop.f32.mrb[0].mxu0
    %v1405 = vpop.f32.mrb[0].mxu0
    %v1406 = vpop.f32.mrb[0].mxu0
    %1407 = vdwg.mxu0
    %v1408 = vpack.c.bf16 %v1403, %v1403
    %1410 = vrot.lane.b32.xlu0 %v1408, 112
    %v1411 = vpop.permute.xlu0 %1410
    %vm1413 = vcmask 1044352
    %1414 = vst.msk [vmem:[#allocation2] sm:$0xf] %vm1413, %v1411
    %v1415 = vrot.slane %v247, 4
    %v1417 = vsel %vm502, %v1415, 0
    %v1420 = vsel %vm502, %v374, 0
    %1422 = vmatprep.subr.bf16.mxu0 0
    %1423 = vmatpush1.bf16.xpose.msra.mxu0 %v1420
    %1424 = vmatprep.subr.bf16.mxu0 0
    %1425 = vmatpush1.bf16.xpose.msra.mxu0 0
    %1426 = vmatprep.subr.bf16.mxu0 0
    %1427 = vmatpush1.bf16.xpose.msra.mxu0 0
    %1428 = vmatprep.subr.bf16.mxu0 0
    %1429 = vmatpush1.bf16.xpose.msra.mxu0 0
    %1430 = vmatprep.subr.bf16.mxu0 0
    %1431 = vmatpush1.bf16.xpose.msra.mxu0 0
    %1432 = vmatprep.subr.bf16.mxu0 0
    %1433 = vmatpush1.bf16.xpose.msra.mxu0 0
    %1434 = vmatprep.subr.bf16.mxu0 0
    %1435 = vmatpush1.bf16.xpose.msra.mxu0 0
    %1436 = vmatprep.subr.bf16.mxu0 0
    %1437 = vmatpush1.bf16.xpose.msra.mxu0 0
    %1438 = vmatprep.subr.bf16.mxu0 0
    %1439 = vmatpush1.bf16.xpose.msra.mxu0 0
    %1440 = vmatprep.subr.bf16.mxu0 0
    %1441 = vmatpush1.bf16.xpose.msra.mxu0 0
    %1442 = vmatprep.subr.bf16.mxu0 0
    %1443 = vmatpush1.bf16.xpose.msra.mxu0 0
    %1444 = vmatprep.subr.bf16.mxu0 0
    %1445 = vmatpush1.bf16.xpose.msra.mxu0 0
    %1446 = vmatprep.subr.bf16.mxu0 0
    %1447 = vmatpush1.bf16.xpose.msra.mxu0 0
    %1448 = vmatprep.subr.bf16.mxu0 0
    %1449 = vmatpush1.bf16.xpose.msra.mxu0 0
    %1450 = vmatprep.subr.bf16.mxu0 0
    %1451 = vmatpush1.bf16.xpose.msra.mxu0 0
    %1452 = vmatprep.subr.bf16.mxu0 0
    %1453 = vmatpush1.bf16.xpose.msra.mxu0 0
    %1454 = vmatprep.mubr.bf16.mxu0 0
    %1455 = vmatmul.mubr.bf16.gmra.mrb[0].mxu0 %v1417
    %v1456 = vpop.f32.mrb[0].mxu0
    %v1457 = vadd.f32 0.0, %v1456
    %v1458 = vpop.f32.mrb[0].mxu0
    %v1459 = vpop.f32.mrb[0].mxu0
    %v1460 = vpop.f32.mrb[0].mxu0
    %1461 = vdwg.mxu0
    %v1462 = vsel %vm502, %v1457, -inf
    %1463 = vmax.xlane.f32.xlu0 %v1462
    %v1464 = vpop.xlane.xlu0 %1463
    %v1465 = vsub.f32 %v1457, %v1464
    %v1466 = vmul.f32 %v1465, 1.442695
    %v1467 = vpow.pop %v1466
    %v1468 = vsel %vm502, %v1467, 0.0
    %1469 = vadd.xlane.f32.xlu0 %v1468
    %v1470 = vpop.xlane.xlu0 %1469
    %v1471 = vrcp.pop %v1470
    %v1472 = vmul.f32 %v1467, %v1471
    %v1473 = vpack.c.bf16 %v1472, %v1472
    %v1475 = vsel %vm502, %v1473, 0
    %1477 = vmatprep.subr.bf16.mxu0 0
    %1478 = vmatpush1.bf16.msra.mxu0 %v501
    %1479 = vmatprep.subr.bf16.mxu0 0
    %1480 = vmatpush1.bf16.msra.mxu0 0
    %1481 = vmatprep.subr.bf16.mxu0 0
    %1482 = vmatpush1.bf16.msra.mxu0 0
    %1483 = vmatprep.subr.bf16.mxu0 0
    %1484 = vmatpush1.bf16.msra.mxu0 0
    %1485 = vmatprep.subr.bf16.mxu0 0
    %1486 = vmatpush1.bf16.msra.mxu0 0
    %1487 = vmatprep.subr.bf16.mxu0 0
    %1488 = vmatpush1.bf16.msra.mxu0 0
    %1489 = vmatprep.subr.bf16.mxu0 0
    %1490 = vmatpush1.bf16.msra.mxu0 0
    %1491 = vmatprep.subr.bf16.mxu0 0
    %1492 = vmatpush1.bf16.msra.mxu0 0
    %1493 = vmatprep.subr.bf16.mxu0 0
    %1494 = vmatpush1.bf16.msra.mxu0 0
    %1495 = vmatprep.subr.bf16.mxu0 0
    %1496 = vmatpush1.bf16.msra.mxu0 0
    %1497 = vmatprep.subr.bf16.mxu0 0
    %1498 = vmatpush1.bf16.msra.mxu0 0
    %1499 = vmatprep.subr.bf16.mxu0 0
    %1500 = vmatpush1.bf16.msra.mxu0 0
    %1501 = vmatprep.subr.bf16.mxu0 0
    %1502 = vmatpush1.bf16.msra.mxu0 0
    %1503 = vmatprep.subr.bf16.mxu0 0
    %1504 = vmatpush1.bf16.msra.mxu0 0
    %1505 = vmatprep.subr.bf16.mxu0 0
    %1506 = vmatpush1.bf16.msra.mxu0 0
    %1507 = vmatprep.subr.bf16.mxu0 0
    %1508 = vmatpush1.bf16.msra.mxu0 0
    %1509 = vmatprep.mubr.bf16.mxu0 0
    %1510 = vmatmul.mubr.bf16.gmra.mrb[0].mxu0 %v1475
    %v1511 = vpop.f32.mrb[0].mxu0
    %v1512 = vadd.f32 0.0, %v1511
    %v1513 = vpop.f32.mrb[0].mxu0
    %v1514 = vpop.f32.mrb[0].mxu0
    %v1515 = vpop.f32.mrb[0].mxu0
    %1516 = vdwg.mxu0
    %v1517 = vpack.c.bf16 %v1512, %v1512
    %v1519 = vrot.slane %v1517, 4
    %vm1521 = vcmask 130052
    %1522 = vst.msk [vmem:[#allocation2] sm:$0xf0] %vm1521, %v1519
    %1523 = vrot.lane.b32.xlu0 %v1415, 112
    %v1524 = vpop.permute.xlu0 %1523
    %1526 = vrot.lane.b32.xlu0 %v374, 112
    %v1527 = vpop.permute.xlu0 %1526
    %v1529 = vsel %vm502, %v1524, 0
    %v1532 = vsel %vm502, %v1527, 0
    %1534 = vmatprep.subr.bf16.mxu0 0
    %1535 = vmatpush1.bf16.xpose.msra.mxu0 %v1532
    %1536 = vmatprep.subr.bf16.mxu0 0
    %1537 = vmatpush1.bf16.xpose.msra.mxu0 0
    %1538 = vmatprep.subr.bf16.mxu0 0
    %1539 = vmatpush1.bf16.xpose.msra.mxu0 0
    %1540 = vmatprep.subr.bf16.mxu0 0
    %1541 = vmatpush1.bf16.xpose.msra.mxu0 0
    %1542 = vmatprep.subr.bf16.mxu0 0
    %1543 = vmatpush1.bf16.xpose.msra.mxu0 0
    %1544 = vmatprep.subr.bf16.mxu0 0
    %1545 = vmatpush1.bf16.xpose.msra.mxu0 0
    %1546 = vmatprep.subr.bf16.mxu0 0
    %1547 = vmatpush1.bf16.xpose.msra.mxu0 0
    %1548 = vmatprep.subr.bf16.mxu0 0
    %1549 = vmatpush1.bf16.xpose.msra.mxu0 0
    %1550 = vmatprep.subr.bf16.mxu0 0
    %1551 = vmatpush1.bf16.xpose.msra.mxu0 0
    %1552 = vmatprep.subr.bf16.mxu0 0
    %1553 = vmatpush1.bf16.xpose.msra.mxu0 0
    %1554 = vmatprep.subr.bf16.mxu0 0
    %1555 = vmatpush1.bf16.xpose.msra.mxu0 0
    %1556 = vmatprep.subr.bf16.mxu0 0
    %1557 = vmatpush1.bf16.xpose.msra.mxu0 0
    %1558 = vmatprep.subr.bf16.mxu0 0
    %1559 = vmatpush1.bf16.xpose.msra.mxu0 0
    %1560 = vmatprep.subr.bf16.mxu0 0
    %1561 = vmatpush1.bf16.xpose.msra.mxu0 0
    %1562 = vmatprep.subr.bf16.mxu0 0
    %1563 = vmatpush1.bf16.xpose.msra.mxu0 0
    %1564 = vmatprep.subr.bf16.mxu0 0
    %1565 = vmatpush1.bf16.xpose.msra.mxu0 0
    %1566 = vmatprep.mubr.bf16.mxu0 0
    %1567 = vmatmul.mubr.bf16.gmra.mrb[0].mxu0 %v1529
    %v1568 = vpop.f32.mrb[0].mxu0
    %v1569 = vadd.f32 0.0, %v1568
    %v1570 = vpop.f32.mrb[0].mxu0
    %v1571 = vpop.f32.mrb[0].mxu0
    %v1572 = vpop.f32.mrb[0].mxu0
    %1573 = vdwg.mxu0
    %v1574 = vsel %vm502, %v1569, -inf
    %1575 = vmax.xlane.f32.xlu0 %v1574
    %v1576 = vpop.xlane.xlu0 %1575
    %v1577 = vsub.f32 %v1569, %v1576
    %v1578 = vmul.f32 %v1577, 1.442695
    %v1579 = vpow.pop %v1578
    %v1580 = vsel %vm502, %v1579, 0.0
    %1581 = vadd.xlane.f32.xlu0 %v1580
    %v1582 = vpop.xlane.xlu0 %1581
    %v1583 = vrcp.pop %v1582
    %v1584 = vmul.f32 %v1579, %v1583
    %v1585 = vpack.c.bf16 %v1584, %v1584
    %1587 = vrot.lane.b32.xlu0 %v501, 112
    %v1588 = vpop.permute.xlu0 %1587
    %v1591 = vsel %vm502, %v1585, 0
    %1593 = vmatprep.subr.bf16.mxu0 0
    %1594 = vmatpush1.bf16.msra.mxu0 %v1588
    %1595 = vmatprep.subr.bf16.mxu0 0
    %1596 = vmatpush1.bf16.msra.mxu0 0
    %1597 = vmatprep.subr.bf16.mxu0 0
    %1598 = vmatpush1.bf16.msra.mxu0 0
    %1599 = vmatprep.subr.bf16.mxu0 0
    %1600 = vmatpush1.bf16.msra.mxu0 0
    %1601 = vmatprep.subr.bf16.mxu0 0
    %1602 = vmatpush1.bf16.msra.mxu0 0
    %1603 = vmatprep.subr.bf16.mxu0 0
    %1604 = vmatpush1.bf16.msra.mxu0 0
    %1605 = vmatprep.subr.bf16.mxu0 0
    %1606 = vmatpush1.bf16.msra.mxu0 0
    %1607 = vmatprep.subr.bf16.mxu0 0
    %1608 = vmatpush1.bf16.msra.mxu0 0
    %1609 = vmatprep.subr.bf16.mxu0 0
    %1610 = vmatpush1.bf16.msra.mxu0 0
    %1611 = vmatprep.subr.bf16.mxu0 0
    %1612 = vmatpush1.bf16.msra.mxu0 0
    %1613 = vmatprep.subr.bf16.mxu0 0
    %1614 = vmatpush1.bf16.msra.mxu0 0
    %1615 = vmatprep.subr.bf16.mxu0 0
    %1616 = vmatpush1.bf16.msra.mxu0 0
    %1617 = vmatprep.subr.bf16.mxu0 0
    %1618 = vmatpush1.bf16.msra.mxu0 0
    %1619 = vmatprep.subr.bf16.mxu0 0
    %1620 = vmatpush1.bf16.msra.mxu0 0
    %1621 = vmatprep.subr.bf16.mxu0 0
    %1622 = vmatpush1.bf16.msra.mxu0 0
    %1623 = vmatprep.subr.bf16.mxu0 0
    %1624 = vmatpush1.bf16.msra.mxu0 0
    %1625 = vmatprep.mubr.bf16.mxu0 0
    %1626 = vmatmul.mubr.bf16.gmra.mrb[0].mxu0 %v1591
    %v1627 = vpop.f32.mrb[0].mxu0
    %v1628 = vadd.f32 0.0, %v1627
    %v1629 = vpop.f32.mrb[0].mxu0
    %v1630 = vpop.f32.mrb[0].mxu0
    %v1631 = vpop.f32.mrb[0].mxu0
    %1632 = vdwg.mxu0
    %v1633 = vpack.c.bf16 %v1628, %v1628
    %v1635 = vrot.slane %v1633, 4
    %1636 = vrot.lane.b32.xlu0 %v1635, 16
    %v1637 = vpop.permute.xlu0 %1636
    %vm1639 = vcmask 261252
    %1640 = vst.msk [vmem:[#allocation2] sm:$0xf0] %vm1639, %v1637
    %1641 = vrot.lane.b32.xlu0 %v1415, 96
    %v1642 = vpop.permute.xlu0 %1641
    %1643 = vrot.lane.b32.xlu0 %v374, 96
    %v1644 = vpop.permute.xlu0 %1643
    %v1646 = vsel %vm502, %v1642, 0
    %v1649 = vsel %vm502, %v1644, 0
    %1651 = vmatprep.subr.bf16.mxu0 0
    %1652 = vmatpush1.bf16.xpose.msra.mxu0 %v1649
    %1653 = vmatprep.subr.bf16.mxu0 0
    %1654 = vmatpush1.bf16.xpose.msra.mxu0 0
    %1655 = vmatprep.subr.bf16.mxu0 0
    %1656 = vmatpush1.bf16.xpose.msra.mxu0 0
    %1657 = vmatprep.subr.bf16.mxu0 0
    %1658 = vmatpush1.bf16.xpose.msra.mxu0 0
    %1659 = vmatprep.subr.bf16.mxu0 0
    %1660 = vmatpush1.bf16.xpose.msra.mxu0 0
    %1661 = vmatprep.subr.bf16.mxu0 0
    %1662 = vmatpush1.bf16.xpose.msra.mxu0 0
    %1663 = vmatprep.subr.bf16.mxu0 0
    %1664 = vmatpush1.bf16.xpose.msra.mxu0 0
    %1665 = vmatprep.subr.bf16.mxu0 0
    %1666 = vmatpush1.bf16.xpose.msra.mxu0 0
    %1667 = vmatprep.subr.bf16.mxu0 0
    %1668 = vmatpush1.bf16.xpose.msra.mxu0 0
    %1669 = vmatprep.subr.bf16.mxu0 0
    %1670 = vmatpush1.bf16.xpose.msra.mxu0 0
    %1671 = vmatprep.subr.bf16.mxu0 0
    %1672 = vmatpush1.bf16.xpose.msra.mxu0 0
    %1673 = vmatprep.subr.bf16.mxu0 0
    %1674 = vmatpush1.bf16.xpose.msra.mxu0 0
    %1675 = vmatprep.subr.bf16.mxu0 0
    %1676 = vmatpush1.bf16.xpose.msra.mxu0 0
    %1677 = vmatprep.subr.bf16.mxu0 0
    %1678 = vmatpush1.bf16.xpose.msra.mxu0 0
    %1679 = vmatprep.subr.bf16.mxu0 0
    %1680 = vmatpush1.bf16.xpose.msra.mxu0 0
    %1681 = vmatprep.subr.bf16.mxu0 0
    %1682 = vmatpush1.bf16.xpose.msra.mxu0 0
    %1683 = vmatprep.mubr.bf16.mxu0 0
    %1684 = vmatmul.mubr.bf16.gmra.mrb[0].mxu0 %v1646
    %v1685 = vpop.f32.mrb[0].mxu0
    %v1686 = vadd.f32 0.0, %v1685
    %v1687 = vpop.f32.mrb[0].mxu0
    %v1688 = vpop.f32.mrb[0].mxu0
    %v1689 = vpop.f32.mrb[0].mxu0
    %1690 = vdwg.mxu0
    %v1691 = vsel %vm502, %v1686, -inf
    %1692 = vmax.xlane.f32.xlu0 %v1691
    %v1693 = vpop.xlane.xlu0 %1692
    %v1694 = vsub.f32 %v1686, %v1693
    %v1695 = vmul.f32 %v1694, 1.442695
    %v1696 = vpow.pop %v1695
    %v1697 = vsel %vm502, %v1696, 0.0
    %1698 = vadd.xlane.f32.xlu0 %v1697
    %v1699 = vpop.xlane.xlu0 %1698
    %v1700 = vrcp.pop %v1699
    %v1701 = vmul.f32 %v1696, %v1700
    %v1702 = vpack.c.bf16 %v1701, %v1701
    %1703 = vrot.lane.b32.xlu0 %v501, 96
    %v1704 = vpop.permute.xlu0 %1703
    %v1707 = vsel %vm502, %v1702, 0
    %1709 = vmatprep.subr.bf16.mxu0 0
    %1710 = vmatpush1.bf16.msra.mxu0 %v1704
    %1711 = vmatprep.subr.bf16.mxu0 0
    %1712 = vmatpush1.bf16.msra.mxu0 0
    %1713 = vmatprep.subr.bf16.mxu0 0
    %1714 = vmatpush1.bf16.msra.mxu0 0
    %1715 = vmatprep.subr.bf16.mxu0 0
    %1716 = vmatpush1.bf16.msra.mxu0 0
    %1717 = vmatprep.subr.bf16.mxu0 0
    %1718 = vmatpush1.bf16.msra.mxu0 0
    %1719 = vmatprep.subr.bf16.mxu0 0
    %1720 = vmatpush1.bf16.msra.mxu0 0
    %1721 = vmatprep.subr.bf16.mxu0 0
    %1722 = vmatpush1.bf16.msra.mxu0 0
    %1723 = vmatprep.subr.bf16.mxu0 0
    %1724 = vmatpush1.bf16.msra.mxu0 0
    %1725 = vmatprep.subr.bf16.mxu0 0
    %1726 = vmatpush1.bf16.msra.mxu0 0
    %1727 = vmatprep.subr.bf16.mxu0 0
    %1728 = vmatpush1.bf16.msra.mxu0 0
    %1729 = vmatprep.subr.bf16.mxu0 0
    %1730 = vmatpush1.bf16.msra.mxu0 0
    %1731 = vmatprep.subr.bf16.mxu0 0
    %1732 = vmatpush1.bf16.msra.mxu0 0
    %1733 = vmatprep.subr.bf16.mxu0 0
    %1734 = vmatpush1.bf16.msra.mxu0 0
    %1735 = vmatprep.subr.bf16.mxu0 0
    %1736 = vmatpush1.bf16.msra.mxu0 0
    %1737 = vmatprep.subr.bf16.mxu0 0
    %1738 = vmatpush1.bf16.msra.mxu0 0
    %1739 = vmatprep.subr.bf16.mxu0 0
    %1740 = vmatpush1.bf16.msra.mxu0 0
    %1741 = vmatprep.mubr.bf16.mxu0 0
    %1742 = vmatmul.mubr.bf16.gmra.mrb[0].mxu0 %v1707
    %v1743 = vpop.f32.mrb[0].mxu0
    %v1744 = vadd.f32 0.0, %v1743
    %v1745 = vpop.f32.mrb[0].mxu0
    %v1746 = vpop.f32.mrb[0].mxu0
    %v1747 = vpop.f32.mrb[0].mxu0
    %1748 = vdwg.mxu0
    %v1749 = vpack.c.bf16 %v1744, %v1744
    %v1751 = vrot.slane %v1749, 4
    %1752 = vrot.lane.b32.xlu0 %v1751, 32
    %v1753 = vpop.permute.xlu0 %1752
    %vm1755 = vcmask 392452
    %1756 = vst.msk [vmem:[#allocation2] sm:$0xf0] %vm1755, %v1753
    %1757 = vrot.lane.b32.xlu0 %v1415, 80
    %v1758 = vpop.permute.xlu0 %1757
    %1759 = vrot.lane.b32.xlu0 %v374, 80
    %v1760 = vpop.permute.xlu0 %1759
    %v1762 = vsel %vm502, %v1758, 0
    %v1765 = vsel %vm502, %v1760, 0
    %1767 = vmatprep.subr.bf16.mxu0 0
    %1768 = vmatpush1.bf16.xpose.msra.mxu0 %v1765
    %1769 = vmatprep.subr.bf16.mxu0 0
    %1770 = vmatpush1.bf16.xpose.msra.mxu0 0
    %1771 = vmatprep.subr.bf16.mxu0 0
    %1772 = vmatpush1.bf16.xpose.msra.mxu0 0
    %1773 = vmatprep.subr.bf16.mxu0 0
    %1774 = vmatpush1.bf16.xpose.msra.mxu0 0
    %1775 = vmatprep.subr.bf16.mxu0 0
    %1776 = vmatpush1.bf16.xpose.msra.mxu0 0
    %1777 = vmatprep.subr.bf16.mxu0 0
    %1778 = vmatpush1.bf16.xpose.msra.mxu0 0
    %1779 = vmatprep.subr.bf16.mxu0 0
    %1780 = vmatpush1.bf16.xpose.msra.mxu0 0
    %1781 = vmatprep.subr.bf16.mxu0 0
    %1782 = vmatpush1.bf16.xpose.msra.mxu0 0
    %1783 = vmatprep.subr.bf16.mxu0 0
    %1784 = vmatpush1.bf16.xpose.msra.mxu0 0
    %1785 = vmatprep.subr.bf16.mxu0 0
    %1786 = vmatpush1.bf16.xpose.msra.mxu0 0
    %1787 = vmatprep.subr.bf16.mxu0 0
    %1788 = vmatpush1.bf16.xpose.msra.mxu0 0
    %1789 = vmatprep.subr.bf16.mxu0 0
    %1790 = vmatpush1.bf16.xpose.msra.mxu0 0
    %1791 = vmatprep.subr.bf16.mxu0 0
    %1792 = vmatpush1.bf16.xpose.msra.mxu0 0
    %1793 = vmatprep.subr.bf16.mxu0 0
    %1794 = vmatpush1.bf16.xpose.msra.mxu0 0
    %1795 = vmatprep.subr.bf16.mxu0 0
    %1796 = vmatpush1.bf16.xpose.msra.mxu0 0
    %1797 = vmatprep.subr.bf16.mxu0 0
    %1798 = vmatpush1.bf16.xpose.msra.mxu0 0
    %1799 = vmatprep.mubr.bf16.mxu0 0
    %1800 = vmatmul.mubr.bf16.gmra.mrb[0].mxu0 %v1762
    %v1801 = vpop.f32.mrb[0].mxu0
    %v1802 = vadd.f32 0.0, %v1801
    %v1803 = vpop.f32.mrb[0].mxu0
    %v1804 = vpop.f32.mrb[0].mxu0
    %v1805 = vpop.f32.mrb[0].mxu0
    %1806 = vdwg.mxu0
    %v1807 = vsel %vm502, %v1802, -inf
    %1808 = vmax.xlane.f32.xlu0 %v1807
    %v1809 = vpop.xlane.xlu0 %1808
    %v1810 = vsub.f32 %v1802, %v1809
    %v1811 = vmul.f32 %v1810, 1.442695
    %v1812 = vpow.pop %v1811
    %v1813 = vsel %vm502, %v1812, 0.0
    %1814 = vadd.xlane.f32.xlu0 %v1813
    %v1815 = vpop.xlane.xlu0 %1814
    %v1816 = vrcp.pop %v1815
    %v1817 = vmul.f32 %v1812, %v1816
    %v1818 = vpack.c.bf16 %v1817, %v1817
    %1819 = vrot.lane.b32.xlu0 %v501, 80
    %v1820 = vpop.permute.xlu0 %1819
    %v1823 = vsel %vm502, %v1818, 0
    %1825 = vmatprep.subr.bf16.mxu0 0
    %1826 = vmatpush1.bf16.msra.mxu0 %v1820
    %1827 = vmatprep.subr.bf16.mxu0 0
    %1828 = vmatpush1.bf16.msra.mxu0 0
    %1829 = vmatprep.subr.bf16.mxu0 0
    %1830 = vmatpush1.bf16.msra.mxu0 0
    %1831 = vmatprep.subr.bf16.mxu0 0
    %1832 = vmatpush1.bf16.msra.mxu0 0
    %1833 = vmatprep.subr.bf16.mxu0 0
    %1834 = vmatpush1.bf16.msra.mxu0 0
    %1835 = vmatprep.subr.bf16.mxu0 0
    %1836 = vmatpush1.bf16.msra.mxu0 0
    %1837 = vmatprep.subr.bf16.mxu0 0
    %1838 = vmatpush1.bf16.msra.mxu0 0
    %1839 = vmatprep.subr.bf16.mxu0 0
    %1840 = vmatpush1.bf16.msra.mxu0 0
    %1841 = vmatprep.subr.bf16.mxu0 0
    %1842 = vmatpush1.bf16.msra.mxu0 0
    %1843 = vmatprep.subr.bf16.mxu0 0
    %1844 = vmatpush1.bf16.msra.mxu0 0
    %1845 = vmatprep.subr.bf16.mxu0 0
    %1846 = vmatpush1.bf16.msra.mxu0 0
    %1847 = vmatprep.subr.bf16.mxu0 0
    %1848 = vmatpush1.bf16.msra.mxu0 0
    %1849 = vmatprep.subr.bf16.mxu0 0
    %1850 = vmatpush1.bf16.msra.mxu0 0
    %1851 = vmatprep.subr.bf16.mxu0 0
    %1852 = vmatpush1.bf16.msra.mxu0 0
    %1853 = vmatprep.subr.bf16.mxu0 0
    %1854 = vmatpush1.bf16.msra.mxu0 0
    %1855 = vmatprep.subr.bf16.mxu0 0
    %1856 = vmatpush1.bf16.msra.mxu0 0
    %1857 = vmatprep.mubr.bf16.mxu0 0
    %1858 = vmatmul.mubr.bf16.gmra.mrb[0].mxu0 %v1823
    %v1859 = vpop.f32.mrb[0].mxu0
    %v1860 = vadd.f32 0.0, %v1859
    %v1861 = vpop.f32.mrb[0].mxu0
    %v1862 = vpop.f32.mrb[0].mxu0
    %v1863 = vpop.f32.mrb[0].mxu0
    %1864 = vdwg.mxu0
    %v1865 = vpack.c.bf16 %v1860, %v1860
    %v1867 = vrot.slane %v1865, 4
    %1868 = vrot.lane.b32.xlu0 %v1867, 48
    %v1869 = vpop.permute.xlu0 %1868
    %vm1871 = vcmask 523652
    %1872 = vst.msk [vmem:[#allocation2] sm:$0xf0] %vm1871, %v1869
    %1873 = vrot.lane.b32.xlu0 %v1415, 64
    %v1874 = vpop.permute.xlu0 %1873
    %1875 = vrot.lane.b32.xlu0 %v374, 64
    %v1876 = vpop.permute.xlu0 %1875
    %v1878 = vsel %vm502, %v1874, 0
    %v1881 = vsel %vm502, %v1876, 0
    %1883 = vmatprep.subr.bf16.mxu0 0
    %1884 = vmatpush1.bf16.xpose.msra.mxu0 %v1881
    %1885 = vmatprep.subr.bf16.mxu0 0
    %1886 = vmatpush1.bf16.xpose.msra.mxu0 0
    %1887 = vmatprep.subr.bf16.mxu0 0
    %1888 = vmatpush1.bf16.xpose.msra.mxu0 0
    %1889 = vmatprep.subr.bf16.mxu0 0
    %1890 = vmatpush1.bf16.xpose.msra.mxu0 0
    %1891 = vmatprep.subr.bf16.mxu0 0
    %1892 = vmatpush1.bf16.xpose.msra.mxu0 0
    %1893 = vmatprep.subr.bf16.mxu0 0
    %1894 = vmatpush1.bf16.xpose.msra.mxu0 0
    %1895 = vmatprep.subr.bf16.mxu0 0
    %1896 = vmatpush1.bf16.xpose.msra.mxu0 0
    %1897 = vmatprep.subr.bf16.mxu0 0
    %1898 = vmatpush1.bf16.xpose.msra.mxu0 0
    %1899 = vmatprep.subr.bf16.mxu0 0
    %1900 = vmatpush1.bf16.xpose.msra.mxu0 0
    %1901 = vmatprep.subr.bf16.mxu0 0
    %1902 = vmatpush1.bf16.xpose.msra.mxu0 0
    %1903 = vmatprep.subr.bf16.mxu0 0
    %1904 = vmatpush1.bf16.xpose.msra.mxu0 0
    %1905 = vmatprep.subr.bf16.mxu0 0
    %1906 = vmatpush1.bf16.xpose.msra.mxu0 0
    %1907 = vmatprep.subr.bf16.mxu0 0
    %1908 = vmatpush1.bf16.xpose.msra.mxu0 0
    %1909 = vmatprep.subr.bf16.mxu0 0
    %1910 = vmatpush1.bf16.xpose.msra.mxu0 0
    %1911 = vmatprep.subr.bf16.mxu0 0
    %1912 = vmatpush1.bf16.xpose.msra.mxu0 0
    %1913 = vmatprep.subr.bf16.mxu0 0
    %1914 = vmatpush1.bf16.xpose.msra.mxu0 0
    %1915 = vmatprep.mubr.bf16.mxu0 0
    %1916 = vmatmul.mubr.bf16.gmra.mrb[0].mxu0 %v1878
    %v1917 = vpop.f32.mrb[0].mxu0
    %v1918 = vadd.f32 0.0, %v1917
    %v1919 = vpop.f32.mrb[0].mxu0
    %v1920 = vpop.f32.mrb[0].mxu0
    %v1921 = vpop.f32.mrb[0].mxu0
    %1922 = vdwg.mxu0
    %v1923 = vsel %vm502, %v1918, -inf
    %1924 = vmax.xlane.f32.xlu0 %v1923
    %v1925 = vpop.xlane.xlu0 %1924
    %v1926 = vsub.f32 %v1918, %v1925
    %v1927 = vmul.f32 %v1926, 1.442695
    %v1928 = vpow.pop %v1927
    %v1929 = vsel %vm502, %v1928, 0.0
    %1930 = vadd.xlane.f32.xlu0 %v1929
    %v1931 = vpop.xlane.xlu0 %1930
    %v1932 = vrcp.pop %v1931
    %v1933 = vmul.f32 %v1928, %v1932
    %v1934 = vpack.c.bf16 %v1933, %v1933
    %1935 = vrot.lane.b32.xlu0 %v501, 64
    %v1936 = vpop.permute.xlu0 %1935
    %v1939 = vsel %vm502, %v1934, 0
    %1941 = vmatprep.subr.bf16.mxu0 0
    %1942 = vmatpush1.bf16.msra.mxu0 %v1936
    %1943 = vmatprep.subr.bf16.mxu0 0
    %1944 = vmatpush1.bf16.msra.mxu0 0
    %1945 = vmatprep.subr.bf16.mxu0 0
    %1946 = vmatpush1.bf16.msra.mxu0 0
    %1947 = vmatprep.subr.bf16.mxu0 0
    %1948 = vmatpush1.bf16.msra.mxu0 0
    %1949 = vmatprep.subr.bf16.mxu0 0
    %1950 = vmatpush1.bf16.msra.mxu0 0
    %1951 = vmatprep.subr.bf16.mxu0 0
    %1952 = vmatpush1.bf16.msra.mxu0 0
    %1953 = vmatprep.subr.bf16.mxu0 0
    %1954 = vmatpush1.bf16.msra.mxu0 0
    %1955 = vmatprep.subr.bf16.mxu0 0
    %1956 = vmatpush1.bf16.msra.mxu0 0
    %1957 = vmatprep.subr.bf16.mxu0 0
    %1958 = vmatpush1.bf16.msra.mxu0 0
    %1959 = vmatprep.subr.bf16.mxu0 0
    %1960 = vmatpush1.bf16.msra.mxu0 0
    %1961 = vmatprep.subr.bf16.mxu0 0
    %1962 = vmatpush1.bf16.msra.mxu0 0
    %1963 = vmatprep.subr.bf16.mxu0 0
    %1964 = vmatpush1.bf16.msra.mxu0 0
    %1965 = vmatprep.subr.bf16.mxu0 0
    %1966 = vmatpush1.bf16.msra.mxu0 0
    %1967 = vmatprep.subr.bf16.mxu0 0
    %1968 = vmatpush1.bf16.msra.mxu0 0
    %1969 = vmatprep.subr.bf16.mxu0 0
    %1970 = vmatpush1.bf16.msra.mxu0 0
    %1971 = vmatprep.subr.bf16.mxu0 0
    %1972 = vmatpush1.bf16.msra.mxu0 0
    %1973 = vmatprep.mubr.bf16.mxu0 0
    %1974 = vmatmul.mubr.bf16.gmra.mrb[0].mxu0 %v1939
    %v1975 = vpop.f32.mrb[0].mxu0
    %v1976 = vadd.f32 0.0, %v1975
    %v1977 = vpop.f32.mrb[0].mxu0
    %v1978 = vpop.f32.mrb[0].mxu0
    %v1979 = vpop.f32.mrb[0].mxu0
    %1980 = vdwg.mxu0
    %v1981 = vpack.c.bf16 %v1976, %v1976
    %v1983 = vrot.slane %v1981, 4
    %1984 = vrot.lane.b32.xlu0 %v1983, 64
    %v1985 = vpop.permute.xlu0 %1984
    %vm1987 = vcmask 654852
    %1988 = vst.msk [vmem:[#allocation2] sm:$0xf0] %vm1987, %v1985
    %1989 = vrot.lane.b32.xlu0 %v1415, 48
    %v1990 = vpop.permute.xlu0 %1989
    %1991 = vrot.lane.b32.xlu0 %v374, 48
    %v1992 = vpop.permute.xlu0 %1991
    %v1994 = vsel %vm502, %v1990, 0
    %v1997 = vsel %vm502, %v1992, 0
    %1999 = vmatprep.subr.bf16.mxu0 0
    %2000 = vmatpush1.bf16.xpose.msra.mxu0 %v1997
    %2001 = vmatprep.subr.bf16.mxu0 0
    %2002 = vmatpush1.bf16.xpose.msra.mxu0 0
    %2003 = vmatprep.subr.bf16.mxu0 0
    %2004 = vmatpush1.bf16.xpose.msra.mxu0 0
    %2005 = vmatprep.subr.bf16.mxu0 0
    %2006 = vmatpush1.bf16.xpose.msra.mxu0 0
    %2007 = vmatprep.subr.bf16.mxu0 0
    %2008 = vmatpush1.bf16.xpose.msra.mxu0 0
    %2009 = vmatprep.subr.bf16.mxu0 0
    %2010 = vmatpush1.bf16.xpose.msra.mxu0 0
    %2011 = vmatprep.subr.bf16.mxu0 0
    %2012 = vmatpush1.bf16.xpose.msra.mxu0 0
    %2013 = vmatprep.subr.bf16.mxu0 0
    %2014 = vmatpush1.bf16.xpose.msra.mxu0 0
    %2015 = vmatprep.subr.bf16.mxu0 0
    %2016 = vmatpush1.bf16.xpose.msra.mxu0 0
    %2017 = vmatprep.subr.bf16.mxu0 0
    %2018 = vmatpush1.bf16.xpose.msra.mxu0 0
    %2019 = vmatprep.subr.bf16.mxu0 0
    %2020 = vmatpush1.bf16.xpose.msra.mxu0 0
    %2021 = vmatprep.subr.bf16.mxu0 0
    %2022 = vmatpush1.bf16.xpose.msra.mxu0 0
    %2023 = vmatprep.subr.bf16.mxu0 0
    %2024 = vmatpush1.bf16.xpose.msra.mxu0 0
    %2025 = vmatprep.subr.bf16.mxu0 0
    %2026 = vmatpush1.bf16.xpose.msra.mxu0 0
    %2027 = vmatprep.subr.bf16.mxu0 0
    %2028 = vmatpush1.bf16.xpose.msra.mxu0 0
    %2029 = vmatprep.subr.bf16.mxu0 0
    %2030 = vmatpush1.bf16.xpose.msra.mxu0 0
    %2031 = vmatprep.mubr.bf16.mxu0 0
    %2032 = vmatmul.mubr.bf16.gmra.mrb[0].mxu0 %v1994
    %v2033 = vpop.f32.mrb[0].mxu0
    %v2034 = vadd.f32 0.0, %v2033
    %v2035 = vpop.f32.mrb[0].mxu0
    %v2036 = vpop.f32.mrb[0].mxu0
    %v2037 = vpop.f32.mrb[0].mxu0
    %2038 = vdwg.mxu0
    %v2039 = vsel %vm502, %v2034, -inf
    %2040 = vmax.xlane.f32.xlu0 %v2039
    %v2041 = vpop.xlane.xlu0 %2040
    %v2042 = vsub.f32 %v2034, %v2041
    %v2043 = vmul.f32 %v2042, 1.442695
    %v2044 = vpow.pop %v2043
    %v2045 = vsel %vm502, %v2044, 0.0
    %2046 = vadd.xlane.f32.xlu0 %v2045
    %v2047 = vpop.xlane.xlu0 %2046
    %v2048 = vrcp.pop %v2047
    %v2049 = vmul.f32 %v2044, %v2048
    %v2050 = vpack.c.bf16 %v2049, %v2049
    %2051 = vrot.lane.b32.xlu0 %v501, 48
    %v2052 = vpop.permute.xlu0 %2051
    %v2055 = vsel %vm502, %v2050, 0
    %2057 = vmatprep.subr.bf16.mxu0 0
    %2058 = vmatpush1.bf16.msra.mxu0 %v2052
    %2059 = vmatprep.subr.bf16.mxu0 0
    %2060 = vmatpush1.bf16.msra.mxu0 0
    %2061 = vmatprep.subr.bf16.mxu0 0
    %2062 = vmatpush1.bf16.msra.mxu0 0
    %2063 = vmatprep.subr.bf16.mxu0 0
    %2064 = vmatpush1.bf16.msra.mxu0 0
    %2065 = vmatprep.subr.bf16.mxu0 0
    %2066 = vmatpush1.bf16.msra.mxu0 0
    %2067 = vmatprep.subr.bf16.mxu0 0
    %2068 = vmatpush1.bf16.msra.mxu0 0
    %2069 = vmatprep.subr.bf16.mxu0 0
    %2070 = vmatpush1.bf16.msra.mxu0 0
    %2071 = vmatprep.subr.bf16.mxu0 0
    %2072 = vmatpush1.bf16.msra.mxu0 0
    %2073 = vmatprep.subr.bf16.mxu0 0
    %2074 = vmatpush1.bf16.msra.mxu0 0
    %2075 = vmatprep.subr.bf16.mxu0 0
    %2076 = vmatpush1.bf16.msra.mxu0 0
    %2077 = vmatprep.subr.bf16.mxu0 0
    %2078 = vmatpush1.bf16.msra.mxu0 0
    %2079 = vmatprep.subr.bf16.mxu0 0
    %2080 = vmatpush1.bf16.msra.mxu0 0
    %2081 = vmatprep.subr.bf16.mxu0 0
    %2082 = vmatpush1.bf16.msra.mxu0 0
    %2083 = vmatprep.subr.bf16.mxu0 0
    %2084 = vmatpush1.bf16.msra.mxu0 0
    %2085 = vmatprep.subr.bf16.mxu0 0
    %2086 = vmatpush1.bf16.msra.mxu0 0
    %2087 = vmatprep.subr.bf16.mxu0 0
    %2088 = vmatpush1.bf16.msra.mxu0 0
    %2089 = vmatprep.mubr.bf16.mxu0 0
    %2090 = vmatmul.mubr.bf16.gmra.mrb[0].mxu0 %v2055
    %v2091 = vpop.f32.mrb[0].mxu0
    %v2092 = vadd.f32 0.0, %v2091
    %v2093 = vpop.f32.mrb[0].mxu0
    %v2094 = vpop.f32.mrb[0].mxu0
    %v2095 = vpop.f32.mrb[0].mxu0
    %2096 = vdwg.mxu0
    %v2097 = vpack.c.bf16 %v2092, %v2092
    %v2099 = vrot.slane %v2097, 4
    %2100 = vrot.lane.b32.xlu0 %v2099, 80
    %v2101 = vpop.permute.xlu0 %2100
    %vm2103 = vcmask 786052
    %2104 = vst.msk [vmem:[#allocation2] sm:$0xf0] %vm2103, %v2101
    %2105 = vrot.lane.b32.xlu0 %v1415, 32
    %v2106 = vpop.permute.xlu0 %2105
    %2107 = vrot.lane.b32.xlu0 %v374, 32
    %v2108 = vpop.permute.xlu0 %2107
    %v2110 = vsel %vm502, %v2106, 0
    %v2113 = vsel %vm502, %v2108, 0
    %2115 = vmatprep.subr.bf16.mxu0 0
    %2116 = vmatpush1.bf16.xpose.msra.mxu0 %v2113
    %2117 = vmatprep.subr.bf16.mxu0 0
    %2118 = vmatpush1.bf16.xpose.msra.mxu0 0
    %2119 = vmatprep.subr.bf16.mxu0 0
    %2120 = vmatpush1.bf16.xpose.msra.mxu0 0
    %2121 = vmatprep.subr.bf16.mxu0 0
    %2122 = vmatpush1.bf16.xpose.msra.mxu0 0
    %2123 = vmatprep.subr.bf16.mxu0 0
    %2124 = vmatpush1.bf16.xpose.msra.mxu0 0
    %2125 = vmatprep.subr.bf16.mxu0 0
    %2126 = vmatpush1.bf16.xpose.msra.mxu0 0
    %2127 = vmatprep.subr.bf16.mxu0 0
    %2128 = vmatpush1.bf16.xpose.msra.mxu0 0
    %2129 = vmatprep.subr.bf16.mxu0 0
    %2130 = vmatpush1.bf16.xpose.msra.mxu0 0
    %2131 = vmatprep.subr.bf16.mxu0 0
    %2132 = vmatpush1.bf16.xpose.msra.mxu0 0
    %2133 = vmatprep.subr.bf16.mxu0 0
    %2134 = vmatpush1.bf16.xpose.msra.mxu0 0
    %2135 = vmatprep.subr.bf16.mxu0 0
    %2136 = vmatpush1.bf16.xpose.msra.mxu0 0
    %2137 = vmatprep.subr.bf16.mxu0 0
    %2138 = vmatpush1.bf16.xpose.msra.mxu0 0
    %2139 = vmatprep.subr.bf16.mxu0 0
    %2140 = vmatpush1.bf16.xpose.msra.mxu0 0
    %2141 = vmatprep.subr.bf16.mxu0 0
    %2142 = vmatpush1.bf16.xpose.msra.mxu0 0
    %2143 = vmatprep.subr.bf16.mxu0 0
    %2144 = vmatpush1.bf16.xpose.msra.mxu0 0
    %2145 = vmatprep.subr.bf16.mxu0 0
    %2146 = vmatpush1.bf16.xpose.msra.mxu0 0
    %2147 = vmatprep.mubr.bf16.mxu0 0
    %2148 = vmatmul.mubr.bf16.gmra.mrb[0].mxu0 %v2110
    %v2149 = vpop.f32.mrb[0].mxu0
    %v2150 = vadd.f32 0.0, %v2149
    %v2151 = vpop.f32.mrb[0].mxu0
    %v2152 = vpop.f32.mrb[0].mxu0
    %v2153 = vpop.f32.mrb[0].mxu0
    %2154 = vdwg.mxu0
    %v2155 = vsel %vm502, %v2150, -inf
    %2156 = vmax.xlane.f32.xlu0 %v2155
    %v2157 = vpop.xlane.xlu0 %2156
    %v2158 = vsub.f32 %v2150, %v2157
    %v2159 = vmul.f32 %v2158, 1.442695
    %v2160 = vpow.pop %v2159
    %v2161 = vsel %vm502, %v2160, 0.0
    %2162 = vadd.xlane.f32.xlu0 %v2161
    %v2163 = vpop.xlane.xlu0 %2162
    %v2164 = vrcp.pop %v2163
    %v2165 = vmul.f32 %v2160, %v2164
    %v2166 = vpack.c.bf16 %v2165, %v2165
    %2167 = vrot.lane.b32.xlu0 %v501, 32
    %v2168 = vpop.permute.xlu0 %2167
    %v2171 = vsel %vm502, %v2166, 0
    %2173 = vmatprep.subr.bf16.mxu0 0
    %2174 = vmatpush1.bf16.msra.mxu0 %v2168
    %2175 = vmatprep.subr.bf16.mxu0 0
    %2176 = vmatpush1.bf16.msra.mxu0 0
    %2177 = vmatprep.subr.bf16.mxu0 0
    %2178 = vmatpush1.bf16.msra.mxu0 0
    %2179 = vmatprep.subr.bf16.mxu0 0
    %2180 = vmatpush1.bf16.msra.mxu0 0
    %2181 = vmatprep.subr.bf16.mxu0 0
    %2182 = vmatpush1.bf16.msra.mxu0 0
    %2183 = vmatprep.subr.bf16.mxu0 0
    %2184 = vmatpush1.bf16.msra.mxu0 0
    %2185 = vmatprep.subr.bf16.mxu0 0
    %2186 = vmatpush1.bf16.msra.mxu0 0
    %2187 = vmatprep.subr.bf16.mxu0 0
    %2188 = vmatpush1.bf16.msra.mxu0 0
    %2189 = vmatprep.subr.bf16.mxu0 0
    %2190 = vmatpush1.bf16.msra.mxu0 0
    %2191 = vmatprep.subr.bf16.mxu0 0
    %2192 = vmatpush1.bf16.msra.mxu0 0
    %2193 = vmatprep.subr.bf16.mxu0 0
    %2194 = vmatpush1.bf16.msra.mxu0 0
    %2195 = vmatprep.subr.bf16.mxu0 0
    %2196 = vmatpush1.bf16.msra.mxu0 0
    %2197 = vmatprep.subr.bf16.mxu0 0
    %2198 = vmatpush1.bf16.msra.mxu0 0
    %2199 = vmatprep.subr.bf16.mxu0 0
    %2200 = vmatpush1.bf16.msra.mxu0 0
    %2201 = vmatprep.subr.bf16.mxu0 0
    %2202 = vmatpush1.bf16.msra.mxu0 0
    %2203 = vmatprep.subr.bf16.mxu0 0
    %2204 = vmatpush1.bf16.msra.mxu0 0
    %2205 = vmatprep.mubr.bf16.mxu0 0
    %2206 = vmatmul.mubr.bf16.gmra.mrb[0].mxu0 %v2171
    %v2207 = vpop.f32.mrb[0].mxu0
    %v2208 = vadd.f32 0.0, %v2207
    %v2209 = vpop.f32.mrb[0].mxu0
    %v2210 = vpop.f32.mrb[0].mxu0
    %v2211 = vpop.f32.mrb[0].mxu0
    %2212 = vdwg.mxu0
    %v2213 = vpack.c.bf16 %v2208, %v2208
    %v2215 = vrot.slane %v2213, 4
    %2216 = vrot.lane.b32.xlu0 %v2215, 96
    %v2217 = vpop.permute.xlu0 %2216
    %vm2219 = vcmask 917252
    %2220 = vst.msk [vmem:[#allocation2] sm:$0xf0] %vm2219, %v2217
    %2221 = vrot.lane.b32.xlu0 %v1415, 16
    %v2222 = vpop.permute.xlu0 %2221
    %2223 = vrot.lane.b32.xlu0 %v374, 16
    %v2224 = vpop.permute.xlu0 %2223
    %v2226 = vsel %vm502, %v2222, 0
    %v2229 = vsel %vm502, %v2224, 0
    %2231 = vmatprep.subr.bf16.mxu0 0
    %2232 = vmatpush1.bf16.xpose.msra.mxu0 %v2229
    %2233 = vmatprep.subr.bf16.mxu0 0
    %2234 = vmatpush1.bf16.xpose.msra.mxu0 0
    %2235 = vmatprep.subr.bf16.mxu0 0
    %2236 = vmatpush1.bf16.xpose.msra.mxu0 0
    %2237 = vmatprep.subr.bf16.mxu0 0
    %2238 = vmatpush1.bf16.xpose.msra.mxu0 0
    %2239 = vmatprep.subr.bf16.mxu0 0
    %2240 = vmatpush1.bf16.xpose.msra.mxu0 0
    %2241 = vmatprep.subr.bf16.mxu0 0
    %2242 = vmatpush1.bf16.xpose.msra.mxu0 0
    %2243 = vmatprep.subr.bf16.mxu0 0
    %2244 = vmatpush1.bf16.xpose.msra.mxu0 0
    %2245 = vmatprep.subr.bf16.mxu0 0
    %2246 = vmatpush1.bf16.xpose.msra.mxu0 0
    %2247 = vmatprep.subr.bf16.mxu0 0
    %2248 = vmatpush1.bf16.xpose.msra.mxu0 0
    %2249 = vmatprep.subr.bf16.mxu0 0
    %2250 = vmatpush1.bf16.xpose.msra.mxu0 0
    %2251 = vmatprep.subr.bf16.mxu0 0
    %2252 = vmatpush1.bf16.xpose.msra.mxu0 0
    %2253 = vmatprep.subr.bf16.mxu0 0
    %2254 = vmatpush1.bf16.xpose.msra.mxu0 0
    %2255 = vmatprep.subr.bf16.mxu0 0
    %2256 = vmatpush1.bf16.xpose.msra.mxu0 0
    %2257 = vmatprep.subr.bf16.mxu0 0
    %2258 = vmatpush1.bf16.xpose.msra.mxu0 0
    %2259 = vmatprep.subr.bf16.mxu0 0
    %2260 = vmatpush1.bf16.xpose.msra.mxu0 0
    %2261 = vmatprep.subr.bf16.mxu0 0
    %2262 = vmatpush1.bf16.xpose.msra.mxu0 0
    %2263 = vmatprep.mubr.bf16.mxu0 0
    %2264 = vmatmul.mubr.bf16.gmra.mrb[0].mxu0 %v2226
    %v2265 = vpop.f32.mrb[0].mxu0
    %v2266 = vadd.f32 0.0, %v2265
    %v2267 = vpop.f32.mrb[0].mxu0
    %v2268 = vpop.f32.mrb[0].mxu0
    %v2269 = vpop.f32.mrb[0].mxu0
    %2270 = vdwg.mxu0
    %v2271 = vsel %vm502, %v2266, -inf
    %2272 = vmax.xlane.f32.xlu0 %v2271
    %v2273 = vpop.xlane.xlu0 %2272
    %v2274 = vsub.f32 %v2266, %v2273
    %v2275 = vmul.f32 %v2274, 1.442695
    %v2276 = vpow.pop %v2275
    %v2277 = vsel %vm502, %v2276, 0.0
    %2278 = vadd.xlane.f32.xlu0 %v2277
    %v2279 = vpop.xlane.xlu0 %2278
    %v2280 = vrcp.pop %v2279
    %v2281 = vmul.f32 %v2276, %v2280
    %v2282 = vpack.c.bf16 %v2281, %v2281
    %2283 = vrot.lane.b32.xlu0 %v501, 16
    %v2284 = vpop.permute.xlu0 %2283
    %v2287 = vsel %vm502, %v2282, 0
    %2289 = vmatprep.subr.bf16.mxu0 0
    %2290 = vmatpush1.bf16.msra.mxu0 %v2284
    %2291 = vmatprep.subr.bf16.mxu0 0
    %2292 = vmatpush1.bf16.msra.mxu0 0
    %2293 = vmatprep.subr.bf16.mxu0 0
    %2294 = vmatpush1.bf16.msra.mxu0 0
    %2295 = vmatprep.subr.bf16.mxu0 0
    %2296 = vmatpush1.bf16.msra.mxu0 0
    %2297 = vmatprep.subr.bf16.mxu0 0
    %2298 = vmatpush1.bf16.msra.mxu0 0
    %2299 = vmatprep.subr.bf16.mxu0 0
    %2300 = vmatpush1.bf16.msra.mxu0 0
    %2301 = vmatprep.subr.bf16.mxu0 0
    %2302 = vmatpush1.bf16.msra.mxu0 0
    %2303 = vmatprep.subr.bf16.mxu0 0
    %2304 = vmatpush1.bf16.msra.mxu0 0
    %2305 = vmatprep.subr.bf16.mxu0 0
    %2306 = vmatpush1.bf16.msra.mxu0 0
    %2307 = vmatprep.subr.bf16.mxu0 0
    %2308 = vmatpush1.bf16.msra.mxu0 0
    %2309 = vmatprep.subr.bf16.mxu0 0
    %2310 = vmatpush1.bf16.msra.mxu0 0
    %2311 = vmatprep.subr.bf16.mxu0 0
    %2312 = vmatpush1.bf16.msra.mxu0 0
    %2313 = vmatprep.subr.bf16.mxu0 0
    %2314 = vmatpush1.bf16.msra.mxu0 0
    %2315 = vmatprep.subr.bf16.mxu0 0
    %2316 = vmatpush1.bf16.msra.mxu0 0
    %2317 = vmatprep.subr.bf16.mxu0 0
    %2318 = vmatpush1.bf16.msra.mxu0 0
    %2319 = vmatprep.subr.bf16.mxu0 0
    %2320 = vmatpush1.bf16.msra.mxu0 0
    %2321 = vmatprep.mubr.bf16.mxu0 0
    %2322 = vmatmul.mubr.bf16.gmra.mrb[0].mxu0 %v2287
    %v2323 = vpop.f32.mrb[0].mxu0
    %v2324 = vadd.f32 0.0, %v2323
    %v2325 = vpop.f32.mrb[0].mxu0
    %v2326 = vpop.f32.mrb[0].mxu0
    %v2327 = vpop.f32.mrb[0].mxu0
    %2328 = vdwg.mxu0
    %v2329 = vpack.c.bf16 %v2324, %v2324
    %v2331 = vrot.slane %v2329, 4
    %2332 = vrot.lane.b32.xlu0 %v2331, 112
    %v2333 = vpop.permute.xlu0 %2332
    %vm2335 = vcmask 1048452
    %2336 = vst.msk [vmem:[#allocation2] sm:$0xf0] %vm2335, %v2333
    %v2337 = vld [vmem:[#allocation2] sm:$0xff]
    %v2338 = vld [vmem:[#allocation14] sm:$0xf]
    %v2339 = vld [vmem:[#allocation14 + $0x4] sm:$0xf]
    %v2340 = vld [vmem:[#allocation14 + $0x8] sm:$0xf]
    %v2341 = vld [vmem:[#allocation14 + $0xc] sm:$0xf]
    %v2342 = vld [vmem:[#allocation14 + $0x10] sm:$0xf]
    %v2343 = vld [vmem:[#allocation14 + $0x14] sm:$0xf]
    %v2344 = vld [vmem:[#allocation14 + $0x18] sm:$0xf]
    %v2345 = vld [vmem:[#allocation14 + $0x1c] sm:$0xf]
    %v2346 = vld [vmem:[#allocation14 + $0x20] sm:$0xf]
    %v2347 = vld [vmem:[#allocation14 + $0x24] sm:$0xf]
    %v2348 = vld [vmem:[#allocation14 + $0x28] sm:$0xf]
    %v2349 = vld [vmem:[#allocation14 + $0x2c] sm:$0xf]
    %v2350 = vld [vmem:[#allocation14 + $0x30] sm:$0xf]
    %v2351 = vld [vmem:[#allocation14 + $0x34] sm:$0xf]
    %v2352 = vld [vmem:[#allocation14 + $0x38] sm:$0xf]
    %v2353 = vld [vmem:[#allocation14 + $0x3c] sm:$0xf]
    %v2354 = vld [vmem:[%s7] sm:$0x1]
    %v2356 = vlaneseq
    %v2357 = vshrl.u32 %v2356, 7
    %v2358 = vsub.s32 0, %v2357
    %v2359 = vrot.slane %v2354, %v2358
    %v2377 = vunpack.c.l.b16 %v2338
    %v2378 = vunpack.c.l.b16 %v2339
    %v2379 = vunpack.c.l.b16 %v2340
    %v2380 = vunpack.c.l.b16 %v2341
    %v2381 = vunpack.c.l.b16 %v2342
    %v2382 = vunpack.c.l.b16 %v2343
    %v2383 = vunpack.c.l.b16 %v2344
    %v2384 = vunpack.c.l.b16 %v2345
    %v2385 = vunpack.c.l.b16 %v2346
    %v2386 = vunpack.c.l.b16 %v2347
    %v2387 = vunpack.c.l.b16 %v2348
    %v2388 = vunpack.c.l.b16 %v2349
    %v2389 = vunpack.c.l.b16 %v2350
    %v2390 = vunpack.c.l.b16 %v2351
    %v2391 = vunpack.c.l.b16 %v2352
    %v2392 = vunpack.c.l.b16 %v2353
    %v2393 = vpack.c.b16 %v2378, %v2377
    %v2394 = vpack.c.b16 %v2380, %v2379
    %v2395 = vpack.c.b16 %v2382, %v2381
    %v2396 = vpack.c.b16 %v2384, %v2383
    %v2397 = vpack.c.b16 %v2386, %v2385
    %v2398 = vpack.c.b16 %v2388, %v2387
    %v2399 = vpack.c.b16 %v2390, %v2389
    %v2400 = vpack.c.b16 %v2392, %v2391
    %2409 = vmatprep.subr.bf16.mxu0 0
    %2410 = vmatpush1.bf16.msra.mxu0 %v2393
    %2411 = vmatprep.subr.bf16.mxu0 0
    %2412 = vmatpush1.bf16.msra.mxu0 %v2394
    %2413 = vmatprep.subr.bf16.mxu0 0
    %2414 = vmatpush1.bf16.msra.mxu0 %v2395
    %2415 = vmatprep.subr.bf16.mxu0 0
    %2416 = vmatpush1.bf16.msra.mxu0 %v2396
    %2417 = vmatprep.subr.bf16.mxu0 0
    %2418 = vmatpush1.bf16.msra.mxu0 %v2397
    %2419 = vmatprep.subr.bf16.mxu0 0
    %2420 = vmatpush1.bf16.msra.mxu0 %v2398
    %2421 = vmatprep.subr.bf16.mxu0 0
    %2422 = vmatpush1.bf16.msra.mxu0 %v2399
    %2423 = vmatprep.subr.bf16.mxu0 0
    %2424 = vmatpush1.bf16.msra.mxu0 %v2400
    %2425 = vmatprep.subr.bf16.mxu0 0
    %2426 = vmatpush1.bf16.msra.mxu0 0
    %2427 = vmatprep.subr.bf16.mxu0 0
    %2428 = vmatpush1.bf16.msra.mxu0 0
    %2429 = vmatprep.subr.bf16.mxu0 0
    %2430 = vmatpush1.bf16.msra.mxu0 0
    %2431 = vmatprep.subr.bf16.mxu0 0
    %2432 = vmatpush1.bf16.msra.mxu0 0
    %2433 = vmatprep.subr.bf16.mxu0 0
    %2434 = vmatpush1.bf16.msra.mxu0 0
    %2435 = vmatprep.subr.bf16.mxu0 0
    %2436 = vmatpush1.bf16.msra.mxu0 0
    %2437 = vmatprep.subr.bf16.mxu0 0
    %2438 = vmatpush1.bf16.msra.mxu0 0
    %2439 = vmatprep.subr.bf16.mxu0 0
    %2440 = vmatpush1.bf16.msra.mxu0 0
    %2441 = vmatprep.mubr.bf16.mxu0 0
    %2442 = vmatmul.mubr.bf16.gmra.mrb[0].mxu0 %v2337
    %v2443 = vpop.f32.mrb[0].mxu0
    %v2444 = vadd.f32 %v2359, %v2443
    %v2445 = vpop.f32.mrb[0].mxu0
    %v2446 = vpop.f32.mrb[0].mxu0
    %v2447 = vadd.f32 %v2359, %v2446
    %v2448 = vpop.f32.mrb[0].mxu0
    %2449 = vdwg.mxu0
    %2450 = vst [vmem:[#allocation15] sm:$0xff] %v2444
    %2451 = vst [vmem:[#allocation15 + $0x8] sm:$0xff] %v2447
    // Predicated region
    $region62: #{tpu_custom_call.1} parent=1 // pred_check
      _
    $region63: #{tpu_custom_call.1} parent=1 // pred_check_branch
      %2453 = sbr.rel (0) target = $region65
    $region64: #{tpu_custom_call.1} parent=1 // pred_region
      %s2455 = ssub.s32 256, 256
      %2456 = vsyncadd [#allocation5], %s2455
      %s2457 = sshll.u32 [#allocation15], 4
      %s2458 = int_to_ptr.vmem [resolvable:$true] %s2457
      %2463 = dma.vmem_to_hbm [thread:$0]  %s2458, 256, %s8, [#allocation5], 128, 128, 8
    $region65: #{tpu_custom_call.1} parent=1 // pred_fallthru
      _
    // Predicated region
    $region66: #{tpu_custom_call.1} parent=1 // pred_check
      _
    $region67: #{tpu_custom_call.1} parent=1 // pred_check_branch
      %2465 = sbr.rel (0) target = $region69
    $region68: #{tpu_custom_call.1} parent=1 // pred_region
      %2466 = dma.done [#allocation5], 256
    $region69: #{tpu_custom_call.1} parent=1 // pred_fallthru
      _
    %2467 = vsyncpa [#allocation4], 1
    %2468 = vsyncpa [#allocation7], 1
    %2469 = vsyncpa [#allocation10], 1
    %2470 = vsyncpa [#allocation13], 1
    %2471 = vsyncpa [#allocation5], 1

</llo_original>
